<compile_context>
chip_gen: v6e
topology: v6e:2x2x1
jax: 0.10.0
libtpu: 0.0.40
codegen_flags: <defaults>
</compile_context>

<pallas_src>
import jax
import jax.numpy as jnp
from jax import lax
from jax.experimental import pallas as pl
from jax.experimental.pallas import tpu as pltpu

PAD = 8  # halo rows / cols per side (>= max conv half-width 7, sublane aligned)


# -----------------------------------------------------------------------------
# Static cyclic shifts (read semantics: b[i] = a[(i + s) mod n]).
# Two static slices + concatenate == jnp.roll(a, -s, axis); Mosaic lowers these
# to lane / sublane rotates, so they overlap the VPU multiply-accumulate work.
# -----------------------------------------------------------------------------
def _shift_rows(a, s):
    n = a.shape[0]
    s = s % n
    if s == 0:
        return a
    return jnp.concatenate([a[s:, :], a[:s, :]], axis=0)


def _shift_lanes(a, s):
    n = a.shape[1]
    s = s % n
    if s == 0:
        return a
    return jnp.concatenate([a[:, s:], a[:, :s]], axis=1)


# -----------------------------------------------------------------------------
# Host-side weight preparation: lane-complete per-tap patterns.
# -----------------------------------------------------------------------------
def _build_patterns(params, C, Wp):
    """Pre-tile every depthwise / 1x1 weight into lane-complete rows.

    Returns (wpat, bpat, offs):
      wpat : (T_pad, Wp*C) f32 -- one lane pattern per conv tap (rows padded to 8)
      bpat : (8, Wp*C)     f32 -- lane-tiled biases (conv order)
      offs : name -> row offset into wpat
    """
    def tile_rows(w2d):  # (T, C) -> (T, Wp*C), channel-fastest tiling
        return jnp.tile(jnp.asarray(w2d, jnp.float32), (1, Wp))

    pats, offs, off = [], {}, 0

    def register(name, w2d):
        nonlocal off
        p = tile_rows(w2d)
        pats.append(p)
        offs[name] = off
        off += p.shape[0]

    # conv0: 5x5 depthwise, row index = dy*5 + dx
    register("c0", jnp.asarray(params["w0"], jnp.float32).reshape(25, C))
    # strip branches: horizontal (1,k) then vertical (k,1); row index = tap
    register("c01", params["w0_1"])
    register("c11", params["w1_1"])
    register("c21", params["w2_1"])
    register("c02", params["w0_2"])
    register("c12", params["w1_2"])
    register("c22", params["w2_2"])
    # conv3: 1x1 cross-channel mix as a (2C-1)-tap lane convolution (VPU path).
    # TODO(synk): for large C, route conv3 through the MXU instead.
    w3 = jnp.asarray(params["w3"], jnp.float32)  # (out, in)
    o = jnp.arange(C)
    rows3 = []
    for s in range(-(C - 1), C):
        i = o + s
        valid = (i >= 0) & (i < C)
        rows3.append(jnp.where(valid, w3[o, jnp.clip(i, 0, C - 1)], 0.0))
    register("c3", jnp.stack(rows3))

    wpat = jnp.concatenate(pats, axis=0)
    pad_rows = (-wpat.shape[0]) % 8
    if pad_rows:
        wpat = jnp.pad(wpat, ((0, pad_rows), (0, 0)))

    bias_order = ["b0", "b0_1", "b0_2", "b1_1", "b1_2", "b2_1", "b2_2", "b3"]
    bpat = jnp.tile(jnp.stack([jnp.asarray(params[k], jnp.float32)
                               for k in bias_order]), (1, Wp))
    return wpat, bpat, offs


# -----------------------------------------------------------------------------
# Kernel
# -----------------------------------------------------------------------------
def _make_kernel(offs, bt, Hp, H, W, C):
    WC = W * C
    PC = PAD * C

    def kernel(xf_ref, wpat_ref, bpat_ref, mask_ref, o_ref):
        x = xf_ref[...]    # (bt*Hp, Wp*C); halo rows / lanes are zero
        m = mask_ref[...]  # 1.0 on the interiors, 0.0 on the halos

        def wrow(name, t):
            off = offs[name] + t
            return wpat_ref[off:off + 1, :]

        def brow(i):
            return bpat_ref[i:i + 1, :]

        # ---- conv0: 5x5 depthwise ----
        acc = None
        for dy in range(5):
            xr = _shift_rows(x, dy - 2)
            for dx in range(5):
                term = wrow("c0", dy * 5 + dx) * _shift_lanes(xr, (dx - 2) * C)
                acc = term if acc is None else acc + term
        attn = (acc + brow(0)) * m  # re-zero halo; every branch rolls over it

        # ---- horizontal strip convs (1,7)/(1,11)/(1,15): shared lane shifts --
        h_branches = (("c01", 3, 1), ("c11", 5, 3), ("c21", 7, 5))
        h_acc = {name: None for name, _, _ in h_branches}
        for s in range(-7, 8):
            v = _shift_lanes(attn, s * C)
            for name, hw, _ in h_branches:
                if abs(s) <= hw:
                    term = wrow(name, s + hw) * v
                    h_acc[name] = term if h_acc[name] is None else h_acc[name] + term
        t0 = (h_acc["c01"] + brow(1)) * m
        t1 = (h_acc["c11"] + brow(3)) * m
        t2 = (h_acc["c21"] + brow(5)) * m

        # ---- vertical strip convs (7,1)/(11,1)/(15,1) ----
        def vconv(a, name, hw, bidx):
            acc = None
            for s in range(-hw, hw + 1):
                term = wrow(name, s + hw) * _shift_rows(a, s)
                acc = term if acc is None else acc + term
            return acc + brow(bidx)

        s_sum = (attn
                 + vconv(t0, "c02", 3, 2)
                 + vconv(t1, "c12", 5, 4)
                 + vconv(t2, "c22", 7, 6))

        # ---- conv3 (1x1 channel mix, VPU lane-conv), then gate by u = x ----
        acc = None
        for s in range(-(C - 1), C):
            term = wrow("c3", s + C - 1) * _shift_lanes(s_sum, s)
            acc = term if acc is None else acc + term
        y = (acc + brow(7)) * x

        # ---- store only the interiors: lane-dense, full-width row stores ----
        for k in range(bt):
            o_ref[k * H:(k + 1) * H, :] = y[k * Hp + PAD:k * Hp + PAD + H,
                                            PC:PC + WC]

    return kernel


def _pick_bt(B, Hp, H, frame_bytes, budget_bytes=16 * 1024 * 1024,
             live_frames=12):
    """Images per grid step: largest divisor of B that fits a VMEM budget."""
    if H % 8 != 0:
        return B  # block must then equal the full array dims
    for bt in range(B, 0, -1):
        if B % bt:
            continue
        if bt == 1 or bt * frame_bytes * live_frames <= budget_bytes:
            return bt
    return 1


def tdatt_forward(x_nchw, params):
    """x_nchw: (B, C, H, W) float32 (PyTorch layout). Returns (B, C, H, W)."""
    B, C, H, W = x_nchw.shape
    Hp, Wp = H + 2 * PAD, W + 2 * PAD
    WpC, WC = Wp * C, W * C

    # NCHW -> NHWC -> zero-haloed frames, flattened lane-dense: (B*Hp, Wp*C).
    x_nhwc = jnp.transpose(x_nchw, (0, 2, 3, 1)).astype(jnp.float32)
    xf = jnp.pad(x_nhwc, ((0, 0), (PAD, PAD), (PAD, PAD), (0, 0)))
    xf = xf.reshape(B * Hp, WpC)

    wpat, bpat, offs = _build_patterns(params, C, Wp)

    frame_bytes = Hp * WpC * 4
    bt = _pick_bt(B, Hp, H, frame_bytes)
    # TODO(synk): for large H additionally tile the grid over H with a 7-row
    # halo so the VMEM working set stays bounded on v7x (64 MiB); unnecessary
    # at these demo shapes.

    rowm = ((jnp.arange(Hp) >= PAD) & (jnp.arange(Hp) < PAD + H)
            ).astype(jnp.float32)
    colm = ((jnp.arange(WpC) >= PAD * C) & (jnp.arange(WpC) < PAD * C + WC)
            ).astype(jnp.float32)
    mask = jnp.tile(rowm[:, None] * colm[None, :], (bt, 1))

    kernel = _make_kernel(offs, bt, Hp, H, W, C)

    out = pl.pallas_call(
        kernel,
        out_shape=jax.ShapeDtypeStruct((B * H, WC), jnp.float32),
        grid_spec=pltpu.PrefetchScalarGridSpec(
            num_scalar_prefetch=0,
            grid=(B // bt,),
            in_specs=[
                pl.BlockSpec((bt * Hp, WpC), lambda i: (i, 0)),
                pl.BlockSpec(wpat.shape, lambda i: (0, 0)),
                pl.BlockSpec(bpat.shape, lambda i: (0, 0)),
                pl.BlockSpec(mask.shape, lambda i: (0, 0)),
            ],
            out_specs=pl.BlockSpec((bt * H, WC), lambda i: (i, 0)),
        ),
        compiler_params=pltpu.CompilerParams(
            dimension_semantics=("parallel",),
            vmem_limit_bytes=32 * 1024 * 1024),
    )(xf, wpat, bpat, mask)

    out = out.reshape(B, H, W, C)
    return jnp.transpose(out, (0, 3, 1, 2))  # back to NCHW


# ----------------------------- reference (pure JAX) --------------------------
def _dw_conv_ref(x, w, b, kh, kw):
    C = x.shape[-1]
    ph, pw = (kh - 1) // 2, (kw - 1) // 2
    out = lax.conv_general_dilated(
        x, jnp.asarray(w, jnp.float32).reshape(kh, kw, 1, C),
        window_strides=(1, 1), padding=((ph, ph), (pw, pw)),
        dimension_numbers=("NHWC", "HWIO", "NHWC"),
        feature_group_count=C)
    return out + b[None, None, None, :]


def tdatt_reference(x_nchw, p):
    x = jnp.transpose(x_nchw, (0, 2, 3, 1)).astype(jnp.float32)
    attn = _dw_conv_ref(x, p["w0"], p["b0"], 5, 5)
    a0 = _dw_conv_ref(attn, p["w0_1"], p["b0_1"], 1, 7)
    a0 = _dw_conv_ref(a0, p["w0_2"], p["b0_2"], 7, 1)
    a1 = _dw_conv_ref(attn, p["w1_1"], p["b1_1"], 1, 11)
    a1 = _dw_conv_ref(a1, p["w1_2"], p["b1_2"], 11, 1)
    a2 = _dw_conv_ref(attn, p["w2_1"], p["b2_1"], 1, 15)
    a2 = _dw_conv_ref(a2, p["w2_2"], p["b2_2"], 15, 1)
    attn = attn + a0 + a1 + a2
    mixed = jnp.einsum("bhwi,oi->bhwo", attn, p["w3"]) + p["b3"][None, None, None, :]
    out = mixed * x
    return jnp.transpose(out, (0, 3, 1, 2))


# --------------------------------- main ---------------------------------------
def _make_params(key, dim):
    ks = jax.random.split(key, 18)
    s = 0.1

    def n(k, shape):
        return jax.random.normal(k, shape, jnp.float32) * s

    return {
        "w0":   n(ks[0], (5, 5, dim)),  "b0":   n(ks[1], (dim,)),
        "w0_1": n(ks[2], (7, dim)),     "b0_1": n(ks[3], (dim,)),
        "w0_2": n(ks[4], (7, dim)),     "b0_2": n(ks[5], (dim,)),
        "w1_1": n(ks[6], (11, dim)),    "b1_1": n(ks[7], (dim,)),
        "w1_2": n(ks[8], (11, dim)),    "b1_2": n(ks[9], (dim,)),
        "w2_1": n(ks[10], (15, dim)),   "b2_1": n(ks[11], (dim,)),
        "w2_2": n(ks[12], (15, dim)),   "b2_2": n(ks[13], (dim,)),
        "w3":   n(ks[14], (dim, dim)),  "b3":   n(ks[15], (dim,)),
    }


if __name__ == "__main__":
    B, C, H, W = 2, 8, 16, 16   # W*C = 128 -> fully lane-dense demo shape
    key = jax.random.PRNGKey(0)
    kx, kp = jax.random.split(key)
    x = jax.random.normal(kx, (B, C, H, W), jnp.float32)
    params = _make_params(kp, C)

    out = jax.block_until_ready(tdatt_forward(x, params))

    ref = jax.block_until_ready(tdatt_reference(x, params))
    err = float(jnp.max(jnp.abs(out - ref)))
    assert err < 1e-3, f"mismatch vs reference: max abs err = {err}"

    print("KERNEL_OK")
</pallas_src>

<mosaic_0001>
module attributes {stable_mosaic.version = 11 : i64} {
  func.func @kernel(%arg0: i32, %arg1: memref<64x256xf32, #tpu.memory_space<vmem>>, %arg2: memref<112x256xf32, #tpu.memory_space<vmem>>, %arg3: memref<8x256xf32, #tpu.memory_space<vmem>>, %arg4: memref<64x256xf32, #tpu.memory_space<vmem>>, %arg5: memref<32x128xf32, #tpu.memory_space<vmem>>) attributes {dimension_semantics = [#tpu.dimension_semantics<parallel>], iteration_bounds = array<i64: 1>, scalar_prefetch = 0 : i64, scratch_operands = 0 : i64, tpu.core_type = #tpu.core_type<tc>, window_params = [{transform_indices = @transform_0, window_bounds = array<i64: 64, 256>}, {pipeline_mode = #tpu.pipeline_mode<synchronous>, transform_indices = @transform_1, window_bounds = array<i64: 112, 256>}, {pipeline_mode = #tpu.pipeline_mode<synchronous>, transform_indices = @transform_2, window_bounds = array<i64: 8, 256>}, {pipeline_mode = #tpu.pipeline_mode<synchronous>, transform_indices = @transform_3, window_bounds = array<i64: 64, 256>}, {transform_indices = @transform_4, window_bounds = array<i64: 32, 128>}]} {
    %c0 = arith.constant 0 : index
    %c0_0 = arith.constant 0 : index
    %0 = vector.load %arg1[%c0, %c0_0] : memref<64x256xf32, #tpu.memory_space<vmem>>, vector<64x256xf32>
    %c0_1 = arith.constant 0 : index
    %c0_2 = arith.constant 0 : index
    %1 = vector.load %arg4[%c0_1, %c0_2] : memref<64x256xf32, #tpu.memory_space<vmem>>, vector<64x256xf32>
    %2 = vector.extract_strided_slice %0 {offsets = [62, 0], sizes = [2, 256], strides = [1, 1]} : vector<64x256xf32> to vector<2x256xf32>
    %3 = vector.extract_strided_slice %0 {offsets = [0, 0], sizes = [62, 256], strides = [1, 1]} : vector<64x256xf32> to vector<62x256xf32>
    %4 = tpu.concatenate %2, %3 in 0 : vector<2x256xf32>, vector<62x256xf32> -> vector<64x256xf32>
    %c0_3 = arith.constant 0 : index
    %c0_4 = arith.constant 0 : index
    %5 = vector.load %arg2[%c0_3, %c0_4] : memref<112x256xf32, #tpu.memory_space<vmem>>, vector<1x256xf32>
    %6 = vector.extract_strided_slice %4 {offsets = [0, 240], sizes = [64, 16], strides = [1, 1]} : vector<64x256xf32> to vector<64x16xf32>
    %7 = vector.extract_strided_slice %4 {offsets = [0, 0], sizes = [64, 240], strides = [1, 1]} : vector<64x256xf32> to vector<64x240xf32>
    %8 = tpu.concatenate %6, %7 in 1 : vector<64x16xf32>, vector<64x240xf32> -> vector<64x256xf32>
    %9 = vector.broadcast %5 : vector<1x256xf32> to vector<64x256xf32>
    %10 = arith.mulf %9, %8 : vector<64x256xf32>
    %c1 = arith.constant 1 : index
    %c0_5 = arith.constant 0 : index
    %11 = vector.load %arg2[%c1, %c0_5] : memref<112x256xf32, #tpu.memory_space<vmem>>, vector<1x256xf32>
    %12 = vector.extract_strided_slice %4 {offsets = [0, 248], sizes = [64, 8], strides = [1, 1]} : vector<64x256xf32> to vector<64x8xf32>
    %13 = vector.extract_strided_slice %4 {offsets = [0, 0], sizes = [64, 248], strides = [1, 1]} : vector<64x256xf32> to vector<64x248xf32>
    %14 = tpu.concatenate %12, %13 in 1 : vector<64x8xf32>, vector<64x248xf32> -> vector<64x256xf32>
    %15 = vector.broadcast %11 : vector<1x256xf32> to vector<64x256xf32>
    %16 = arith.mulf %15, %14 : vector<64x256xf32>
    %17 = arith.addf %10, %16 : vector<64x256xf32>
    %c2 = arith.constant 2 : index
    %c0_6 = arith.constant 0 : index
    %18 = vector.load %arg2[%c2, %c0_6] : memref<112x256xf32, #tpu.memory_space<vmem>>, vector<1x256xf32>
    %19 = vector.broadcast %18 : vector<1x256xf32> to vector<64x256xf32>
    %20 = arith.mulf %19, %4 : vector<64x256xf32>
    %21 = arith.addf %17, %20 : vector<64x256xf32>
    %c3 = arith.constant 3 : index
    %c0_7 = arith.constant 0 : index
    %22 = vector.load %arg2[%c3, %c0_7] : memref<112x256xf32, #tpu.memory_space<vmem>>, vector<1x256xf32>
    %23 = vector.extract_strided_slice %4 {offsets = [0, 8], sizes = [64, 248], strides = [1, 1]} : vector<64x256xf32> to vector<64x248xf32>
    %24 = vector.extract_strided_slice %4 {offsets = [0, 0], sizes = [64, 8], strides = [1, 1]} : vector<64x256xf32> to vector<64x8xf32>
    %25 = tpu.concatenate %23, %24 in 1 : vector<64x248xf32>, vector<64x8xf32> -> vector<64x256xf32>
    %26 = vector.broadcast %22 : vector<1x256xf32> to vector<64x256xf32>
    %27 = arith.mulf %26, %25 : vector<64x256xf32>
    %28 = arith.addf %21, %27 : vector<64x256xf32>
    %c4 = arith.constant 4 : index
    %c0_8 = arith.constant 0 : index
    %29 = vector.load %arg2[%c4, %c0_8] : memref<112x256xf32, #tpu.memory_space<vmem>>, vector<1x256xf32>
    %30 = vector.extract_strided_slice %4 {offsets = [0, 16], sizes = [64, 240], strides = [1, 1]} : vector<64x256xf32> to vector<64x240xf32>
    %31 = vector.extract_strided_slice %4 {offsets = [0, 0], sizes = [64, 16], strides = [1, 1]} : vector<64x256xf32> to vector<64x16xf32>
    %32 = tpu.concatenate %30, %31 in 1 : vector<64x240xf32>, vector<64x16xf32> -> vector<64x256xf32>
    %33 = vector.broadcast %29 : vector<1x256xf32> to vector<64x256xf32>
    %34 = arith.mulf %33, %32 : vector<64x256xf32>
    %35 = arith.addf %28, %34 : vector<64x256xf32>
    %36 = vector.extract_strided_slice %0 {offsets = [63, 0], sizes = [1, 256], strides = [1, 1]} : vector<64x256xf32> to vector<1x256xf32>
    %37 = vector.extract_strided_slice %0 {offsets = [0, 0], sizes = [63, 256], strides = [1, 1]} : vector<64x256xf32> to vector<63x256xf32>
    %38 = tpu.concatenate %36, %37 in 0 : vector<1x256xf32>, vector<63x256xf32> -> vector<64x256xf32>
    %c5 = arith.constant 5 : index
    %c0_9 = arith.constant 0 : index
    %39 = vector.load %arg2[%c5, %c0_9] : memref<112x256xf32, #tpu.memory_space<vmem>>, vector<1x256xf32>
    %40 = vector.extract_strided_slice %38 {offsets = [0, 240], sizes = [64, 16], strides = [1, 1]} : vector<64x256xf32> to vector<64x16xf32>
    %41 = vector.extract_strided_slice %38 {offsets = [0, 0], sizes = [64, 240], strides = [1, 1]} : vector<64x256xf32> to vector<64x240xf32>
    %42 = tpu.concatenate %40, %41 in 1 : vector<64x16xf32>, vector<64x240xf32> -> vector<64x256xf32>
    %43 = vector.broadcast %39 : vector<1x256xf32> to vector<64x256xf32>
    %44 = arith.mulf %43, %42 : vector<64x256xf32>
    %45 = arith.addf %35, %44 : vector<64x256xf32>
    %c6 = arith.constant 6 : index
    %c0_10 = arith.constant 0 : index
    %46 = vector.load %arg2[%c6, %c0_10] : memref<112x256xf32, #tpu.memory_space<vmem>>, vector<1x256xf32>
    %47 = vector.extract_strided_slice %38 {offsets = [0, 248], sizes = [64, 8], strides = [1, 1]} : vector<64x256xf32> to vector<64x8xf32>
    %48 = vector.extract_strided_slice %38 {offsets = [0, 0], sizes = [64, 248], strides = [1, 1]} : vector<64x256xf32> to vector<64x248xf32>
    %49 = tpu.concatenate %47, %48 in 1 : vector<64x8xf32>, vector<64x248xf32> -> vector<64x256xf32>
    %50 = vector.broadcast %46 : vector<1x256xf32> to vector<64x256xf32>
    %51 = arith.mulf %50, %49 : vector<64x256xf32>
    %52 = arith.addf %45, %51 : vector<64x256xf32>
    %c7 = arith.constant 7 : index
    %c0_11 = arith.constant 0 : index
    %53 = vector.load %arg2[%c7, %c0_11] : memref<112x256xf32, #tpu.memory_space<vmem>>, vector<1x256xf32>
    %54 = vector.broadcast %53 : vector<1x256xf32> to vector<64x256xf32>
    %55 = arith.mulf %54, %38 : vector<64x256xf32>
    %56 = arith.addf %52, %55 : vector<64x256xf32>
    %c8 = arith.constant 8 : index
    %c0_12 = arith.constant 0 : index
    %57 = vector.load %arg2[%c8, %c0_12] : memref<112x256xf32, #tpu.memory_space<vmem>>, vector<1x256xf32>
    %58 = vector.extract_strided_slice %38 {offsets = [0, 8], sizes = [64, 248], strides = [1, 1]} : vector<64x256xf32> to vector<64x248xf32>
    %59 = vector.extract_strided_slice %38 {offsets = [0, 0], sizes = [64, 8], strides = [1, 1]} : vector<64x256xf32> to vector<64x8xf32>
    %60 = tpu.concatenate %58, %59 in 1 : vector<64x248xf32>, vector<64x8xf32> -> vector<64x256xf32>
    %61 = vector.broadcast %57 : vector<1x256xf32> to vector<64x256xf32>
    %62 = arith.mulf %61, %60 : vector<64x256xf32>
    %63 = arith.addf %56, %62 : vector<64x256xf32>
    %c9 = arith.constant 9 : index
    %c0_13 = arith.constant 0 : index
    %64 = vector.load %arg2[%c9, %c0_13] : memref<112x256xf32, #tpu.memory_space<vmem>>, vector<1x256xf32>
    %65 = vector.extract_strided_slice %38 {offsets = [0, 16], sizes = [64, 240], strides = [1, 1]} : vector<64x256xf32> to vector<64x240xf32>
    %66 = vector.extract_strided_slice %38 {offsets = [0, 0], sizes = [64, 16], strides = [1, 1]} : vector<64x256xf32> to vector<64x16xf32>
    %67 = tpu.concatenate %65, %66 in 1 : vector<64x240xf32>, vector<64x16xf32> -> vector<64x256xf32>
    %68 = vector.broadcast %64 : vector<1x256xf32> to vector<64x256xf32>
    %69 = arith.mulf %68, %67 : vector<64x256xf32>
    %70 = arith.addf %63, %69 : vector<64x256xf32>
    %c10 = arith.constant 10 : index
    %c0_14 = arith.constant 0 : index
    %71 = vector.load %arg2[%c10, %c0_14] : memref<112x256xf32, #tpu.memory_space<vmem>>, vector<1x256xf32>
    %72 = vector.extract_strided_slice %0 {offsets = [0, 240], sizes = [64, 16], strides = [1, 1]} : vector<64x256xf32> to vector<64x16xf32>
    %73 = vector.extract_strided_slice %0 {offsets = [0, 0], sizes = [64, 240], strides = [1, 1]} : vector<64x256xf32> to vector<64x240xf32>
    %74 = tpu.concatenate %72, %73 in 1 : vector<64x16xf32>, vector<64x240xf32> -> vector<64x256xf32>
    %75 = vector.broadcast %71 : vector<1x256xf32> to vector<64x256xf32>
    %76 = arith.mulf %75, %74 : vector<64x256xf32>
    %77 = arith.addf %70, %76 : vector<64x256xf32>
    %c11 = arith.constant 11 : index
    %c0_15 = arith.constant 0 : index
    %78 = vector.load %arg2[%c11, %c0_15] : memref<112x256xf32, #tpu.memory_space<vmem>>, vector<1x256xf32>
    %79 = vector.extract_strided_slice %0 {offsets = [0, 248], sizes = [64, 8], strides = [1, 1]} : vector<64x256xf32> to vector<64x8xf32>
    %80 = vector.extract_strided_slice %0 {offsets = [0, 0], sizes = [64, 248], strides = [1, 1]} : vector<64x256xf32> to vector<64x248xf32>
    %81 = tpu.concatenate %79, %80 in 1 : vector<64x8xf32>, vector<64x248xf32> -> vector<64x256xf32>
    %82 = vector.broadcast %78 : vector<1x256xf32> to vector<64x256xf32>
    %83 = arith.mulf %82, %81 : vector<64x256xf32>
    %84 = arith.addf %77, %83 : vector<64x256xf32>
    %c12 = arith.constant 12 : index
    %c0_16 = arith.constant 0 : index
    %85 = vector.load %arg2[%c12, %c0_16] : memref<112x256xf32, #tpu.memory_space<vmem>>, vector<1x256xf32>
    %86 = vector.broadcast %85 : vector<1x256xf32> to vector<64x256xf32>
    %87 = arith.mulf %86, %0 : vector<64x256xf32>
    %88 = arith.addf %84, %87 : vector<64x256xf32>
    %c13 = arith.constant 13 : index
    %c0_17 = arith.constant 0 : index
    %89 = vector.load %arg2[%c13, %c0_17] : memref<112x256xf32, #tpu.memory_space<vmem>>, vector<1x256xf32>
    %90 = vector.extract_strided_slice %0 {offsets = [0, 8], sizes = [64, 248], strides = [1, 1]} : vector<64x256xf32> to vector<64x248xf32>
    %91 = vector.extract_strided_slice %0 {offsets = [0, 0], sizes = [64, 8], strides = [1, 1]} : vector<64x256xf32> to vector<64x8xf32>
    %92 = tpu.concatenate %90, %91 in 1 : vector<64x248xf32>, vector<64x8xf32> -> vector<64x256xf32>
    %93 = vector.broadcast %89 : vector<1x256xf32> to vector<64x256xf32>
    %94 = arith.mulf %93, %92 : vector<64x256xf32>
    %95 = arith.addf %88, %94 : vector<64x256xf32>
    %c14 = arith.constant 14 : index
    %c0_18 = arith.constant 0 : index
    %96 = vector.load %arg2[%c14, %c0_18] : memref<112x256xf32, #tpu.memory_space<vmem>>, vector<1x256xf32>
    %97 = vector.extract_strided_slice %0 {offsets = [0, 16], sizes = [64, 240], strides = [1, 1]} : vector<64x256xf32> to vector<64x240xf32>
    %98 = vector.extract_strided_slice %0 {offsets = [0, 0], sizes = [64, 16], strides = [1, 1]} : vector<64x256xf32> to vector<64x16xf32>
    %99 = tpu.concatenate %97, %98 in 1 : vector<64x240xf32>, vector<64x16xf32> -> vector<64x256xf32>
    %100 = vector.broadcast %96 : vector<1x256xf32> to vector<64x256xf32>
    %101 = arith.mulf %100, %99 : vector<64x256xf32>
    %102 = arith.addf %95, %101 : vector<64x256xf32>
    %103 = vector.extract_strided_slice %0 {offsets = [1, 0], sizes = [63, 256], strides = [1, 1]} : vector<64x256xf32> to vector<63x256xf32>
    %104 = vector.extract_strided_slice %0 {offsets = [0, 0], sizes = [1, 256], strides = [1, 1]} : vector<64x256xf32> to vector<1x256xf32>
    %105 = tpu.concatenate %103, %104 in 0 : vector<63x256xf32>, vector<1x256xf32> -> vector<64x256xf32>
    %c15 = arith.constant 15 : index
    %c0_19 = arith.constant 0 : index
    %106 = vector.load %arg2[%c15, %c0_19] : memref<112x256xf32, #tpu.memory_space<vmem>>, vector<1x256xf32>
    %107 = vector.extract_strided_slice %105 {offsets = [0, 240], sizes = [64, 16], strides = [1, 1]} : vector<64x256xf32> to vector<64x16xf32>
    %108 = vector.extract_strided_slice %105 {offsets = [0, 0], sizes = [64, 240], strides = [1, 1]} : vector<64x256xf32> to vector<64x240xf32>
    %109 = tpu.concatenate %107, %108 in 1 : vector<64x16xf32>, vector<64x240xf32> -> vector<64x256xf32>
    %110 = vector.broadcast %106 : vector<1x256xf32> to vector<64x256xf32>
    %111 = arith.mulf %110, %109 : vector<64x256xf32>
    %112 = arith.addf %102, %111 : vector<64x256xf32>
    %c16 = arith.constant 16 : index
    %c0_20 = arith.constant 0 : index
    %113 = vector.load %arg2[%c16, %c0_20] : memref<112x256xf32, #tpu.memory_space<vmem>>, vector<1x256xf32>
    %114 = vector.extract_strided_slice %105 {offsets = [0, 248], sizes = [64, 8], strides = [1, 1]} : vector<64x256xf32> to vector<64x8xf32>
    %115 = vector.extract_strided_slice %105 {offsets = [0, 0], sizes = [64, 248], strides = [1, 1]} : vector<64x256xf32> to vector<64x248xf32>
    %116 = tpu.concatenate %114, %115 in 1 : vector<64x8xf32>, vector<64x248xf32> -> vector<64x256xf32>
    %117 = vector.broadcast %113 : vector<1x256xf32> to vector<64x256xf32>
    %118 = arith.mulf %117, %116 : vector<64x256xf32>
    %119 = arith.addf %112, %118 : vector<64x256xf32>
    %c17 = arith.constant 17 : index
    %c0_21 = arith.constant 0 : index
    %120 = vector.load %arg2[%c17, %c0_21] : memref<112x256xf32, #tpu.memory_space<vmem>>, vector<1x256xf32>
    %121 = vector.broadcast %120 : vector<1x256xf32> to vector<64x256xf32>
    %122 = arith.mulf %121, %105 : vector<64x256xf32>
    %123 = arith.addf %119, %122 : vector<64x256xf32>
    %c18 = arith.constant 18 : index
    %c0_22 = arith.constant 0 : index
    %124 = vector.load %arg2[%c18, %c0_22] : memref<112x256xf32, #tpu.memory_space<vmem>>, vector<1x256xf32>
    %125 = vector.extract_strided_slice %105 {offsets = [0, 8], sizes = [64, 248], strides = [1, 1]} : vector<64x256xf32> to vector<64x248xf32>
    %126 = vector.extract_strided_slice %105 {offsets = [0, 0], sizes = [64, 8], strides = [1, 1]} : vector<64x256xf32> to vector<64x8xf32>
    %127 = tpu.concatenate %125, %126 in 1 : vector<64x248xf32>, vector<64x8xf32> -> vector<64x256xf32>
    %128 = vector.broadcast %124 : vector<1x256xf32> to vector<64x256xf32>
    %129 = arith.mulf %128, %127 : vector<64x256xf32>
    %130 = arith.addf %123, %129 : vector<64x256xf32>
    %c19 = arith.constant 19 : index
    %c0_23 = arith.constant 0 : index
    %131 = vector.load %arg2[%c19, %c0_23] : memref<112x256xf32, #tpu.memory_space<vmem>>, vector<1x256xf32>
    %132 = vector.extract_strided_slice %105 {offsets = [0, 16], sizes = [64, 240], strides = [1, 1]} : vector<64x256xf32> to vector<64x240xf32>
    %133 = vector.extract_strided_slice %105 {offsets = [0, 0], sizes = [64, 16], strides = [1, 1]} : vector<64x256xf32> to vector<64x16xf32>
    %134 = tpu.concatenate %132, %133 in 1 : vector<64x240xf32>, vector<64x16xf32> -> vector<64x256xf32>
    %135 = vector.broadcast %131 : vector<1x256xf32> to vector<64x256xf32>
    %136 = arith.mulf %135, %134 : vector<64x256xf32>
    %137 = arith.addf %130, %136 : vector<64x256xf32>
    %138 = vector.extract_strided_slice %0 {offsets = [2, 0], sizes = [62, 256], strides = [1, 1]} : vector<64x256xf32> to vector<62x256xf32>
    %139 = vector.extract_strided_slice %0 {offsets = [0, 0], sizes = [2, 256], strides = [1, 1]} : vector<64x256xf32> to vector<2x256xf32>
    %140 = tpu.concatenate %138, %139 in 0 : vector<62x256xf32>, vector<2x256xf32> -> vector<64x256xf32>
    %c20 = arith.constant 20 : index
    %c0_24 = arith.constant 0 : index
    %141 = vector.load %arg2[%c20, %c0_24] : memref<112x256xf32, #tpu.memory_space<vmem>>, vector<1x256xf32>
    %142 = vector.extract_strided_slice %140 {offsets = [0, 240], sizes = [64, 16], strides = [1, 1]} : vector<64x256xf32> to vector<64x16xf32>
    %143 = vector.extract_strided_slice %140 {offsets = [0, 0], sizes = [64, 240], strides = [1, 1]} : vector<64x256xf32> to vector<64x240xf32>
    %144 = tpu.concatenate %142, %143 in 1 : vector<64x16xf32>, vector<64x240xf32> -> vector<64x256xf32>
    %145 = vector.broadcast %141 : vector<1x256xf32> to vector<64x256xf32>
    %146 = arith.mulf %145, %144 : vector<64x256xf32>
    %147 = arith.addf %137, %146 : vector<64x256xf32>
    %c21 = arith.constant 21 : index
    %c0_25 = arith.constant 0 : index
    %148 = vector.load %arg2[%c21, %c0_25] : memref<112x256xf32, #tpu.memory_space<vmem>>, vector<1x256xf32>
    %149 = vector.extract_strided_slice %140 {offsets = [0, 248], sizes = [64, 8], strides = [1, 1]} : vector<64x256xf32> to vector<64x8xf32>
    %150 = vector.extract_strided_slice %140 {offsets = [0, 0], sizes = [64, 248], strides = [1, 1]} : vector<64x256xf32> to vector<64x248xf32>
    %151 = tpu.concatenate %149, %150 in 1 : vector<64x8xf32>, vector<64x248xf32> -> vector<64x256xf32>
    %152 = vector.broadcast %148 : vector<1x256xf32> to vector<64x256xf32>
    %153 = arith.mulf %152, %151 : vector<64x256xf32>
    %154 = arith.addf %147, %153 : vector<64x256xf32>
    %c22 = arith.constant 22 : index
    %c0_26 = arith.constant 0 : index
    %155 = vector.load %arg2[%c22, %c0_26] : memref<112x256xf32, #tpu.memory_space<vmem>>, vector<1x256xf32>
    %156 = vector.broadcast %155 : vector<1x256xf32> to vector<64x256xf32>
    %157 = arith.mulf %156, %140 : vector<64x256xf32>
    %158 = arith.addf %154, %157 : vector<64x256xf32>
    %c23 = arith.constant 23 : index
    %c0_27 = arith.constant 0 : index
    %159 = vector.load %arg2[%c23, %c0_27] : memref<112x256xf32, #tpu.memory_space<vmem>>, vector<1x256xf32>
    %160 = vector.extract_strided_slice %140 {offsets = [0, 8], sizes = [64, 248], strides = [1, 1]} : vector<64x256xf32> to vector<64x248xf32>
    %161 = vector.extract_strided_slice %140 {offsets = [0, 0], sizes = [64, 8], strides = [1, 1]} : vector<64x256xf32> to vector<64x8xf32>
    %162 = tpu.concatenate %160, %161 in 1 : vector<64x248xf32>, vector<64x8xf32> -> vector<64x256xf32>
    %163 = vector.broadcast %159 : vector<1x256xf32> to vector<64x256xf32>
    %164 = arith.mulf %163, %162 : vector<64x256xf32>
    %165 = arith.addf %158, %164 : vector<64x256xf32>
    %c24 = arith.constant 24 : index
    %c0_28 = arith.constant 0 : index
    %166 = vector.load %arg2[%c24, %c0_28] : memref<112x256xf32, #tpu.memory_space<vmem>>, vector<1x256xf32>
    %167 = vector.extract_strided_slice %140 {offsets = [0, 16], sizes = [64, 240], strides = [1, 1]} : vector<64x256xf32> to vector<64x240xf32>
    %168 = vector.extract_strided_slice %140 {offsets = [0, 0], sizes = [64, 16], strides = [1, 1]} : vector<64x256xf32> to vector<64x16xf32>
    %169 = tpu.concatenate %167, %168 in 1 : vector<64x240xf32>, vector<64x16xf32> -> vector<64x256xf32>
    %170 = vector.broadcast %166 : vector<1x256xf32> to vector<64x256xf32>
    %171 = arith.mulf %170, %169 : vector<64x256xf32>
    %172 = arith.addf %165, %171 : vector<64x256xf32>
    %c0_29 = arith.constant 0 : index
    %c0_30 = arith.constant 0 : index
    %173 = vector.load %arg3[%c0_29, %c0_30] : memref<8x256xf32, #tpu.memory_space<vmem>>, vector<1x256xf32>
    %174 = vector.broadcast %173 : vector<1x256xf32> to vector<64x256xf32>
    %175 = arith.addf %172, %174 : vector<64x256xf32>
    %176 = arith.mulf %175, %1 : vector<64x256xf32>
    %177 = vector.extract_strided_slice %176 {offsets = [0, 200], sizes = [64, 56], strides = [1, 1]} : vector<64x256xf32> to vector<64x56xf32>
    %178 = vector.extract_strided_slice %176 {offsets = [0, 0], sizes = [64, 200], strides = [1, 1]} : vector<64x256xf32> to vector<64x200xf32>
    %179 = tpu.concatenate %177, %178 in 1 : vector<64x56xf32>, vector<64x200xf32> -> vector<64x256xf32>
    %c43 = arith.constant 43 : index
    %c0_31 = arith.constant 0 : index
    %180 = vector.load %arg2[%c43, %c0_31] : memref<112x256xf32, #tpu.memory_space<vmem>>, vector<1x256xf32>
    %181 = vector.broadcast %180 : vector<1x256xf32> to vector<64x256xf32>
    %182 = arith.mulf %181, %179 : vector<64x256xf32>
    %183 = vector.extract_strided_slice %176 {offsets = [0, 208], sizes = [64, 48], strides = [1, 1]} : vector<64x256xf32> to vector<64x48xf32>
    %184 = vector.extract_strided_slice %176 {offsets = [0, 0], sizes = [64, 208], strides = [1, 1]} : vector<64x256xf32> to vector<64x208xf32>
    %185 = tpu.concatenate %183, %184 in 1 : vector<64x48xf32>, vector<64x208xf32> -> vector<64x256xf32>
    %c44 = arith.constant 44 : index
    %c0_32 = arith.constant 0 : index
    %186 = vector.load %arg2[%c44, %c0_32] : memref<112x256xf32, #tpu.memory_space<vmem>>, vector<1x256xf32>
    %187 = vector.broadcast %186 : vector<1x256xf32> to vector<64x256xf32>
    %188 = arith.mulf %187, %185 : vector<64x256xf32>
    %189 = arith.addf %182, %188 : vector<64x256xf32>
    %190 = vector.extract_strided_slice %176 {offsets = [0, 216], sizes = [64, 40], strides = [1, 1]} : vector<64x256xf32> to vector<64x40xf32>
    %191 = vector.extract_strided_slice %176 {offsets = [0, 0], sizes = [64, 216], strides = [1, 1]} : vector<64x256xf32> to vector<64x216xf32>
    %192 = tpu.concatenate %190, %191 in 1 : vector<64x40xf32>, vector<64x216xf32> -> vector<64x256xf32>
    %c32 = arith.constant 32 : index
    %c0_33 = arith.constant 0 : index
    %193 = vector.load %arg2[%c32, %c0_33] : memref<112x256xf32, #tpu.memory_space<vmem>>, vector<1x256xf32>
    %194 = vector.broadcast %193 : vector<1x256xf32> to vector<64x256xf32>
    %195 = arith.mulf %194, %192 : vector<64x256xf32>
    %c45 = arith.constant 45 : index
    %c0_34 = arith.constant 0 : index
    %196 = vector.load %arg2[%c45, %c0_34] : memref<112x256xf32, #tpu.memory_space<vmem>>, vector<1x256xf32>
    %197 = vector.broadcast %196 : vector<1x256xf32> to vector<64x256xf32>
    %198 = arith.mulf %197, %192 : vector<64x256xf32>
    %199 = arith.addf %189, %198 : vector<64x256xf32>
    %200 = vector.extract_strided_slice %176 {offsets = [0, 224], sizes = [64, 32], strides = [1, 1]} : vector<64x256xf32> to vector<64x32xf32>
    %201 = vector.extract_strided_slice %176 {offsets = [0, 0], sizes = [64, 224], strides = [1, 1]} : vector<64x256xf32> to vector<64x224xf32>
    %202 = tpu.concatenate %200, %201 in 1 : vector<64x32xf32>, vector<64x224xf32> -> vector<64x256xf32>
    %c33 = arith.constant 33 : index
    %c0_35 = arith.constant 0 : index
    %203 = vector.load %arg2[%c33, %c0_35] : memref<112x256xf32, #tpu.memory_space<vmem>>, vector<1x256xf32>
    %204 = vector.broadcast %203 : vector<1x256xf32> to vector<64x256xf32>
    %205 = arith.mulf %204, %202 : vector<64x256xf32>
    %206 = arith.addf %195, %205 : vector<64x256xf32>
    %c46 = arith.constant 46 : index
    %c0_36 = arith.constant 0 : index
    %207 = vector.load %arg2[%c46, %c0_36] : memref<112x256xf32, #tpu.memory_space<vmem>>, vector<1x256xf32>
    %208 = vector.broadcast %207 : vector<1x256xf32> to vector<64x256xf32>
    %209 = arith.mulf %208, %202 : vector<64x256xf32>
    %210 = arith.addf %199, %209 : vector<64x256xf32>
    %211 = vector.extract_strided_slice %176 {offsets = [0, 232], sizes = [64, 24], strides = [1, 1]} : vector<64x256xf32> to vector<64x24xf32>
    %212 = vector.extract_strided_slice %176 {offsets = [0, 0], sizes = [64, 232], strides = [1, 1]} : vector<64x256xf32> to vector<64x232xf32>
    %213 = tpu.concatenate %211, %212 in 1 : vector<64x24xf32>, vector<64x232xf32> -> vector<64x256xf32>
    %c25 = arith.constant 25 : index
    %c0_37 = arith.constant 0 : index
    %214 = vector.load %arg2[%c25, %c0_37] : memref<112x256xf32, #tpu.memory_space<vmem>>, vector<1x256xf32>
    %215 = vector.broadcast %214 : vector<1x256xf32> to vector<64x256xf32>
    %216 = arith.mulf %215, %213 : vector<64x256xf32>
    %c34 = arith.constant 34 : index
    %c0_38 = arith.constant 0 : index
    %217 = vector.load %arg2[%c34, %c0_38] : memref<112x256xf32, #tpu.memory_space<vmem>>, vector<1x256xf32>
    %218 = vector.broadcast %217 : vector<1x256xf32> to vector<64x256xf32>
    %219 = arith.mulf %218, %213 : vector<64x256xf32>
    %220 = arith.addf %206, %219 : vector<64x256xf32>
    %c47 = arith.constant 47 : index
    %c0_39 = arith.constant 0 : index
    %221 = vector.load %arg2[%c47, %c0_39] : memref<112x256xf32, #tpu.memory_space<vmem>>, vector<1x256xf32>
    %222 = vector.broadcast %221 : vector<1x256xf32> to vector<64x256xf32>
    %223 = arith.mulf %222, %213 : vector<64x256xf32>
    %224 = arith.addf %210, %223 : vector<64x256xf32>
    %225 = vector.extract_strided_slice %176 {offsets = [0, 240], sizes = [64, 16], strides = [1, 1]} : vector<64x256xf32> to vector<64x16xf32>
    %226 = vector.extract_strided_slice %176 {offsets = [0, 0], sizes = [64, 240], strides = [1, 1]} : vector<64x256xf32> to vector<64x240xf32>
    %227 = tpu.concatenate %225, %226 in 1 : vector<64x16xf32>, vector<64x240xf32> -> vector<64x256xf32>
    %c26 = arith.constant 26 : index
    %c0_40 = arith.constant 0 : index
    %228 = vector.load %arg2[%c26, %c0_40] : memref<112x256xf32, #tpu.memory_space<vmem>>, vector<1x256xf32>
    %229 = vector.broadcast %228 : vector<1x256xf32> to vector<64x256xf32>
    %230 = arith.mulf %229, %227 : vector<64x256xf32>
    %231 = arith.addf %216, %230 : vector<64x256xf32>
    %c35 = arith.constant 35 : index
    %c0_41 = arith.constant 0 : index
    %232 = vector.load %arg2[%c35, %c0_41] : memref<112x256xf32, #tpu.memory_space<vmem>>, vector<1x256xf32>
    %233 = vector.broadcast %232 : vector<1x256xf32> to vector<64x256xf32>
    %234 = arith.mulf %233, %227 : vector<64x256xf32>
    %235 = arith.addf %220, %234 : vector<64x256xf32>
    %c48 = arith.constant 48 : index
    %c0_42 = arith.constant 0 : index
    %236 = vector.load %arg2[%c48, %c0_42] : memref<112x256xf32, #tpu.memory_space<vmem>>, vector<1x256xf32>
    %237 = vector.broadcast %236 : vector<1x256xf32> to vector<64x256xf32>
    %238 = arith.mulf %237, %227 : vector<64x256xf32>
    %239 = arith.addf %224, %238 : vector<64x256xf32>
    %240 = vector.extract_strided_slice %176 {offsets = [0, 248], sizes = [64, 8], strides = [1, 1]} : vector<64x256xf32> to vector<64x8xf32>
    %241 = vector.extract_strided_slice %176 {offsets = [0, 0], sizes = [64, 248], strides = [1, 1]} : vector<64x256xf32> to vector<64x248xf32>
    %242 = tpu.concatenate %240, %241 in 1 : vector<64x8xf32>, vector<64x248xf32> -> vector<64x256xf32>
    %c27 = arith.constant 27 : index
    %c0_43 = arith.constant 0 : index
    %243 = vector.load %arg2[%c27, %c0_43] : memref<112x256xf32, #tpu.memory_space<vmem>>, vector<1x256xf32>
    %244 = vector.broadcast %243 : vector<1x256xf32> to vector<64x256xf32>
    %245 = arith.mulf %244, %242 : vector<64x256xf32>
    %246 = arith.addf %231, %245 : vector<64x256xf32>
    %c36 = arith.constant 36 : index
    %c0_44 = arith.constant 0 : index
    %247 = vector.load %arg2[%c36, %c0_44] : memref<112x256xf32, #tpu.memory_space<vmem>>, vector<1x256xf32>
    %248 = vector.broadcast %247 : vector<1x256xf32> to vector<64x256xf32>
    %249 = arith.mulf %248, %242 : vector<64x256xf32>
    %250 = arith.addf %235, %249 : vector<64x256xf32>
    %c49 = arith.constant 49 : index
    %c0_45 = arith.constant 0 : index
    %251 = vector.load %arg2[%c49, %c0_45] : memref<112x256xf32, #tpu.memory_space<vmem>>, vector<1x256xf32>
    %252 = vector.broadcast %251 : vector<1x256xf32> to vector<64x256xf32>
    %253 = arith.mulf %252, %242 : vector<64x256xf32>
    %254 = arith.addf %239, %253 : vector<64x256xf32>
    %c28 = arith.constant 28 : index
    %c0_46 = arith.constant 0 : index
    %255 = vector.load %arg2[%c28, %c0_46] : memref<112x256xf32, #tpu.memory_space<vmem>>, vector<1x256xf32>
    %256 = vector.broadcast %255 : vector<1x256xf32> to vector<64x256xf32>
    %257 = arith.mulf %256, %176 : vector<64x256xf32>
    %258 = arith.addf %246, %257 : vector<64x256xf32>
    %c37 = arith.constant 37 : index
    %c0_47 = arith.constant 0 : index
    %259 = vector.load %arg2[%c37, %c0_47] : memref<112x256xf32, #tpu.memory_space<vmem>>, vector<1x256xf32>
    %260 = vector.broadcast %259 : vector<1x256xf32> to vector<64x256xf32>
    %261 = arith.mulf %260, %176 : vector<64x256xf32>
    %262 = arith.addf %250, %261 : vector<64x256xf32>
    %c50 = arith.constant 50 : index
    %c0_48 = arith.constant 0 : index
    %263 = vector.load %arg2[%c50, %c0_48] : memref<112x256xf32, #tpu.memory_space<vmem>>, vector<1x256xf32>
    %264 = vector.broadcast %263 : vector<1x256xf32> to vector<64x256xf32>
    %265 = arith.mulf %264, %176 : vector<64x256xf32>
    %266 = arith.addf %254, %265 : vector<64x256xf32>
    %267 = vector.extract_strided_slice %176 {offsets = [0, 8], sizes = [64, 248], strides = [1, 1]} : vector<64x256xf32> to vector<64x248xf32>
    %268 = vector.extract_strided_slice %176 {offsets = [0, 0], sizes = [64, 8], strides = [1, 1]} : vector<64x256xf32> to vector<64x8xf32>
    %269 = tpu.concatenate %267, %268 in 1 : vector<64x248xf32>, vector<64x8xf32> -> vector<64x256xf32>
    %c29 = arith.constant 29 : index
    %c0_49 = arith.constant 0 : index
    %270 = vector.load %arg2[%c29, %c0_49] : memref<112x256xf32, #tpu.memory_space<vmem>>, vector<1x256xf32>
    %271 = vector.broadcast %270 : vector<1x256xf32> to vector<64x256xf32>
    %272 = arith.mulf %271, %269 : vector<64x256xf32>
    %273 = arith.addf %258, %272 : vector<64x256xf32>
    %c38 = arith.constant 38 : index
    %c0_50 = arith.constant 0 : index
    %274 = vector.load %arg2[%c38, %c0_50] : memref<112x256xf32, #tpu.memory_space<vmem>>, vector<1x256xf32>
    %275 = vector.broadcast %274 : vector<1x256xf32> to vector<64x256xf32>
    %276 = arith.mulf %275, %269 : vector<64x256xf32>
    %277 = arith.addf %262, %276 : vector<64x256xf32>
    %c51 = arith.constant 51 : index
    %c0_51 = arith.constant 0 : index
    %278 = vector.load %arg2[%c51, %c0_51] : memref<112x256xf32, #tpu.memory_space<vmem>>, vector<1x256xf32>
    %279 = vector.broadcast %278 : vector<1x256xf32> to vector<64x256xf32>
    %280 = arith.mulf %279, %269 : vector<64x256xf32>
    %281 = arith.addf %266, %280 : vector<64x256xf32>
    %282 = vector.extract_strided_slice %176 {offsets = [0, 16], sizes = [64, 240], strides = [1, 1]} : vector<64x256xf32> to vector<64x240xf32>
    %283 = vector.extract_strided_slice %176 {offsets = [0, 0], sizes = [64, 16], strides = [1, 1]} : vector<64x256xf32> to vector<64x16xf32>
    %284 = tpu.concatenate %282, %283 in 1 : vector<64x240xf32>, vector<64x16xf32> -> vector<64x256xf32>
    %c30 = arith.constant 30 : index
    %c0_52 = arith.constant 0 : index
    %285 = vector.load %arg2[%c30, %c0_52] : memref<112x256xf32, #tpu.memory_space<vmem>>, vector<1x256xf32>
    %286 = vector.broadcast %285 : vector<1x256xf32> to vector<64x256xf32>
    %287 = arith.mulf %286, %284 : vector<64x256xf32>
    %288 = arith.addf %273, %287 : vector<64x256xf32>
    %c39 = arith.constant 39 : index
    %c0_53 = arith.constant 0 : index
    %289 = vector.load %arg2[%c39, %c0_53] : memref<112x256xf32, #tpu.memory_space<vmem>>, vector<1x256xf32>
    %290 = vector.broadcast %289 : vector<1x256xf32> to vector<64x256xf32>
    %291 = arith.mulf %290, %284 : vector<64x256xf32>
    %292 = arith.addf %277, %291 : vector<64x256xf32>
    %c52 = arith.constant 52 : index
    %c0_54 = arith.constant 0 : index
    %293 = vector.load %arg2[%c52, %c0_54] : memref<112x256xf32, #tpu.memory_space<vmem>>, vector<1x256xf32>
    %294 = vector.broadcast %293 : vector<1x256xf32> to vector<64x256xf32>
    %295 = arith.mulf %294, %284 : vector<64x256xf32>
    %296 = arith.addf %281, %295 : vector<64x256xf32>
    %297 = vector.extract_strided_slice %176 {offsets = [0, 24], sizes = [64, 232], strides = [1, 1]} : vector<64x256xf32> to vector<64x232xf32>
    %298 = vector.extract_strided_slice %176 {offsets = [0, 0], sizes = [64, 24], strides = [1, 1]} : vector<64x256xf32> to vector<64x24xf32>
    %299 = tpu.concatenate %297, %298 in 1 : vector<64x232xf32>, vector<64x24xf32> -> vector<64x256xf32>
    %c31 = arith.constant 31 : index
    %c0_55 = arith.constant 0 : index
    %300 = vector.load %arg2[%c31, %c0_55] : memref<112x256xf32, #tpu.memory_space<vmem>>, vector<1x256xf32>
    %301 = vector.broadcast %300 : vector<1x256xf32> to vector<64x256xf32>
    %302 = arith.mulf %301, %299 : vector<64x256xf32>
    %303 = arith.addf %288, %302 : vector<64x256xf32>
    %c40 = arith.constant 40 : index
    %c0_56 = arith.constant 0 : index
    %304 = vector.load %arg2[%c40, %c0_56] : memref<112x256xf32, #tpu.memory_space<vmem>>, vector<1x256xf32>
    %305 = vector.broadcast %304 : vector<1x256xf32> to vector<64x256xf32>
    %306 = arith.mulf %305, %299 : vector<64x256xf32>
    %307 = arith.addf %292, %306 : vector<64x256xf32>
    %c53 = arith.constant 53 : index
    %c0_57 = arith.constant 0 : index
    %308 = vector.load %arg2[%c53, %c0_57] : memref<112x256xf32, #tpu.memory_space<vmem>>, vector<1x256xf32>
    %309 = vector.broadcast %308 : vector<1x256xf32> to vector<64x256xf32>
    %310 = arith.mulf %309, %299 : vector<64x256xf32>
    %311 = arith.addf %296, %310 : vector<64x256xf32>
    %312 = vector.extract_strided_slice %176 {offsets = [0, 32], sizes = [64, 224], strides = [1, 1]} : vector<64x256xf32> to vector<64x224xf32>
    %313 = vector.extract_strided_slice %176 {offsets = [0, 0], sizes = [64, 32], strides = [1, 1]} : vector<64x256xf32> to vector<64x32xf32>
    %314 = tpu.concatenate %312, %313 in 1 : vector<64x224xf32>, vector<64x32xf32> -> vector<64x256xf32>
    %c41 = arith.constant 41 : index
    %c0_58 = arith.constant 0 : index
    %315 = vector.load %arg2[%c41, %c0_58] : memref<112x256xf32, #tpu.memory_space<vmem>>, vector<1x256xf32>
    %316 = vector.broadcast %315 : vector<1x256xf32> to vector<64x256xf32>
    %317 = arith.mulf %316, %314 : vector<64x256xf32>
    %318 = arith.addf %307, %317 : vector<64x256xf32>
    %c54 = arith.constant 54 : index
    %c0_59 = arith.constant 0 : index
    %319 = vector.load %arg2[%c54, %c0_59] : memref<112x256xf32, #tpu.memory_space<vmem>>, vector<1x256xf32>
    %320 = vector.broadcast %319 : vector<1x256xf32> to vector<64x256xf32>
    %321 = arith.mulf %320, %314 : vector<64x256xf32>
    %322 = arith.addf %311, %321 : vector<64x256xf32>
    %323 = vector.extract_strided_slice %176 {offsets = [0, 40], sizes = [64, 216], strides = [1, 1]} : vector<64x256xf32> to vector<64x216xf32>
    %324 = vector.extract_strided_slice %176 {offsets = [0, 0], sizes = [64, 40], strides = [1, 1]} : vector<64x256xf32> to vector<64x40xf32>
    %325 = tpu.concatenate %323, %324 in 1 : vector<64x216xf32>, vector<64x40xf32> -> vector<64x256xf32>
    %c42 = arith.constant 42 : index
    %c0_60 = arith.constant 0 : index
    %326 = vector.load %arg2[%c42, %c0_60] : memref<112x256xf32, #tpu.memory_space<vmem>>, vector<1x256xf32>
    %327 = vector.broadcast %326 : vector<1x256xf32> to vector<64x256xf32>
    %328 = arith.mulf %327, %325 : vector<64x256xf32>
    %329 = arith.addf %318, %328 : vector<64x256xf32>
    %c55 = arith.constant 55 : index
    %c0_61 = arith.constant 0 : index
    %330 = vector.load %arg2[%c55, %c0_61] : memref<112x256xf32, #tpu.memory_space<vmem>>, vector<1x256xf32>
    %331 = vector.broadcast %330 : vector<1x256xf32> to vector<64x256xf32>
    %332 = arith.mulf %331, %325 : vector<64x256xf32>
    %333 = arith.addf %322, %332 : vector<64x256xf32>
    %334 = vector.extract_strided_slice %176 {offsets = [0, 48], sizes = [64, 208], strides = [1, 1]} : vector<64x256xf32> to vector<64x208xf32>
    %335 = vector.extract_strided_slice %176 {offsets = [0, 0], sizes = [64, 48], strides = [1, 1]} : vector<64x256xf32> to vector<64x48xf32>
    %336 = tpu.concatenate %334, %335 in 1 : vector<64x208xf32>, vector<64x48xf32> -> vector<64x256xf32>
    %c56 = arith.constant 56 : index
    %c0_62 = arith.constant 0 : index
    %337 = vector.load %arg2[%c56, %c0_62] : memref<112x256xf32, #tpu.memory_space<vmem>>, vector<1x256xf32>
    %338 = vector.broadcast %337 : vector<1x256xf32> to vector<64x256xf32>
    %339 = arith.mulf %338, %336 : vector<64x256xf32>
    %340 = arith.addf %333, %339 : vector<64x256xf32>
    %341 = vector.extract_strided_slice %176 {offsets = [0, 56], sizes = [64, 200], strides = [1, 1]} : vector<64x256xf32> to vector<64x200xf32>
    %342 = vector.extract_strided_slice %176 {offsets = [0, 0], sizes = [64, 56], strides = [1, 1]} : vector<64x256xf32> to vector<64x56xf32>
    %343 = tpu.concatenate %341, %342 in 1 : vector<64x200xf32>, vector<64x56xf32> -> vector<64x256xf32>
    %c57 = arith.constant 57 : index
    %c0_63 = arith.constant 0 : index
    %344 = vector.load %arg2[%c57, %c0_63] : memref<112x256xf32, #tpu.memory_space<vmem>>, vector<1x256xf32>
    %345 = vector.broadcast %344 : vector<1x256xf32> to vector<64x256xf32>
    %346 = arith.mulf %345, %343 : vector<64x256xf32>
    %347 = arith.addf %340, %346 : vector<64x256xf32>
    %c1_64 = arith.constant 1 : index
    %c0_65 = arith.constant 0 : index
    %348 = vector.load %arg3[%c1_64, %c0_65] : memref<8x256xf32, #tpu.memory_space<vmem>>, vector<1x256xf32>
    %349 = vector.broadcast %348 : vector<1x256xf32> to vector<64x256xf32>
    %350 = arith.addf %303, %349 : vector<64x256xf32>
    %351 = arith.mulf %350, %1 : vector<64x256xf32>
    %c3_66 = arith.constant 3 : index
    %c0_67 = arith.constant 0 : index
    %352 = vector.load %arg3[%c3_66, %c0_67] : memref<8x256xf32, #tpu.memory_space<vmem>>, vector<1x256xf32>
    %353 = vector.broadcast %352 : vector<1x256xf32> to vector<64x256xf32>
    %354 = arith.addf %329, %353 : vector<64x256xf32>
    %355 = arith.mulf %354, %1 : vector<64x256xf32>
    %c5_68 = arith.constant 5 : index
    %c0_69 = arith.constant 0 : index
    %356 = vector.load %arg3[%c5_68, %c0_69] : memref<8x256xf32, #tpu.memory_space<vmem>>, vector<1x256xf32>
    %357 = vector.broadcast %356 : vector<1x256xf32> to vector<64x256xf32>
    %358 = arith.addf %347, %357 : vector<64x256xf32>
    %359 = arith.mulf %358, %1 : vector<64x256xf32>
    %c58 = arith.constant 58 : index
    %c0_70 = arith.constant 0 : index
    %360 = vector.load %arg2[%c58, %c0_70] : memref<112x256xf32, #tpu.memory_space<vmem>>, vector<1x256xf32>
    %361 = vector.extract_strided_slice %351 {offsets = [61, 0], sizes = [3, 256], strides = [1, 1]} : vector<64x256xf32> to vector<3x256xf32>
    %362 = vector.extract_strided_slice %351 {offsets = [0, 0], sizes = [61, 256], strides = [1, 1]} : vector<64x256xf32> to vector<61x256xf32>
    %363 = tpu.concatenate %361, %362 in 0 : vector<3x256xf32>, vector<61x256xf32> -> vector<64x256xf32>
    %364 = vector.broadcast %360 : vector<1x256xf32> to vector<64x256xf32>
    %365 = arith.mulf %364, %363 : vector<64x256xf32>
    %c59 = arith.constant 59 : index
    %c0_71 = arith.constant 0 : index
    %366 = vector.load %arg2[%c59, %c0_71] : memref<112x256xf32, #tpu.memory_space<vmem>>, vector<1x256xf32>
    %367 = vector.extract_strided_slice %351 {offsets = [62, 0], sizes = [2, 256], strides = [1, 1]} : vector<64x256xf32> to vector<2x256xf32>
    %368 = vector.extract_strided_slice %351 {offsets = [0, 0], sizes = [62, 256], strides = [1, 1]} : vector<64x256xf32> to vector<62x256xf32>
    %369 = tpu.concatenate %367, %368 in 0 : vector<2x256xf32>, vector<62x256xf32> -> vector<64x256xf32>
    %370 = vector.broadcast %366 : vector<1x256xf32> to vector<64x256xf32>
    %371 = arith.mulf %370, %369 : vector<64x256xf32>
    %372 = arith.addf %365, %371 : vector<64x256xf32>
    %c60 = arith.constant 60 : index
    %c0_72 = arith.constant 0 : index
    %373 = vector.load %arg2[%c60, %c0_72] : memref<112x256xf32, #tpu.memory_space<vmem>>, vector<1x256xf32>
    %374 = vector.extract_strided_slice %351 {offsets = [63, 0], sizes = [1, 256], strides = [1, 1]} : vector<64x256xf32> to vector<1x256xf32>
    %375 = vector.extract_strided_slice %351 {offsets = [0, 0], sizes = [63, 256], strides = [1, 1]} : vector<64x256xf32> to vector<63x256xf32>
    %376 = tpu.concatenate %374, %375 in 0 : vector<1x256xf32>, vector<63x256xf32> -> vector<64x256xf32>
    %377 = vector.broadcast %373 : vector<1x256xf32> to vector<64x256xf32>
    %378 = arith.mulf %377, %376 : vector<64x256xf32>
    %379 = arith.addf %372, %378 : vector<64x256xf32>
    %c61 = arith.constant 61 : index
    %c0_73 = arith.constant 0 : index
    %380 = vector.load %arg2[%c61, %c0_73] : memref<112x256xf32, #tpu.memory_space<vmem>>, vector<1x256xf32>
    %381 = vector.broadcast %380 : vector<1x256xf32> to vector<64x256xf32>
    %382 = arith.mulf %381, %351 : vector<64x256xf32>
    %383 = arith.addf %379, %382 : vector<64x256xf32>
    %c62 = arith.constant 62 : index
    %c0_74 = arith.constant 0 : index
    %384 = vector.load %arg2[%c62, %c0_74] : memref<112x256xf32, #tpu.memory_space<vmem>>, vector<1x256xf32>
    %385 = vector.extract_strided_slice %351 {offsets = [1, 0], sizes = [63, 256], strides = [1, 1]} : vector<64x256xf32> to vector<63x256xf32>
    %386 = vector.extract_strided_slice %351 {offsets = [0, 0], sizes = [1, 256], strides = [1, 1]} : vector<64x256xf32> to vector<1x256xf32>
    %387 = tpu.concatenate %385, %386 in 0 : vector<63x256xf32>, vector<1x256xf32> -> vector<64x256xf32>
    %388 = vector.broadcast %384 : vector<1x256xf32> to vector<64x256xf32>
    %389 = arith.mulf %388, %387 : vector<64x256xf32>
    %390 = arith.addf %383, %389 : vector<64x256xf32>
    %c63 = arith.constant 63 : index
    %c0_75 = arith.constant 0 : index
    %391 = vector.load %arg2[%c63, %c0_75] : memref<112x256xf32, #tpu.memory_space<vmem>>, vector<1x256xf32>
    %392 = vector.extract_strided_slice %351 {offsets = [2, 0], sizes = [62, 256], strides = [1, 1]} : vector<64x256xf32> to vector<62x256xf32>
    %393 = vector.extract_strided_slice %351 {offsets = [0, 0], sizes = [2, 256], strides = [1, 1]} : vector<64x256xf32> to vector<2x256xf32>
    %394 = tpu.concatenate %392, %393 in 0 : vector<62x256xf32>, vector<2x256xf32> -> vector<64x256xf32>
    %395 = vector.broadcast %391 : vector<1x256xf32> to vector<64x256xf32>
    %396 = arith.mulf %395, %394 : vector<64x256xf32>
    %397 = arith.addf %390, %396 : vector<64x256xf32>
    %c64 = arith.constant 64 : index
    %c0_76 = arith.constant 0 : index
    %398 = vector.load %arg2[%c64, %c0_76] : memref<112x256xf32, #tpu.memory_space<vmem>>, vector<1x256xf32>
    %399 = vector.extract_strided_slice %351 {offsets = [3, 0], sizes = [61, 256], strides = [1, 1]} : vector<64x256xf32> to vector<61x256xf32>
    %400 = vector.extract_strided_slice %351 {offsets = [0, 0], sizes = [3, 256], strides = [1, 1]} : vector<64x256xf32> to vector<3x256xf32>
    %401 = tpu.concatenate %399, %400 in 0 : vector<61x256xf32>, vector<3x256xf32> -> vector<64x256xf32>
    %402 = vector.broadcast %398 : vector<1x256xf32> to vector<64x256xf32>
    %403 = arith.mulf %402, %401 : vector<64x256xf32>
    %404 = arith.addf %397, %403 : vector<64x256xf32>
    %c2_77 = arith.constant 2 : index
    %c0_78 = arith.constant 0 : index
    %405 = vector.load %arg3[%c2_77, %c0_78] : memref<8x256xf32, #tpu.memory_space<vmem>>, vector<1x256xf32>
    %406 = vector.broadcast %405 : vector<1x256xf32> to vector<64x256xf32>
    %407 = arith.addf %404, %406 : vector<64x256xf32>
    %408 = arith.addf %176, %407 : vector<64x256xf32>
    %c65 = arith.constant 65 : index
    %c0_79 = arith.constant 0 : index
    %409 = vector.load %arg2[%c65, %c0_79] : memref<112x256xf32, #tpu.memory_space<vmem>>, vector<1x256xf32>
    %410 = vector.extract_strided_slice %355 {offsets = [59, 0], sizes = [5, 256], strides = [1, 1]} : vector<64x256xf32> to vector<5x256xf32>
    %411 = vector.extract_strided_slice %355 {offsets = [0, 0], sizes = [59, 256], strides = [1, 1]} : vector<64x256xf32> to vector<59x256xf32>
    %412 = tpu.concatenate %410, %411 in 0 : vector<5x256xf32>, vector<59x256xf32> -> vector<64x256xf32>
    %413 = vector.broadcast %409 : vector<1x256xf32> to vector<64x256xf32>
    %414 = arith.mulf %413, %412 : vector<64x256xf32>
    %c66 = arith.constant 66 : index
    %c0_80 = arith.constant 0 : index
    %415 = vector.load %arg2[%c66, %c0_80] : memref<112x256xf32, #tpu.memory_space<vmem>>, vector<1x256xf32>
    %416 = vector.extract_strided_slice %355 {offsets = [60, 0], sizes = [4, 256], strides = [1, 1]} : vector<64x256xf32> to vector<4x256xf32>
    %417 = vector.extract_strided_slice %355 {offsets = [0, 0], sizes = [60, 256], strides = [1, 1]} : vector<64x256xf32> to vector<60x256xf32>
    %418 = tpu.concatenate %416, %417 in 0 : vector<4x256xf32>, vector<60x256xf32> -> vector<64x256xf32>
    %419 = vector.broadcast %415 : vector<1x256xf32> to vector<64x256xf32>
    %420 = arith.mulf %419, %418 : vector<64x256xf32>
    %421 = arith.addf %414, %420 : vector<64x256xf32>
    %c67 = arith.constant 67 : index
    %c0_81 = arith.constant 0 : index
    %422 = vector.load %arg2[%c67, %c0_81] : memref<112x256xf32, #tpu.memory_space<vmem>>, vector<1x256xf32>
    %423 = vector.extract_strided_slice %355 {offsets = [61, 0], sizes = [3, 256], strides = [1, 1]} : vector<64x256xf32> to vector<3x256xf32>
    %424 = vector.extract_strided_slice %355 {offsets = [0, 0], sizes = [61, 256], strides = [1, 1]} : vector<64x256xf32> to vector<61x256xf32>
    %425 = tpu.concatenate %423, %424 in 0 : vector<3x256xf32>, vector<61x256xf32> -> vector<64x256xf32>
    %426 = vector.broadcast %422 : vector<1x256xf32> to vector<64x256xf32>
    %427 = arith.mulf %426, %425 : vector<64x256xf32>
    %428 = arith.addf %421, %427 : vector<64x256xf32>
    %c68 = arith.constant 68 : index
    %c0_82 = arith.constant 0 : index
    %429 = vector.load %arg2[%c68, %c0_82] : memref<112x256xf32, #tpu.memory_space<vmem>>, vector<1x256xf32>
    %430 = vector.extract_strided_slice %355 {offsets = [62, 0], sizes = [2, 256], strides = [1, 1]} : vector<64x256xf32> to vector<2x256xf32>
    %431 = vector.extract_strided_slice %355 {offsets = [0, 0], sizes = [62, 256], strides = [1, 1]} : vector<64x256xf32> to vector<62x256xf32>
    %432 = tpu.concatenate %430, %431 in 0 : vector<2x256xf32>, vector<62x256xf32> -> vector<64x256xf32>
    %433 = vector.broadcast %429 : vector<1x256xf32> to vector<64x256xf32>
    %434 = arith.mulf %433, %432 : vector<64x256xf32>
    %435 = arith.addf %428, %434 : vector<64x256xf32>
    %c69 = arith.constant 69 : index
    %c0_83 = arith.constant 0 : index
    %436 = vector.load %arg2[%c69, %c0_83] : memref<112x256xf32, #tpu.memory_space<vmem>>, vector<1x256xf32>
    %437 = vector.extract_strided_slice %355 {offsets = [63, 0], sizes = [1, 256], strides = [1, 1]} : vector<64x256xf32> to vector<1x256xf32>
    %438 = vector.extract_strided_slice %355 {offsets = [0, 0], sizes = [63, 256], strides = [1, 1]} : vector<64x256xf32> to vector<63x256xf32>
    %439 = tpu.concatenate %437, %438 in 0 : vector<1x256xf32>, vector<63x256xf32> -> vector<64x256xf32>
    %440 = vector.broadcast %436 : vector<1x256xf32> to vector<64x256xf32>
    %441 = arith.mulf %440, %439 : vector<64x256xf32>
    %442 = arith.addf %435, %441 : vector<64x256xf32>
    %c70 = arith.constant 70 : index
    %c0_84 = arith.constant 0 : index
    %443 = vector.load %arg2[%c70, %c0_84] : memref<112x256xf32, #tpu.memory_space<vmem>>, vector<1x256xf32>
    %444 = vector.broadcast %443 : vector<1x256xf32> to vector<64x256xf32>
    %445 = arith.mulf %444, %355 : vector<64x256xf32>
    %446 = arith.addf %442, %445 : vector<64x256xf32>
    %c71 = arith.constant 71 : index
    %c0_85 = arith.constant 0 : index
    %447 = vector.load %arg2[%c71, %c0_85] : memref<112x256xf32, #tpu.memory_space<vmem>>, vector<1x256xf32>
    %448 = vector.extract_strided_slice %355 {offsets = [1, 0], sizes = [63, 256], strides = [1, 1]} : vector<64x256xf32> to vector<63x256xf32>
    %449 = vector.extract_strided_slice %355 {offsets = [0, 0], sizes = [1, 256], strides = [1, 1]} : vector<64x256xf32> to vector<1x256xf32>
    %450 = tpu.concatenate %448, %449 in 0 : vector<63x256xf32>, vector<1x256xf32> -> vector<64x256xf32>
    %451 = vector.broadcast %447 : vector<1x256xf32> to vector<64x256xf32>
    %452 = arith.mulf %451, %450 : vector<64x256xf32>
    %453 = arith.addf %446, %452 : vector<64x256xf32>
    %c72 = arith.constant 72 : index
    %c0_86 = arith.constant 0 : index
    %454 = vector.load %arg2[%c72, %c0_86] : memref<112x256xf32, #tpu.memory_space<vmem>>, vector<1x256xf32>
    %455 = vector.extract_strided_slice %355 {offsets = [2, 0], sizes = [62, 256], strides = [1, 1]} : vector<64x256xf32> to vector<62x256xf32>
    %456 = vector.extract_strided_slice %355 {offsets = [0, 0], sizes = [2, 256], strides = [1, 1]} : vector<64x256xf32> to vector<2x256xf32>
    %457 = tpu.concatenate %455, %456 in 0 : vector<62x256xf32>, vector<2x256xf32> -> vector<64x256xf32>
    %458 = vector.broadcast %454 : vector<1x256xf32> to vector<64x256xf32>
    %459 = arith.mulf %458, %457 : vector<64x256xf32>
    %460 = arith.addf %453, %459 : vector<64x256xf32>
    %c73 = arith.constant 73 : index
    %c0_87 = arith.constant 0 : index
    %461 = vector.load %arg2[%c73, %c0_87] : memref<112x256xf32, #tpu.memory_space<vmem>>, vector<1x256xf32>
    %462 = vector.extract_strided_slice %355 {offsets = [3, 0], sizes = [61, 256], strides = [1, 1]} : vector<64x256xf32> to vector<61x256xf32>
    %463 = vector.extract_strided_slice %355 {offsets = [0, 0], sizes = [3, 256], strides = [1, 1]} : vector<64x256xf32> to vector<3x256xf32>
    %464 = tpu.concatenate %462, %463 in 0 : vector<61x256xf32>, vector<3x256xf32> -> vector<64x256xf32>
    %465 = vector.broadcast %461 : vector<1x256xf32> to vector<64x256xf32>
    %466 = arith.mulf %465, %464 : vector<64x256xf32>
    %467 = arith.addf %460, %466 : vector<64x256xf32>
    %c74 = arith.constant 74 : index
    %c0_88 = arith.constant 0 : index
    %468 = vector.load %arg2[%c74, %c0_88] : memref<112x256xf32, #tpu.memory_space<vmem>>, vector<1x256xf32>
    %469 = vector.extract_strided_slice %355 {offsets = [4, 0], sizes = [60, 256], strides = [1, 1]} : vector<64x256xf32> to vector<60x256xf32>
    %470 = vector.extract_strided_slice %355 {offsets = [0, 0], sizes = [4, 256], strides = [1, 1]} : vector<64x256xf32> to vector<4x256xf32>
    %471 = tpu.concatenate %469, %470 in 0 : vector<60x256xf32>, vector<4x256xf32> -> vector<64x256xf32>
    %472 = vector.broadcast %468 : vector<1x256xf32> to vector<64x256xf32>
    %473 = arith.mulf %472, %471 : vector<64x256xf32>
    %474 = arith.addf %467, %473 : vector<64x256xf32>
    %c75 = arith.constant 75 : index
    %c0_89 = arith.constant 0 : index
    %475 = vector.load %arg2[%c75, %c0_89] : memref<112x256xf32, #tpu.memory_space<vmem>>, vector<1x256xf32>
    %476 = vector.extract_strided_slice %355 {offsets = [5, 0], sizes = [59, 256], strides = [1, 1]} : vector<64x256xf32> to vector<59x256xf32>
    %477 = vector.extract_strided_slice %355 {offsets = [0, 0], sizes = [5, 256], strides = [1, 1]} : vector<64x256xf32> to vector<5x256xf32>
    %478 = tpu.concatenate %476, %477 in 0 : vector<59x256xf32>, vector<5x256xf32> -> vector<64x256xf32>
    %479 = vector.broadcast %475 : vector<1x256xf32> to vector<64x256xf32>
    %480 = arith.mulf %479, %478 : vector<64x256xf32>
    %481 = arith.addf %474, %480 : vector<64x256xf32>
    %c4_90 = arith.constant 4 : index
    %c0_91 = arith.constant 0 : index
    %482 = vector.load %arg3[%c4_90, %c0_91] : memref<8x256xf32, #tpu.memory_space<vmem>>, vector<1x256xf32>
    %483 = vector.broadcast %482 : vector<1x256xf32> to vector<64x256xf32>
    %484 = arith.addf %481, %483 : vector<64x256xf32>
    %485 = arith.addf %408, %484 : vector<64x256xf32>
    %c76 = arith.constant 76 : index
    %c0_92 = arith.constant 0 : index
    %486 = vector.load %arg2[%c76, %c0_92] : memref<112x256xf32, #tpu.memory_space<vmem>>, vector<1x256xf32>
    %487 = vector.extract_strided_slice %359 {offsets = [57, 0], sizes = [7, 256], strides = [1, 1]} : vector<64x256xf32> to vector<7x256xf32>
    %488 = vector.extract_strided_slice %359 {offsets = [0, 0], sizes = [57, 256], strides = [1, 1]} : vector<64x256xf32> to vector<57x256xf32>
    %489 = tpu.concatenate %487, %488 in 0 : vector<7x256xf32>, vector<57x256xf32> -> vector<64x256xf32>
    %490 = vector.broadcast %486 : vector<1x256xf32> to vector<64x256xf32>
    %491 = arith.mulf %490, %489 : vector<64x256xf32>
    %c77 = arith.constant 77 : index
    %c0_93 = arith.constant 0 : index
    %492 = vector.load %arg2[%c77, %c0_93] : memref<112x256xf32, #tpu.memory_space<vmem>>, vector<1x256xf32>
    %493 = vector.extract_strided_slice %359 {offsets = [58, 0], sizes = [6, 256], strides = [1, 1]} : vector<64x256xf32> to vector<6x256xf32>
    %494 = vector.extract_strided_slice %359 {offsets = [0, 0], sizes = [58, 256], strides = [1, 1]} : vector<64x256xf32> to vector<58x256xf32>
    %495 = tpu.concatenate %493, %494 in 0 : vector<6x256xf32>, vector<58x256xf32> -> vector<64x256xf32>
    %496 = vector.broadcast %492 : vector<1x256xf32> to vector<64x256xf32>
    %497 = arith.mulf %496, %495 : vector<64x256xf32>
    %498 = arith.addf %491, %497 : vector<64x256xf32>
    %c78 = arith.constant 78 : index
    %c0_94 = arith.constant 0 : index
    %499 = vector.load %arg2[%c78, %c0_94] : memref<112x256xf32, #tpu.memory_space<vmem>>, vector<1x256xf32>
    %500 = vector.extract_strided_slice %359 {offsets = [59, 0], sizes = [5, 256], strides = [1, 1]} : vector<64x256xf32> to vector<5x256xf32>
    %501 = vector.extract_strided_slice %359 {offsets = [0, 0], sizes = [59, 256], strides = [1, 1]} : vector<64x256xf32> to vector<59x256xf32>
    %502 = tpu.concatenate %500, %501 in 0 : vector<5x256xf32>, vector<59x256xf32> -> vector<64x256xf32>
    %503 = vector.broadcast %499 : vector<1x256xf32> to vector<64x256xf32>
    %504 = arith.mulf %503, %502 : vector<64x256xf32>
    %505 = arith.addf %498, %504 : vector<64x256xf32>
    %c79 = arith.constant 79 : index
    %c0_95 = arith.constant 0 : index
    %506 = vector.load %arg2[%c79, %c0_95] : memref<112x256xf32, #tpu.memory_space<vmem>>, vector<1x256xf32>
    %507 = vector.extract_strided_slice %359 {offsets = [60, 0], sizes = [4, 256], strides = [1, 1]} : vector<64x256xf32> to vector<4x256xf32>
    %508 = vector.extract_strided_slice %359 {offsets = [0, 0], sizes = [60, 256], strides = [1, 1]} : vector<64x256xf32> to vector<60x256xf32>
    %509 = tpu.concatenate %507, %508 in 0 : vector<4x256xf32>, vector<60x256xf32> -> vector<64x256xf32>
    %510 = vector.broadcast %506 : vector<1x256xf32> to vector<64x256xf32>
    %511 = arith.mulf %510, %509 : vector<64x256xf32>
    %512 = arith.addf %505, %511 : vector<64x256xf32>
    %c80 = arith.constant 80 : index
    %c0_96 = arith.constant 0 : index
    %513 = vector.load %arg2[%c80, %c0_96] : memref<112x256xf32, #tpu.memory_space<vmem>>, vector<1x256xf32>
    %514 = vector.extract_strided_slice %359 {offsets = [61, 0], sizes = [3, 256], strides = [1, 1]} : vector<64x256xf32> to vector<3x256xf32>
    %515 = vector.extract_strided_slice %359 {offsets = [0, 0], sizes = [61, 256], strides = [1, 1]} : vector<64x256xf32> to vector<61x256xf32>
    %516 = tpu.concatenate %514, %515 in 0 : vector<3x256xf32>, vector<61x256xf32> -> vector<64x256xf32>
    %517 = vector.broadcast %513 : vector<1x256xf32> to vector<64x256xf32>
    %518 = arith.mulf %517, %516 : vector<64x256xf32>
    %519 = arith.addf %512, %518 : vector<64x256xf32>
    %c81 = arith.constant 81 : index
    %c0_97 = arith.constant 0 : index
    %520 = vector.load %arg2[%c81, %c0_97] : memref<112x256xf32, #tpu.memory_space<vmem>>, vector<1x256xf32>
    %521 = vector.extract_strided_slice %359 {offsets = [62, 0], sizes = [2, 256], strides = [1, 1]} : vector<64x256xf32> to vector<2x256xf32>
    %522 = vector.extract_strided_slice %359 {offsets = [0, 0], sizes = [62, 256], strides = [1, 1]} : vector<64x256xf32> to vector<62x256xf32>
    %523 = tpu.concatenate %521, %522 in 0 : vector<2x256xf32>, vector<62x256xf32> -> vector<64x256xf32>
    %524 = vector.broadcast %520 : vector<1x256xf32> to vector<64x256xf32>
    %525 = arith.mulf %524, %523 : vector<64x256xf32>
    %526 = arith.addf %519, %525 : vector<64x256xf32>
    %c82 = arith.constant 82 : index
    %c0_98 = arith.constant 0 : index
    %527 = vector.load %arg2[%c82, %c0_98] : memref<112x256xf32, #tpu.memory_space<vmem>>, vector<1x256xf32>
    %528 = vector.extract_strided_slice %359 {offsets = [63, 0], sizes = [1, 256], strides = [1, 1]} : vector<64x256xf32> to vector<1x256xf32>
    %529 = vector.extract_strided_slice %359 {offsets = [0, 0], sizes = [63, 256], strides = [1, 1]} : vector<64x256xf32> to vector<63x256xf32>
    %530 = tpu.concatenate %528, %529 in 0 : vector<1x256xf32>, vector<63x256xf32> -> vector<64x256xf32>
    %531 = vector.broadcast %527 : vector<1x256xf32> to vector<64x256xf32>
    %532 = arith.mulf %531, %530 : vector<64x256xf32>
    %533 = arith.addf %526, %532 : vector<64x256xf32>
    %c83 = arith.constant 83 : index
    %c0_99 = arith.constant 0 : index
    %534 = vector.load %arg2[%c83, %c0_99] : memref<112x256xf32, #tpu.memory_space<vmem>>, vector<1x256xf32>
    %535 = vector.broadcast %534 : vector<1x256xf32> to vector<64x256xf32>
    %536 = arith.mulf %535, %359 : vector<64x256xf32>
    %537 = arith.addf %533, %536 : vector<64x256xf32>
    %c84 = arith.constant 84 : index
    %c0_100 = arith.constant 0 : index
    %538 = vector.load %arg2[%c84, %c0_100] : memref<112x256xf32, #tpu.memory_space<vmem>>, vector<1x256xf32>
    %539 = vector.extract_strided_slice %359 {offsets = [1, 0], sizes = [63, 256], strides = [1, 1]} : vector<64x256xf32> to vector<63x256xf32>
    %540 = vector.extract_strided_slice %359 {offsets = [0, 0], sizes = [1, 256], strides = [1, 1]} : vector<64x256xf32> to vector<1x256xf32>
    %541 = tpu.concatenate %539, %540 in 0 : vector<63x256xf32>, vector<1x256xf32> -> vector<64x256xf32>
    %542 = vector.broadcast %538 : vector<1x256xf32> to vector<64x256xf32>
    %543 = arith.mulf %542, %541 : vector<64x256xf32>
    %544 = arith.addf %537, %543 : vector<64x256xf32>
    %c85 = arith.constant 85 : index
    %c0_101 = arith.constant 0 : index
    %545 = vector.load %arg2[%c85, %c0_101] : memref<112x256xf32, #tpu.memory_space<vmem>>, vector<1x256xf32>
    %546 = vector.extract_strided_slice %359 {offsets = [2, 0], sizes = [62, 256], strides = [1, 1]} : vector<64x256xf32> to vector<62x256xf32>
    %547 = vector.extract_strided_slice %359 {offsets = [0, 0], sizes = [2, 256], strides = [1, 1]} : vector<64x256xf32> to vector<2x256xf32>
    %548 = tpu.concatenate %546, %547 in 0 : vector<62x256xf32>, vector<2x256xf32> -> vector<64x256xf32>
    %549 = vector.broadcast %545 : vector<1x256xf32> to vector<64x256xf32>
    %550 = arith.mulf %549, %548 : vector<64x256xf32>
    %551 = arith.addf %544, %550 : vector<64x256xf32>
    %c86 = arith.constant 86 : index
    %c0_102 = arith.constant 0 : index
    %552 = vector.load %arg2[%c86, %c0_102] : memref<112x256xf32, #tpu.memory_space<vmem>>, vector<1x256xf32>
    %553 = vector.extract_strided_slice %359 {offsets = [3, 0], sizes = [61, 256], strides = [1, 1]} : vector<64x256xf32> to vector<61x256xf32>
    %554 = vector.extract_strided_slice %359 {offsets = [0, 0], sizes = [3, 256], strides = [1, 1]} : vector<64x256xf32> to vector<3x256xf32>
    %555 = tpu.concatenate %553, %554 in 0 : vector<61x256xf32>, vector<3x256xf32> -> vector<64x256xf32>
    %556 = vector.broadcast %552 : vector<1x256xf32> to vector<64x256xf32>
    %557 = arith.mulf %556, %555 : vector<64x256xf32>
    %558 = arith.addf %551, %557 : vector<64x256xf32>
    %c87 = arith.constant 87 : index
    %c0_103 = arith.constant 0 : index
    %559 = vector.load %arg2[%c87, %c0_103] : memref<112x256xf32, #tpu.memory_space<vmem>>, vector<1x256xf32>
    %560 = vector.extract_strided_slice %359 {offsets = [4, 0], sizes = [60, 256], strides = [1, 1]} : vector<64x256xf32> to vector<60x256xf32>
    %561 = vector.extract_strided_slice %359 {offsets = [0, 0], sizes = [4, 256], strides = [1, 1]} : vector<64x256xf32> to vector<4x256xf32>
    %562 = tpu.concatenate %560, %561 in 0 : vector<60x256xf32>, vector<4x256xf32> -> vector<64x256xf32>
    %563 = vector.broadcast %559 : vector<1x256xf32> to vector<64x256xf32>
    %564 = arith.mulf %563, %562 : vector<64x256xf32>
    %565 = arith.addf %558, %564 : vector<64x256xf32>
    %c88 = arith.constant 88 : index
    %c0_104 = arith.constant 0 : index
    %566 = vector.load %arg2[%c88, %c0_104] : memref<112x256xf32, #tpu.memory_space<vmem>>, vector<1x256xf32>
    %567 = vector.extract_strided_slice %359 {offsets = [5, 0], sizes = [59, 256], strides = [1, 1]} : vector<64x256xf32> to vector<59x256xf32>
    %568 = vector.extract_strided_slice %359 {offsets = [0, 0], sizes = [5, 256], strides = [1, 1]} : vector<64x256xf32> to vector<5x256xf32>
    %569 = tpu.concatenate %567, %568 in 0 : vector<59x256xf32>, vector<5x256xf32> -> vector<64x256xf32>
    %570 = vector.broadcast %566 : vector<1x256xf32> to vector<64x256xf32>
    %571 = arith.mulf %570, %569 : vector<64x256xf32>
    %572 = arith.addf %565, %571 : vector<64x256xf32>
    %c89 = arith.constant 89 : index
    %c0_105 = arith.constant 0 : index
    %573 = vector.load %arg2[%c89, %c0_105] : memref<112x256xf32, #tpu.memory_space<vmem>>, vector<1x256xf32>
    %574 = vector.extract_strided_slice %359 {offsets = [6, 0], sizes = [58, 256], strides = [1, 1]} : vector<64x256xf32> to vector<58x256xf32>
    %575 = vector.extract_strided_slice %359 {offsets = [0, 0], sizes = [6, 256], strides = [1, 1]} : vector<64x256xf32> to vector<6x256xf32>
    %576 = tpu.concatenate %574, %575 in 0 : vector<58x256xf32>, vector<6x256xf32> -> vector<64x256xf32>
    %577 = vector.broadcast %573 : vector<1x256xf32> to vector<64x256xf32>
    %578 = arith.mulf %577, %576 : vector<64x256xf32>
    %579 = arith.addf %572, %578 : vector<64x256xf32>
    %c90 = arith.constant 90 : index
    %c0_106 = arith.constant 0 : index
    %580 = vector.load %arg2[%c90, %c0_106] : memref<112x256xf32, #tpu.memory_space<vmem>>, vector<1x256xf32>
    %581 = vector.extract_strided_slice %359 {offsets = [7, 0], sizes = [57, 256], strides = [1, 1]} : vector<64x256xf32> to vector<57x256xf32>
    %582 = vector.extract_strided_slice %359 {offsets = [0, 0], sizes = [7, 256], strides = [1, 1]} : vector<64x256xf32> to vector<7x256xf32>
    %583 = tpu.concatenate %581, %582 in 0 : vector<57x256xf32>, vector<7x256xf32> -> vector<64x256xf32>
    %584 = vector.broadcast %580 : vector<1x256xf32> to vector<64x256xf32>
    %585 = arith.mulf %584, %583 : vector<64x256xf32>
    %586 = arith.addf %579, %585 : vector<64x256xf32>
    %c6_107 = arith.constant 6 : index
    %c0_108 = arith.constant 0 : index
    %587 = vector.load %arg3[%c6_107, %c0_108] : memref<8x256xf32, #tpu.memory_space<vmem>>, vector<1x256xf32>
    %588 = vector.broadcast %587 : vector<1x256xf32> to vector<64x256xf32>
    %589 = arith.addf %586, %588 : vector<64x256xf32>
    %590 = arith.addf %485, %589 : vector<64x256xf32>
    %c91 = arith.constant 91 : index
    %c0_109 = arith.constant 0 : index
    %591 = vector.load %arg2[%c91, %c0_109] : memref<112x256xf32, #tpu.memory_space<vmem>>, vector<1x256xf32>
    %592 = vector.extract_strided_slice %590 {offsets = [0, 249], sizes = [64, 7], strides = [1, 1]} : vector<64x256xf32> to vector<64x7xf32>
    %593 = vector.extract_strided_slice %590 {offsets = [0, 0], sizes = [64, 249], strides = [1, 1]} : vector<64x256xf32> to vector<64x249xf32>
    %594 = tpu.concatenate %592, %593 in 1 : vector<64x7xf32>, vector<64x249xf32> -> vector<64x256xf32>
    %595 = vector.broadcast %591 : vector<1x256xf32> to vector<64x256xf32>
    %596 = arith.mulf %595, %594 : vector<64x256xf32>
    %c92 = arith.constant 92 : index
    %c0_110 = arith.constant 0 : index
    %597 = vector.load %arg2[%c92, %c0_110] : memref<112x256xf32, #tpu.memory_space<vmem>>, vector<1x256xf32>
    %598 = vector.extract_strided_slice %590 {offsets = [0, 250], sizes = [64, 6], strides = [1, 1]} : vector<64x256xf32> to vector<64x6xf32>
    %599 = vector.extract_strided_slice %590 {offsets = [0, 0], sizes = [64, 250], strides = [1, 1]} : vector<64x256xf32> to vector<64x250xf32>
    %600 = tpu.concatenate %598, %599 in 1 : vector<64x6xf32>, vector<64x250xf32> -> vector<64x256xf32>
    %601 = vector.broadcast %597 : vector<1x256xf32> to vector<64x256xf32>
    %602 = arith.mulf %601, %600 : vector<64x256xf32>
    %603 = arith.addf %596, %602 : vector<64x256xf32>
    %c93 = arith.constant 93 : index
    %c0_111 = arith.constant 0 : index
    %604 = vector.load %arg2[%c93, %c0_111] : memref<112x256xf32, #tpu.memory_space<vmem>>, vector<1x256xf32>
    %605 = vector.extract_strided_slice %590 {offsets = [0, 251], sizes = [64, 5], strides = [1, 1]} : vector<64x256xf32> to vector<64x5xf32>
    %606 = vector.extract_strided_slice %590 {offsets = [0, 0], sizes = [64, 251], strides = [1, 1]} : vector<64x256xf32> to vector<64x251xf32>
    %607 = tpu.concatenate %605, %606 in 1 : vector<64x5xf32>, vector<64x251xf32> -> vector<64x256xf32>
    %608 = vector.broadcast %604 : vector<1x256xf32> to vector<64x256xf32>
    %609 = arith.mulf %608, %607 : vector<64x256xf32>
    %610 = arith.addf %603, %609 : vector<64x256xf32>
    %c94 = arith.constant 94 : index
    %c0_112 = arith.constant 0 : index
    %611 = vector.load %arg2[%c94, %c0_112] : memref<112x256xf32, #tpu.memory_space<vmem>>, vector<1x256xf32>
    %612 = vector.extract_strided_slice %590 {offsets = [0, 252], sizes = [64, 4], strides = [1, 1]} : vector<64x256xf32> to vector<64x4xf32>
    %613 = vector.extract_strided_slice %590 {offsets = [0, 0], sizes = [64, 252], strides = [1, 1]} : vector<64x256xf32> to vector<64x252xf32>
    %614 = tpu.concatenate %612, %613 in 1 : vector<64x4xf32>, vector<64x252xf32> -> vector<64x256xf32>
    %615 = vector.broadcast %611 : vector<1x256xf32> to vector<64x256xf32>
    %616 = arith.mulf %615, %614 : vector<64x256xf32>
    %617 = arith.addf %610, %616 : vector<64x256xf32>
    %c95 = arith.constant 95 : index
    %c0_113 = arith.constant 0 : index
    %618 = vector.load %arg2[%c95, %c0_113] : memref<112x256xf32, #tpu.memory_space<vmem>>, vector<1x256xf32>
    %619 = vector.extract_strided_slice %590 {offsets = [0, 253], sizes = [64, 3], strides = [1, 1]} : vector<64x256xf32> to vector<64x3xf32>
    %620 = vector.extract_strided_slice %590 {offsets = [0, 0], sizes = [64, 253], strides = [1, 1]} : vector<64x256xf32> to vector<64x253xf32>
    %621 = tpu.concatenate %619, %620 in 1 : vector<64x3xf32>, vector<64x253xf32> -> vector<64x256xf32>
    %622 = vector.broadcast %618 : vector<1x256xf32> to vector<64x256xf32>
    %623 = arith.mulf %622, %621 : vector<64x256xf32>
    %624 = arith.addf %617, %623 : vector<64x256xf32>
    %c96 = arith.constant 96 : index
    %c0_114 = arith.constant 0 : index
    %625 = vector.load %arg2[%c96, %c0_114] : memref<112x256xf32, #tpu.memory_space<vmem>>, vector<1x256xf32>
    %626 = vector.extract_strided_slice %590 {offsets = [0, 254], sizes = [64, 2], strides = [1, 1]} : vector<64x256xf32> to vector<64x2xf32>
    %627 = vector.extract_strided_slice %590 {offsets = [0, 0], sizes = [64, 254], strides = [1, 1]} : vector<64x256xf32> to vector<64x254xf32>
    %628 = tpu.concatenate %626, %627 in 1 : vector<64x2xf32>, vector<64x254xf32> -> vector<64x256xf32>
    %629 = vector.broadcast %625 : vector<1x256xf32> to vector<64x256xf32>
    %630 = arith.mulf %629, %628 : vector<64x256xf32>
    %631 = arith.addf %624, %630 : vector<64x256xf32>
    %c97 = arith.constant 97 : index
    %c0_115 = arith.constant 0 : index
    %632 = vector.load %arg2[%c97, %c0_115] : memref<112x256xf32, #tpu.memory_space<vmem>>, vector<1x256xf32>
    %633 = vector.extract_strided_slice %590 {offsets = [0, 255], sizes = [64, 1], strides = [1, 1]} : vector<64x256xf32> to vector<64x1xf32>
    %634 = vector.extract_strided_slice %590 {offsets = [0, 0], sizes = [64, 255], strides = [1, 1]} : vector<64x256xf32> to vector<64x255xf32>
    %635 = tpu.concatenate %633, %634 in 1 : vector<64x1xf32>, vector<64x255xf32> -> vector<64x256xf32>
    %636 = vector.broadcast %632 : vector<1x256xf32> to vector<64x256xf32>
    %637 = arith.mulf %636, %635 : vector<64x256xf32>
    %638 = arith.addf %631, %637 : vector<64x256xf32>
    %c98 = arith.constant 98 : index
    %c0_116 = arith.constant 0 : index
    %639 = vector.load %arg2[%c98, %c0_116] : memref<112x256xf32, #tpu.memory_space<vmem>>, vector<1x256xf32>
    %640 = vector.broadcast %639 : vector<1x256xf32> to vector<64x256xf32>
    %641 = arith.mulf %640, %590 : vector<64x256xf32>
    %642 = arith.addf %638, %641 : vector<64x256xf32>
    %c99 = arith.constant 99 : index
    %c0_117 = arith.constant 0 : index
    %643 = vector.load %arg2[%c99, %c0_117] : memref<112x256xf32, #tpu.memory_space<vmem>>, vector<1x256xf32>
    %644 = vector.extract_strided_slice %590 {offsets = [0, 1], sizes = [64, 255], strides = [1, 1]} : vector<64x256xf32> to vector<64x255xf32>
    %645 = vector.extract_strided_slice %590 {offsets = [0, 0], sizes = [64, 1], strides = [1, 1]} : vector<64x256xf32> to vector<64x1xf32>
    %646 = tpu.concatenate %644, %645 in 1 : vector<64x255xf32>, vector<64x1xf32> -> vector<64x256xf32>
    %647 = vector.broadcast %643 : vector<1x256xf32> to vector<64x256xf32>
    %648 = arith.mulf %647, %646 : vector<64x256xf32>
    %649 = arith.addf %642, %648 : vector<64x256xf32>
    %c100 = arith.constant 100 : index
    %c0_118 = arith.constant 0 : index
    %650 = vector.load %arg2[%c100, %c0_118] : memref<112x256xf32, #tpu.memory_space<vmem>>, vector<1x256xf32>
    %651 = vector.extract_strided_slice %590 {offsets = [0, 2], sizes = [64, 254], strides = [1, 1]} : vector<64x256xf32> to vector<64x254xf32>
    %652 = vector.extract_strided_slice %590 {offsets = [0, 0], sizes = [64, 2], strides = [1, 1]} : vector<64x256xf32> to vector<64x2xf32>
    %653 = tpu.concatenate %651, %652 in 1 : vector<64x254xf32>, vector<64x2xf32> -> vector<64x256xf32>
    %654 = vector.broadcast %650 : vector<1x256xf32> to vector<64x256xf32>
    %655 = arith.mulf %654, %653 : vector<64x256xf32>
    %656 = arith.addf %649, %655 : vector<64x256xf32>
    %c101 = arith.constant 101 : index
    %c0_119 = arith.constant 0 : index
    %657 = vector.load %arg2[%c101, %c0_119] : memref<112x256xf32, #tpu.memory_space<vmem>>, vector<1x256xf32>
    %658 = vector.extract_strided_slice %590 {offsets = [0, 3], sizes = [64, 253], strides = [1, 1]} : vector<64x256xf32> to vector<64x253xf32>
    %659 = vector.extract_strided_slice %590 {offsets = [0, 0], sizes = [64, 3], strides = [1, 1]} : vector<64x256xf32> to vector<64x3xf32>
    %660 = tpu.concatenate %658, %659 in 1 : vector<64x253xf32>, vector<64x3xf32> -> vector<64x256xf32>
    %661 = vector.broadcast %657 : vector<1x256xf32> to vector<64x256xf32>
    %662 = arith.mulf %661, %660 : vector<64x256xf32>
    %663 = arith.addf %656, %662 : vector<64x256xf32>
    %c102 = arith.constant 102 : index
    %c0_120 = arith.constant 0 : index
    %664 = vector.load %arg2[%c102, %c0_120] : memref<112x256xf32, #tpu.memory_space<vmem>>, vector<1x256xf32>
    %665 = vector.extract_strided_slice %590 {offsets = [0, 4], sizes = [64, 252], strides = [1, 1]} : vector<64x256xf32> to vector<64x252xf32>
    %666 = vector.extract_strided_slice %590 {offsets = [0, 0], sizes = [64, 4], strides = [1, 1]} : vector<64x256xf32> to vector<64x4xf32>
    %667 = tpu.concatenate %665, %666 in 1 : vector<64x252xf32>, vector<64x4xf32> -> vector<64x256xf32>
    %668 = vector.broadcast %664 : vector<1x256xf32> to vector<64x256xf32>
    %669 = arith.mulf %668, %667 : vector<64x256xf32>
    %670 = arith.addf %663, %669 : vector<64x256xf32>
    %c103 = arith.constant 103 : index
    %c0_121 = arith.constant 0 : index
    %671 = vector.load %arg2[%c103, %c0_121] : memref<112x256xf32, #tpu.memory_space<vmem>>, vector<1x256xf32>
    %672 = vector.extract_strided_slice %590 {offsets = [0, 5], sizes = [64, 251], strides = [1, 1]} : vector<64x256xf32> to vector<64x251xf32>
    %673 = vector.extract_strided_slice %590 {offsets = [0, 0], sizes = [64, 5], strides = [1, 1]} : vector<64x256xf32> to vector<64x5xf32>
    %674 = tpu.concatenate %672, %673 in 1 : vector<64x251xf32>, vector<64x5xf32> -> vector<64x256xf32>
    %675 = vector.broadcast %671 : vector<1x256xf32> to vector<64x256xf32>
    %676 = arith.mulf %675, %674 : vector<64x256xf32>
    %677 = arith.addf %670, %676 : vector<64x256xf32>
    %c104 = arith.constant 104 : index
    %c0_122 = arith.constant 0 : index
    %678 = vector.load %arg2[%c104, %c0_122] : memref<112x256xf32, #tpu.memory_space<vmem>>, vector<1x256xf32>
    %679 = vector.extract_strided_slice %590 {offsets = [0, 6], sizes = [64, 250], strides = [1, 1]} : vector<64x256xf32> to vector<64x250xf32>
    %680 = vector.extract_strided_slice %590 {offsets = [0, 0], sizes = [64, 6], strides = [1, 1]} : vector<64x256xf32> to vector<64x6xf32>
    %681 = tpu.concatenate %679, %680 in 1 : vector<64x250xf32>, vector<64x6xf32> -> vector<64x256xf32>
    %682 = vector.broadcast %678 : vector<1x256xf32> to vector<64x256xf32>
    %683 = arith.mulf %682, %681 : vector<64x256xf32>
    %684 = arith.addf %677, %683 : vector<64x256xf32>
    %c105 = arith.constant 105 : index
    %c0_123 = arith.constant 0 : index
    %685 = vector.load %arg2[%c105, %c0_123] : memref<112x256xf32, #tpu.memory_space<vmem>>, vector<1x256xf32>
    %686 = vector.extract_strided_slice %590 {offsets = [0, 7], sizes = [64, 249], strides = [1, 1]} : vector<64x256xf32> to vector<64x249xf32>
    %687 = vector.extract_strided_slice %590 {offsets = [0, 0], sizes = [64, 7], strides = [1, 1]} : vector<64x256xf32> to vector<64x7xf32>
    %688 = tpu.concatenate %686, %687 in 1 : vector<64x249xf32>, vector<64x7xf32> -> vector<64x256xf32>
    %689 = vector.broadcast %685 : vector<1x256xf32> to vector<64x256xf32>
    %690 = arith.mulf %689, %688 : vector<64x256xf32>
    %691 = arith.addf %684, %690 : vector<64x256xf32>
    %c7_124 = arith.constant 7 : index
    %c0_125 = arith.constant 0 : index
    %692 = vector.load %arg3[%c7_124, %c0_125] : memref<8x256xf32, #tpu.memory_space<vmem>>, vector<1x256xf32>
    %693 = vector.broadcast %692 : vector<1x256xf32> to vector<64x256xf32>
    %694 = arith.addf %691, %693 : vector<64x256xf32>
    %695 = arith.mulf %694, %0 : vector<64x256xf32>
    %696 = vector.extract_strided_slice %695 {offsets = [8, 64], sizes = [16, 128], strides = [1, 1]} : vector<64x256xf32> to vector<16x128xf32>
    %c0_126 = arith.constant 0 : index
    %c0_127 = arith.constant 0 : index
    %697 = vector.load %arg5[%c0_126, %c0_127] : memref<32x128xf32, #tpu.memory_space<vmem>>, vector<16x128xf32>
    tpu.vector_store %arg5[%c0_126, %c0_127], %696 {strides = array<i32>} : memref<32x128xf32, #tpu.memory_space<vmem>>, vector<16x128xf32>,
    %698 = vector.extract_strided_slice %695 {offsets = [40, 64], sizes = [16, 128], strides = [1, 1]} : vector<64x256xf32> to vector<16x128xf32>
    %c16_128 = arith.constant 16 : index
    %c0_129 = arith.constant 0 : index
    %699 = vector.load %arg5[%c16_128, %c0_129] : memref<32x128xf32, #tpu.memory_space<vmem>>, vector<16x128xf32>
    tpu.vector_store %arg5[%c16_128, %c0_129], %698 {strides = array<i32>} : memref<32x128xf32, #tpu.memory_space<vmem>>, vector<16x128xf32>,
    return
  }
  func.func @transform_0(%arg0: i32) -> (i32, i32) {
    %c0_i32 = arith.constant 0 : i32
    %c0_i32_0 = arith.constant 0 : i32
    return %arg0, %c0_i32 : i32, i32
  }
  func.func @transform_1(%arg0: i32) -> (i32, i32) {
    %c0_i32 = arith.constant 0 : i32
    %c0_i32_0 = arith.constant 0 : i32
    %c0_i32_1 = arith.constant 0 : i32
    return %c0_i32, %c0_i32_0 : i32, i32
  }
  func.func @transform_2(%arg0: i32) -> (i32, i32) {
    %c0_i32 = arith.constant 0 : i32
    %c0_i32_0 = arith.constant 0 : i32
    %c0_i32_1 = arith.constant 0 : i32
    return %c0_i32, %c0_i32_0 : i32, i32
  }
  func.func @transform_3(%arg0: i32) -> (i32, i32) {
    %c0_i32 = arith.constant 0 : i32
    %c0_i32_0 = arith.constant 0 : i32
    %c0_i32_1 = arith.constant 0 : i32
    return %c0_i32, %c0_i32_0 : i32, i32
  }
  func.func @transform_4(%arg0: i32) -> (i32, i32) {
    %c0_i32 = arith.constant 0 : i32
    %c0_i32_0 = arith.constant 0 : i32
    return %arg0, %c0_i32 : i32, i32
  }
}

</mosaic_0001>

<llo_original>
// kernel: tpu_custom_call.1
$region0: #{tpu_custom_call.1}
  #allocation0 [shape = 'u32[]', space=smem, size = 0x4, offset = 0x4, fixed_abs, tag = 'smem constant byte address 0x4 - core index']
  #allocation1 [shape = 'u32[144,128]{1,0:T(1,128)}', space=vmem, size = 0x12000, scoped, tag = 'internal scratch']
  %s0 = inlined_call_operand.hbm [shape: f32[64,256], index: 0, kind: input, shape index: {}]
  %s1 = inlined_call_operand.hbm [shape: f32[112,256], index: 1, kind: input, shape index: {}]
  %s2 = inlined_call_operand.hbm [shape: f32[8,256], index: 2, kind: input, shape index: {}]
  %s3 = inlined_call_operand.hbm [shape: f32[64,256], index: 3, kind: input, shape index: {}]
  %s4 = inlined_call_operand.hbm [shape: f32[32,128], index: 4, kind: output, shape index: {}]
  %s5 = sld [smem:[#allocation0]]
  $region42: #{tpu_custom_call.1} parent=0
    _
  %s7 = ssub.s32 1, %s5
  %s8 = scalar_select 0, %s7, %s5
  $region1: #{tpu_custom_call.1} parent=0
    #allocation2 [shape = 'u8[65536]{0}', space=vmem, size = 0x10000, scoped, tag = 'input window, operand 0, single buffered']
    #allocation3 [shape = 's32[1]{0}', space=sflag, size = 0x4, scoped, tag = 'scoped memory for tpu_custom_call.1']
    #allocation4 [shape = 's32[1]{0}', space=sflag, size = 0x4, scoped, tag = 'scoped memory for tpu_custom_call.1']
    #allocation5 [shape = 'u8[114688]{0}', space=vmem, size = 0x1c000, scoped, tag = 'input window, operand 1, single buffered']
    #allocation6 [shape = 's32[1]{0}', space=sflag, size = 0x4, scoped, tag = 'scoped memory for tpu_custom_call.1']
    #allocation7 [shape = 'u8[8192]{0}', space=vmem, size = 0x2000, scoped, tag = 'input window, operand 2, single buffered']
    #allocation8 [shape = 'u8[65536]{0}', space=vmem, size = 0x10000, scoped, tag = 'input window, operand 3, single buffered']
    #allocation9 [shape = 's32[1]{0}', space=sflag, size = 0x4, scoped, tag = 'scoped memory for tpu_custom_call.1']
    #allocation10 [shape = 'u8[16384]{0}', space=vmem, size = 0x4000, scoped, tag = 'output window, operand 0, single buffered']
    %9 = vsyncpa [#allocation3], 0
    %10 = vsyncpa [#allocation6], 0
    %11 = vsyncpa [#allocation9], 0
    %12 = vsyncpa [#allocation4], 0
    // Predicated region
    $region2: #{tpu_custom_call.1} parent=1 // pred_check
      _
    $region3: #{tpu_custom_call.1} parent=1 // pred_check_branch
      %14 = sbr.rel (0) target = $region5
    $region4: #{tpu_custom_call.1} parent=1 // pred_region
      %s16 = ssub.s32 2048, 2048
      %17 = vsyncadd [#allocation3], %s16
      %s18 = sshll.u32 [#allocation2], 4
      %s19 = int_to_ptr.vmem [resolvable:$true] %s18
      %24 = dma.hbm_to_vmem [thread:$0]  %s0, 2048, %s19, [#allocation3], 256, 256, 16
    $region5: #{tpu_custom_call.1} parent=1 // pred_fallthru
      _
    // Predicated region
    $region6: #{tpu_custom_call.1} parent=1 // pred_check
      _
    $region7: #{tpu_custom_call.1} parent=1 // pred_check_branch
      %26 = sbr.rel (0) target = $region9
    $region8: #{tpu_custom_call.1} parent=1 // pred_region
      %s28 = ssub.s32 3584, 3584
      %29 = vsyncadd [#allocation6], %s28
      %s30 = sshll.u32 [#allocation5], 4
      %s31 = int_to_ptr.vmem [resolvable:$true] %s30
      %36 = dma.hbm_to_vmem [thread:$0]  %s1, 3584, %s31, [#allocation6], 256, 256, 16
    $region9: #{tpu_custom_call.1} parent=1 // pred_fallthru
      _
    // Predicated region
    $region10: #{tpu_custom_call.1} parent=1 // pred_check
      _
    $region11: #{tpu_custom_call.1} parent=1 // pred_check_branch
      %38 = sbr.rel (0) target = $region13
    $region12: #{tpu_custom_call.1} parent=1 // pred_region
      %s40 = ssub.s32 256, 256
      %41 = vsyncadd [#allocation6], %s40
      %s43 = sshll.u32 [#allocation7], 4
      %s44 = int_to_ptr.vmem [resolvable:$true] %s43
      %46 = dma.hbm_to_vmem [thread:$0]  %s2, 256, %s44, [#allocation6]
    $region13: #{tpu_custom_call.1} parent=1 // pred_fallthru
      _
    // Predicated region
    $region14: #{tpu_custom_call.1} parent=1 // pred_check
      _
    $region15: #{tpu_custom_call.1} parent=1 // pred_check_branch
      %48 = sbr.rel (0) target = $region17
    $region16: #{tpu_custom_call.1} parent=1 // pred_region
      %s50 = ssub.s32 2048, 2048
      %51 = vsyncadd [#allocation9], %s50
      %s52 = sshll.u32 [#allocation8], 4
      %s53 = int_to_ptr.vmem [resolvable:$true] %s52
      %58 = dma.hbm_to_vmem [thread:$0]  %s3, 2048, %s53, [#allocation9], 256, 256, 16
    $region17: #{tpu_custom_call.1} parent=1 // pred_fallthru
      _
    // Predicated region
    $region18: #{tpu_custom_call.1} parent=1 // pred_check
      _
    $region19: #{tpu_custom_call.1} parent=1 // pred_check_branch
      %60 = sbr.rel (0) target = $region21
    $region20: #{tpu_custom_call.1} parent=1 // pred_region
      %61 = dma.done [#allocation3], 2048
    $region21: #{tpu_custom_call.1} parent=1 // pred_fallthru
      _
    // Predicated region
    $region22: #{tpu_custom_call.1} parent=1 // pred_check
      _
    $region23: #{tpu_custom_call.1} parent=1 // pred_check_branch
      %63 = sbr.rel (0) target = $region25
    $region24: #{tpu_custom_call.1} parent=1 // pred_region
      %64 = dma.done [#allocation6], 3584
    $region25: #{tpu_custom_call.1} parent=1 // pred_fallthru
      _
    // Predicated region
    $region26: #{tpu_custom_call.1} parent=1 // pred_check
      _
    $region27: #{tpu_custom_call.1} parent=1 // pred_check_branch
      %66 = sbr.rel (0) target = $region29
    $region28: #{tpu_custom_call.1} parent=1 // pred_region
      %67 = dma.done [#allocation6], 256
    $region29: #{tpu_custom_call.1} parent=1 // pred_fallthru
      _
    // Predicated region
    $region30: #{tpu_custom_call.1} parent=1 // pred_check
      _
    $region31: #{tpu_custom_call.1} parent=1 // pred_check_branch
      %69 = sbr.rel (0) target = $region33
    $region32: #{tpu_custom_call.1} parent=1 // pred_region
      %70 = dma.done [#allocation9], 2048
    $region33: #{tpu_custom_call.1} parent=1 // pred_fallthru
      _
    %v71 = vld [vmem:[#allocation2] sm:$0xff]
    %v72 = vld [vmem:[#allocation2 + $0x8] sm:$0xff]
    %v73 = vld [vmem:[#allocation2 + $0x10] sm:$0xff]
    %v74 = vld [vmem:[#allocation2 + $0x18] sm:$0xff]
    %v75 = vld [vmem:[#allocation2 + $0x20] sm:$0xff]
    %v76 = vld [vmem:[#allocation2 + $0x28] sm:$0xff]
    %v77 = vld [vmem:[#allocation2 + $0x30] sm:$0xff]
    %v78 = vld [vmem:[#allocation2 + $0x38] sm:$0xff]
    %v79 = vld [vmem:[#allocation2 + $0x40] sm:$0xff]
    %v80 = vld [vmem:[#allocation2 + $0x48] sm:$0xff]
    %v81 = vld [vmem:[#allocation2 + $0x50] sm:$0xff]
    %v82 = vld [vmem:[#allocation2 + $0x58] sm:$0xff]
    %v83 = vld [vmem:[#allocation2 + $0x60] sm:$0xff]
    %v84 = vld [vmem:[#allocation2 + $0x68] sm:$0xff]
    %v85 = vld [vmem:[#allocation2 + $0x70] sm:$0xff]
    %v86 = vld [vmem:[#allocation2 + $0x78] sm:$0xff]
    %v87 = vld [vmem:[#allocation8] sm:$0xff]
    %v88 = vld [vmem:[#allocation8 + $0x8] sm:$0xff]
    %v89 = vld [vmem:[#allocation8 + $0x10] sm:$0xff]
    %v90 = vld [vmem:[#allocation8 + $0x18] sm:$0xff]
    %v91 = vld [vmem:[#allocation8 + $0x20] sm:$0xff]
    %v92 = vld [vmem:[#allocation8 + $0x28] sm:$0xff]
    %v93 = vld [vmem:[#allocation8 + $0x30] sm:$0xff]
    %v94 = vld [vmem:[#allocation8 + $0x38] sm:$0xff]
    %v95 = vld [vmem:[#allocation8 + $0x40] sm:$0xff]
    %v96 = vld [vmem:[#allocation8 + $0x48] sm:$0xff]
    %v97 = vld [vmem:[#allocation8 + $0x50] sm:$0xff]
    %v98 = vld [vmem:[#allocation8 + $0x58] sm:$0xff]
    %v99 = vld [vmem:[#allocation8 + $0x60] sm:$0xff]
    %v100 = vld [vmem:[#allocation8 + $0x68] sm:$0xff]
    %v101 = vld [vmem:[#allocation8 + $0x70] sm:$0xff]
    %v102 = vld [vmem:[#allocation8 + $0x78] sm:$0xff]
    %v105 = vrot.slane %v85, 6
    %v106 = vrot.slane %v86, 6
    %vm123 = vcmask 1041408
    %v124 = vrot.slane %v71, 6
    %v125 = vrot.slane %v72, 6
    %v126 = vrot.slane %v73, 6
    %v127 = vsel %vm123, %v124, %v126
    %v128 = vrot.slane %v74, 6
    %v129 = vsel %vm123, %v125, %v128
    %v130 = vrot.slane %v75, 6
    %v131 = vsel %vm123, %v126, %v130
    %v132 = vrot.slane %v76, 6
    %v133 = vsel %vm123, %v128, %v132
    %v134 = vrot.slane %v77, 6
    %v135 = vsel %vm123, %v130, %v134
    %v136 = vrot.slane %v78, 6
    %v137 = vsel %vm123, %v132, %v136
    %v138 = vrot.slane %v79, 6
    %v139 = vsel %vm123, %v134, %v138
    %v140 = vrot.slane %v80, 6
    %v141 = vsel %vm123, %v136, %v140
    %v142 = vrot.slane %v81, 6
    %v143 = vsel %vm123, %v138, %v142
    %v144 = vrot.slane %v82, 6
    %v145 = vsel %vm123, %v140, %v144
    %v146 = vrot.slane %v83, 6
    %v147 = vsel %vm123, %v142, %v146
    %v148 = vrot.slane %v84, 6
    %v149 = vsel %vm123, %v144, %v148
    %v150 = vsel %vm123, %v146, %v105
    %v151 = vsel %vm123, %v148, %v106
    %v168 = vsel %vm123, %v105, %v124
    %v169 = vsel %vm123, %v106, %v125
    %v170 = vld [vmem:[#allocation5] ss:$8 sm:$0x3]
    %172 = vrot.lane.b32.xlu0 %v169, 16
    %v173 = vpop.permute.xlu0 %172
    %174 = vrot.lane.b32.xlu0 %v129, 16
    %v175 = vpop.permute.xlu0 %174
    %176 = vrot.lane.b32.xlu0 %v133, 16
    %v177 = vpop.permute.xlu0 %176
    %178 = vrot.lane.b32.xlu0 %v137, 16
    %v179 = vpop.permute.xlu0 %178
    %180 = vrot.lane.b32.xlu0 %v141, 16
    %v181 = vpop.permute.xlu0 %180
    %182 = vrot.lane.b32.xlu0 %v145, 16
    %v183 = vpop.permute.xlu0 %182
    %184 = vrot.lane.b32.xlu0 %v149, 16
    %v185 = vpop.permute.xlu0 %184
    %186 = vrot.lane.b32.xlu0 %v151, 16
    %v187 = vpop.permute.xlu0 %186
    %197 = vrot.lane.b32.xlu0 %v168, 16
    %v198 = vpop.permute.xlu0 %197
    %199 = vrot.lane.b32.xlu0 %v127, 16
    %v200 = vpop.permute.xlu0 %199
    %201 = vrot.lane.b32.xlu0 %v131, 16
    %v202 = vpop.permute.xlu0 %201
    %203 = vrot.lane.b32.xlu0 %v135, 16
    %v204 = vpop.permute.xlu0 %203
    %205 = vrot.lane.b32.xlu0 %v139, 16
    %v206 = vpop.permute.xlu0 %205
    %207 = vrot.lane.b32.xlu0 %v143, 16
    %v208 = vpop.permute.xlu0 %207
    %209 = vrot.lane.b32.xlu0 %v147, 16
    %v210 = vpop.permute.xlu0 %209
    %211 = vrot.lane.b32.xlu0 %v150, 16
    %v212 = vpop.permute.xlu0 %211
    %vm213 = vcmask 130048
    %v214 = vsel %vm213, %v198, %v173
    %v215 = vsel %vm213, %v200, %v175
    %v216 = vsel %vm213, %v202, %v177
    %v217 = vsel %vm213, %v204, %v179
    %v218 = vsel %vm213, %v206, %v181
    %v219 = vsel %vm213, %v208, %v183
    %v220 = vsel %vm213, %v210, %v185
    %v221 = vsel %vm213, %v212, %v187
    %v238 = vsel %vm213, %v173, %v198
    %v239 = vsel %vm213, %v175, %v200
    %v240 = vsel %vm213, %v177, %v202
    %v241 = vsel %vm213, %v179, %v204
    %v242 = vsel %vm213, %v181, %v206
    %v243 = vsel %vm213, %v183, %v208
    %v244 = vsel %vm213, %v185, %v210
    %v245 = vsel %vm213, %v187, %v212
    %v247 = vlaneseq
    %v248 = vshrl.u32 %v247, 7
    %v249 = vsub.s32 0, %v248
    %v250 = vrot.slane %v170, %v249
    %v251 = vlaneseq
    %v252 = vshrl.u32 %v251, 7
    %v253 = vsub.s32 1, %v252
    %v254 = vrot.slane %v170, %v253
    %v257 = vmul.f32 %v250, %v238
    %v258 = vmul.f32 %v254, %v214
    %v259 = vmul.f32 %v250, %v239
    %v260 = vmul.f32 %v254, %v215
    %v261 = vmul.f32 %v250, %v240
    %v262 = vmul.f32 %v254, %v216
    %v263 = vmul.f32 %v250, %v241
    %v264 = vmul.f32 %v254, %v217
    %v265 = vmul.f32 %v250, %v242
    %v266 = vmul.f32 %v254, %v218
    %v267 = vmul.f32 %v250, %v243
    %v268 = vmul.f32 %v254, %v219
    %v269 = vmul.f32 %v250, %v244
    %v270 = vmul.f32 %v254, %v220
    %v271 = vmul.f32 %v250, %v245
    %v272 = vmul.f32 %v254, %v221
    %s273 = scalar_lea.vmem [#allocation5], 1
    %v274 = vld [vmem:[%s273] ss:$8 sm:$0x3]
    %275 = vrot.lane.b32.xlu0 %v169, 8
    %v276 = vpop.permute.xlu0 %275
    %277 = vrot.lane.b32.xlu0 %v129, 8
    %v278 = vpop.permute.xlu0 %277
    %279 = vrot.lane.b32.xlu0 %v133, 8
    %v280 = vpop.permute.xlu0 %279
    %281 = vrot.lane.b32.xlu0 %v137, 8
    %v282 = vpop.permute.xlu0 %281
    %283 = vrot.lane.b32.xlu0 %v141, 8
    %v284 = vpop.permute.xlu0 %283
    %285 = vrot.lane.b32.xlu0 %v145, 8
    %v286 = vpop.permute.xlu0 %285
    %287 = vrot.lane.b32.xlu0 %v149, 8
    %v288 = vpop.permute.xlu0 %287
    %289 = vrot.lane.b32.xlu0 %v151, 8
    %v290 = vpop.permute.xlu0 %289
    %299 = vrot.lane.b32.xlu0 %v168, 8
    %v300 = vpop.permute.xlu0 %299
    %301 = vrot.lane.b32.xlu0 %v127, 8
    %v302 = vpop.permute.xlu0 %301
    %303 = vrot.lane.b32.xlu0 %v131, 8
    %v304 = vpop.permute.xlu0 %303
    %305 = vrot.lane.b32.xlu0 %v135, 8
    %v306 = vpop.permute.xlu0 %305
    %307 = vrot.lane.b32.xlu0 %v139, 8
    %v308 = vpop.permute.xlu0 %307
    %309 = vrot.lane.b32.xlu0 %v143, 8
    %v310 = vpop.permute.xlu0 %309
    %311 = vrot.lane.b32.xlu0 %v147, 8
    %v312 = vpop.permute.xlu0 %311
    %313 = vrot.lane.b32.xlu0 %v150, 8
    %v314 = vpop.permute.xlu0 %313
    %vm315 = vcmask 64512
    %v316 = vsel %vm315, %v300, %v276
    %v317 = vsel %vm315, %v302, %v278
    %v318 = vsel %vm315, %v304, %v280
    %v319 = vsel %vm315, %v306, %v282
    %v320 = vsel %vm315, %v308, %v284
    %v321 = vsel %vm315, %v310, %v286
    %v322 = vsel %vm315, %v312, %v288
    %v323 = vsel %vm315, %v314, %v290
    %v340 = vsel %vm315, %v276, %v300
    %v341 = vsel %vm315, %v278, %v302
    %v342 = vsel %vm315, %v280, %v304
    %v343 = vsel %vm315, %v282, %v306
    %v344 = vsel %vm315, %v284, %v308
    %v345 = vsel %vm315, %v286, %v310
    %v346 = vsel %vm315, %v288, %v312
    %v347 = vsel %vm315, %v290, %v314
    %v349 = vlaneseq
    %v350 = vshrl.u32 %v349, 7
    %v351 = vsub.s32 0, %v350
    %v352 = vrot.slane %v274, %v351
    %v353 = vlaneseq
    %v354 = vshrl.u32 %v353, 7
    %v355 = vsub.s32 1, %v354
    %v356 = vrot.slane %v274, %v355
    %v359 = vmul.f32 %v352, %v340
    %v360 = vmul.f32 %v356, %v316
    %v361 = vmul.f32 %v352, %v341
    %v362 = vmul.f32 %v356, %v317
    %v363 = vmul.f32 %v352, %v342
    %v364 = vmul.f32 %v356, %v318
    %v365 = vmul.f32 %v352, %v343
    %v366 = vmul.f32 %v356, %v319
    %v367 = vmul.f32 %v352, %v344
    %v368 = vmul.f32 %v356, %v320
    %v369 = vmul.f32 %v352, %v345
    %v370 = vmul.f32 %v356, %v321
    %v371 = vmul.f32 %v352, %v346
    %v372 = vmul.f32 %v356, %v322
    %v373 = vmul.f32 %v352, %v347
    %v374 = vmul.f32 %v356, %v323
    %v375 = vadd.f32 %v257, %v359
    %v376 = vadd.f32 %v258, %v360
    %v377 = vadd.f32 %v259, %v361
    %v378 = vadd.f32 %v260, %v362
    %v379 = vadd.f32 %v261, %v363
    %v380 = vadd.f32 %v262, %v364
    %v381 = vadd.f32 %v263, %v365
    %v382 = vadd.f32 %v264, %v366
    %v383 = vadd.f32 %v265, %v367
    %v384 = vadd.f32 %v266, %v368
    %v385 = vadd.f32 %v267, %v369
    %v386 = vadd.f32 %v268, %v370
    %v387 = vadd.f32 %v269, %v371
    %v388 = vadd.f32 %v270, %v372
    %v389 = vadd.f32 %v271, %v373
    %v390 = vadd.f32 %v272, %v374
    %s391 = scalar_lea.vmem [#allocation5], 2
    %v392 = vld [vmem:[%s391] ss:$8 sm:$0x3]
    %v394 = vlaneseq
    %v395 = vshrl.u32 %v394, 7
    %v396 = vsub.s32 0, %v395
    %v397 = vrot.slane %v392, %v396
    %v398 = vlaneseq
    %v399 = vshrl.u32 %v398, 7
    %v400 = vsub.s32 1, %v399
    %v401 = vrot.slane %v392, %v400
    %v404 = vmul.f32 %v397, %v168
    %v405 = vmul.f32 %v401, %v169
    %v406 = vmul.f32 %v397, %v127
    %v407 = vmul.f32 %v401, %v129
    %v408 = vmul.f32 %v397, %v131
    %v409 = vmul.f32 %v401, %v133
    %v410 = vmul.f32 %v397, %v135
    %v411 = vmul.f32 %v401, %v137
    %v412 = vmul.f32 %v397, %v139
    %v413 = vmul.f32 %v401, %v141
    %v414 = vmul.f32 %v397, %v143
    %v415 = vmul.f32 %v401, %v145
    %v416 = vmul.f32 %v397, %v147
    %v417 = vmul.f32 %v401, %v149
    %v418 = vmul.f32 %v397, %v150
    %v419 = vmul.f32 %v401, %v151
    %v420 = vadd.f32 %v375, %v404
    %v421 = vadd.f32 %v376, %v405
    %v422 = vadd.f32 %v377, %v406
    %v423 = vadd.f32 %v378, %v407
    %v424 = vadd.f32 %v379, %v408
    %v425 = vadd.f32 %v380, %v409
    %v426 = vadd.f32 %v381, %v410
    %v427 = vadd.f32 %v382, %v411
    %v428 = vadd.f32 %v383, %v412
    %v429 = vadd.f32 %v384, %v413
    %v430 = vadd.f32 %v385, %v414
    %v431 = vadd.f32 %v386, %v415
    %v432 = vadd.f32 %v387, %v416
    %v433 = vadd.f32 %v388, %v417
    %v434 = vadd.f32 %v389, %v418
    %v435 = vadd.f32 %v390, %v419
    %s436 = scalar_lea.vmem [#allocation5], 3
    %v437 = vld [vmem:[%s436] ss:$8 sm:$0x3]
    %438 = vrot.lane.b32.xlu0 %v168, 120
    %v439 = vpop.permute.xlu0 %438
    %440 = vrot.lane.b32.xlu0 %v169, 120
    %v441 = vpop.permute.xlu0 %440
    %442 = vrot.lane.b32.xlu0 %v127, 120
    %v443 = vpop.permute.xlu0 %442
    %444 = vrot.lane.b32.xlu0 %v129, 120
    %v445 = vpop.permute.xlu0 %444
    %446 = vrot.lane.b32.xlu0 %v131, 120
    %v447 = vpop.permute.xlu0 %446
    %448 = vrot.lane.b32.xlu0 %v133, 120
    %v449 = vpop.permute.xlu0 %448
    %450 = vrot.lane.b32.xlu0 %v135, 120
    %v451 = vpop.permute.xlu0 %450
    %452 = vrot.lane.b32.xlu0 %v137, 120
    %v453 = vpop.permute.xlu0 %452
    %454 = vrot.lane.b32.xlu0 %v139, 120
    %v455 = vpop.permute.xlu0 %454
    %456 = vrot.lane.b32.xlu0 %v141, 120
    %v457 = vpop.permute.xlu0 %456
    %458 = vrot.lane.b32.xlu0 %v143, 120
    %v459 = vpop.permute.xlu0 %458
    %460 = vrot.lane.b32.xlu0 %v145, 120
    %v461 = vpop.permute.xlu0 %460
    %462 = vrot.lane.b32.xlu0 %v147, 120
    %v463 = vpop.permute.xlu0 %462
    %464 = vrot.lane.b32.xlu0 %v149, 120
    %v465 = vpop.permute.xlu0 %464
    %466 = vrot.lane.b32.xlu0 %v150, 120
    %v467 = vpop.permute.xlu0 %466
    %468 = vrot.lane.b32.xlu0 %v151, 120
    %v469 = vpop.permute.xlu0 %468
    %vm470 = vcmask 982016
    %v471 = vsel %vm470, %v439, %v441
    %v472 = vsel %vm470, %v443, %v445
    %v473 = vsel %vm470, %v447, %v449
    %v474 = vsel %vm470, %v451, %v453
    %v475 = vsel %vm470, %v455, %v457
    %v476 = vsel %vm470, %v459, %v461
    %v477 = vsel %vm470, %v463, %v465
    %v478 = vsel %vm470, %v467, %v469
    %v503 = vsel %vm470, %v441, %v439
    %v504 = vsel %vm470, %v445, %v443
    %v505 = vsel %vm470, %v449, %v447
    %v506 = vsel %vm470, %v453, %v451
    %v507 = vsel %vm470, %v457, %v455
    %v508 = vsel %vm470, %v461, %v459
    %v509 = vsel %vm470, %v465, %v463
    %v510 = vsel %vm470, %v469, %v467
    %v512 = vlaneseq
    %v513 = vshrl.u32 %v512, 7
    %v514 = vsub.s32 0, %v513
    %v515 = vrot.slane %v437, %v514
    %v516 = vlaneseq
    %v517 = vshrl.u32 %v516, 7
    %v518 = vsub.s32 1, %v517
    %v519 = vrot.slane %v437, %v518
    %v522 = vmul.f32 %v515, %v471
    %v523 = vmul.f32 %v519, %v503
    %v524 = vmul.f32 %v515, %v472
    %v525 = vmul.f32 %v519, %v504
    %v526 = vmul.f32 %v515, %v473
    %v527 = vmul.f32 %v519, %v505
    %v528 = vmul.f32 %v515, %v474
    %v529 = vmul.f32 %v519, %v506
    %v530 = vmul.f32 %v515, %v475
    %v531 = vmul.f32 %v519, %v507
    %v532 = vmul.f32 %v515, %v476
    %v533 = vmul.f32 %v519, %v508
    %v534 = vmul.f32 %v515, %v477
    %v535 = vmul.f32 %v519, %v509
    %v536 = vmul.f32 %v515, %v478
    %v537 = vmul.f32 %v519, %v510
    %v538 = vadd.f32 %v420, %v522
    %v539 = vadd.f32 %v421, %v523
    %v540 = vadd.f32 %v422, %v524
    %v541 = vadd.f32 %v423, %v525
    %v542 = vadd.f32 %v424, %v526
    %v543 = vadd.f32 %v425, %v527
    %v544 = vadd.f32 %v426, %v528
    %v545 = vadd.f32 %v427, %v529
    %v546 = vadd.f32 %v428, %v530
    %v547 = vadd.f32 %v429, %v531
    %v548 = vadd.f32 %v430, %v532
    %v549 = vadd.f32 %v431, %v533
    %v550 = vadd.f32 %v432, %v534
    %v551 = vadd.f32 %v433, %v535
    %v552 = vadd.f32 %v434, %v536
    %v553 = vadd.f32 %v435, %v537
    %s554 = scalar_lea.vmem [#allocation5], 4
    %v555 = vld [vmem:[%s554] ss:$8 sm:$0x3]
    %556 = vrot.lane.b32.xlu0 %v168, 112
    %v557 = vpop.permute.xlu0 %556
    %558 = vrot.lane.b32.xlu0 %v169, 112
    %v559 = vpop.permute.xlu0 %558
    %560 = vrot.lane.b32.xlu0 %v127, 112
    %v561 = vpop.permute.xlu0 %560
    %562 = vrot.lane.b32.xlu0 %v129, 112
    %v563 = vpop.permute.xlu0 %562
    %564 = vrot.lane.b32.xlu0 %v131, 112
    %v565 = vpop.permute.xlu0 %564
    %566 = vrot.lane.b32.xlu0 %v133, 112
    %v567 = vpop.permute.xlu0 %566
    %568 = vrot.lane.b32.xlu0 %v135, 112
    %v569 = vpop.permute.xlu0 %568
    %570 = vrot.lane.b32.xlu0 %v137, 112
    %v571 = vpop.permute.xlu0 %570
    %572 = vrot.lane.b32.xlu0 %v139, 112
    %v573 = vpop.permute.xlu0 %572
    %574 = vrot.lane.b32.xlu0 %v141, 112
    %v575 = vpop.permute.xlu0 %574
    %576 = vrot.lane.b32.xlu0 %v143, 112
    %v577 = vpop.permute.xlu0 %576
    %578 = vrot.lane.b32.xlu0 %v145, 112
    %v579 = vpop.permute.xlu0 %578
    %580 = vrot.lane.b32.xlu0 %v147, 112
    %v581 = vpop.permute.xlu0 %580
    %582 = vrot.lane.b32.xlu0 %v149, 112
    %v583 = vpop.permute.xlu0 %582
    %584 = vrot.lane.b32.xlu0 %v150, 112
    %v585 = vpop.permute.xlu0 %584
    %586 = vrot.lane.b32.xlu0 %v151, 112
    %v587 = vpop.permute.xlu0 %586
    %vm588 = vcmask 916480
    %v589 = vsel %vm588, %v557, %v559
    %v590 = vsel %vm588, %v561, %v563
    %v591 = vsel %vm588, %v565, %v567
    %v592 = vsel %vm588, %v569, %v571
    %v593 = vsel %vm588, %v573, %v575
    %v594 = vsel %vm588, %v577, %v579
    %v595 = vsel %vm588, %v581, %v583
    %v596 = vsel %vm588, %v585, %v587
    %v621 = vsel %vm588, %v559, %v557
    %v622 = vsel %vm588, %v563, %v561
    %v623 = vsel %vm588, %v567, %v565
    %v624 = vsel %vm588, %v571, %v569
    %v625 = vsel %vm588, %v575, %v573
    %v626 = vsel %vm588, %v579, %v577
    %v627 = vsel %vm588, %v583, %v581
    %v628 = vsel %vm588, %v587, %v585
    %v630 = vlaneseq
    %v631 = vshrl.u32 %v630, 7
    %v632 = vsub.s32 0, %v631
    %v633 = vrot.slane %v555, %v632
    %v634 = vlaneseq
    %v635 = vshrl.u32 %v634, 7
    %v636 = vsub.s32 1, %v635
    %v637 = vrot.slane %v555, %v636
    %v640 = vmul.f32 %v633, %v589
    %v641 = vmul.f32 %v637, %v621
    %v642 = vmul.f32 %v633, %v590
    %v643 = vmul.f32 %v637, %v622
    %v644 = vmul.f32 %v633, %v591
    %v645 = vmul.f32 %v637, %v623
    %v646 = vmul.f32 %v633, %v592
    %v647 = vmul.f32 %v637, %v624
    %v648 = vmul.f32 %v633, %v593
    %v649 = vmul.f32 %v637, %v625
    %v650 = vmul.f32 %v633, %v594
    %v651 = vmul.f32 %v637, %v626
    %v652 = vmul.f32 %v633, %v595
    %v653 = vmul.f32 %v637, %v627
    %v654 = vmul.f32 %v633, %v596
    %v655 = vmul.f32 %v637, %v628
    %v656 = vadd.f32 %v538, %v640
    %v657 = vadd.f32 %v539, %v641
    %v658 = vadd.f32 %v540, %v642
    %v659 = vadd.f32 %v541, %v643
    %v660 = vadd.f32 %v542, %v644
    %v661 = vadd.f32 %v543, %v645
    %v662 = vadd.f32 %v544, %v646
    %v663 = vadd.f32 %v545, %v647
    %v664 = vadd.f32 %v546, %v648
    %v665 = vadd.f32 %v547, %v649
    %v666 = vadd.f32 %v548, %v650
    %v667 = vadd.f32 %v549, %v651
    %v668 = vadd.f32 %v550, %v652
    %v669 = vadd.f32 %v551, %v653
    %v670 = vadd.f32 %v552, %v654
    %v671 = vadd.f32 %v553, %v655
    %v672 = vrot.slane %v85, 7
    %v673 = vrot.slane %v86, 7
    %vm676 = vcmask 1040384
    %v677 = vrot.slane %v71, 7
    %v678 = vrot.slane %v72, 7
    %v679 = vrot.slane %v73, 7
    %v680 = vsel %vm676, %v677, %v679
    %v681 = vrot.slane %v74, 7
    %v682 = vsel %vm676, %v678, %v681
    %v683 = vrot.slane %v75, 7
    %v684 = vsel %vm676, %v679, %v683
    %v685 = vrot.slane %v76, 7
    %v686 = vsel %vm676, %v681, %v685
    %v687 = vrot.slane %v77, 7
    %v688 = vsel %vm676, %v683, %v687
    %v689 = vrot.slane %v78, 7
    %v690 = vsel %vm676, %v685, %v689
    %v691 = vrot.slane %v79, 7
    %v692 = vsel %vm676, %v687, %v691
    %v693 = vrot.slane %v80, 7
    %v694 = vsel %vm676, %v689, %v693
    %v695 = vrot.slane %v81, 7
    %v696 = vsel %vm676, %v691, %v695
    %v697 = vrot.slane %v82, 7
    %v698 = vsel %vm676, %v693, %v697
    %v699 = vrot.slane %v83, 7
    %v700 = vsel %vm676, %v695, %v699
    %v701 = vrot.slane %v84, 7
    %v702 = vsel %vm676, %v697, %v701
    %v703 = vsel %vm676, %v699, %v672
    %v704 = vsel %vm676, %v701, %v673
    %v721 = vsel %vm676, %v672, %v677
    %v722 = vsel %vm676, %v673, %v678
    %s723 = scalar_lea.vmem [#allocation5], 5
    %v724 = vld [vmem:[%s723] ss:$8 sm:$0x3]
    %726 = vrot.lane.b32.xlu0 %v722, 16
    %v727 = vpop.permute.xlu0 %726
    %728 = vrot.lane.b32.xlu0 %v682, 16
    %v729 = vpop.permute.xlu0 %728
    %730 = vrot.lane.b32.xlu0 %v686, 16
    %v731 = vpop.permute.xlu0 %730
    %732 = vrot.lane.b32.xlu0 %v690, 16
    %v733 = vpop.permute.xlu0 %732
    %734 = vrot.lane.b32.xlu0 %v694, 16
    %v735 = vpop.permute.xlu0 %734
    %736 = vrot.lane.b32.xlu0 %v698, 16
    %v737 = vpop.permute.xlu0 %736
    %738 = vrot.lane.b32.xlu0 %v702, 16
    %v739 = vpop.permute.xlu0 %738
    %740 = vrot.lane.b32.xlu0 %v704, 16
    %v741 = vpop.permute.xlu0 %740
    %751 = vrot.lane.b32.xlu0 %v721, 16
    %v752 = vpop.permute.xlu0 %751
    %753 = vrot.lane.b32.xlu0 %v680, 16
    %v754 = vpop.permute.xlu0 %753
    %755 = vrot.lane.b32.xlu0 %v684, 16
    %v756 = vpop.permute.xlu0 %755
    %757 = vrot.lane.b32.xlu0 %v688, 16
    %v758 = vpop.permute.xlu0 %757
    %759 = vrot.lane.b32.xlu0 %v692, 16
    %v760 = vpop.permute.xlu0 %759
    %761 = vrot.lane.b32.xlu0 %v696, 16
    %v762 = vpop.permute.xlu0 %761
    %763 = vrot.lane.b32.xlu0 %v700, 16
    %v764 = vpop.permute.xlu0 %763
    %765 = vrot.lane.b32.xlu0 %v703, 16
    %v766 = vpop.permute.xlu0 %765
    %v767 = vsel %vm213, %v752, %v727
    %v768 = vsel %vm213, %v754, %v729
    %v769 = vsel %vm213, %v756, %v731
    %v770 = vsel %vm213, %v758, %v733
    %v771 = vsel %vm213, %v760, %v735
    %v772 = vsel %vm213, %v762, %v737
    %v773 = vsel %vm213, %v764, %v739
    %v774 = vsel %vm213, %v766, %v741
    %v791 = vsel %vm213, %v727, %v752
    %v792 = vsel %vm213, %v729, %v754
    %v793 = vsel %vm213, %v731, %v756
    %v794 = vsel %vm213, %v733, %v758
    %v795 = vsel %vm213, %v735, %v760
    %v796 = vsel %vm213, %v737, %v762
    %v797 = vsel %vm213, %v739, %v764
    %v798 = vsel %vm213, %v741, %v766
    %v800 = vlaneseq
    %v801 = vshrl.u32 %v800, 7
    %v802 = vsub.s32 0, %v801
    %v803 = vrot.slane %v724, %v802
    %v804 = vlaneseq
    %v805 = vshrl.u32 %v804, 7
    %v806 = vsub.s32 1, %v805
    %v807 = vrot.slane %v724, %v806
    %v810 = vmul.f32 %v803, %v791
    %v811 = vmul.f32 %v807, %v767
    %v812 = vmul.f32 %v803, %v792
    %v813 = vmul.f32 %v807, %v768
    %v814 = vmul.f32 %v803, %v793
    %v815 = vmul.f32 %v807, %v769
    %v816 = vmul.f32 %v803, %v794
    %v817 = vmul.f32 %v807, %v770
    %v818 = vmul.f32 %v803, %v795
    %v819 = vmul.f32 %v807, %v771
    %v820 = vmul.f32 %v803, %v796
    %v821 = vmul.f32 %v807, %v772
    %v822 = vmul.f32 %v803, %v797
    %v823 = vmul.f32 %v807, %v773
    %v824 = vmul.f32 %v803, %v798
    %v825 = vmul.f32 %v807, %v774
    %v826 = vadd.f32 %v656, %v810
    %v827 = vadd.f32 %v657, %v811
    %v828 = vadd.f32 %v658, %v812
    %v829 = vadd.f32 %v659, %v813
    %v830 = vadd.f32 %v660, %v814
    %v831 = vadd.f32 %v661, %v815
    %v832 = vadd.f32 %v662, %v816
    %v833 = vadd.f32 %v663, %v817
    %v834 = vadd.f32 %v664, %v818
    %v835 = vadd.f32 %v665, %v819
    %v836 = vadd.f32 %v666, %v820
    %v837 = vadd.f32 %v667, %v821
    %v838 = vadd.f32 %v668, %v822
    %v839 = vadd.f32 %v669, %v823
    %v840 = vadd.f32 %v670, %v824
    %v841 = vadd.f32 %v671, %v825
    %s842 = scalar_lea.vmem [#allocation5], 6
    %v843 = vld [vmem:[%s842] ss:$8 sm:$0x3]
    %844 = vrot.lane.b32.xlu0 %v722, 8
    %v845 = vpop.permute.xlu0 %844
    %846 = vrot.lane.b32.xlu0 %v682, 8
    %v847 = vpop.permute.xlu0 %846
    %848 = vrot.lane.b32.xlu0 %v686, 8
    %v849 = vpop.permute.xlu0 %848
    %850 = vrot.lane.b32.xlu0 %v690, 8
    %v851 = vpop.permute.xlu0 %850
    %852 = vrot.lane.b32.xlu0 %v694, 8
    %v853 = vpop.permute.xlu0 %852
    %854 = vrot.lane.b32.xlu0 %v698, 8
    %v855 = vpop.permute.xlu0 %854
    %856 = vrot.lane.b32.xlu0 %v702, 8
    %v857 = vpop.permute.xlu0 %856
    %858 = vrot.lane.b32.xlu0 %v704, 8
    %v859 = vpop.permute.xlu0 %858
    %868 = vrot.lane.b32.xlu0 %v721, 8
    %v869 = vpop.permute.xlu0 %868
    %870 = vrot.lane.b32.xlu0 %v680, 8
    %v871 = vpop.permute.xlu0 %870
    %872 = vrot.lane.b32.xlu0 %v684, 8
    %v873 = vpop.permute.xlu0 %872
    %874 = vrot.lane.b32.xlu0 %v688, 8
    %v875 = vpop.permute.xlu0 %874
    %876 = vrot.lane.b32.xlu0 %v692, 8
    %v877 = vpop.permute.xlu0 %876
    %878 = vrot.lane.b32.xlu0 %v696, 8
    %v879 = vpop.permute.xlu0 %878
    %880 = vrot.lane.b32.xlu0 %v700, 8
    %v881 = vpop.permute.xlu0 %880
    %882 = vrot.lane.b32.xlu0 %v703, 8
    %v883 = vpop.permute.xlu0 %882
    %v884 = vsel %vm315, %v869, %v845
    %v885 = vsel %vm315, %v871, %v847
    %v886 = vsel %vm315, %v873, %v849
    %v887 = vsel %vm315, %v875, %v851
    %v888 = vsel %vm315, %v877, %v853
    %v889 = vsel %vm315, %v879, %v855
    %v890 = vsel %vm315, %v881, %v857
    %v891 = vsel %vm315, %v883, %v859
    %v908 = vsel %vm315, %v845, %v869
    %v909 = vsel %vm315, %v847, %v871
    %v910 = vsel %vm315, %v849, %v873
    %v911 = vsel %vm315, %v851, %v875
    %v912 = vsel %vm315, %v853, %v877
    %v913 = vsel %vm315, %v855, %v879
    %v914 = vsel %vm315, %v857, %v881
    %v915 = vsel %vm315, %v859, %v883
    %v917 = vlaneseq
    %v918 = vshrl.u32 %v917, 7
    %v919 = vsub.s32 0, %v918
    %v920 = vrot.slane %v843, %v919
    %v921 = vlaneseq
    %v922 = vshrl.u32 %v921, 7
    %v923 = vsub.s32 1, %v922
    %v924 = vrot.slane %v843, %v923
    %v927 = vmul.f32 %v920, %v908
    %v928 = vmul.f32 %v924, %v884
    %v929 = vmul.f32 %v920, %v909
    %v930 = vmul.f32 %v924, %v885
    %v931 = vmul.f32 %v920, %v910
    %v932 = vmul.f32 %v924, %v886
    %v933 = vmul.f32 %v920, %v911
    %v934 = vmul.f32 %v924, %v887
    %v935 = vmul.f32 %v920, %v912
    %v936 = vmul.f32 %v924, %v888
    %v937 = vmul.f32 %v920, %v913
    %v938 = vmul.f32 %v924, %v889
    %v939 = vmul.f32 %v920, %v914
    %v940 = vmul.f32 %v924, %v890
    %v941 = vmul.f32 %v920, %v915
    %v942 = vmul.f32 %v924, %v891
    %v943 = vadd.f32 %v826, %v927
    %v944 = vadd.f32 %v827, %v928
    %v945 = vadd.f32 %v828, %v929
    %v946 = vadd.f32 %v829, %v930
    %v947 = vadd.f32 %v830, %v931
    %v948 = vadd.f32 %v831, %v932
    %v949 = vadd.f32 %v832, %v933
    %v950 = vadd.f32 %v833, %v934
    %v951 = vadd.f32 %v834, %v935
    %v952 = vadd.f32 %v835, %v936
    %v953 = vadd.f32 %v836, %v937
    %v954 = vadd.f32 %v837, %v938
    %v955 = vadd.f32 %v838, %v939
    %v956 = vadd.f32 %v839, %v940
    %v957 = vadd.f32 %v840, %v941
    %v958 = vadd.f32 %v841, %v942
    %s959 = scalar_lea.vmem [#allocation5], 7
    %v960 = vld [vmem:[%s959] ss:$8 sm:$0x3]
    %v962 = vlaneseq
    %v963 = vshrl.u32 %v962, 7
    %v964 = vsub.s32 0, %v963
    %v965 = vrot.slane %v960, %v964
    %v966 = vlaneseq
    %v967 = vshrl.u32 %v966, 7
    %v968 = vsub.s32 1, %v967
    %v969 = vrot.slane %v960, %v968
    %v972 = vmul.f32 %v965, %v721
    %v973 = vmul.f32 %v969, %v722
    %v974 = vmul.f32 %v965, %v680
    %v975 = vmul.f32 %v969, %v682
    %v976 = vmul.f32 %v965, %v684
    %v977 = vmul.f32 %v969, %v686
    %v978 = vmul.f32 %v965, %v688
    %v979 = vmul.f32 %v969, %v690
    %v980 = vmul.f32 %v965, %v692
    %v981 = vmul.f32 %v969, %v694
    %v982 = vmul.f32 %v965, %v696
    %v983 = vmul.f32 %v969, %v698
    %v984 = vmul.f32 %v965, %v700
    %v985 = vmul.f32 %v969, %v702
    %v986 = vmul.f32 %v965, %v703
    %v987 = vmul.f32 %v969, %v704
    %v988 = vadd.f32 %v943, %v972
    %v989 = vadd.f32 %v944, %v973
    %v990 = vadd.f32 %v945, %v974
    %v991 = vadd.f32 %v946, %v975
    %v992 = vadd.f32 %v947, %v976
    %v993 = vadd.f32 %v948, %v977
    %v994 = vadd.f32 %v949, %v978
    %v995 = vadd.f32 %v950, %v979
    %v996 = vadd.f32 %v951, %v980
    %v997 = vadd.f32 %v952, %v981
    %v998 = vadd.f32 %v953, %v982
    %v999 = vadd.f32 %v954, %v983
    %v1000 = vadd.f32 %v955, %v984
    %v1001 = vadd.f32 %v956, %v985
    %v1002 = vadd.f32 %v957, %v986
    %v1003 = vadd.f32 %v958, %v987
    %s1004 = scalar_lea.vmem [#allocation5], 16
    %v1005 = vld [vmem:[%s1004] ss:$8 sm:$0x3]
    %1006 = vrot.lane.b32.xlu0 %v721, 120
    %v1007 = vpop.permute.xlu0 %1006
    %1008 = vrot.lane.b32.xlu0 %v722, 120
    %v1009 = vpop.permute.xlu0 %1008
    %1010 = vrot.lane.b32.xlu0 %v680, 120
    %v1011 = vpop.permute.xlu0 %1010
    %1012 = vrot.lane.b32.xlu0 %v682, 120
    %v1013 = vpop.permute.xlu0 %1012
    %1014 = vrot.lane.b32.xlu0 %v684, 120
    %v1015 = vpop.permute.xlu0 %1014
    %1016 = vrot.lane.b32.xlu0 %v686, 120
    %v1017 = vpop.permute.xlu0 %1016
    %1018 = vrot.lane.b32.xlu0 %v688, 120
    %v1019 = vpop.permute.xlu0 %1018
    %1020 = vrot.lane.b32.xlu0 %v690, 120
    %v1021 = vpop.permute.xlu0 %1020
    %1022 = vrot.lane.b32.xlu0 %v692, 120
    %v1023 = vpop.permute.xlu0 %1022
    %1024 = vrot.lane.b32.xlu0 %v694, 120
    %v1025 = vpop.permute.xlu0 %1024
    %1026 = vrot.lane.b32.xlu0 %v696, 120
    %v1027 = vpop.permute.xlu0 %1026
    %1028 = vrot.lane.b32.xlu0 %v698, 120
    %v1029 = vpop.permute.xlu0 %1028
    %1030 = vrot.lane.b32.xlu0 %v700, 120
    %v1031 = vpop.permute.xlu0 %1030
    %1032 = vrot.lane.b32.xlu0 %v702, 120
    %v1033 = vpop.permute.xlu0 %1032
    %1034 = vrot.lane.b32.xlu0 %v703, 120
    %v1035 = vpop.permute.xlu0 %1034
    %1036 = vrot.lane.b32.xlu0 %v704, 120
    %v1037 = vpop.permute.xlu0 %1036
    %v1038 = vsel %vm470, %v1007, %v1009
    %v1039 = vsel %vm470, %v1011, %v1013
    %v1040 = vsel %vm470, %v1015, %v1017
    %v1041 = vsel %vm470, %v1019, %v1021
    %v1042 = vsel %vm470, %v1023, %v1025
    %v1043 = vsel %vm470, %v1027, %v1029
    %v1044 = vsel %vm470, %v1031, %v1033
    %v1045 = vsel %vm470, %v1035, %v1037
    %v1070 = vsel %vm470, %v1009, %v1007
    %v1071 = vsel %vm470, %v1013, %v1011
    %v1072 = vsel %vm470, %v1017, %v1015
    %v1073 = vsel %vm470, %v1021, %v1019
    %v1074 = vsel %vm470, %v1025, %v1023
    %v1075 = vsel %vm470, %v1029, %v1027
    %v1076 = vsel %vm470, %v1033, %v1031
    %v1077 = vsel %vm470, %v1037, %v1035
    %v1079 = vlaneseq
    %v1080 = vshrl.u32 %v1079, 7
    %v1081 = vsub.s32 0, %v1080
    %v1082 = vrot.slane %v1005, %v1081
    %v1083 = vlaneseq
    %v1084 = vshrl.u32 %v1083, 7
    %v1085 = vsub.s32 1, %v1084
    %v1086 = vrot.slane %v1005, %v1085
    %v1089 = vmul.f32 %v1082, %v1038
    %v1090 = vmul.f32 %v1086, %v1070
    %v1091 = vmul.f32 %v1082, %v1039
    %v1092 = vmul.f32 %v1086, %v1071
    %v1093 = vmul.f32 %v1082, %v1040
    %v1094 = vmul.f32 %v1086, %v1072
    %v1095 = vmul.f32 %v1082, %v1041
    %v1096 = vmul.f32 %v1086, %v1073
    %v1097 = vmul.f32 %v1082, %v1042
    %v1098 = vmul.f32 %v1086, %v1074
    %v1099 = vmul.f32 %v1082, %v1043
    %v1100 = vmul.f32 %v1086, %v1075
    %v1101 = vmul.f32 %v1082, %v1044
    %v1102 = vmul.f32 %v1086, %v1076
    %v1103 = vmul.f32 %v1082, %v1045
    %v1104 = vmul.f32 %v1086, %v1077
    %v1105 = vadd.f32 %v988, %v1089
    %v1106 = vadd.f32 %v989, %v1090
    %v1107 = vadd.f32 %v990, %v1091
    %v1108 = vadd.f32 %v991, %v1092
    %v1109 = vadd.f32 %v992, %v1093
    %v1110 = vadd.f32 %v993, %v1094
    %v1111 = vadd.f32 %v994, %v1095
    %v1112 = vadd.f32 %v995, %v1096
    %v1113 = vadd.f32 %v996, %v1097
    %v1114 = vadd.f32 %v997, %v1098
    %v1115 = vadd.f32 %v998, %v1099
    %v1116 = vadd.f32 %v999, %v1100
    %v1117 = vadd.f32 %v1000, %v1101
    %v1118 = vadd.f32 %v1001, %v1102
    %v1119 = vadd.f32 %v1002, %v1103
    %v1120 = vadd.f32 %v1003, %v1104
    %s1121 = scalar_lea.vmem [#allocation5], 17
    %v1122 = vld [vmem:[%s1121] ss:$8 sm:$0x3]
    %1123 = vrot.lane.b32.xlu0 %v721, 112
    %v1124 = vpop.permute.xlu0 %1123
    %1125 = vrot.lane.b32.xlu0 %v722, 112
    %v1126 = vpop.permute.xlu0 %1125
    %1127 = vrot.lane.b32.xlu0 %v680, 112
    %v1128 = vpop.permute.xlu0 %1127
    %1129 = vrot.lane.b32.xlu0 %v682, 112
    %v1130 = vpop.permute.xlu0 %1129
    %1131 = vrot.lane.b32.xlu0 %v684, 112
    %v1132 = vpop.permute.xlu0 %1131
    %1133 = vrot.lane.b32.xlu0 %v686, 112
    %v1134 = vpop.permute.xlu0 %1133
    %1135 = vrot.lane.b32.xlu0 %v688, 112
    %v1136 = vpop.permute.xlu0 %1135
    %1137 = vrot.lane.b32.xlu0 %v690, 112
    %v1138 = vpop.permute.xlu0 %1137
    %1139 = vrot.lane.b32.xlu0 %v692, 112
    %v1140 = vpop.permute.xlu0 %1139
    %1141 = vrot.lane.b32.xlu0 %v694, 112
    %v1142 = vpop.permute.xlu0 %1141
    %1143 = vrot.lane.b32.xlu0 %v696, 112
    %v1144 = vpop.permute.xlu0 %1143
    %1145 = vrot.lane.b32.xlu0 %v698, 112
    %v1146 = vpop.permute.xlu0 %1145
    %1147 = vrot.lane.b32.xlu0 %v700, 112
    %v1148 = vpop.permute.xlu0 %1147
    %1149 = vrot.lane.b32.xlu0 %v702, 112
    %v1150 = vpop.permute.xlu0 %1149
    %1151 = vrot.lane.b32.xlu0 %v703, 112
    %v1152 = vpop.permute.xlu0 %1151
    %1153 = vrot.lane.b32.xlu0 %v704, 112
    %v1154 = vpop.permute.xlu0 %1153
    %v1155 = vsel %vm588, %v1124, %v1126
    %v1156 = vsel %vm588, %v1128, %v1130
    %v1157 = vsel %vm588, %v1132, %v1134
    %v1158 = vsel %vm588, %v1136, %v1138
    %v1159 = vsel %vm588, %v1140, %v1142
    %v1160 = vsel %vm588, %v1144, %v1146
    %v1161 = vsel %vm588, %v1148, %v1150
    %v1162 = vsel %vm588, %v1152, %v1154
    %v1187 = vsel %vm588, %v1126, %v1124
    %v1188 = vsel %vm588, %v1130, %v1128
    %v1189 = vsel %vm588, %v1134, %v1132
    %v1190 = vsel %vm588, %v1138, %v1136
    %v1191 = vsel %vm588, %v1142, %v1140
    %v1192 = vsel %vm588, %v1146, %v1144
    %v1193 = vsel %vm588, %v1150, %v1148
    %v1194 = vsel %vm588, %v1154, %v1152
    %v1196 = vlaneseq
    %v1197 = vshrl.u32 %v1196, 7
    %v1198 = vsub.s32 0, %v1197
    %v1199 = vrot.slane %v1122, %v1198
    %v1200 = vlaneseq
    %v1201 = vshrl.u32 %v1200, 7
    %v1202 = vsub.s32 1, %v1201
    %v1203 = vrot.slane %v1122, %v1202
    %v1206 = vmul.f32 %v1199, %v1155
    %v1207 = vmul.f32 %v1203, %v1187
    %v1208 = vmul.f32 %v1199, %v1156
    %v1209 = vmul.f32 %v1203, %v1188
    %v1210 = vmul.f32 %v1199, %v1157
    %v1211 = vmul.f32 %v1203, %v1189
    %v1212 = vmul.f32 %v1199, %v1158
    %v1213 = vmul.f32 %v1203, %v1190
    %v1214 = vmul.f32 %v1199, %v1159
    %v1215 = vmul.f32 %v1203, %v1191
    %v1216 = vmul.f32 %v1199, %v1160
    %v1217 = vmul.f32 %v1203, %v1192
    %v1218 = vmul.f32 %v1199, %v1161
    %v1219 = vmul.f32 %v1203, %v1193
    %v1220 = vmul.f32 %v1199, %v1162
    %v1221 = vmul.f32 %v1203, %v1194
    %v1222 = vadd.f32 %v1105, %v1206
    %v1223 = vadd.f32 %v1106, %v1207
    %v1224 = vadd.f32 %v1107, %v1208
    %v1225 = vadd.f32 %v1108, %v1209
    %v1226 = vadd.f32 %v1109, %v1210
    %v1227 = vadd.f32 %v1110, %v1211
    %v1228 = vadd.f32 %v1111, %v1212
    %v1229 = vadd.f32 %v1112, %v1213
    %v1230 = vadd.f32 %v1113, %v1214
    %v1231 = vadd.f32 %v1114, %v1215
    %v1232 = vadd.f32 %v1115, %v1216
    %v1233 = vadd.f32 %v1116, %v1217
    %v1234 = vadd.f32 %v1117, %v1218
    %v1235 = vadd.f32 %v1118, %v1219
    %v1236 = vadd.f32 %v1119, %v1220
    %v1237 = vadd.f32 %v1120, %v1221
    %s1238 = scalar_lea.vmem [#allocation5], 18
    %v1239 = vld [vmem:[%s1238] ss:$8 sm:$0x3]
    %1240 = vrot.lane.b32.xlu0 %v72, 16
    %v1241 = vpop.permute.xlu0 %1240
    %1242 = vrot.lane.b32.xlu0 %v74, 16
    %v1243 = vpop.permute.xlu0 %1242
    %1244 = vrot.lane.b32.xlu0 %v76, 16
    %v1245 = vpop.permute.xlu0 %1244
    %1246 = vrot.lane.b32.xlu0 %v78, 16
    %v1247 = vpop.permute.xlu0 %1246
    %1248 = vrot.lane.b32.xlu0 %v80, 16
    %v1249 = vpop.permute.xlu0 %1248
    %1250 = vrot.lane.b32.xlu0 %v82, 16
    %v1251 = vpop.permute.xlu0 %1250
    %1252 = vrot.lane.b32.xlu0 %v84, 16
    %v1253 = vpop.permute.xlu0 %1252
    %1254 = vrot.lane.b32.xlu0 %v86, 16
    %v1255 = vpop.permute.xlu0 %1254
    %1264 = vrot.lane.b32.xlu0 %v71, 16
    %v1265 = vpop.permute.xlu0 %1264
    %1266 = vrot.lane.b32.xlu0 %v73, 16
    %v1267 = vpop.permute.xlu0 %1266
    %1268 = vrot.lane.b32.xlu0 %v75, 16
    %v1269 = vpop.permute.xlu0 %1268
    %1270 = vrot.lane.b32.xlu0 %v77, 16
    %v1271 = vpop.permute.xlu0 %1270
    %1272 = vrot.lane.b32.xlu0 %v79, 16
    %v1273 = vpop.permute.xlu0 %1272
    %1274 = vrot.lane.b32.xlu0 %v81, 16
    %v1275 = vpop.permute.xlu0 %1274
    %1276 = vrot.lane.b32.xlu0 %v83, 16
    %v1277 = vpop.permute.xlu0 %1276
    %1278 = vrot.lane.b32.xlu0 %v85, 16
    %v1279 = vpop.permute.xlu0 %1278
    %v1280 = vsel %vm213, %v1265, %v1241
    %v1281 = vsel %vm213, %v1267, %v1243
    %v1282 = vsel %vm213, %v1269, %v1245
    %v1283 = vsel %vm213, %v1271, %v1247
    %v1284 = vsel %vm213, %v1273, %v1249
    %v1285 = vsel %vm213, %v1275, %v1251
    %v1286 = vsel %vm213, %v1277, %v1253
    %v1287 = vsel %vm213, %v1279, %v1255
    %v1304 = vsel %vm213, %v1241, %v1265
    %v1305 = vsel %vm213, %v1243, %v1267
    %v1306 = vsel %vm213, %v1245, %v1269
    %v1307 = vsel %vm213, %v1247, %v1271
    %v1308 = vsel %vm213, %v1249, %v1273
    %v1309 = vsel %vm213, %v1251, %v1275
    %v1310 = vsel %vm213, %v1253, %v1277
    %v1311 = vsel %vm213, %v1255, %v1279
    %v1313 = vlaneseq
    %v1314 = vshrl.u32 %v1313, 7
    %v1315 = vsub.s32 0, %v1314
    %v1316 = vrot.slane %v1239, %v1315
    %v1317 = vlaneseq
    %v1318 = vshrl.u32 %v1317, 7
    %v1319 = vsub.s32 1, %v1318
    %v1320 = vrot.slane %v1239, %v1319
    %v1323 = vmul.f32 %v1316, %v1304
    %v1324 = vmul.f32 %v1320, %v1280
    %v1325 = vmul.f32 %v1316, %v1305
    %v1326 = vmul.f32 %v1320, %v1281
    %v1327 = vmul.f32 %v1316, %v1306
    %v1328 = vmul.f32 %v1320, %v1282
    %v1329 = vmul.f32 %v1316, %v1307
    %v1330 = vmul.f32 %v1320, %v1283
    %v1331 = vmul.f32 %v1316, %v1308
    %v1332 = vmul.f32 %v1320, %v1284
    %v1333 = vmul.f32 %v1316, %v1309
    %v1334 = vmul.f32 %v1320, %v1285
    %v1335 = vmul.f32 %v1316, %v1310
    %v1336 = vmul.f32 %v1320, %v1286
    %v1337 = vmul.f32 %v1316, %v1311
    %v1338 = vmul.f32 %v1320, %v1287
    %v1339 = vadd.f32 %v1222, %v1323
    %v1340 = vadd.f32 %v1223, %v1324
    %v1341 = vadd.f32 %v1224, %v1325
    %v1342 = vadd.f32 %v1225, %v1326
    %v1343 = vadd.f32 %v1226, %v1327
    %v1344 = vadd.f32 %v1227, %v1328
    %v1345 = vadd.f32 %v1228, %v1329
    %v1346 = vadd.f32 %v1229, %v1330
    %v1347 = vadd.f32 %v1230, %v1331
    %v1348 = vadd.f32 %v1231, %v1332
    %v1349 = vadd.f32 %v1232, %v1333
    %v1350 = vadd.f32 %v1233, %v1334
    %v1351 = vadd.f32 %v1234, %v1335
    %v1352 = vadd.f32 %v1235, %v1336
    %v1353 = vadd.f32 %v1236, %v1337
    %v1354 = vadd.f32 %v1237, %v1338
    %s1355 = scalar_lea.vmem [#allocation5], 19
    %v1356 = vld [vmem:[%s1355] ss:$8 sm:$0x3]
    %1357 = vrot.lane.b32.xlu0 %v72, 8
    %v1358 = vpop.permute.xlu0 %1357
    %1359 = vrot.lane.b32.xlu0 %v74, 8
    %v1360 = vpop.permute.xlu0 %1359
    %1361 = vrot.lane.b32.xlu0 %v76, 8
    %v1362 = vpop.permute.xlu0 %1361
    %1363 = vrot.lane.b32.xlu0 %v78, 8
    %v1364 = vpop.permute.xlu0 %1363
    %1365 = vrot.lane.b32.xlu0 %v80, 8
    %v1366 = vpop.permute.xlu0 %1365
    %1367 = vrot.lane.b32.xlu0 %v82, 8
    %v1368 = vpop.permute.xlu0 %1367
    %1369 = vrot.lane.b32.xlu0 %v84, 8
    %v1370 = vpop.permute.xlu0 %1369
    %1371 = vrot.lane.b32.xlu0 %v86, 8
    %v1372 = vpop.permute.xlu0 %1371
    %1381 = vrot.lane.b32.xlu0 %v71, 8
    %v1382 = vpop.permute.xlu0 %1381
    %1383 = vrot.lane.b32.xlu0 %v73, 8
    %v1384 = vpop.permute.xlu0 %1383
    %1385 = vrot.lane.b32.xlu0 %v75, 8
    %v1386 = vpop.permute.xlu0 %1385
    %1387 = vrot.lane.b32.xlu0 %v77, 8
    %v1388 = vpop.permute.xlu0 %1387
    %1389 = vrot.lane.b32.xlu0 %v79, 8
    %v1390 = vpop.permute.xlu0 %1389
    %1391 = vrot.lane.b32.xlu0 %v81, 8
    %v1392 = vpop.permute.xlu0 %1391
    %1393 = vrot.lane.b32.xlu0 %v83, 8
    %v1394 = vpop.permute.xlu0 %1393
    %1395 = vrot.lane.b32.xlu0 %v85, 8
    %v1396 = vpop.permute.xlu0 %1395
    %v1397 = vsel %vm315, %v1382, %v1358
    %v1398 = vsel %vm315, %v1384, %v1360
    %v1399 = vsel %vm315, %v1386, %v1362
    %v1400 = vsel %vm315, %v1388, %v1364
    %v1401 = vsel %vm315, %v1390, %v1366
    %v1402 = vsel %vm315, %v1392, %v1368
    %v1403 = vsel %vm315, %v1394, %v1370
    %v1404 = vsel %vm315, %v1396, %v1372
    %v1421 = vsel %vm315, %v1358, %v1382
    %v1422 = vsel %vm315, %v1360, %v1384
    %v1423 = vsel %vm315, %v1362, %v1386
    %v1424 = vsel %vm315, %v1364, %v1388
    %v1425 = vsel %vm315, %v1366, %v1390
    %v1426 = vsel %vm315, %v1368, %v1392
    %v1427 = vsel %vm315, %v1370, %v1394
    %v1428 = vsel %vm315, %v1372, %v1396
    %v1430 = vlaneseq
    %v1431 = vshrl.u32 %v1430, 7
    %v1432 = vsub.s32 0, %v1431
    %v1433 = vrot.slane %v1356, %v1432
    %v1434 = vlaneseq
    %v1435 = vshrl.u32 %v1434, 7
    %v1436 = vsub.s32 1, %v1435
    %v1437 = vrot.slane %v1356, %v1436
    %v1440 = vmul.f32 %v1433, %v1421
    %v1441 = vmul.f32 %v1437, %v1397
    %v1442 = vmul.f32 %v1433, %v1422
    %v1443 = vmul.f32 %v1437, %v1398
    %v1444 = vmul.f32 %v1433, %v1423
    %v1445 = vmul.f32 %v1437, %v1399
    %v1446 = vmul.f32 %v1433, %v1424
    %v1447 = vmul.f32 %v1437, %v1400
    %v1448 = vmul.f32 %v1433, %v1425
    %v1449 = vmul.f32 %v1437, %v1401
    %v1450 = vmul.f32 %v1433, %v1426
    %v1451 = vmul.f32 %v1437, %v1402
    %v1452 = vmul.f32 %v1433, %v1427
    %v1453 = vmul.f32 %v1437, %v1403
    %v1454 = vmul.f32 %v1433, %v1428
    %v1455 = vmul.f32 %v1437, %v1404
    %v1456 = vadd.f32 %v1339, %v1440
    %v1457 = vadd.f32 %v1340, %v1441
    %v1458 = vadd.f32 %v1341, %v1442
    %v1459 = vadd.f32 %v1342, %v1443
    %v1460 = vadd.f32 %v1343, %v1444
    %v1461 = vadd.f32 %v1344, %v1445
    %v1462 = vadd.f32 %v1345, %v1446
    %v1463 = vadd.f32 %v1346, %v1447
    %v1464 = vadd.f32 %v1347, %v1448
    %v1465 = vadd.f32 %v1348, %v1449
    %v1466 = vadd.f32 %v1349, %v1450
    %v1467 = vadd.f32 %v1350, %v1451
    %v1468 = vadd.f32 %v1351, %v1452
    %v1469 = vadd.f32 %v1352, %v1453
    %v1470 = vadd.f32 %v1353, %v1454
    %v1471 = vadd.f32 %v1354, %v1455
    %s1472 = scalar_lea.vmem [#allocation5], 20
    %v1473 = vld [vmem:[%s1472] ss:$8 sm:$0x3]
    %v1475 = vlaneseq
    %v1476 = vshrl.u32 %v1475, 7
    %v1477 = vsub.s32 0, %v1476
    %v1478 = vrot.slane %v1473, %v1477
    %v1479 = vlaneseq
    %v1480 = vshrl.u32 %v1479, 7
    %v1481 = vsub.s32 1, %v1480
    %v1482 = vrot.slane %v1473, %v1481
    %v1485 = vmul.f32 %v1478, %v71
    %v1486 = vmul.f32 %v1482, %v72
    %v1487 = vmul.f32 %v1478, %v73
    %v1488 = vmul.f32 %v1482, %v74
    %v1489 = vmul.f32 %v1478, %v75
    %v1490 = vmul.f32 %v1482, %v76
    %v1491 = vmul.f32 %v1478, %v77
    %v1492 = vmul.f32 %v1482, %v78
    %v1493 = vmul.f32 %v1478, %v79
    %v1494 = vmul.f32 %v1482, %v80
    %v1495 = vmul.f32 %v1478, %v81
    %v1496 = vmul.f32 %v1482, %v82
    %v1497 = vmul.f32 %v1478, %v83
    %v1498 = vmul.f32 %v1482, %v84
    %v1499 = vmul.f32 %v1478, %v85
    %v1500 = vmul.f32 %v1482, %v86
    %v1501 = vadd.f32 %v1456, %v1485
    %v1502 = vadd.f32 %v1457, %v1486
    %v1503 = vadd.f32 %v1458, %v1487
    %v1504 = vadd.f32 %v1459, %v1488
    %v1505 = vadd.f32 %v1460, %v1489
    %v1506 = vadd.f32 %v1461, %v1490
    %v1507 = vadd.f32 %v1462, %v1491
    %v1508 = vadd.f32 %v1463, %v1492
    %v1509 = vadd.f32 %v1464, %v1493
    %v1510 = vadd.f32 %v1465, %v1494
    %v1511 = vadd.f32 %v1466, %v1495
    %v1512 = vadd.f32 %v1467, %v1496
    %v1513 = vadd.f32 %v1468, %v1497
    %v1514 = vadd.f32 %v1469, %v1498
    %v1515 = vadd.f32 %v1470, %v1499
    %v1516 = vadd.f32 %v1471, %v1500
    %s1517 = scalar_lea.vmem [#allocation5], 21
    %v1518 = vld [vmem:[%s1517] ss:$8 sm:$0x3]
    %1519 = vrot.lane.b32.xlu0 %v71, 120
    %v1520 = vpop.permute.xlu0 %1519
    %1521 = vrot.lane.b32.xlu0 %v72, 120
    %v1522 = vpop.permute.xlu0 %1521
    %1523 = vrot.lane.b32.xlu0 %v73, 120
    %v1524 = vpop.permute.xlu0 %1523
    %1525 = vrot.lane.b32.xlu0 %v74, 120
    %v1526 = vpop.permute.xlu0 %1525
    %1527 = vrot.lane.b32.xlu0 %v75, 120
    %v1528 = vpop.permute.xlu0 %1527
    %1529 = vrot.lane.b32.xlu0 %v76, 120
    %v1530 = vpop.permute.xlu0 %1529
    %1531 = vrot.lane.b32.xlu0 %v77, 120
    %v1532 = vpop.permute.xlu0 %1531
    %1533 = vrot.lane.b32.xlu0 %v78, 120
    %v1534 = vpop.permute.xlu0 %1533
    %1535 = vrot.lane.b32.xlu0 %v79, 120
    %v1536 = vpop.permute.xlu0 %1535
    %1537 = vrot.lane.b32.xlu0 %v80, 120
    %v1538 = vpop.permute.xlu0 %1537
    %1539 = vrot.lane.b32.xlu0 %v81, 120
    %v1540 = vpop.permute.xlu0 %1539
    %1541 = vrot.lane.b32.xlu0 %v82, 120
    %v1542 = vpop.permute.xlu0 %1541
    %1543 = vrot.lane.b32.xlu0 %v83, 120
    %v1544 = vpop.permute.xlu0 %1543
    %1545 = vrot.lane.b32.xlu0 %v84, 120
    %v1546 = vpop.permute.xlu0 %1545
    %1547 = vrot.lane.b32.xlu0 %v85, 120
    %v1548 = vpop.permute.xlu0 %1547
    %1549 = vrot.lane.b32.xlu0 %v86, 120
    %v1550 = vpop.permute.xlu0 %1549
    %v1551 = vsel %vm470, %v1520, %v1522
    %v1552 = vsel %vm470, %v1524, %v1526
    %v1553 = vsel %vm470, %v1528, %v1530
    %v1554 = vsel %vm470, %v1532, %v1534
    %v1555 = vsel %vm470, %v1536, %v1538
    %v1556 = vsel %vm470, %v1540, %v1542
    %v1557 = vsel %vm470, %v1544, %v1546
    %v1558 = vsel %vm470, %v1548, %v1550
    %v1583 = vsel %vm470, %v1522, %v1520
    %v1584 = vsel %vm470, %v1526, %v1524
    %v1585 = vsel %vm470, %v1530, %v1528
    %v1586 = vsel %vm470, %v1534, %v1532
    %v1587 = vsel %vm470, %v1538, %v1536
    %v1588 = vsel %vm470, %v1542, %v1540
    %v1589 = vsel %vm470, %v1546, %v1544
    %v1590 = vsel %vm470, %v1550, %v1548
    %v1592 = vlaneseq
    %v1593 = vshrl.u32 %v1592, 7
    %v1594 = vsub.s32 0, %v1593
    %v1595 = vrot.slane %v1518, %v1594
    %v1596 = vlaneseq
    %v1597 = vshrl.u32 %v1596, 7
    %v1598 = vsub.s32 1, %v1597
    %v1599 = vrot.slane %v1518, %v1598
    %v1602 = vmul.f32 %v1595, %v1551
    %v1603 = vmul.f32 %v1599, %v1583
    %v1604 = vmul.f32 %v1595, %v1552
    %v1605 = vmul.f32 %v1599, %v1584
    %v1606 = vmul.f32 %v1595, %v1553
    %v1607 = vmul.f32 %v1599, %v1585
    %v1608 = vmul.f32 %v1595, %v1554
    %v1609 = vmul.f32 %v1599, %v1586
    %v1610 = vmul.f32 %v1595, %v1555
    %v1611 = vmul.f32 %v1599, %v1587
    %v1612 = vmul.f32 %v1595, %v1556
    %v1613 = vmul.f32 %v1599, %v1588
    %v1614 = vmul.f32 %v1595, %v1557
    %v1615 = vmul.f32 %v1599, %v1589
    %v1616 = vmul.f32 %v1595, %v1558
    %v1617 = vmul.f32 %v1599, %v1590
    %v1618 = vadd.f32 %v1501, %v1602
    %v1619 = vadd.f32 %v1502, %v1603
    %v1620 = vadd.f32 %v1503, %v1604
    %v1621 = vadd.f32 %v1504, %v1605
    %v1622 = vadd.f32 %v1505, %v1606
    %v1623 = vadd.f32 %v1506, %v1607
    %v1624 = vadd.f32 %v1507, %v1608
    %v1625 = vadd.f32 %v1508, %v1609
    %v1626 = vadd.f32 %v1509, %v1610
    %v1627 = vadd.f32 %v1510, %v1611
    %v1628 = vadd.f32 %v1511, %v1612
    %v1629 = vadd.f32 %v1512, %v1613
    %v1630 = vadd.f32 %v1513, %v1614
    %v1631 = vadd.f32 %v1514, %v1615
    %v1632 = vadd.f32 %v1515, %v1616
    %v1633 = vadd.f32 %v1516, %v1617
    %s1634 = scalar_lea.vmem [#allocation5], 22
    %v1635 = vld [vmem:[%s1634] ss:$8 sm:$0x3]
    %1636 = vrot.lane.b32.xlu0 %v71, 112
    %v1637 = vpop.permute.xlu0 %1636
    %1638 = vrot.lane.b32.xlu0 %v72, 112
    %v1639 = vpop.permute.xlu0 %1638
    %1640 = vrot.lane.b32.xlu0 %v73, 112
    %v1641 = vpop.permute.xlu0 %1640
    %1642 = vrot.lane.b32.xlu0 %v74, 112
    %v1643 = vpop.permute.xlu0 %1642
    %1644 = vrot.lane.b32.xlu0 %v75, 112
    %v1645 = vpop.permute.xlu0 %1644
    %1646 = vrot.lane.b32.xlu0 %v76, 112
    %v1647 = vpop.permute.xlu0 %1646
    %1648 = vrot.lane.b32.xlu0 %v77, 112
    %v1649 = vpop.permute.xlu0 %1648
    %1650 = vrot.lane.b32.xlu0 %v78, 112
    %v1651 = vpop.permute.xlu0 %1650
    %1652 = vrot.lane.b32.xlu0 %v79, 112
    %v1653 = vpop.permute.xlu0 %1652
    %1654 = vrot.lane.b32.xlu0 %v80, 112
    %v1655 = vpop.permute.xlu0 %1654
    %1656 = vrot.lane.b32.xlu0 %v81, 112
    %v1657 = vpop.permute.xlu0 %1656
    %1658 = vrot.lane.b32.xlu0 %v82, 112
    %v1659 = vpop.permute.xlu0 %1658
    %1660 = vrot.lane.b32.xlu0 %v83, 112
    %v1661 = vpop.permute.xlu0 %1660
    %1662 = vrot.lane.b32.xlu0 %v84, 112
    %v1663 = vpop.permute.xlu0 %1662
    %1664 = vrot.lane.b32.xlu0 %v85, 112
    %v1665 = vpop.permute.xlu0 %1664
    %1666 = vrot.lane.b32.xlu0 %v86, 112
    %v1667 = vpop.permute.xlu0 %1666
    %v1668 = vsel %vm588, %v1637, %v1639
    %v1669 = vsel %vm588, %v1641, %v1643
    %v1670 = vsel %vm588, %v1645, %v1647
    %v1671 = vsel %vm588, %v1649, %v1651
    %v1672 = vsel %vm588, %v1653, %v1655
    %v1673 = vsel %vm588, %v1657, %v1659
    %v1674 = vsel %vm588, %v1661, %v1663
    %v1675 = vsel %vm588, %v1665, %v1667
    %v1700 = vsel %vm588, %v1639, %v1637
    %v1701 = vsel %vm588, %v1643, %v1641
    %v1702 = vsel %vm588, %v1647, %v1645
    %v1703 = vsel %vm588, %v1651, %v1649
    %v1704 = vsel %vm588, %v1655, %v1653
    %v1705 = vsel %vm588, %v1659, %v1657
    %v1706 = vsel %vm588, %v1663, %v1661
    %v1707 = vsel %vm588, %v1667, %v1665
    %v1709 = vlaneseq
    %v1710 = vshrl.u32 %v1709, 7
    %v1711 = vsub.s32 0, %v1710
    %v1712 = vrot.slane %v1635, %v1711
    %v1713 = vlaneseq
    %v1714 = vshrl.u32 %v1713, 7
    %v1715 = vsub.s32 1, %v1714
    %v1716 = vrot.slane %v1635, %v1715
    %v1719 = vmul.f32 %v1712, %v1668
    %v1720 = vmul.f32 %v1716, %v1700
    %v1721 = vmul.f32 %v1712, %v1669
    %v1722 = vmul.f32 %v1716, %v1701
    %v1723 = vmul.f32 %v1712, %v1670
    %v1724 = vmul.f32 %v1716, %v1702
    %v1725 = vmul.f32 %v1712, %v1671
    %v1726 = vmul.f32 %v1716, %v1703
    %v1727 = vmul.f32 %v1712, %v1672
    %v1728 = vmul.f32 %v1716, %v1704
    %v1729 = vmul.f32 %v1712, %v1673
    %v1730 = vmul.f32 %v1716, %v1705
    %v1731 = vmul.f32 %v1712, %v1674
    %v1732 = vmul.f32 %v1716, %v1706
    %v1733 = vmul.f32 %v1712, %v1675
    %v1734 = vmul.f32 %v1716, %v1707
    %v1735 = vadd.f32 %v1618, %v1719
    %v1736 = vadd.f32 %v1619, %v1720
    %v1737 = vadd.f32 %v1620, %v1721
    %v1738 = vadd.f32 %v1621, %v1722
    %v1739 = vadd.f32 %v1622, %v1723
    %v1740 = vadd.f32 %v1623, %v1724
    %v1741 = vadd.f32 %v1624, %v1725
    %v1742 = vadd.f32 %v1625, %v1726
    %v1743 = vadd.f32 %v1626, %v1727
    %v1744 = vadd.f32 %v1627, %v1728
    %v1745 = vadd.f32 %v1628, %v1729
    %v1746 = vadd.f32 %v1629, %v1730
    %v1747 = vadd.f32 %v1630, %v1731
    %v1748 = vadd.f32 %v1631, %v1732
    %v1749 = vadd.f32 %v1632, %v1733
    %v1750 = vadd.f32 %v1633, %v1734
    %vm1751 = vcmask 1046528
    %v1752 = vrot.slane %v71, 1
    %v1753 = vrot.slane %v73, 1
    %v1754 = vsel %vm1751, %v1752, %v1753
    %v1755 = vrot.slane %v72, 1
    %v1756 = vrot.slane %v74, 1
    %v1757 = vsel %vm1751, %v1755, %v1756
    %v1758 = vrot.slane %v75, 1
    %v1759 = vsel %vm1751, %v1753, %v1758
    %v1760 = vrot.slane %v76, 1
    %v1761 = vsel %vm1751, %v1756, %v1760
    %v1762 = vrot.slane %v77, 1
    %v1763 = vsel %vm1751, %v1758, %v1762
    %v1764 = vrot.slane %v78, 1
    %v1765 = vsel %vm1751, %v1760, %v1764
    %v1766 = vrot.slane %v79, 1
    %v1767 = vsel %vm1751, %v1762, %v1766
    %v1768 = vrot.slane %v80, 1
    %v1769 = vsel %vm1751, %v1764, %v1768
    %v1770 = vrot.slane %v81, 1
    %v1771 = vsel %vm1751, %v1766, %v1770
    %v1772 = vrot.slane %v82, 1
    %v1773 = vsel %vm1751, %v1768, %v1772
    %v1774 = vrot.slane %v83, 1
    %v1775 = vsel %vm1751, %v1770, %v1774
    %v1776 = vrot.slane %v84, 1
    %v1777 = vsel %vm1751, %v1772, %v1776
    %v1778 = vrot.slane %v85, 1
    %v1779 = vsel %vm1751, %v1774, %v1778
    %v1780 = vrot.slane %v86, 1
    %v1781 = vsel %vm1751, %v1776, %v1780
    %v1800 = vsel %vm1751, %v1778, %v1752
    %v1801 = vsel %vm1751, %v1780, %v1755
    %s1802 = scalar_lea.vmem [#allocation5], 23
    %v1803 = vld [vmem:[%s1802] ss:$8 sm:$0x3]
    %1805 = vrot.lane.b32.xlu0 %v1757, 16
    %v1806 = vpop.permute.xlu0 %1805
    %1807 = vrot.lane.b32.xlu0 %v1761, 16
    %v1808 = vpop.permute.xlu0 %1807
    %1809 = vrot.lane.b32.xlu0 %v1765, 16
    %v1810 = vpop.permute.xlu0 %1809
    %1811 = vrot.lane.b32.xlu0 %v1769, 16
    %v1812 = vpop.permute.xlu0 %1811
    %1813 = vrot.lane.b32.xlu0 %v1773, 16
    %v1814 = vpop.permute.xlu0 %1813
    %1815 = vrot.lane.b32.xlu0 %v1777, 16
    %v1816 = vpop.permute.xlu0 %1815
    %1817 = vrot.lane.b32.xlu0 %v1781, 16
    %v1818 = vpop.permute.xlu0 %1817
    %1819 = vrot.lane.b32.xlu0 %v1801, 16
    %v1820 = vpop.permute.xlu0 %1819
    %1830 = vrot.lane.b32.xlu0 %v1754, 16
    %v1831 = vpop.permute.xlu0 %1830
    %1832 = vrot.lane.b32.xlu0 %v1759, 16
    %v1833 = vpop.permute.xlu0 %1832
    %1834 = vrot.lane.b32.xlu0 %v1763, 16
    %v1835 = vpop.permute.xlu0 %1834
    %1836 = vrot.lane.b32.xlu0 %v1767, 16
    %v1837 = vpop.permute.xlu0 %1836
    %1838 = vrot.lane.b32.xlu0 %v1771, 16
    %v1839 = vpop.permute.xlu0 %1838
    %1840 = vrot.lane.b32.xlu0 %v1775, 16
    %v1841 = vpop.permute.xlu0 %1840
    %1842 = vrot.lane.b32.xlu0 %v1779, 16
    %v1843 = vpop.permute.xlu0 %1842
    %1844 = vrot.lane.b32.xlu0 %v1800, 16
    %v1845 = vpop.permute.xlu0 %1844
    %v1846 = vsel %vm213, %v1831, %v1806
    %v1847 = vsel %vm213, %v1833, %v1808
    %v1848 = vsel %vm213, %v1835, %v1810
    %v1849 = vsel %vm213, %v1837, %v1812
    %v1850 = vsel %vm213, %v1839, %v1814
    %v1851 = vsel %vm213, %v1841, %v1816
    %v1852 = vsel %vm213, %v1843, %v1818
    %v1853 = vsel %vm213, %v1845, %v1820
    %v1870 = vsel %vm213, %v1806, %v1831
    %v1871 = vsel %vm213, %v1808, %v1833
    %v1872 = vsel %vm213, %v1810, %v1835
    %v1873 = vsel %vm213, %v1812, %v1837
    %v1874 = vsel %vm213, %v1814, %v1839
    %v1875 = vsel %vm213, %v1816, %v1841
    %v1876 = vsel %vm213, %v1818, %v1843
    %v1877 = vsel %vm213, %v1820, %v1845
    %v1879 = vlaneseq
    %v1880 = vshrl.u32 %v1879, 7
    %v1881 = vsub.s32 0, %v1880
    %v1882 = vrot.slane %v1803, %v1881
    %v1883 = vlaneseq
    %v1884 = vshrl.u32 %v1883, 7
    %v1885 = vsub.s32 1, %v1884
    %v1886 = vrot.slane %v1803, %v1885
    %v1889 = vmul.f32 %v1882, %v1870
    %v1890 = vmul.f32 %v1886, %v1846
    %v1891 = vmul.f32 %v1882, %v1871
    %v1892 = vmul.f32 %v1886, %v1847
    %v1893 = vmul.f32 %v1882, %v1872
    %v1894 = vmul.f32 %v1886, %v1848
    %v1895 = vmul.f32 %v1882, %v1873
    %v1896 = vmul.f32 %v1886, %v1849
    %v1897 = vmul.f32 %v1882, %v1874
    %v1898 = vmul.f32 %v1886, %v1850
    %v1899 = vmul.f32 %v1882, %v1875
    %v1900 = vmul.f32 %v1886, %v1851
    %v1901 = vmul.f32 %v1882, %v1876
    %v1902 = vmul.f32 %v1886, %v1852
    %v1903 = vmul.f32 %v1882, %v1877
    %v1904 = vmul.f32 %v1886, %v1853
    %v1905 = vadd.f32 %v1735, %v1889
    %v1906 = vadd.f32 %v1736, %v1890
    %v1907 = vadd.f32 %v1737, %v1891
    %v1908 = vadd.f32 %v1738, %v1892
    %v1909 = vadd.f32 %v1739, %v1893
    %v1910 = vadd.f32 %v1740, %v1894
    %v1911 = vadd.f32 %v1741, %v1895
    %v1912 = vadd.f32 %v1742, %v1896
    %v1913 = vadd.f32 %v1743, %v1897
    %v1914 = vadd.f32 %v1744, %v1898
    %v1915 = vadd.f32 %v1745, %v1899
    %v1916 = vadd.f32 %v1746, %v1900
    %v1917 = vadd.f32 %v1747, %v1901
    %v1918 = vadd.f32 %v1748, %v1902
    %v1919 = vadd.f32 %v1749, %v1903
    %v1920 = vadd.f32 %v1750, %v1904
    %s1921 = scalar_lea.vmem [#allocation5], 32
    %v1922 = vld [vmem:[%s1921] ss:$8 sm:$0x3]
    %1923 = vrot.lane.b32.xlu0 %v1757, 8
    %v1924 = vpop.permute.xlu0 %1923
    %1925 = vrot.lane.b32.xlu0 %v1761, 8
    %v1926 = vpop.permute.xlu0 %1925
    %1927 = vrot.lane.b32.xlu0 %v1765, 8
    %v1928 = vpop.permute.xlu0 %1927
    %1929 = vrot.lane.b32.xlu0 %v1769, 8
    %v1930 = vpop.permute.xlu0 %1929
    %1931 = vrot.lane.b32.xlu0 %v1773, 8
    %v1932 = vpop.permute.xlu0 %1931
    %1933 = vrot.lane.b32.xlu0 %v1777, 8
    %v1934 = vpop.permute.xlu0 %1933
    %1935 = vrot.lane.b32.xlu0 %v1781, 8
    %v1936 = vpop.permute.xlu0 %1935
    %1937 = vrot.lane.b32.xlu0 %v1801, 8
    %v1938 = vpop.permute.xlu0 %1937
    %1947 = vrot.lane.b32.xlu0 %v1754, 8
    %v1948 = vpop.permute.xlu0 %1947
    %1949 = vrot.lane.b32.xlu0 %v1759, 8
    %v1950 = vpop.permute.xlu0 %1949
    %1951 = vrot.lane.b32.xlu0 %v1763, 8
    %v1952 = vpop.permute.xlu0 %1951
    %1953 = vrot.lane.b32.xlu0 %v1767, 8
    %v1954 = vpop.permute.xlu0 %1953
    %1955 = vrot.lane.b32.xlu0 %v1771, 8
    %v1956 = vpop.permute.xlu0 %1955
    %1957 = vrot.lane.b32.xlu0 %v1775, 8
    %v1958 = vpop.permute.xlu0 %1957
    %1959 = vrot.lane.b32.xlu0 %v1779, 8
    %v1960 = vpop.permute.xlu0 %1959
    %1961 = vrot.lane.b32.xlu0 %v1800, 8
    %v1962 = vpop.permute.xlu0 %1961
    %v1963 = vsel %vm315, %v1948, %v1924
    %v1964 = vsel %vm315, %v1950, %v1926
    %v1965 = vsel %vm315, %v1952, %v1928
    %v1966 = vsel %vm315, %v1954, %v1930
    %v1967 = vsel %vm315, %v1956, %v1932
    %v1968 = vsel %vm315, %v1958, %v1934
    %v1969 = vsel %vm315, %v1960, %v1936
    %v1970 = vsel %vm315, %v1962, %v1938
    %v1987 = vsel %vm315, %v1924, %v1948
    %v1988 = vsel %vm315, %v1926, %v1950
    %v1989 = vsel %vm315, %v1928, %v1952
    %v1990 = vsel %vm315, %v1930, %v1954
    %v1991 = vsel %vm315, %v1932, %v1956
    %v1992 = vsel %vm315, %v1934, %v1958
    %v1993 = vsel %vm315, %v1936, %v1960
    %v1994 = vsel %vm315, %v1938, %v1962
    %v1996 = vlaneseq
    %v1997 = vshrl.u32 %v1996, 7
    %v1998 = vsub.s32 0, %v1997
    %v1999 = vrot.slane %v1922, %v1998
    %v2000 = vlaneseq
    %v2001 = vshrl.u32 %v2000, 7
    %v2002 = vsub.s32 1, %v2001
    %v2003 = vrot.slane %v1922, %v2002
    %v2006 = vmul.f32 %v1999, %v1987
    %v2007 = vmul.f32 %v2003, %v1963
    %v2008 = vmul.f32 %v1999, %v1988
    %v2009 = vmul.f32 %v2003, %v1964
    %v2010 = vmul.f32 %v1999, %v1989
    %v2011 = vmul.f32 %v2003, %v1965
    %v2012 = vmul.f32 %v1999, %v1990
    %v2013 = vmul.f32 %v2003, %v1966
    %v2014 = vmul.f32 %v1999, %v1991
    %v2015 = vmul.f32 %v2003, %v1967
    %v2016 = vmul.f32 %v1999, %v1992
    %v2017 = vmul.f32 %v2003, %v1968
    %v2018 = vmul.f32 %v1999, %v1993
    %v2019 = vmul.f32 %v2003, %v1969
    %v2020 = vmul.f32 %v1999, %v1994
    %v2021 = vmul.f32 %v2003, %v1970
    %v2022 = vadd.f32 %v1905, %v2006
    %v2023 = vadd.f32 %v1906, %v2007
    %v2024 = vadd.f32 %v1907, %v2008
    %v2025 = vadd.f32 %v1908, %v2009
    %v2026 = vadd.f32 %v1909, %v2010
    %v2027 = vadd.f32 %v1910, %v2011
    %v2028 = vadd.f32 %v1911, %v2012
    %v2029 = vadd.f32 %v1912, %v2013
    %v2030 = vadd.f32 %v1913, %v2014
    %v2031 = vadd.f32 %v1914, %v2015
    %v2032 = vadd.f32 %v1915, %v2016
    %v2033 = vadd.f32 %v1916, %v2017
    %v2034 = vadd.f32 %v1917, %v2018
    %v2035 = vadd.f32 %v1918, %v2019
    %v2036 = vadd.f32 %v1919, %v2020
    %v2037 = vadd.f32 %v1920, %v2021
    %s2038 = scalar_lea.vmem [#allocation5], 33
    %v2039 = vld [vmem:[%s2038] ss:$8 sm:$0x3]
    %v2041 = vlaneseq
    %v2042 = vshrl.u32 %v2041, 7
    %v2043 = vsub.s32 0, %v2042
    %v2044 = vrot.slane %v2039, %v2043
    %v2045 = vlaneseq
    %v2046 = vshrl.u32 %v2045, 7
    %v2047 = vsub.s32 1, %v2046
    %v2048 = vrot.slane %v2039, %v2047
    %v2051 = vmul.f32 %v2044, %v1754
    %v2052 = vmul.f32 %v2048, %v1757
    %v2053 = vmul.f32 %v2044, %v1759
    %v2054 = vmul.f32 %v2048, %v1761
    %v2055 = vmul.f32 %v2044, %v1763
    %v2056 = vmul.f32 %v2048, %v1765
    %v2057 = vmul.f32 %v2044, %v1767
    %v2058 = vmul.f32 %v2048, %v1769
    %v2059 = vmul.f32 %v2044, %v1771
    %v2060 = vmul.f32 %v2048, %v1773
    %v2061 = vmul.f32 %v2044, %v1775
    %v2062 = vmul.f32 %v2048, %v1777
    %v2063 = vmul.f32 %v2044, %v1779
    %v2064 = vmul.f32 %v2048, %v1781
    %v2065 = vmul.f32 %v2044, %v1800
    %v2066 = vmul.f32 %v2048, %v1801
    %v2067 = vadd.f32 %v2022, %v2051
    %v2068 = vadd.f32 %v2023, %v2052
    %v2069 = vadd.f32 %v2024, %v2053
    %v2070 = vadd.f32 %v2025, %v2054
    %v2071 = vadd.f32 %v2026, %v2055
    %v2072 = vadd.f32 %v2027, %v2056
    %v2073 = vadd.f32 %v2028, %v2057
    %v2074 = vadd.f32 %v2029, %v2058
    %v2075 = vadd.f32 %v2030, %v2059
    %v2076 = vadd.f32 %v2031, %v2060
    %v2077 = vadd.f32 %v2032, %v2061
    %v2078 = vadd.f32 %v2033, %v2062
    %v2079 = vadd.f32 %v2034, %v2063
    %v2080 = vadd.f32 %v2035, %v2064
    %v2081 = vadd.f32 %v2036, %v2065
    %v2082 = vadd.f32 %v2037, %v2066
    %s2083 = scalar_lea.vmem [#allocation5], 34
    %v2084 = vld [vmem:[%s2083] ss:$8 sm:$0x3]
    %2085 = vrot.lane.b32.xlu0 %v1754, 120
    %v2086 = vpop.permute.xlu0 %2085
    %2087 = vrot.lane.b32.xlu0 %v1757, 120
    %v2088 = vpop.permute.xlu0 %2087
    %2089 = vrot.lane.b32.xlu0 %v1759, 120
    %v2090 = vpop.permute.xlu0 %2089
    %2091 = vrot.lane.b32.xlu0 %v1761, 120
    %v2092 = vpop.permute.xlu0 %2091
    %2093 = vrot.lane.b32.xlu0 %v1763, 120
    %v2094 = vpop.permute.xlu0 %2093
    %2095 = vrot.lane.b32.xlu0 %v1765, 120
    %v2096 = vpop.permute.xlu0 %2095
    %2097 = vrot.lane.b32.xlu0 %v1767, 120
    %v2098 = vpop.permute.xlu0 %2097
    %2099 = vrot.lane.b32.xlu0 %v1769, 120
    %v2100 = vpop.permute.xlu0 %2099
    %2101 = vrot.lane.b32.xlu0 %v1771, 120
    %v2102 = vpop.permute.xlu0 %2101
    %2103 = vrot.lane.b32.xlu0 %v1773, 120
    %v2104 = vpop.permute.xlu0 %2103
    %2105 = vrot.lane.b32.xlu0 %v1775, 120
    %v2106 = vpop.permute.xlu0 %2105
    %2107 = vrot.lane.b32.xlu0 %v1777, 120
    %v2108 = vpop.permute.xlu0 %2107
    %2109 = vrot.lane.b32.xlu0 %v1779, 120
    %v2110 = vpop.permute.xlu0 %2109
    %2111 = vrot.lane.b32.xlu0 %v1781, 120
    %v2112 = vpop.permute.xlu0 %2111
    %2113 = vrot.lane.b32.xlu0 %v1800, 120
    %v2114 = vpop.permute.xlu0 %2113
    %2115 = vrot.lane.b32.xlu0 %v1801, 120
    %v2116 = vpop.permute.xlu0 %2115
    %v2117 = vsel %vm470, %v2086, %v2088
    %v2118 = vsel %vm470, %v2090, %v2092
    %v2119 = vsel %vm470, %v2094, %v2096
    %v2120 = vsel %vm470, %v2098, %v2100
    %v2121 = vsel %vm470, %v2102, %v2104
    %v2122 = vsel %vm470, %v2106, %v2108
    %v2123 = vsel %vm470, %v2110, %v2112
    %v2124 = vsel %vm470, %v2114, %v2116
    %v2149 = vsel %vm470, %v2088, %v2086
    %v2150 = vsel %vm470, %v2092, %v2090
    %v2151 = vsel %vm470, %v2096, %v2094
    %v2152 = vsel %vm470, %v2100, %v2098
    %v2153 = vsel %vm470, %v2104, %v2102
    %v2154 = vsel %vm470, %v2108, %v2106
    %v2155 = vsel %vm470, %v2112, %v2110
    %v2156 = vsel %vm470, %v2116, %v2114
    %v2158 = vlaneseq
    %v2159 = vshrl.u32 %v2158, 7
    %v2160 = vsub.s32 0, %v2159
    %v2161 = vrot.slane %v2084, %v2160
    %v2162 = vlaneseq
    %v2163 = vshrl.u32 %v2162, 7
    %v2164 = vsub.s32 1, %v2163
    %v2165 = vrot.slane %v2084, %v2164
    %v2168 = vmul.f32 %v2161, %v2117
    %v2169 = vmul.f32 %v2165, %v2149
    %v2170 = vmul.f32 %v2161, %v2118
    %v2171 = vmul.f32 %v2165, %v2150
    %v2172 = vmul.f32 %v2161, %v2119
    %v2173 = vmul.f32 %v2165, %v2151
    %v2174 = vmul.f32 %v2161, %v2120
    %v2175 = vmul.f32 %v2165, %v2152
    %v2176 = vmul.f32 %v2161, %v2121
    %v2177 = vmul.f32 %v2165, %v2153
    %v2178 = vmul.f32 %v2161, %v2122
    %v2179 = vmul.f32 %v2165, %v2154
    %v2180 = vmul.f32 %v2161, %v2123
    %v2181 = vmul.f32 %v2165, %v2155
    %v2182 = vmul.f32 %v2161, %v2124
    %v2183 = vmul.f32 %v2165, %v2156
    %v2184 = vadd.f32 %v2067, %v2168
    %v2185 = vadd.f32 %v2068, %v2169
    %v2186 = vadd.f32 %v2069, %v2170
    %v2187 = vadd.f32 %v2070, %v2171
    %v2188 = vadd.f32 %v2071, %v2172
    %v2189 = vadd.f32 %v2072, %v2173
    %v2190 = vadd.f32 %v2073, %v2174
    %v2191 = vadd.f32 %v2074, %v2175
    %v2192 = vadd.f32 %v2075, %v2176
    %v2193 = vadd.f32 %v2076, %v2177
    %v2194 = vadd.f32 %v2077, %v2178
    %v2195 = vadd.f32 %v2078, %v2179
    %v2196 = vadd.f32 %v2079, %v2180
    %v2197 = vadd.f32 %v2080, %v2181
    %v2198 = vadd.f32 %v2081, %v2182
    %v2199 = vadd.f32 %v2082, %v2183
    %s2200 = scalar_lea.vmem [#allocation5], 35
    %v2201 = vld [vmem:[%s2200] ss:$8 sm:$0x3]
    %2202 = vrot.lane.b32.xlu0 %v1754, 112
    %v2203 = vpop.permute.xlu0 %2202
    %2204 = vrot.lane.b32.xlu0 %v1757, 112
    %v2205 = vpop.permute.xlu0 %2204
    %2206 = vrot.lane.b32.xlu0 %v1759, 112
    %v2207 = vpop.permute.xlu0 %2206
    %2208 = vrot.lane.b32.xlu0 %v1761, 112
    %v2209 = vpop.permute.xlu0 %2208
    %2210 = vrot.lane.b32.xlu0 %v1763, 112
    %v2211 = vpop.permute.xlu0 %2210
    %2212 = vrot.lane.b32.xlu0 %v1765, 112
    %v2213 = vpop.permute.xlu0 %2212
    %2214 = vrot.lane.b32.xlu0 %v1767, 112
    %v2215 = vpop.permute.xlu0 %2214
    %2216 = vrot.lane.b32.xlu0 %v1769, 112
    %v2217 = vpop.permute.xlu0 %2216
    %2218 = vrot.lane.b32.xlu0 %v1771, 112
    %v2219 = vpop.permute.xlu0 %2218
    %2220 = vrot.lane.b32.xlu0 %v1773, 112
    %v2221 = vpop.permute.xlu0 %2220
    %2222 = vrot.lane.b32.xlu0 %v1775, 112
    %v2223 = vpop.permute.xlu0 %2222
    %2224 = vrot.lane.b32.xlu0 %v1777, 112
    %v2225 = vpop.permute.xlu0 %2224
    %2226 = vrot.lane.b32.xlu0 %v1779, 112
    %v2227 = vpop.permute.xlu0 %2226
    %2228 = vrot.lane.b32.xlu0 %v1781, 112
    %v2229 = vpop.permute.xlu0 %2228
    %2230 = vrot.lane.b32.xlu0 %v1800, 112
    %v2231 = vpop.permute.xlu0 %2230
    %2232 = vrot.lane.b32.xlu0 %v1801, 112
    %v2233 = vpop.permute.xlu0 %2232
    %v2234 = vsel %vm588, %v2203, %v2205
    %v2235 = vsel %vm588, %v2207, %v2209
    %v2236 = vsel %vm588, %v2211, %v2213
    %v2237 = vsel %vm588, %v2215, %v2217
    %v2238 = vsel %vm588, %v2219, %v2221
    %v2239 = vsel %vm588, %v2223, %v2225
    %v2240 = vsel %vm588, %v2227, %v2229
    %v2241 = vsel %vm588, %v2231, %v2233
    %v2266 = vsel %vm588, %v2205, %v2203
    %v2267 = vsel %vm588, %v2209, %v2207
    %v2268 = vsel %vm588, %v2213, %v2211
    %v2269 = vsel %vm588, %v2217, %v2215
    %v2270 = vsel %vm588, %v2221, %v2219
    %v2271 = vsel %vm588, %v2225, %v2223
    %v2272 = vsel %vm588, %v2229, %v2227
    %v2273 = vsel %vm588, %v2233, %v2231
    %v2275 = vlaneseq
    %v2276 = vshrl.u32 %v2275, 7
    %v2277 = vsub.s32 0, %v2276
    %v2278 = vrot.slane %v2201, %v2277
    %v2279 = vlaneseq
    %v2280 = vshrl.u32 %v2279, 7
    %v2281 = vsub.s32 1, %v2280
    %v2282 = vrot.slane %v2201, %v2281
    %v2285 = vmul.f32 %v2278, %v2234
    %v2286 = vmul.f32 %v2282, %v2266
    %v2287 = vmul.f32 %v2278, %v2235
    %v2288 = vmul.f32 %v2282, %v2267
    %v2289 = vmul.f32 %v2278, %v2236
    %v2290 = vmul.f32 %v2282, %v2268
    %v2291 = vmul.f32 %v2278, %v2237
    %v2292 = vmul.f32 %v2282, %v2269
    %v2293 = vmul.f32 %v2278, %v2238
    %v2294 = vmul.f32 %v2282, %v2270
    %v2295 = vmul.f32 %v2278, %v2239
    %v2296 = vmul.f32 %v2282, %v2271
    %v2297 = vmul.f32 %v2278, %v2240
    %v2298 = vmul.f32 %v2282, %v2272
    %v2299 = vmul.f32 %v2278, %v2241
    %v2300 = vmul.f32 %v2282, %v2273
    %v2301 = vadd.f32 %v2184, %v2285
    %v2302 = vadd.f32 %v2185, %v2286
    %v2303 = vadd.f32 %v2186, %v2287
    %v2304 = vadd.f32 %v2187, %v2288
    %v2305 = vadd.f32 %v2188, %v2289
    %v2306 = vadd.f32 %v2189, %v2290
    %v2307 = vadd.f32 %v2190, %v2291
    %v2308 = vadd.f32 %v2191, %v2292
    %v2309 = vadd.f32 %v2192, %v2293
    %v2310 = vadd.f32 %v2193, %v2294
    %v2311 = vadd.f32 %v2194, %v2295
    %v2312 = vadd.f32 %v2195, %v2296
    %v2313 = vadd.f32 %v2196, %v2297
    %v2314 = vadd.f32 %v2197, %v2298
    %v2315 = vadd.f32 %v2198, %v2299
    %v2316 = vadd.f32 %v2199, %v2300
    %vm2317 = vcmask 1045504
    %v2318 = vrot.slane %v71, 2
    %v2319 = vrot.slane %v73, 2
    %v2320 = vsel %vm2317, %v2318, %v2319
    %v2321 = vrot.slane %v72, 2
    %v2322 = vrot.slane %v74, 2
    %v2323 = vsel %vm2317, %v2321, %v2322
    %v2324 = vrot.slane %v75, 2
    %v2325 = vsel %vm2317, %v2319, %v2324
    %v2326 = vrot.slane %v76, 2
    %v2327 = vsel %vm2317, %v2322, %v2326
    %v2328 = vrot.slane %v77, 2
    %v2329 = vsel %vm2317, %v2324, %v2328
    %v2330 = vrot.slane %v78, 2
    %v2331 = vsel %vm2317, %v2326, %v2330
    %v2332 = vrot.slane %v79, 2
    %v2333 = vsel %vm2317, %v2328, %v2332
    %v2334 = vrot.slane %v80, 2
    %v2335 = vsel %vm2317, %v2330, %v2334
    %v2336 = vrot.slane %v81, 2
    %v2337 = vsel %vm2317, %v2332, %v2336
    %v2338 = vrot.slane %v82, 2
    %v2339 = vsel %vm2317, %v2334, %v2338
    %v2340 = vrot.slane %v83, 2
    %v2341 = vsel %vm2317, %v2336, %v2340
    %v2342 = vrot.slane %v84, 2
    %v2343 = vsel %vm2317, %v2338, %v2342
    %v2344 = vrot.slane %v85, 2
    %v2345 = vsel %vm2317, %v2340, %v2344
    %v2346 = vrot.slane %v86, 2
    %v2347 = vsel %vm2317, %v2342, %v2346
    %v2366 = vsel %vm2317, %v2344, %v2318
    %v2367 = vsel %vm2317, %v2346, %v2321
    %s2368 = scalar_lea.vmem [#allocation5], 36
    %v2369 = vld [vmem:[%s2368] ss:$8 sm:$0x3]
    %2371 = vrot.lane.b32.xlu0 %v2323, 16
    %v2372 = vpop.permute.xlu0 %2371
    %2373 = vrot.lane.b32.xlu0 %v2327, 16
    %v2374 = vpop.permute.xlu0 %2373
    %2375 = vrot.lane.b32.xlu0 %v2331, 16
    %v2376 = vpop.permute.xlu0 %2375
    %2377 = vrot.lane.b32.xlu0 %v2335, 16
    %v2378 = vpop.permute.xlu0 %2377
    %2379 = vrot.lane.b32.xlu0 %v2339, 16
    %v2380 = vpop.permute.xlu0 %2379
    %2381 = vrot.lane.b32.xlu0 %v2343, 16
    %v2382 = vpop.permute.xlu0 %2381
    %2383 = vrot.lane.b32.xlu0 %v2347, 16
    %v2384 = vpop.permute.xlu0 %2383
    %2385 = vrot.lane.b32.xlu0 %v2367, 16
    %v2386 = vpop.permute.xlu0 %2385
    %2396 = vrot.lane.b32.xlu0 %v2320, 16
    %v2397 = vpop.permute.xlu0 %2396
    %2398 = vrot.lane.b32.xlu0 %v2325, 16
    %v2399 = vpop.permute.xlu0 %2398
    %2400 = vrot.lane.b32.xlu0 %v2329, 16
    %v2401 = vpop.permute.xlu0 %2400
    %2402 = vrot.lane.b32.xlu0 %v2333, 16
    %v2403 = vpop.permute.xlu0 %2402
    %2404 = vrot.lane.b32.xlu0 %v2337, 16
    %v2405 = vpop.permute.xlu0 %2404
    %2406 = vrot.lane.b32.xlu0 %v2341, 16
    %v2407 = vpop.permute.xlu0 %2406
    %2408 = vrot.lane.b32.xlu0 %v2345, 16
    %v2409 = vpop.permute.xlu0 %2408
    %2410 = vrot.lane.b32.xlu0 %v2366, 16
    %v2411 = vpop.permute.xlu0 %2410
    %v2412 = vsel %vm213, %v2397, %v2372
    %v2413 = vsel %vm213, %v2399, %v2374
    %v2414 = vsel %vm213, %v2401, %v2376
    %v2415 = vsel %vm213, %v2403, %v2378
    %v2416 = vsel %vm213, %v2405, %v2380
    %v2417 = vsel %vm213, %v2407, %v2382
    %v2418 = vsel %vm213, %v2409, %v2384
    %v2419 = vsel %vm213, %v2411, %v2386
    %v2436 = vsel %vm213, %v2372, %v2397
    %v2437 = vsel %vm213, %v2374, %v2399
    %v2438 = vsel %vm213, %v2376, %v2401
    %v2439 = vsel %vm213, %v2378, %v2403
    %v2440 = vsel %vm213, %v2380, %v2405
    %v2441 = vsel %vm213, %v2382, %v2407
    %v2442 = vsel %vm213, %v2384, %v2409
    %v2443 = vsel %vm213, %v2386, %v2411
    %v2445 = vlaneseq
    %v2446 = vshrl.u32 %v2445, 7
    %v2447 = vsub.s32 0, %v2446
    %v2448 = vrot.slane %v2369, %v2447
    %v2449 = vlaneseq
    %v2450 = vshrl.u32 %v2449, 7
    %v2451 = vsub.s32 1, %v2450
    %v2452 = vrot.slane %v2369, %v2451
    %v2455 = vmul.f32 %v2448, %v2436
    %v2456 = vmul.f32 %v2452, %v2412
    %v2457 = vmul.f32 %v2448, %v2437
    %v2458 = vmul.f32 %v2452, %v2413
    %v2459 = vmul.f32 %v2448, %v2438
    %v2460 = vmul.f32 %v2452, %v2414
    %v2461 = vmul.f32 %v2448, %v2439
    %v2462 = vmul.f32 %v2452, %v2415
    %v2463 = vmul.f32 %v2448, %v2440
    %v2464 = vmul.f32 %v2452, %v2416
    %v2465 = vmul.f32 %v2448, %v2441
    %v2466 = vmul.f32 %v2452, %v2417
    %v2467 = vmul.f32 %v2448, %v2442
    %v2468 = vmul.f32 %v2452, %v2418
    %v2469 = vmul.f32 %v2448, %v2443
    %v2470 = vmul.f32 %v2452, %v2419
    %v2471 = vadd.f32 %v2301, %v2455
    %v2472 = vadd.f32 %v2302, %v2456
    %v2473 = vadd.f32 %v2303, %v2457
    %v2474 = vadd.f32 %v2304, %v2458
    %v2475 = vadd.f32 %v2305, %v2459
    %v2476 = vadd.f32 %v2306, %v2460
    %v2477 = vadd.f32 %v2307, %v2461
    %v2478 = vadd.f32 %v2308, %v2462
    %v2479 = vadd.f32 %v2309, %v2463
    %v2480 = vadd.f32 %v2310, %v2464
    %v2481 = vadd.f32 %v2311, %v2465
    %v2482 = vadd.f32 %v2312, %v2466
    %v2483 = vadd.f32 %v2313, %v2467
    %v2484 = vadd.f32 %v2314, %v2468
    %v2485 = vadd.f32 %v2315, %v2469
    %v2486 = vadd.f32 %v2316, %v2470
    %s2487 = scalar_lea.vmem [#allocation5], 37
    %v2488 = vld [vmem:[%s2487] ss:$8 sm:$0x3]
    %2489 = vrot.lane.b32.xlu0 %v2323, 8
    %v2490 = vpop.permute.xlu0 %2489
    %2491 = vrot.lane.b32.xlu0 %v2327, 8
    %v2492 = vpop.permute.xlu0 %2491
    %2493 = vrot.lane.b32.xlu0 %v2331, 8
    %v2494 = vpop.permute.xlu0 %2493
    %2495 = vrot.lane.b32.xlu0 %v2335, 8
    %v2496 = vpop.permute.xlu0 %2495
    %2497 = vrot.lane.b32.xlu0 %v2339, 8
    %v2498 = vpop.permute.xlu0 %2497
    %2499 = vrot.lane.b32.xlu0 %v2343, 8
    %v2500 = vpop.permute.xlu0 %2499
    %2501 = vrot.lane.b32.xlu0 %v2347, 8
    %v2502 = vpop.permute.xlu0 %2501
    %2503 = vrot.lane.b32.xlu0 %v2367, 8
    %v2504 = vpop.permute.xlu0 %2503
    %2513 = vrot.lane.b32.xlu0 %v2320, 8
    %v2514 = vpop.permute.xlu0 %2513
    %2515 = vrot.lane.b32.xlu0 %v2325, 8
    %v2516 = vpop.permute.xlu0 %2515
    %2517 = vrot.lane.b32.xlu0 %v2329, 8
    %v2518 = vpop.permute.xlu0 %2517
    %2519 = vrot.lane.b32.xlu0 %v2333, 8
    %v2520 = vpop.permute.xlu0 %2519
    %2521 = vrot.lane.b32.xlu0 %v2337, 8
    %v2522 = vpop.permute.xlu0 %2521
    %2523 = vrot.lane.b32.xlu0 %v2341, 8
    %v2524 = vpop.permute.xlu0 %2523
    %2525 = vrot.lane.b32.xlu0 %v2345, 8
    %v2526 = vpop.permute.xlu0 %2525
    %2527 = vrot.lane.b32.xlu0 %v2366, 8
    %v2528 = vpop.permute.xlu0 %2527
    %v2529 = vsel %vm315, %v2514, %v2490
    %v2530 = vsel %vm315, %v2516, %v2492
    %v2531 = vsel %vm315, %v2518, %v2494
    %v2532 = vsel %vm315, %v2520, %v2496
    %v2533 = vsel %vm315, %v2522, %v2498
    %v2534 = vsel %vm315, %v2524, %v2500
    %v2535 = vsel %vm315, %v2526, %v2502
    %v2536 = vsel %vm315, %v2528, %v2504
    %v2553 = vsel %vm315, %v2490, %v2514
    %v2554 = vsel %vm315, %v2492, %v2516
    %v2555 = vsel %vm315, %v2494, %v2518
    %v2556 = vsel %vm315, %v2496, %v2520
    %v2557 = vsel %vm315, %v2498, %v2522
    %v2558 = vsel %vm315, %v2500, %v2524
    %v2559 = vsel %vm315, %v2502, %v2526
    %v2560 = vsel %vm315, %v2504, %v2528
    %v2562 = vlaneseq
    %v2563 = vshrl.u32 %v2562, 7
    %v2564 = vsub.s32 0, %v2563
    %v2565 = vrot.slane %v2488, %v2564
    %v2566 = vlaneseq
    %v2567 = vshrl.u32 %v2566, 7
    %v2568 = vsub.s32 1, %v2567
    %v2569 = vrot.slane %v2488, %v2568
    %v2572 = vmul.f32 %v2565, %v2553
    %v2573 = vmul.f32 %v2569, %v2529
    %v2574 = vmul.f32 %v2565, %v2554
    %v2575 = vmul.f32 %v2569, %v2530
    %v2576 = vmul.f32 %v2565, %v2555
    %v2577 = vmul.f32 %v2569, %v2531
    %v2578 = vmul.f32 %v2565, %v2556
    %v2579 = vmul.f32 %v2569, %v2532
    %v2580 = vmul.f32 %v2565, %v2557
    %v2581 = vmul.f32 %v2569, %v2533
    %v2582 = vmul.f32 %v2565, %v2558
    %v2583 = vmul.f32 %v2569, %v2534
    %v2584 = vmul.f32 %v2565, %v2559
    %v2585 = vmul.f32 %v2569, %v2535
    %v2586 = vmul.f32 %v2565, %v2560
    %v2587 = vmul.f32 %v2569, %v2536
    %v2588 = vadd.f32 %v2471, %v2572
    %v2589 = vadd.f32 %v2472, %v2573
    %v2590 = vadd.f32 %v2473, %v2574
    %v2591 = vadd.f32 %v2474, %v2575
    %v2592 = vadd.f32 %v2475, %v2576
    %v2593 = vadd.f32 %v2476, %v2577
    %v2594 = vadd.f32 %v2477, %v2578
    %v2595 = vadd.f32 %v2478, %v2579
    %v2596 = vadd.f32 %v2479, %v2580
    %v2597 = vadd.f32 %v2480, %v2581
    %v2598 = vadd.f32 %v2481, %v2582
    %v2599 = vadd.f32 %v2482, %v2583
    %v2600 = vadd.f32 %v2483, %v2584
    %v2601 = vadd.f32 %v2484, %v2585
    %v2602 = vadd.f32 %v2485, %v2586
    %v2603 = vadd.f32 %v2486, %v2587
    %s2604 = scalar_lea.vmem [#allocation5], 38
    %v2605 = vld [vmem:[%s2604] ss:$8 sm:$0x3]
    %v2607 = vlaneseq
    %v2608 = vshrl.u32 %v2607, 7
    %v2609 = vsub.s32 0, %v2608
    %v2610 = vrot.slane %v2605, %v2609
    %v2611 = vlaneseq
    %v2612 = vshrl.u32 %v2611, 7
    %v2613 = vsub.s32 1, %v2612
    %v2614 = vrot.slane %v2605, %v2613
    %v2617 = vmul.f32 %v2610, %v2320
    %v2618 = vmul.f32 %v2614, %v2323
    %v2619 = vmul.f32 %v2610, %v2325
    %v2620 = vmul.f32 %v2614, %v2327
    %v2621 = vmul.f32 %v2610, %v2329
    %v2622 = vmul.f32 %v2614, %v2331
    %v2623 = vmul.f32 %v2610, %v2333
    %v2624 = vmul.f32 %v2614, %v2335
    %v2625 = vmul.f32 %v2610, %v2337
    %v2626 = vmul.f32 %v2614, %v2339
    %v2627 = vmul.f32 %v2610, %v2341
    %v2628 = vmul.f32 %v2614, %v2343
    %v2629 = vmul.f32 %v2610, %v2345
    %v2630 = vmul.f32 %v2614, %v2347
    %v2631 = vmul.f32 %v2610, %v2366
    %v2632 = vmul.f32 %v2614, %v2367
    %v2633 = vadd.f32 %v2588, %v2617
    %v2634 = vadd.f32 %v2589, %v2618
    %v2635 = vadd.f32 %v2590, %v2619
    %v2636 = vadd.f32 %v2591, %v2620
    %v2637 = vadd.f32 %v2592, %v2621
    %v2638 = vadd.f32 %v2593, %v2622
    %v2639 = vadd.f32 %v2594, %v2623
    %v2640 = vadd.f32 %v2595, %v2624
    %v2641 = vadd.f32 %v2596, %v2625
    %v2642 = vadd.f32 %v2597, %v2626
    %v2643 = vadd.f32 %v2598, %v2627
    %v2644 = vadd.f32 %v2599, %v2628
    %v2645 = vadd.f32 %v2600, %v2629
    %v2646 = vadd.f32 %v2601, %v2630
    %v2647 = vadd.f32 %v2602, %v2631
    %v2648 = vadd.f32 %v2603, %v2632
    %s2649 = scalar_lea.vmem [#allocation5], 39
    %v2650 = vld [vmem:[%s2649] ss:$8 sm:$0x3]
    %2651 = vrot.lane.b32.xlu0 %v2320, 120
    %v2652 = vpop.permute.xlu0 %2651
    %2653 = vrot.lane.b32.xlu0 %v2323, 120
    %v2654 = vpop.permute.xlu0 %2653
    %2655 = vrot.lane.b32.xlu0 %v2325, 120
    %v2656 = vpop.permute.xlu0 %2655
    %2657 = vrot.lane.b32.xlu0 %v2327, 120
    %v2658 = vpop.permute.xlu0 %2657
    %2659 = vrot.lane.b32.xlu0 %v2329, 120
    %v2660 = vpop.permute.xlu0 %2659
    %2661 = vrot.lane.b32.xlu0 %v2331, 120
    %v2662 = vpop.permute.xlu0 %2661
    %2663 = vrot.lane.b32.xlu0 %v2333, 120
    %v2664 = vpop.permute.xlu0 %2663
    %2665 = vrot.lane.b32.xlu0 %v2335, 120
    %v2666 = vpop.permute.xlu0 %2665
    %2667 = vrot.lane.b32.xlu0 %v2337, 120
    %v2668 = vpop.permute.xlu0 %2667
    %2669 = vrot.lane.b32.xlu0 %v2339, 120
    %v2670 = vpop.permute.xlu0 %2669
    %2671 = vrot.lane.b32.xlu0 %v2341, 120
    %v2672 = vpop.permute.xlu0 %2671
    %2673 = vrot.lane.b32.xlu0 %v2343, 120
    %v2674 = vpop.permute.xlu0 %2673
    %2675 = vrot.lane.b32.xlu0 %v2345, 120
    %v2676 = vpop.permute.xlu0 %2675
    %2677 = vrot.lane.b32.xlu0 %v2347, 120
    %v2678 = vpop.permute.xlu0 %2677
    %2679 = vrot.lane.b32.xlu0 %v2366, 120
    %v2680 = vpop.permute.xlu0 %2679
    %2681 = vrot.lane.b32.xlu0 %v2367, 120
    %v2682 = vpop.permute.xlu0 %2681
    %v2683 = vsel %vm470, %v2652, %v2654
    %v2684 = vsel %vm470, %v2656, %v2658
    %v2685 = vsel %vm470, %v2660, %v2662
    %v2686 = vsel %vm470, %v2664, %v2666
    %v2687 = vsel %vm470, %v2668, %v2670
    %v2688 = vsel %vm470, %v2672, %v2674
    %v2689 = vsel %vm470, %v2676, %v2678
    %v2690 = vsel %vm470, %v2680, %v2682
    %v2715 = vsel %vm470, %v2654, %v2652
    %v2716 = vsel %vm470, %v2658, %v2656
    %v2717 = vsel %vm470, %v2662, %v2660
    %v2718 = vsel %vm470, %v2666, %v2664
    %v2719 = vsel %vm470, %v2670, %v2668
    %v2720 = vsel %vm470, %v2674, %v2672
    %v2721 = vsel %vm470, %v2678, %v2676
    %v2722 = vsel %vm470, %v2682, %v2680
    %v2724 = vlaneseq
    %v2725 = vshrl.u32 %v2724, 7
    %v2726 = vsub.s32 0, %v2725
    %v2727 = vrot.slane %v2650, %v2726
    %v2728 = vlaneseq
    %v2729 = vshrl.u32 %v2728, 7
    %v2730 = vsub.s32 1, %v2729
    %v2731 = vrot.slane %v2650, %v2730
    %v2734 = vmul.f32 %v2727, %v2683
    %v2735 = vmul.f32 %v2731, %v2715
    %v2736 = vmul.f32 %v2727, %v2684
    %v2737 = vmul.f32 %v2731, %v2716
    %v2738 = vmul.f32 %v2727, %v2685
    %v2739 = vmul.f32 %v2731, %v2717
    %v2740 = vmul.f32 %v2727, %v2686
    %v2741 = vmul.f32 %v2731, %v2718
    %v2742 = vmul.f32 %v2727, %v2687
    %v2743 = vmul.f32 %v2731, %v2719
    %v2744 = vmul.f32 %v2727, %v2688
    %v2745 = vmul.f32 %v2731, %v2720
    %v2746 = vmul.f32 %v2727, %v2689
    %v2747 = vmul.f32 %v2731, %v2721
    %v2748 = vmul.f32 %v2727, %v2690
    %v2749 = vmul.f32 %v2731, %v2722
    %v2750 = vadd.f32 %v2633, %v2734
    %v2751 = vadd.f32 %v2634, %v2735
    %v2752 = vadd.f32 %v2635, %v2736
    %v2753 = vadd.f32 %v2636, %v2737
    %v2754 = vadd.f32 %v2637, %v2738
    %v2755 = vadd.f32 %v2638, %v2739
    %v2756 = vadd.f32 %v2639, %v2740
    %v2757 = vadd.f32 %v2640, %v2741
    %v2758 = vadd.f32 %v2641, %v2742
    %v2759 = vadd.f32 %v2642, %v2743
    %v2760 = vadd.f32 %v2643, %v2744
    %v2761 = vadd.f32 %v2644, %v2745
    %v2762 = vadd.f32 %v2645, %v2746
    %v2763 = vadd.f32 %v2646, %v2747
    %v2764 = vadd.f32 %v2647, %v2748
    %v2765 = vadd.f32 %v2648, %v2749
    %s2766 = scalar_lea.vmem [#allocation5], 48
    %v2767 = vld [vmem:[%s2766] ss:$8 sm:$0x3]
    %2768 = vrot.lane.b32.xlu0 %v2320, 112
    %v2769 = vpop.permute.xlu0 %2768
    %2770 = vrot.lane.b32.xlu0 %v2323, 112
    %v2771 = vpop.permute.xlu0 %2770
    %2772 = vrot.lane.b32.xlu0 %v2325, 112
    %v2773 = vpop.permute.xlu0 %2772
    %2774 = vrot.lane.b32.xlu0 %v2327, 112
    %v2775 = vpop.permute.xlu0 %2774
    %2776 = vrot.lane.b32.xlu0 %v2329, 112
    %v2777 = vpop.permute.xlu0 %2776
    %2778 = vrot.lane.b32.xlu0 %v2331, 112
    %v2779 = vpop.permute.xlu0 %2778
    %2780 = vrot.lane.b32.xlu0 %v2333, 112
    %v2781 = vpop.permute.xlu0 %2780
    %2782 = vrot.lane.b32.xlu0 %v2335, 112
    %v2783 = vpop.permute.xlu0 %2782
    %2784 = vrot.lane.b32.xlu0 %v2337, 112
    %v2785 = vpop.permute.xlu0 %2784
    %2786 = vrot.lane.b32.xlu0 %v2339, 112
    %v2787 = vpop.permute.xlu0 %2786
    %2788 = vrot.lane.b32.xlu0 %v2341, 112
    %v2789 = vpop.permute.xlu0 %2788
    %2790 = vrot.lane.b32.xlu0 %v2343, 112
    %v2791 = vpop.permute.xlu0 %2790
    %2792 = vrot.lane.b32.xlu0 %v2345, 112
    %v2793 = vpop.permute.xlu0 %2792
    %2794 = vrot.lane.b32.xlu0 %v2347, 112
    %v2795 = vpop.permute.xlu0 %2794
    %2796 = vrot.lane.b32.xlu0 %v2366, 112
    %v2797 = vpop.permute.xlu0 %2796
    %2798 = vrot.lane.b32.xlu0 %v2367, 112
    %v2799 = vpop.permute.xlu0 %2798
    %v2800 = vsel %vm588, %v2769, %v2771
    %v2801 = vsel %vm588, %v2773, %v2775
    %v2802 = vsel %vm588, %v2777, %v2779
    %v2803 = vsel %vm588, %v2781, %v2783
    %v2804 = vsel %vm588, %v2785, %v2787
    %v2805 = vsel %vm588, %v2789, %v2791
    %v2806 = vsel %vm588, %v2793, %v2795
    %v2807 = vsel %vm588, %v2797, %v2799
    %v2832 = vsel %vm588, %v2771, %v2769
    %v2833 = vsel %vm588, %v2775, %v2773
    %v2834 = vsel %vm588, %v2779, %v2777
    %v2835 = vsel %vm588, %v2783, %v2781
    %v2836 = vsel %vm588, %v2787, %v2785
    %v2837 = vsel %vm588, %v2791, %v2789
    %v2838 = vsel %vm588, %v2795, %v2793
    %v2839 = vsel %vm588, %v2799, %v2797
    %v2841 = vlaneseq
    %v2842 = vshrl.u32 %v2841, 7
    %v2843 = vsub.s32 0, %v2842
    %v2844 = vrot.slane %v2767, %v2843
    %v2845 = vlaneseq
    %v2846 = vshrl.u32 %v2845, 7
    %v2847 = vsub.s32 1, %v2846
    %v2848 = vrot.slane %v2767, %v2847
    %v2851 = vmul.f32 %v2844, %v2800
    %v2852 = vmul.f32 %v2848, %v2832
    %v2853 = vmul.f32 %v2844, %v2801
    %v2854 = vmul.f32 %v2848, %v2833
    %v2855 = vmul.f32 %v2844, %v2802
    %v2856 = vmul.f32 %v2848, %v2834
    %v2857 = vmul.f32 %v2844, %v2803
    %v2858 = vmul.f32 %v2848, %v2835
    %v2859 = vmul.f32 %v2844, %v2804
    %v2860 = vmul.f32 %v2848, %v2836
    %v2861 = vmul.f32 %v2844, %v2805
    %v2862 = vmul.f32 %v2848, %v2837
    %v2863 = vmul.f32 %v2844, %v2806
    %v2864 = vmul.f32 %v2848, %v2838
    %v2865 = vmul.f32 %v2844, %v2807
    %v2866 = vmul.f32 %v2848, %v2839
    %v2867 = vadd.f32 %v2750, %v2851
    %v2868 = vadd.f32 %v2751, %v2852
    %v2869 = vadd.f32 %v2752, %v2853
    %v2870 = vadd.f32 %v2753, %v2854
    %v2871 = vadd.f32 %v2754, %v2855
    %v2872 = vadd.f32 %v2755, %v2856
    %v2873 = vadd.f32 %v2756, %v2857
    %v2874 = vadd.f32 %v2757, %v2858
    %v2875 = vadd.f32 %v2758, %v2859
    %v2876 = vadd.f32 %v2759, %v2860
    %v2877 = vadd.f32 %v2760, %v2861
    %v2878 = vadd.f32 %v2761, %v2862
    %v2879 = vadd.f32 %v2762, %v2863
    %v2880 = vadd.f32 %v2763, %v2864
    %v2881 = vadd.f32 %v2764, %v2865
    %v2882 = vadd.f32 %v2765, %v2866
    %v2883 = vld [vmem:[#allocation7] ss:$8 sm:$0x3]
    %v2885 = vlaneseq
    %v2886 = vshrl.u32 %v2885, 7
    %v2887 = vsub.s32 0, %v2886
    %v2888 = vrot.slane %v2883, %v2887
    %v2889 = vlaneseq
    %v2890 = vshrl.u32 %v2889, 7
    %v2891 = vsub.s32 1, %v2890
    %v2892 = vrot.slane %v2883, %v2891
    %v2895 = vadd.f32 %v2867, %v2888
    %v2896 = vadd.f32 %v2868, %v2892
    %v2897 = vadd.f32 %v2869, %v2888
    %v2898 = vadd.f32 %v2870, %v2892
    %v2899 = vadd.f32 %v2871, %v2888
    %v2900 = vadd.f32 %v2872, %v2892
    %v2901 = vadd.f32 %v2873, %v2888
    %v2902 = vadd.f32 %v2874, %v2892
    %v2903 = vadd.f32 %v2875, %v2888
    %v2904 = vadd.f32 %v2876, %v2892
    %v2905 = vadd.f32 %v2877, %v2888
    %v2906 = vadd.f32 %v2878, %v2892
    %v2907 = vadd.f32 %v2879, %v2888
    %v2908 = vadd.f32 %v2880, %v2892
    %v2909 = vadd.f32 %v2881, %v2888
    %v2910 = vadd.f32 %v2882, %v2892
    %v2911 = vmul.f32 %v2895, %v87
    %v2912 = vmul.f32 %v2896, %v88
    %v2913 = vmul.f32 %v2897, %v89
    %v2914 = vmul.f32 %v2898, %v90
    %v2915 = vmul.f32 %v2899, %v91
    %v2916 = vmul.f32 %v2900, %v92
    %v2917 = vmul.f32 %v2901, %v93
    %v2918 = vmul.f32 %v2902, %v94
    %v2919 = vmul.f32 %v2903, %v95
    %v2920 = vmul.f32 %v2904, %v96
    %v2921 = vmul.f32 %v2905, %v97
    %v2922 = vmul.f32 %v2906, %v98
    %v2923 = vmul.f32 %v2907, %v99
    %v2924 = vmul.f32 %v2908, %v100
    %v2925 = vmul.f32 %v2909, %v101
    %v2926 = vmul.f32 %v2910, %v102
    %2935 = vrot.lane.b32.xlu0 %v2912, 56
    %v2936 = vpop.permute.xlu0 %2935
    %2937 = vrot.lane.b32.xlu0 %v2914, 56
    %v2938 = vpop.permute.xlu0 %2937
    %2939 = vrot.lane.b32.xlu0 %v2916, 56
    %v2940 = vpop.permute.xlu0 %2939
    %2941 = vrot.lane.b32.xlu0 %v2918, 56
    %v2942 = vpop.permute.xlu0 %2941
    %2943 = vrot.lane.b32.xlu0 %v2920, 56
    %v2944 = vpop.permute.xlu0 %2943
    %2945 = vrot.lane.b32.xlu0 %v2922, 56
    %v2946 = vpop.permute.xlu0 %2945
    %2947 = vrot.lane.b32.xlu0 %v2924, 56
    %v2948 = vpop.permute.xlu0 %2947
    %2949 = vrot.lane.b32.xlu0 %v2926, 56
    %v2950 = vpop.permute.xlu0 %2949
    %2967 = vrot.lane.b32.xlu0 %v2911, 56
    %v2968 = vpop.permute.xlu0 %2967
    %2969 = vrot.lane.b32.xlu0 %v2913, 56
    %v2970 = vpop.permute.xlu0 %2969
    %2971 = vrot.lane.b32.xlu0 %v2915, 56
    %v2972 = vpop.permute.xlu0 %2971
    %2973 = vrot.lane.b32.xlu0 %v2917, 56
    %v2974 = vpop.permute.xlu0 %2973
    %2975 = vrot.lane.b32.xlu0 %v2919, 56
    %v2976 = vpop.permute.xlu0 %2975
    %2977 = vrot.lane.b32.xlu0 %v2921, 56
    %v2978 = vpop.permute.xlu0 %2977
    %2979 = vrot.lane.b32.xlu0 %v2923, 56
    %v2980 = vpop.permute.xlu0 %2979
    %2981 = vrot.lane.b32.xlu0 %v2925, 56
    %v2982 = vpop.permute.xlu0 %2981
    %vm2983 = vcmask 457728
    %v2984 = vsel %vm2983, %v2968, %v2936
    %v2985 = vsel %vm2983, %v2970, %v2938
    %v2986 = vsel %vm2983, %v2972, %v2940
    %v2987 = vsel %vm2983, %v2974, %v2942
    %v2988 = vsel %vm2983, %v2976, %v2944
    %v2989 = vsel %vm2983, %v2978, %v2946
    %v2990 = vsel %vm2983, %v2980, %v2948
    %v2991 = vsel %vm2983, %v2982, %v2950
    %v3008 = vsel %vm2983, %v2936, %v2968
    %v3009 = vsel %vm2983, %v2938, %v2970
    %v3010 = vsel %vm2983, %v2940, %v2972
    %v3011 = vsel %vm2983, %v2942, %v2974
    %v3012 = vsel %vm2983, %v2944, %v2976
    %v3013 = vsel %vm2983, %v2946, %v2978
    %v3014 = vsel %vm2983, %v2948, %v2980
    %v3015 = vsel %vm2983, %v2950, %v2982
    %s3016 = scalar_lea.vmem [#allocation5], 83
    %v3017 = vld [vmem:[%s3016] ss:$8 sm:$0x3]
    %v3019 = vlaneseq
    %v3020 = vshrl.u32 %v3019, 7
    %v3021 = vsub.s32 0, %v3020
    %v3022 = vrot.slane %v3017, %v3021
    %v3023 = vlaneseq
    %v3024 = vshrl.u32 %v3023, 7
    %v3025 = vsub.s32 1, %v3024
    %v3026 = vrot.slane %v3017, %v3025
    %v3029 = vmul.f32 %v3022, %v3008
    %v3030 = vmul.f32 %v3026, %v2984
    %v3031 = vmul.f32 %v3022, %v3009
    %v3032 = vmul.f32 %v3026, %v2985
    %v3033 = vmul.f32 %v3022, %v3010
    %v3034 = vmul.f32 %v3026, %v2986
    %v3035 = vmul.f32 %v3022, %v3011
    %v3036 = vmul.f32 %v3026, %v2987
    %v3037 = vmul.f32 %v3022, %v3012
    %v3038 = vmul.f32 %v3026, %v2988
    %v3039 = vmul.f32 %v3022, %v3013
    %v3040 = vmul.f32 %v3026, %v2989
    %v3041 = vmul.f32 %v3022, %v3014
    %v3042 = vmul.f32 %v3026, %v2990
    %v3043 = vmul.f32 %v3022, %v3015
    %v3044 = vmul.f32 %v3026, %v2991
    %3045 = vrot.lane.b32.xlu0 %v2912, 48
    %v3046 = vpop.permute.xlu0 %3045
    %3047 = vrot.lane.b32.xlu0 %v2914, 48
    %v3048 = vpop.permute.xlu0 %3047
    %3049 = vrot.lane.b32.xlu0 %v2916, 48
    %v3050 = vpop.permute.xlu0 %3049
    %3051 = vrot.lane.b32.xlu0 %v2918, 48
    %v3052 = vpop.permute.xlu0 %3051
    %3053 = vrot.lane.b32.xlu0 %v2920, 48
    %v3054 = vpop.permute.xlu0 %3053
    %3055 = vrot.lane.b32.xlu0 %v2922, 48
    %v3056 = vpop.permute.xlu0 %3055
    %3057 = vrot.lane.b32.xlu0 %v2924, 48
    %v3058 = vpop.permute.xlu0 %3057
    %3059 = vrot.lane.b32.xlu0 %v2926, 48
    %v3060 = vpop.permute.xlu0 %3059
    %3069 = vrot.lane.b32.xlu0 %v2911, 48
    %v3070 = vpop.permute.xlu0 %3069
    %3071 = vrot.lane.b32.xlu0 %v2913, 48
    %v3072 = vpop.permute.xlu0 %3071
    %3073 = vrot.lane.b32.xlu0 %v2915, 48
    %v3074 = vpop.permute.xlu0 %3073
    %3075 = vrot.lane.b32.xlu0 %v2917, 48
    %v3076 = vpop.permute.xlu0 %3075
    %3077 = vrot.lane.b32.xlu0 %v2919, 48
    %v3078 = vpop.permute.xlu0 %3077
    %3079 = vrot.lane.b32.xlu0 %v2921, 48
    %v3080 = vpop.permute.xlu0 %3079
    %3081 = vrot.lane.b32.xlu0 %v2923, 48
    %v3082 = vpop.permute.xlu0 %3081
    %3083 = vrot.lane.b32.xlu0 %v2925, 48
    %v3084 = vpop.permute.xlu0 %3083
    %vm3085 = vcmask 392192
    %v3086 = vsel %vm3085, %v3070, %v3046
    %v3087 = vsel %vm3085, %v3072, %v3048
    %v3088 = vsel %vm3085, %v3074, %v3050
    %v3089 = vsel %vm3085, %v3076, %v3052
    %v3090 = vsel %vm3085, %v3078, %v3054
    %v3091 = vsel %vm3085, %v3080, %v3056
    %v3092 = vsel %vm3085, %v3082, %v3058
    %v3093 = vsel %vm3085, %v3084, %v3060
    %v3110 = vsel %vm3085, %v3046, %v3070
    %v3111 = vsel %vm3085, %v3048, %v3072
    %v3112 = vsel %vm3085, %v3050, %v3074
    %v3113 = vsel %vm3085, %v3052, %v3076
    %v3114 = vsel %vm3085, %v3054, %v3078
    %v3115 = vsel %vm3085, %v3056, %v3080
    %v3116 = vsel %vm3085, %v3058, %v3082
    %v3117 = vsel %vm3085, %v3060, %v3084
    %s3118 = scalar_lea.vmem [#allocation5], 84
    %v3119 = vld [vmem:[%s3118] ss:$8 sm:$0x3]
    %v3121 = vlaneseq
    %v3122 = vshrl.u32 %v3121, 7
    %v3123 = vsub.s32 0, %v3122
    %v3124 = vrot.slane %v3119, %v3123
    %v3125 = vlaneseq
    %v3126 = vshrl.u32 %v3125, 7
    %v3127 = vsub.s32 1, %v3126
    %v3128 = vrot.slane %v3119, %v3127
    %v3131 = vmul.f32 %v3124, %v3110
    %v3132 = vmul.f32 %v3128, %v3086
    %v3133 = vmul.f32 %v3124, %v3111
    %v3134 = vmul.f32 %v3128, %v3087
    %v3135 = vmul.f32 %v3124, %v3112
    %v3136 = vmul.f32 %v3128, %v3088
    %v3137 = vmul.f32 %v3124, %v3113
    %v3138 = vmul.f32 %v3128, %v3089
    %v3139 = vmul.f32 %v3124, %v3114
    %v3140 = vmul.f32 %v3128, %v3090
    %v3141 = vmul.f32 %v3124, %v3115
    %v3142 = vmul.f32 %v3128, %v3091
    %v3143 = vmul.f32 %v3124, %v3116
    %v3144 = vmul.f32 %v3128, %v3092
    %v3145 = vmul.f32 %v3124, %v3117
    %v3146 = vmul.f32 %v3128, %v3093
    %v3147 = vadd.f32 %v3029, %v3131
    %v3148 = vadd.f32 %v3030, %v3132
    %v3149 = vadd.f32 %v3031, %v3133
    %v3150 = vadd.f32 %v3032, %v3134
    %v3151 = vadd.f32 %v3033, %v3135
    %v3152 = vadd.f32 %v3034, %v3136
    %v3153 = vadd.f32 %v3035, %v3137
    %v3154 = vadd.f32 %v3036, %v3138
    %v3155 = vadd.f32 %v3037, %v3139
    %v3156 = vadd.f32 %v3038, %v3140
    %v3157 = vadd.f32 %v3039, %v3141
    %v3158 = vadd.f32 %v3040, %v3142
    %v3159 = vadd.f32 %v3041, %v3143
    %v3160 = vadd.f32 %v3042, %v3144
    %v3161 = vadd.f32 %v3043, %v3145
    %v3162 = vadd.f32 %v3044, %v3146
    %3163 = vrot.lane.b32.xlu0 %v2912, 40
    %v3164 = vpop.permute.xlu0 %3163
    %3165 = vrot.lane.b32.xlu0 %v2914, 40
    %v3166 = vpop.permute.xlu0 %3165
    %3167 = vrot.lane.b32.xlu0 %v2916, 40
    %v3168 = vpop.permute.xlu0 %3167
    %3169 = vrot.lane.b32.xlu0 %v2918, 40
    %v3170 = vpop.permute.xlu0 %3169
    %3171 = vrot.lane.b32.xlu0 %v2920, 40
    %v3172 = vpop.permute.xlu0 %3171
    %3173 = vrot.lane.b32.xlu0 %v2922, 40
    %v3174 = vpop.permute.xlu0 %3173
    %3175 = vrot.lane.b32.xlu0 %v2924, 40
    %v3176 = vpop.permute.xlu0 %3175
    %3177 = vrot.lane.b32.xlu0 %v2926, 40
    %v3178 = vpop.permute.xlu0 %3177
    %3187 = vrot.lane.b32.xlu0 %v2911, 40
    %v3188 = vpop.permute.xlu0 %3187
    %3189 = vrot.lane.b32.xlu0 %v2913, 40
    %v3190 = vpop.permute.xlu0 %3189
    %3191 = vrot.lane.b32.xlu0 %v2915, 40
    %v3192 = vpop.permute.xlu0 %3191
    %3193 = vrot.lane.b32.xlu0 %v2917, 40
    %v3194 = vpop.permute.xlu0 %3193
    %3195 = vrot.lane.b32.xlu0 %v2919, 40
    %v3196 = vpop.permute.xlu0 %3195
    %3197 = vrot.lane.b32.xlu0 %v2921, 40
    %v3198 = vpop.permute.xlu0 %3197
    %3199 = vrot.lane.b32.xlu0 %v2923, 40
    %v3200 = vpop.permute.xlu0 %3199
    %3201 = vrot.lane.b32.xlu0 %v2925, 40
    %v3202 = vpop.permute.xlu0 %3201
    %vm3203 = vcmask 326656
    %v3204 = vsel %vm3203, %v3188, %v3164
    %v3205 = vsel %vm3203, %v3190, %v3166
    %v3206 = vsel %vm3203, %v3192, %v3168
    %v3207 = vsel %vm3203, %v3194, %v3170
    %v3208 = vsel %vm3203, %v3196, %v3172
    %v3209 = vsel %vm3203, %v3198, %v3174
    %v3210 = vsel %vm3203, %v3200, %v3176
    %v3211 = vsel %vm3203, %v3202, %v3178
    %v3228 = vsel %vm3203, %v3164, %v3188
    %v3229 = vsel %vm3203, %v3166, %v3190
    %v3230 = vsel %vm3203, %v3168, %v3192
    %v3231 = vsel %vm3203, %v3170, %v3194
    %v3232 = vsel %vm3203, %v3172, %v3196
    %v3233 = vsel %vm3203, %v3174, %v3198
    %v3234 = vsel %vm3203, %v3176, %v3200
    %v3235 = vsel %vm3203, %v3178, %v3202
    %s3236 = scalar_lea.vmem [#allocation5], 64
    %v3237 = vld [vmem:[%s3236] ss:$8 sm:$0x3]
    %v3239 = vlaneseq
    %v3240 = vshrl.u32 %v3239, 7
    %v3241 = vsub.s32 0, %v3240
    %v3242 = vrot.slane %v3237, %v3241
    %v3243 = vlaneseq
    %v3244 = vshrl.u32 %v3243, 7
    %v3245 = vsub.s32 1, %v3244
    %v3246 = vrot.slane %v3237, %v3245
    %v3249 = vmul.f32 %v3242, %v3228
    %v3250 = vmul.f32 %v3246, %v3204
    %v3251 = vmul.f32 %v3242, %v3229
    %v3252 = vmul.f32 %v3246, %v3205
    %v3253 = vmul.f32 %v3242, %v3230
    %v3254 = vmul.f32 %v3246, %v3206
    %v3255 = vmul.f32 %v3242, %v3231
    %v3256 = vmul.f32 %v3246, %v3207
    %v3257 = vmul.f32 %v3242, %v3232
    %v3258 = vmul.f32 %v3246, %v3208
    %v3259 = vmul.f32 %v3242, %v3233
    %v3260 = vmul.f32 %v3246, %v3209
    %v3261 = vmul.f32 %v3242, %v3234
    %v3262 = vmul.f32 %v3246, %v3210
    %v3263 = vmul.f32 %v3242, %v3235
    %v3264 = vmul.f32 %v3246, %v3211
    %s3265 = scalar_lea.vmem [#allocation5], 85
    %v3266 = vld [vmem:[%s3265] ss:$8 sm:$0x3]
    %v3268 = vlaneseq
    %v3269 = vshrl.u32 %v3268, 7
    %v3270 = vsub.s32 0, %v3269
    %v3271 = vrot.slane %v3266, %v3270
    %v3272 = vlaneseq
    %v3273 = vshrl.u32 %v3272, 7
    %v3274 = vsub.s32 1, %v3273
    %v3275 = vrot.slane %v3266, %v3274
    %v3278 = vmul.f32 %v3271, %v3228
    %v3279 = vmul.f32 %v3275, %v3204
    %v3280 = vmul.f32 %v3271, %v3229
    %v3281 = vmul.f32 %v3275, %v3205
    %v3282 = vmul.f32 %v3271, %v3230
    %v3283 = vmul.f32 %v3275, %v3206
    %v3284 = vmul.f32 %v3271, %v3231
    %v3285 = vmul.f32 %v3275, %v3207
    %v3286 = vmul.f32 %v3271, %v3232
    %v3287 = vmul.f32 %v3275, %v3208
    %v3288 = vmul.f32 %v3271, %v3233
    %v3289 = vmul.f32 %v3275, %v3209
    %v3290 = vmul.f32 %v3271, %v3234
    %v3291 = vmul.f32 %v3275, %v3210
    %v3292 = vmul.f32 %v3271, %v3235
    %v3293 = vmul.f32 %v3275, %v3211
    %v3294 = vadd.f32 %v3147, %v3278
    %v3295 = vadd.f32 %v3148, %v3279
    %v3296 = vadd.f32 %v3149, %v3280
    %v3297 = vadd.f32 %v3150, %v3281
    %v3298 = vadd.f32 %v3151, %v3282
    %v3299 = vadd.f32 %v3152, %v3283
    %v3300 = vadd.f32 %v3153, %v3284
    %v3301 = vadd.f32 %v3154, %v3285
    %v3302 = vadd.f32 %v3155, %v3286
    %v3303 = vadd.f32 %v3156, %v3287
    %v3304 = vadd.f32 %v3157, %v3288
    %v3305 = vadd.f32 %v3158, %v3289
    %v3306 = vadd.f32 %v3159, %v3290
    %v3307 = vadd.f32 %v3160, %v3291
    %v3308 = vadd.f32 %v3161, %v3292
    %v3309 = vadd.f32 %v3162, %v3293
    %3310 = vrot.lane.b32.xlu0 %v2912, 32
    %v3311 = vpop.permute.xlu0 %3310
    %3312 = vrot.lane.b32.xlu0 %v2914, 32
    %v3313 = vpop.permute.xlu0 %3312
    %3314 = vrot.lane.b32.xlu0 %v2916, 32
    %v3315 = vpop.permute.xlu0 %3314
    %3316 = vrot.lane.b32.xlu0 %v2918, 32
    %v3317 = vpop.permute.xlu0 %3316
    %3318 = vrot.lane.b32.xlu0 %v2920, 32
    %v3319 = vpop.permute.xlu0 %3318
    %3320 = vrot.lane.b32.xlu0 %v2922, 32
    %v3321 = vpop.permute.xlu0 %3320
    %3322 = vrot.lane.b32.xlu0 %v2924, 32
    %v3323 = vpop.permute.xlu0 %3322
    %3324 = vrot.lane.b32.xlu0 %v2926, 32
    %v3325 = vpop.permute.xlu0 %3324
    %3334 = vrot.lane.b32.xlu0 %v2911, 32
    %v3335 = vpop.permute.xlu0 %3334
    %3336 = vrot.lane.b32.xlu0 %v2913, 32
    %v3337 = vpop.permute.xlu0 %3336
    %3338 = vrot.lane.b32.xlu0 %v2915, 32
    %v3339 = vpop.permute.xlu0 %3338
    %3340 = vrot.lane.b32.xlu0 %v2917, 32
    %v3341 = vpop.permute.xlu0 %3340
    %3342 = vrot.lane.b32.xlu0 %v2919, 32
    %v3343 = vpop.permute.xlu0 %3342
    %3344 = vrot.lane.b32.xlu0 %v2921, 32
    %v3345 = vpop.permute.xlu0 %3344
    %3346 = vrot.lane.b32.xlu0 %v2923, 32
    %v3347 = vpop.permute.xlu0 %3346
    %3348 = vrot.lane.b32.xlu0 %v2925, 32
    %v3349 = vpop.permute.xlu0 %3348
    %vm3350 = vcmask 261120
    %v3351 = vsel %vm3350, %v3335, %v3311
    %v3352 = vsel %vm3350, %v3337, %v3313
    %v3353 = vsel %vm3350, %v3339, %v3315
    %v3354 = vsel %vm3350, %v3341, %v3317
    %v3355 = vsel %vm3350, %v3343, %v3319
    %v3356 = vsel %vm3350, %v3345, %v3321
    %v3357 = vsel %vm3350, %v3347, %v3323
    %v3358 = vsel %vm3350, %v3349, %v3325
    %v3375 = vsel %vm3350, %v3311, %v3335
    %v3376 = vsel %vm3350, %v3313, %v3337
    %v3377 = vsel %vm3350, %v3315, %v3339
    %v3378 = vsel %vm3350, %v3317, %v3341
    %v3379 = vsel %vm3350, %v3319, %v3343
    %v3380 = vsel %vm3350, %v3321, %v3345
    %v3381 = vsel %vm3350, %v3323, %v3347
    %v3382 = vsel %vm3350, %v3325, %v3349
    %s3383 = scalar_lea.vmem [#allocation5], 65
    %v3384 = vld [vmem:[%s3383] ss:$8 sm:$0x3]
    %v3386 = vlaneseq
    %v3387 = vshrl.u32 %v3386, 7
    %v3388 = vsub.s32 0, %v3387
    %v3389 = vrot.slane %v3384, %v3388
    %v3390 = vlaneseq
    %v3391 = vshrl.u32 %v3390, 7
    %v3392 = vsub.s32 1, %v3391
    %v3393 = vrot.slane %v3384, %v3392
    %v3396 = vmul.f32 %v3389, %v3375
    %v3397 = vmul.f32 %v3393, %v3351
    %v3398 = vmul.f32 %v3389, %v3376
    %v3399 = vmul.f32 %v3393, %v3352
    %v3400 = vmul.f32 %v3389, %v3377
    %v3401 = vmul.f32 %v3393, %v3353
    %v3402 = vmul.f32 %v3389, %v3378
    %v3403 = vmul.f32 %v3393, %v3354
    %v3404 = vmul.f32 %v3389, %v3379
    %v3405 = vmul.f32 %v3393, %v3355
    %v3406 = vmul.f32 %v3389, %v3380
    %v3407 = vmul.f32 %v3393, %v3356
    %v3408 = vmul.f32 %v3389, %v3381
    %v3409 = vmul.f32 %v3393, %v3357
    %v3410 = vmul.f32 %v3389, %v3382
    %v3411 = vmul.f32 %v3393, %v3358
    %v3412 = vadd.f32 %v3249, %v3396
    %v3413 = vadd.f32 %v3250, %v3397
    %v3414 = vadd.f32 %v3251, %v3398
    %v3415 = vadd.f32 %v3252, %v3399
    %v3416 = vadd.f32 %v3253, %v3400
    %v3417 = vadd.f32 %v3254, %v3401
    %v3418 = vadd.f32 %v3255, %v3402
    %v3419 = vadd.f32 %v3256, %v3403
    %v3420 = vadd.f32 %v3257, %v3404
    %v3421 = vadd.f32 %v3258, %v3405
    %v3422 = vadd.f32 %v3259, %v3406
    %v3423 = vadd.f32 %v3260, %v3407
    %v3424 = vadd.f32 %v3261, %v3408
    %v3425 = vadd.f32 %v3262, %v3409
    %v3426 = vadd.f32 %v3263, %v3410
    %v3427 = vadd.f32 %v3264, %v3411
    %s3428 = scalar_lea.vmem [#allocation5], 86
    %v3429 = vld [vmem:[%s3428] ss:$8 sm:$0x3]
    %v3431 = vlaneseq
    %v3432 = vshrl.u32 %v3431, 7
    %v3433 = vsub.s32 0, %v3432
    %v3434 = vrot.slane %v3429, %v3433
    %v3435 = vlaneseq
    %v3436 = vshrl.u32 %v3435, 7
    %v3437 = vsub.s32 1, %v3436
    %v3438 = vrot.slane %v3429, %v3437
    %v3441 = vmul.f32 %v3434, %v3375
    %v3442 = vmul.f32 %v3438, %v3351
    %v3443 = vmul.f32 %v3434, %v3376
    %v3444 = vmul.f32 %v3438, %v3352
    %v3445 = vmul.f32 %v3434, %v3377
    %v3446 = vmul.f32 %v3438, %v3353
    %v3447 = vmul.f32 %v3434, %v3378
    %v3448 = vmul.f32 %v3438, %v3354
    %v3449 = vmul.f32 %v3434, %v3379
    %v3450 = vmul.f32 %v3438, %v3355
    %v3451 = vmul.f32 %v3434, %v3380
    %v3452 = vmul.f32 %v3438, %v3356
    %v3453 = vmul.f32 %v3434, %v3381
    %v3454 = vmul.f32 %v3438, %v3357
    %v3455 = vmul.f32 %v3434, %v3382
    %v3456 = vmul.f32 %v3438, %v3358
    %v3457 = vadd.f32 %v3294, %v3441
    %v3458 = vadd.f32 %v3295, %v3442
    %v3459 = vadd.f32 %v3296, %v3443
    %v3460 = vadd.f32 %v3297, %v3444
    %v3461 = vadd.f32 %v3298, %v3445
    %v3462 = vadd.f32 %v3299, %v3446
    %v3463 = vadd.f32 %v3300, %v3447
    %v3464 = vadd.f32 %v3301, %v3448
    %v3465 = vadd.f32 %v3302, %v3449
    %v3466 = vadd.f32 %v3303, %v3450
    %v3467 = vadd.f32 %v3304, %v3451
    %v3468 = vadd.f32 %v3305, %v3452
    %v3469 = vadd.f32 %v3306, %v3453
    %v3470 = vadd.f32 %v3307, %v3454
    %v3471 = vadd.f32 %v3308, %v3455
    %v3472 = vadd.f32 %v3309, %v3456
    %3473 = vrot.lane.b32.xlu0 %v2912, 24
    %v3474 = vpop.permute.xlu0 %3473
    %3475 = vrot.lane.b32.xlu0 %v2914, 24
    %v3476 = vpop.permute.xlu0 %3475
    %3477 = vrot.lane.b32.xlu0 %v2916, 24
    %v3478 = vpop.permute.xlu0 %3477
    %3479 = vrot.lane.b32.xlu0 %v2918, 24
    %v3480 = vpop.permute.xlu0 %3479
    %3481 = vrot.lane.b32.xlu0 %v2920, 24
    %v3482 = vpop.permute.xlu0 %3481
    %3483 = vrot.lane.b32.xlu0 %v2922, 24
    %v3484 = vpop.permute.xlu0 %3483
    %3485 = vrot.lane.b32.xlu0 %v2924, 24
    %v3486 = vpop.permute.xlu0 %3485
    %3487 = vrot.lane.b32.xlu0 %v2926, 24
    %v3488 = vpop.permute.xlu0 %3487
    %3497 = vrot.lane.b32.xlu0 %v2911, 24
    %v3498 = vpop.permute.xlu0 %3497
    %3499 = vrot.lane.b32.xlu0 %v2913, 24
    %v3500 = vpop.permute.xlu0 %3499
    %3501 = vrot.lane.b32.xlu0 %v2915, 24
    %v3502 = vpop.permute.xlu0 %3501
    %3503 = vrot.lane.b32.xlu0 %v2917, 24
    %v3504 = vpop.permute.xlu0 %3503
    %3505 = vrot.lane.b32.xlu0 %v2919, 24
    %v3506 = vpop.permute.xlu0 %3505
    %3507 = vrot.lane.b32.xlu0 %v2921, 24
    %v3508 = vpop.permute.xlu0 %3507
    %3509 = vrot.lane.b32.xlu0 %v2923, 24
    %v3510 = vpop.permute.xlu0 %3509
    %3511 = vrot.lane.b32.xlu0 %v2925, 24
    %v3512 = vpop.permute.xlu0 %3511
    %vm3513 = vcmask 195584
    %v3514 = vsel %vm3513, %v3498, %v3474
    %v3515 = vsel %vm3513, %v3500, %v3476
    %v3516 = vsel %vm3513, %v3502, %v3478
    %v3517 = vsel %vm3513, %v3504, %v3480
    %v3518 = vsel %vm3513, %v3506, %v3482
    %v3519 = vsel %vm3513, %v3508, %v3484
    %v3520 = vsel %vm3513, %v3510, %v3486
    %v3521 = vsel %vm3513, %v3512, %v3488
    %v3538 = vsel %vm3513, %v3474, %v3498
    %v3539 = vsel %vm3513, %v3476, %v3500
    %v3540 = vsel %vm3513, %v3478, %v3502
    %v3541 = vsel %vm3513, %v3480, %v3504
    %v3542 = vsel %vm3513, %v3482, %v3506
    %v3543 = vsel %vm3513, %v3484, %v3508
    %v3544 = vsel %vm3513, %v3486, %v3510
    %v3545 = vsel %vm3513, %v3488, %v3512
    %s3546 = scalar_lea.vmem [#allocation5], 49
    %v3547 = vld [vmem:[%s3546] ss:$8 sm:$0x3]
    %v3549 = vlaneseq
    %v3550 = vshrl.u32 %v3549, 7
    %v3551 = vsub.s32 0, %v3550
    %v3552 = vrot.slane %v3547, %v3551
    %v3553 = vlaneseq
    %v3554 = vshrl.u32 %v3553, 7
    %v3555 = vsub.s32 1, %v3554
    %v3556 = vrot.slane %v3547, %v3555
    %v3559 = vmul.f32 %v3552, %v3538
    %v3560 = vmul.f32 %v3556, %v3514
    %v3561 = vmul.f32 %v3552, %v3539
    %v3562 = vmul.f32 %v3556, %v3515
    %v3563 = vmul.f32 %v3552, %v3540
    %v3564 = vmul.f32 %v3556, %v3516
    %v3565 = vmul.f32 %v3552, %v3541
    %v3566 = vmul.f32 %v3556, %v3517
    %v3567 = vmul.f32 %v3552, %v3542
    %v3568 = vmul.f32 %v3556, %v3518
    %v3569 = vmul.f32 %v3552, %v3543
    %v3570 = vmul.f32 %v3556, %v3519
    %v3571 = vmul.f32 %v3552, %v3544
    %v3572 = vmul.f32 %v3556, %v3520
    %v3573 = vmul.f32 %v3552, %v3545
    %v3574 = vmul.f32 %v3556, %v3521
    %s3575 = scalar_lea.vmem [#allocation5], 66
    %v3576 = vld [vmem:[%s3575] ss:$8 sm:$0x3]
    %v3578 = vlaneseq
    %v3579 = vshrl.u32 %v3578, 7
    %v3580 = vsub.s32 0, %v3579
    %v3581 = vrot.slane %v3576, %v3580
    %v3582 = vlaneseq
    %v3583 = vshrl.u32 %v3582, 7
    %v3584 = vsub.s32 1, %v3583
    %v3585 = vrot.slane %v3576, %v3584
    %v3588 = vmul.f32 %v3581, %v3538
    %v3589 = vmul.f32 %v3585, %v3514
    %v3590 = vmul.f32 %v3581, %v3539
    %v3591 = vmul.f32 %v3585, %v3515
    %v3592 = vmul.f32 %v3581, %v3540
    %v3593 = vmul.f32 %v3585, %v3516
    %v3594 = vmul.f32 %v3581, %v3541
    %v3595 = vmul.f32 %v3585, %v3517
    %v3596 = vmul.f32 %v3581, %v3542
    %v3597 = vmul.f32 %v3585, %v3518
    %v3598 = vmul.f32 %v3581, %v3543
    %v3599 = vmul.f32 %v3585, %v3519
    %v3600 = vmul.f32 %v3581, %v3544
    %v3601 = vmul.f32 %v3585, %v3520
    %v3602 = vmul.f32 %v3581, %v3545
    %v3603 = vmul.f32 %v3585, %v3521
    %v3604 = vadd.f32 %v3412, %v3588
    %v3605 = vadd.f32 %v3413, %v3589
    %v3606 = vadd.f32 %v3414, %v3590
    %v3607 = vadd.f32 %v3415, %v3591
    %v3608 = vadd.f32 %v3416, %v3592
    %v3609 = vadd.f32 %v3417, %v3593
    %v3610 = vadd.f32 %v3418, %v3594
    %v3611 = vadd.f32 %v3419, %v3595
    %v3612 = vadd.f32 %v3420, %v3596
    %v3613 = vadd.f32 %v3421, %v3597
    %v3614 = vadd.f32 %v3422, %v3598
    %v3615 = vadd.f32 %v3423, %v3599
    %v3616 = vadd.f32 %v3424, %v3600
    %v3617 = vadd.f32 %v3425, %v3601
    %v3618 = vadd.f32 %v3426, %v3602
    %v3619 = vadd.f32 %v3427, %v3603
    %s3620 = scalar_lea.vmem [#allocation5], 87
    %v3621 = vld [vmem:[%s3620] ss:$8 sm:$0x3]
    %v3623 = vlaneseq
    %v3624 = vshrl.u32 %v3623, 7
    %v3625 = vsub.s32 0, %v3624
    %v3626 = vrot.slane %v3621, %v3625
    %v3627 = vlaneseq
    %v3628 = vshrl.u32 %v3627, 7
    %v3629 = vsub.s32 1, %v3628
    %v3630 = vrot.slane %v3621, %v3629
    %v3633 = vmul.f32 %v3626, %v3538
    %v3634 = vmul.f32 %v3630, %v3514
    %v3635 = vmul.f32 %v3626, %v3539
    %v3636 = vmul.f32 %v3630, %v3515
    %v3637 = vmul.f32 %v3626, %v3540
    %v3638 = vmul.f32 %v3630, %v3516
    %v3639 = vmul.f32 %v3626, %v3541
    %v3640 = vmul.f32 %v3630, %v3517
    %v3641 = vmul.f32 %v3626, %v3542
    %v3642 = vmul.f32 %v3630, %v3518
    %v3643 = vmul.f32 %v3626, %v3543
    %v3644 = vmul.f32 %v3630, %v3519
    %v3645 = vmul.f32 %v3626, %v3544
    %v3646 = vmul.f32 %v3630, %v3520
    %v3647 = vmul.f32 %v3626, %v3545
    %v3648 = vmul.f32 %v3630, %v3521
    %v3649 = vadd.f32 %v3457, %v3633
    %v3650 = vadd.f32 %v3458, %v3634
    %v3651 = vadd.f32 %v3459, %v3635
    %v3652 = vadd.f32 %v3460, %v3636
    %v3653 = vadd.f32 %v3461, %v3637
    %v3654 = vadd.f32 %v3462, %v3638
    %v3655 = vadd.f32 %v3463, %v3639
    %v3656 = vadd.f32 %v3464, %v3640
    %v3657 = vadd.f32 %v3465, %v3641
    %v3658 = vadd.f32 %v3466, %v3642
    %v3659 = vadd.f32 %v3467, %v3643
    %v3660 = vadd.f32 %v3468, %v3644
    %v3661 = vadd.f32 %v3469, %v3645
    %v3662 = vadd.f32 %v3470, %v3646
    %v3663 = vadd.f32 %v3471, %v3647
    %v3664 = vadd.f32 %v3472, %v3648
    %3665 = vrot.lane.b32.xlu0 %v2912, 16
    %v3666 = vpop.permute.xlu0 %3665
    %3667 = vrot.lane.b32.xlu0 %v2914, 16
    %v3668 = vpop.permute.xlu0 %3667
    %3669 = vrot.lane.b32.xlu0 %v2916, 16
    %v3670 = vpop.permute.xlu0 %3669
    %3671 = vrot.lane.b32.xlu0 %v2918, 16
    %v3672 = vpop.permute.xlu0 %3671
    %3673 = vrot.lane.b32.xlu0 %v2920, 16
    %v3674 = vpop.permute.xlu0 %3673
    %3675 = vrot.lane.b32.xlu0 %v2922, 16
    %v3676 = vpop.permute.xlu0 %3675
    %3677 = vrot.lane.b32.xlu0 %v2924, 16
    %v3678 = vpop.permute.xlu0 %3677
    %3679 = vrot.lane.b32.xlu0 %v2926, 16
    %v3680 = vpop.permute.xlu0 %3679
    %3689 = vrot.lane.b32.xlu0 %v2911, 16
    %v3690 = vpop.permute.xlu0 %3689
    %3691 = vrot.lane.b32.xlu0 %v2913, 16
    %v3692 = vpop.permute.xlu0 %3691
    %3693 = vrot.lane.b32.xlu0 %v2915, 16
    %v3694 = vpop.permute.xlu0 %3693
    %3695 = vrot.lane.b32.xlu0 %v2917, 16
    %v3696 = vpop.permute.xlu0 %3695
    %3697 = vrot.lane.b32.xlu0 %v2919, 16
    %v3698 = vpop.permute.xlu0 %3697
    %3699 = vrot.lane.b32.xlu0 %v2921, 16
    %v3700 = vpop.permute.xlu0 %3699
    %3701 = vrot.lane.b32.xlu0 %v2923, 16
    %v3702 = vpop.permute.xlu0 %3701
    %3703 = vrot.lane.b32.xlu0 %v2925, 16
    %v3704 = vpop.permute.xlu0 %3703
    %v3705 = vsel %vm213, %v3690, %v3666
    %v3706 = vsel %vm213, %v3692, %v3668
    %v3707 = vsel %vm213, %v3694, %v3670
    %v3708 = vsel %vm213, %v3696, %v3672
    %v3709 = vsel %vm213, %v3698, %v3674
    %v3710 = vsel %vm213, %v3700, %v3676
    %v3711 = vsel %vm213, %v3702, %v3678
    %v3712 = vsel %vm213, %v3704, %v3680
    %v3729 = vsel %vm213, %v3666, %v3690
    %v3730 = vsel %vm213, %v3668, %v3692
    %v3731 = vsel %vm213, %v3670, %v3694
    %v3732 = vsel %vm213, %v3672, %v3696
    %v3733 = vsel %vm213, %v3674, %v3698
    %v3734 = vsel %vm213, %v3676, %v3700
    %v3735 = vsel %vm213, %v3678, %v3702
    %v3736 = vsel %vm213, %v3680, %v3704
    %s3737 = scalar_lea.vmem [#allocation5], 50
    %v3738 = vld [vmem:[%s3737] ss:$8 sm:$0x3]
    %v3740 = vlaneseq
    %v3741 = vshrl.u32 %v3740, 7
    %v3742 = vsub.s32 0, %v3741
    %v3743 = vrot.slane %v3738, %v3742
    %v3744 = vlaneseq
    %v3745 = vshrl.u32 %v3744, 7
    %v3746 = vsub.s32 1, %v3745
    %v3747 = vrot.slane %v3738, %v3746
    %v3750 = vmul.f32 %v3743, %v3729
    %v3751 = vmul.f32 %v3747, %v3705
    %v3752 = vmul.f32 %v3743, %v3730
    %v3753 = vmul.f32 %v3747, %v3706
    %v3754 = vmul.f32 %v3743, %v3731
    %v3755 = vmul.f32 %v3747, %v3707
    %v3756 = vmul.f32 %v3743, %v3732
    %v3757 = vmul.f32 %v3747, %v3708
    %v3758 = vmul.f32 %v3743, %v3733
    %v3759 = vmul.f32 %v3747, %v3709
    %v3760 = vmul.f32 %v3743, %v3734
    %v3761 = vmul.f32 %v3747, %v3710
    %v3762 = vmul.f32 %v3743, %v3735
    %v3763 = vmul.f32 %v3747, %v3711
    %v3764 = vmul.f32 %v3743, %v3736
    %v3765 = vmul.f32 %v3747, %v3712
    %v3766 = vadd.f32 %v3559, %v3750
    %v3767 = vadd.f32 %v3560, %v3751
    %v3768 = vadd.f32 %v3561, %v3752
    %v3769 = vadd.f32 %v3562, %v3753
    %v3770 = vadd.f32 %v3563, %v3754
    %v3771 = vadd.f32 %v3564, %v3755
    %v3772 = vadd.f32 %v3565, %v3756
    %v3773 = vadd.f32 %v3566, %v3757
    %v3774 = vadd.f32 %v3567, %v3758
    %v3775 = vadd.f32 %v3568, %v3759
    %v3776 = vadd.f32 %v3569, %v3760
    %v3777 = vadd.f32 %v3570, %v3761
    %v3778 = vadd.f32 %v3571, %v3762
    %v3779 = vadd.f32 %v3572, %v3763
    %v3780 = vadd.f32 %v3573, %v3764
    %v3781 = vadd.f32 %v3574, %v3765
    %s3782 = scalar_lea.vmem [#allocation5], 67
    %v3783 = vld [vmem:[%s3782] ss:$8 sm:$0x3]
    %v3785 = vlaneseq
    %v3786 = vshrl.u32 %v3785, 7
    %v3787 = vsub.s32 0, %v3786
    %v3788 = vrot.slane %v3783, %v3787
    %v3789 = vlaneseq
    %v3790 = vshrl.u32 %v3789, 7
    %v3791 = vsub.s32 1, %v3790
    %v3792 = vrot.slane %v3783, %v3791
    %v3795 = vmul.f32 %v3788, %v3729
    %v3796 = vmul.f32 %v3792, %v3705
    %v3797 = vmul.f32 %v3788, %v3730
    %v3798 = vmul.f32 %v3792, %v3706
    %v3799 = vmul.f32 %v3788, %v3731
    %v3800 = vmul.f32 %v3792, %v3707
    %v3801 = vmul.f32 %v3788, %v3732
    %v3802 = vmul.f32 %v3792, %v3708
    %v3803 = vmul.f32 %v3788, %v3733
    %v3804 = vmul.f32 %v3792, %v3709
    %v3805 = vmul.f32 %v3788, %v3734
    %v3806 = vmul.f32 %v3792, %v3710
    %v3807 = vmul.f32 %v3788, %v3735
    %v3808 = vmul.f32 %v3792, %v3711
    %v3809 = vmul.f32 %v3788, %v3736
    %v3810 = vmul.f32 %v3792, %v3712
    %v3811 = vadd.f32 %v3604, %v3795
    %v3812 = vadd.f32 %v3605, %v3796
    %v3813 = vadd.f32 %v3606, %v3797
    %v3814 = vadd.f32 %v3607, %v3798
    %v3815 = vadd.f32 %v3608, %v3799
    %v3816 = vadd.f32 %v3609, %v3800
    %v3817 = vadd.f32 %v3610, %v3801
    %v3818 = vadd.f32 %v3611, %v3802
    %v3819 = vadd.f32 %v3612, %v3803
    %v3820 = vadd.f32 %v3613, %v3804
    %v3821 = vadd.f32 %v3614, %v3805
    %v3822 = vadd.f32 %v3615, %v3806
    %v3823 = vadd.f32 %v3616, %v3807
    %v3824 = vadd.f32 %v3617, %v3808
    %v3825 = vadd.f32 %v3618, %v3809
    %v3826 = vadd.f32 %v3619, %v3810
    %s3827 = scalar_lea.vmem [#allocation5], 96
    %v3828 = vld [vmem:[%s3827] ss:$8 sm:$0x3]
    %v3830 = vlaneseq
    %v3831 = vshrl.u32 %v3830, 7
    %v3832 = vsub.s32 0, %v3831
    %v3833 = vrot.slane %v3828, %v3832
    %v3834 = vlaneseq
    %v3835 = vshrl.u32 %v3834, 7
    %v3836 = vsub.s32 1, %v3835
    %v3837 = vrot.slane %v3828, %v3836
    %v3840 = vmul.f32 %v3833, %v3729
    %v3841 = vmul.f32 %v3837, %v3705
    %v3842 = vmul.f32 %v3833, %v3730
    %v3843 = vmul.f32 %v3837, %v3706
    %v3844 = vmul.f32 %v3833, %v3731
    %v3845 = vmul.f32 %v3837, %v3707
    %v3846 = vmul.f32 %v3833, %v3732
    %v3847 = vmul.f32 %v3837, %v3708
    %v3848 = vmul.f32 %v3833, %v3733
    %v3849 = vmul.f32 %v3837, %v3709
    %v3850 = vmul.f32 %v3833, %v3734
    %v3851 = vmul.f32 %v3837, %v3710
    %v3852 = vmul.f32 %v3833, %v3735
    %v3853 = vmul.f32 %v3837, %v3711
    %v3854 = vmul.f32 %v3833, %v3736
    %v3855 = vmul.f32 %v3837, %v3712
    %v3856 = vadd.f32 %v3649, %v3840
    %v3857 = vadd.f32 %v3650, %v3841
    %v3858 = vadd.f32 %v3651, %v3842
    %v3859 = vadd.f32 %v3652, %v3843
    %v3860 = vadd.f32 %v3653, %v3844
    %v3861 = vadd.f32 %v3654, %v3845
    %v3862 = vadd.f32 %v3655, %v3846
    %v3863 = vadd.f32 %v3656, %v3847
    %v3864 = vadd.f32 %v3657, %v3848
    %v3865 = vadd.f32 %v3658, %v3849
    %v3866 = vadd.f32 %v3659, %v3850
    %v3867 = vadd.f32 %v3660, %v3851
    %v3868 = vadd.f32 %v3661, %v3852
    %v3869 = vadd.f32 %v3662, %v3853
    %v3870 = vadd.f32 %v3663, %v3854
    %v3871 = vadd.f32 %v3664, %v3855
    %3872 = vrot.lane.b32.xlu0 %v2912, 8
    %v3873 = vpop.permute.xlu0 %3872
    %3874 = vrot.lane.b32.xlu0 %v2914, 8
    %v3875 = vpop.permute.xlu0 %3874
    %3876 = vrot.lane.b32.xlu0 %v2916, 8
    %v3877 = vpop.permute.xlu0 %3876
    %3878 = vrot.lane.b32.xlu0 %v2918, 8
    %v3879 = vpop.permute.xlu0 %3878
    %3880 = vrot.lane.b32.xlu0 %v2920, 8
    %v3881 = vpop.permute.xlu0 %3880
    %3882 = vrot.lane.b32.xlu0 %v2922, 8
    %v3883 = vpop.permute.xlu0 %3882
    %3884 = vrot.lane.b32.xlu0 %v2924, 8
    %v3885 = vpop.permute.xlu0 %3884
    %3886 = vrot.lane.b32.xlu0 %v2926, 8
    %v3887 = vpop.permute.xlu0 %3886
    %3896 = vrot.lane.b32.xlu0 %v2911, 8
    %v3897 = vpop.permute.xlu0 %3896
    %3898 = vrot.lane.b32.xlu0 %v2913, 8
    %v3899 = vpop.permute.xlu0 %3898
    %3900 = vrot.lane.b32.xlu0 %v2915, 8
    %v3901 = vpop.permute.xlu0 %3900
    %3902 = vrot.lane.b32.xlu0 %v2917, 8
    %v3903 = vpop.permute.xlu0 %3902
    %3904 = vrot.lane.b32.xlu0 %v2919, 8
    %v3905 = vpop.permute.xlu0 %3904
    %3906 = vrot.lane.b32.xlu0 %v2921, 8
    %v3907 = vpop.permute.xlu0 %3906
    %3908 = vrot.lane.b32.xlu0 %v2923, 8
    %v3909 = vpop.permute.xlu0 %3908
    %3910 = vrot.lane.b32.xlu0 %v2925, 8
    %v3911 = vpop.permute.xlu0 %3910
    %v3912 = vsel %vm315, %v3897, %v3873
    %v3913 = vsel %vm315, %v3899, %v3875
    %v3914 = vsel %vm315, %v3901, %v3877
    %v3915 = vsel %vm315, %v3903, %v3879
    %v3916 = vsel %vm315, %v3905, %v3881
    %v3917 = vsel %vm315, %v3907, %v3883
    %v3918 = vsel %vm315, %v3909, %v3885
    %v3919 = vsel %vm315, %v3911, %v3887
    %v3936 = vsel %vm315, %v3873, %v3897
    %v3937 = vsel %vm315, %v3875, %v3899
    %v3938 = vsel %vm315, %v3877, %v3901
    %v3939 = vsel %vm315, %v3879, %v3903
    %v3940 = vsel %vm315, %v3881, %v3905
    %v3941 = vsel %vm315, %v3883, %v3907
    %v3942 = vsel %vm315, %v3885, %v3909
    %v3943 = vsel %vm315, %v3887, %v3911
    %s3944 = scalar_lea.vmem [#allocation5], 51
    %v3945 = vld [vmem:[%s3944] ss:$8 sm:$0x3]
    %v3947 = vlaneseq
    %v3948 = vshrl.u32 %v3947, 7
    %v3949 = vsub.s32 0, %v3948
    %v3950 = vrot.slane %v3945, %v3949
    %v3951 = vlaneseq
    %v3952 = vshrl.u32 %v3951, 7
    %v3953 = vsub.s32 1, %v3952
    %v3954 = vrot.slane %v3945, %v3953
    %v3957 = vmul.f32 %v3950, %v3936
    %v3958 = vmul.f32 %v3954, %v3912
    %v3959 = vmul.f32 %v3950, %v3937
    %v3960 = vmul.f32 %v3954, %v3913
    %v3961 = vmul.f32 %v3950, %v3938
    %v3962 = vmul.f32 %v3954, %v3914
    %v3963 = vmul.f32 %v3950, %v3939
    %v3964 = vmul.f32 %v3954, %v3915
    %v3965 = vmul.f32 %v3950, %v3940
    %v3966 = vmul.f32 %v3954, %v3916
    %v3967 = vmul.f32 %v3950, %v3941
    %v3968 = vmul.f32 %v3954, %v3917
    %v3969 = vmul.f32 %v3950, %v3942
    %v3970 = vmul.f32 %v3954, %v3918
    %v3971 = vmul.f32 %v3950, %v3943
    %v3972 = vmul.f32 %v3954, %v3919
    %v3973 = vadd.f32 %v3766, %v3957
    %v3974 = vadd.f32 %v3767, %v3958
    %v3975 = vadd.f32 %v3768, %v3959
    %v3976 = vadd.f32 %v3769, %v3960
    %v3977 = vadd.f32 %v3770, %v3961
    %v3978 = vadd.f32 %v3771, %v3962
    %v3979 = vadd.f32 %v3772, %v3963
    %v3980 = vadd.f32 %v3773, %v3964
    %v3981 = vadd.f32 %v3774, %v3965
    %v3982 = vadd.f32 %v3775, %v3966
    %v3983 = vadd.f32 %v3776, %v3967
    %v3984 = vadd.f32 %v3777, %v3968
    %v3985 = vadd.f32 %v3778, %v3969
    %v3986 = vadd.f32 %v3779, %v3970
    %v3987 = vadd.f32 %v3780, %v3971
    %v3988 = vadd.f32 %v3781, %v3972
    %s3989 = scalar_lea.vmem [#allocation5], 68
    %v3990 = vld [vmem:[%s3989] ss:$8 sm:$0x3]
    %v3992 = vlaneseq
    %v3993 = vshrl.u32 %v3992, 7
    %v3994 = vsub.s32 0, %v3993
    %v3995 = vrot.slane %v3990, %v3994
    %v3996 = vlaneseq
    %v3997 = vshrl.u32 %v3996, 7
    %v3998 = vsub.s32 1, %v3997
    %v3999 = vrot.slane %v3990, %v3998
    %v4002 = vmul.f32 %v3995, %v3936
    %v4003 = vmul.f32 %v3999, %v3912
    %v4004 = vmul.f32 %v3995, %v3937
    %v4005 = vmul.f32 %v3999, %v3913
    %v4006 = vmul.f32 %v3995, %v3938
    %v4007 = vmul.f32 %v3999, %v3914
    %v4008 = vmul.f32 %v3995, %v3939
    %v4009 = vmul.f32 %v3999, %v3915
    %v4010 = vmul.f32 %v3995, %v3940
    %v4011 = vmul.f32 %v3999, %v3916
    %v4012 = vmul.f32 %v3995, %v3941
    %v4013 = vmul.f32 %v3999, %v3917
    %v4014 = vmul.f32 %v3995, %v3942
    %v4015 = vmul.f32 %v3999, %v3918
    %v4016 = vmul.f32 %v3995, %v3943
    %v4017 = vmul.f32 %v3999, %v3919
    %v4018 = vadd.f32 %v3811, %v4002
    %v4019 = vadd.f32 %v3812, %v4003
    %v4020 = vadd.f32 %v3813, %v4004
    %v4021 = vadd.f32 %v3814, %v4005
    %v4022 = vadd.f32 %v3815, %v4006
    %v4023 = vadd.f32 %v3816, %v4007
    %v4024 = vadd.f32 %v3817, %v4008
    %v4025 = vadd.f32 %v3818, %v4009
    %v4026 = vadd.f32 %v3819, %v4010
    %v4027 = vadd.f32 %v3820, %v4011
    %v4028 = vadd.f32 %v3821, %v4012
    %v4029 = vadd.f32 %v3822, %v4013
    %v4030 = vadd.f32 %v3823, %v4014
    %v4031 = vadd.f32 %v3824, %v4015
    %v4032 = vadd.f32 %v3825, %v4016
    %v4033 = vadd.f32 %v3826, %v4017
    %s4034 = scalar_lea.vmem [#allocation5], 97
    %v4035 = vld [vmem:[%s4034] ss:$8 sm:$0x3]
    %v4037 = vlaneseq
    %v4038 = vshrl.u32 %v4037, 7
    %v4039 = vsub.s32 0, %v4038
    %v4040 = vrot.slane %v4035, %v4039
    %v4041 = vlaneseq
    %v4042 = vshrl.u32 %v4041, 7
    %v4043 = vsub.s32 1, %v4042
    %v4044 = vrot.slane %v4035, %v4043
    %v4047 = vmul.f32 %v4040, %v3936
    %v4048 = vmul.f32 %v4044, %v3912
    %v4049 = vmul.f32 %v4040, %v3937
    %v4050 = vmul.f32 %v4044, %v3913
    %v4051 = vmul.f32 %v4040, %v3938
    %v4052 = vmul.f32 %v4044, %v3914
    %v4053 = vmul.f32 %v4040, %v3939
    %v4054 = vmul.f32 %v4044, %v3915
    %v4055 = vmul.f32 %v4040, %v3940
    %v4056 = vmul.f32 %v4044, %v3916
    %v4057 = vmul.f32 %v4040, %v3941
    %v4058 = vmul.f32 %v4044, %v3917
    %v4059 = vmul.f32 %v4040, %v3942
    %v4060 = vmul.f32 %v4044, %v3918
    %v4061 = vmul.f32 %v4040, %v3943
    %v4062 = vmul.f32 %v4044, %v3919
    %v4063 = vadd.f32 %v3856, %v4047
    %v4064 = vadd.f32 %v3857, %v4048
    %v4065 = vadd.f32 %v3858, %v4049
    %v4066 = vadd.f32 %v3859, %v4050
    %v4067 = vadd.f32 %v3860, %v4051
    %v4068 = vadd.f32 %v3861, %v4052
    %v4069 = vadd.f32 %v3862, %v4053
    %v4070 = vadd.f32 %v3863, %v4054
    %v4071 = vadd.f32 %v3864, %v4055
    %v4072 = vadd.f32 %v3865, %v4056
    %v4073 = vadd.f32 %v3866, %v4057
    %v4074 = vadd.f32 %v3867, %v4058
    %v4075 = vadd.f32 %v3868, %v4059
    %v4076 = vadd.f32 %v3869, %v4060
    %v4077 = vadd.f32 %v3870, %v4061
    %v4078 = vadd.f32 %v3871, %v4062
    %s4079 = scalar_lea.vmem [#allocation5], 52
    %v4080 = vld [vmem:[%s4079] ss:$8 sm:$0x3]
    %v4082 = vlaneseq
    %v4083 = vshrl.u32 %v4082, 7
    %v4084 = vsub.s32 0, %v4083
    %v4085 = vrot.slane %v4080, %v4084
    %v4086 = vlaneseq
    %v4087 = vshrl.u32 %v4086, 7
    %v4088 = vsub.s32 1, %v4087
    %v4089 = vrot.slane %v4080, %v4088
    %v4092 = vmul.f32 %v4085, %v2911
    %v4093 = vmul.f32 %v4089, %v2912
    %v4094 = vmul.f32 %v4085, %v2913
    %v4095 = vmul.f32 %v4089, %v2914
    %v4096 = vmul.f32 %v4085, %v2915
    %v4097 = vmul.f32 %v4089, %v2916
    %v4098 = vmul.f32 %v4085, %v2917
    %v4099 = vmul.f32 %v4089, %v2918
    %v4100 = vmul.f32 %v4085, %v2919
    %v4101 = vmul.f32 %v4089, %v2920
    %v4102 = vmul.f32 %v4085, %v2921
    %v4103 = vmul.f32 %v4089, %v2922
    %v4104 = vmul.f32 %v4085, %v2923
    %v4105 = vmul.f32 %v4089, %v2924
    %v4106 = vmul.f32 %v4085, %v2925
    %v4107 = vmul.f32 %v4089, %v2926
    %v4108 = vadd.f32 %v3973, %v4092
    %v4109 = vadd.f32 %v3974, %v4093
    %v4110 = vadd.f32 %v3975, %v4094
    %v4111 = vadd.f32 %v3976, %v4095
    %v4112 = vadd.f32 %v3977, %v4096
    %v4113 = vadd.f32 %v3978, %v4097
    %v4114 = vadd.f32 %v3979, %v4098
    %v4115 = vadd.f32 %v3980, %v4099
    %v4116 = vadd.f32 %v3981, %v4100
    %v4117 = vadd.f32 %v3982, %v4101
    %v4118 = vadd.f32 %v3983, %v4102
    %v4119 = vadd.f32 %v3984, %v4103
    %v4120 = vadd.f32 %v3985, %v4104
    %v4121 = vadd.f32 %v3986, %v4105
    %v4122 = vadd.f32 %v3987, %v4106
    %v4123 = vadd.f32 %v3988, %v4107
    %s4124 = scalar_lea.vmem [#allocation5], 69
    %v4125 = vld [vmem:[%s4124] ss:$8 sm:$0x3]
    %v4127 = vlaneseq
    %v4128 = vshrl.u32 %v4127, 7
    %v4129 = vsub.s32 0, %v4128
    %v4130 = vrot.slane %v4125, %v4129
    %v4131 = vlaneseq
    %v4132 = vshrl.u32 %v4131, 7
    %v4133 = vsub.s32 1, %v4132
    %v4134 = vrot.slane %v4125, %v4133
    %v4137 = vmul.f32 %v4130, %v2911
    %v4138 = vmul.f32 %v4134, %v2912
    %v4139 = vmul.f32 %v4130, %v2913
    %v4140 = vmul.f32 %v4134, %v2914
    %v4141 = vmul.f32 %v4130, %v2915
    %v4142 = vmul.f32 %v4134, %v2916
    %v4143 = vmul.f32 %v4130, %v2917
    %v4144 = vmul.f32 %v4134, %v2918
    %v4145 = vmul.f32 %v4130, %v2919
    %v4146 = vmul.f32 %v4134, %v2920
    %v4147 = vmul.f32 %v4130, %v2921
    %v4148 = vmul.f32 %v4134, %v2922
    %v4149 = vmul.f32 %v4130, %v2923
    %v4150 = vmul.f32 %v4134, %v2924
    %v4151 = vmul.f32 %v4130, %v2925
    %v4152 = vmul.f32 %v4134, %v2926
    %v4153 = vadd.f32 %v4018, %v4137
    %v4154 = vadd.f32 %v4019, %v4138
    %v4155 = vadd.f32 %v4020, %v4139
    %v4156 = vadd.f32 %v4021, %v4140
    %v4157 = vadd.f32 %v4022, %v4141
    %v4158 = vadd.f32 %v4023, %v4142
    %v4159 = vadd.f32 %v4024, %v4143
    %v4160 = vadd.f32 %v4025, %v4144
    %v4161 = vadd.f32 %v4026, %v4145
    %v4162 = vadd.f32 %v4027, %v4146
    %v4163 = vadd.f32 %v4028, %v4147
    %v4164 = vadd.f32 %v4029, %v4148
    %v4165 = vadd.f32 %v4030, %v4149
    %v4166 = vadd.f32 %v4031, %v4150
    %v4167 = vadd.f32 %v4032, %v4151
    %v4168 = vadd.f32 %v4033, %v4152
    %s4169 = scalar_lea.vmem [#allocation5], 98
    %v4170 = vld [vmem:[%s4169] ss:$8 sm:$0x3]
    %v4172 = vlaneseq
    %v4173 = vshrl.u32 %v4172, 7
    %v4174 = vsub.s32 0, %v4173
    %v4175 = vrot.slane %v4170, %v4174
    %v4176 = vlaneseq
    %v4177 = vshrl.u32 %v4176, 7
    %v4178 = vsub.s32 1, %v4177
    %v4179 = vrot.slane %v4170, %v4178
    %v4182 = vmul.f32 %v4175, %v2911
    %v4183 = vmul.f32 %v4179, %v2912
    %v4184 = vmul.f32 %v4175, %v2913
    %v4185 = vmul.f32 %v4179, %v2914
    %v4186 = vmul.f32 %v4175, %v2915
    %v4187 = vmul.f32 %v4179, %v2916
    %v4188 = vmul.f32 %v4175, %v2917
    %v4189 = vmul.f32 %v4179, %v2918
    %v4190 = vmul.f32 %v4175, %v2919
    %v4191 = vmul.f32 %v4179, %v2920
    %v4192 = vmul.f32 %v4175, %v2921
    %v4193 = vmul.f32 %v4179, %v2922
    %v4194 = vmul.f32 %v4175, %v2923
    %v4195 = vmul.f32 %v4179, %v2924
    %v4196 = vmul.f32 %v4175, %v2925
    %v4197 = vmul.f32 %v4179, %v2926
    %v4198 = vadd.f32 %v4063, %v4182
    %v4199 = vadd.f32 %v4064, %v4183
    %v4200 = vadd.f32 %v4065, %v4184
    %v4201 = vadd.f32 %v4066, %v4185
    %v4202 = vadd.f32 %v4067, %v4186
    %v4203 = vadd.f32 %v4068, %v4187
    %v4204 = vadd.f32 %v4069, %v4188
    %v4205 = vadd.f32 %v4070, %v4189
    %v4206 = vadd.f32 %v4071, %v4190
    %v4207 = vadd.f32 %v4072, %v4191
    %v4208 = vadd.f32 %v4073, %v4192
    %v4209 = vadd.f32 %v4074, %v4193
    %v4210 = vadd.f32 %v4075, %v4194
    %v4211 = vadd.f32 %v4076, %v4195
    %v4212 = vadd.f32 %v4077, %v4196
    %v4213 = vadd.f32 %v4078, %v4197
    %4214 = vrot.lane.b32.xlu0 %v2911, 120
    %v4215 = vpop.permute.xlu0 %4214
    %4216 = vrot.lane.b32.xlu0 %v2912, 120
    %v4217 = vpop.permute.xlu0 %4216
    %4218 = vrot.lane.b32.xlu0 %v2913, 120
    %v4219 = vpop.permute.xlu0 %4218
    %4220 = vrot.lane.b32.xlu0 %v2914, 120
    %v4221 = vpop.permute.xlu0 %4220
    %4222 = vrot.lane.b32.xlu0 %v2915, 120
    %v4223 = vpop.permute.xlu0 %4222
    %4224 = vrot.lane.b32.xlu0 %v2916, 120
    %v4225 = vpop.permute.xlu0 %4224
    %4226 = vrot.lane.b32.xlu0 %v2917, 120
    %v4227 = vpop.permute.xlu0 %4226
    %4228 = vrot.lane.b32.xlu0 %v2918, 120
    %v4229 = vpop.permute.xlu0 %4228
    %4230 = vrot.lane.b32.xlu0 %v2919, 120
    %v4231 = vpop.permute.xlu0 %4230
    %4232 = vrot.lane.b32.xlu0 %v2920, 120
    %v4233 = vpop.permute.xlu0 %4232
    %4234 = vrot.lane.b32.xlu0 %v2921, 120
    %v4235 = vpop.permute.xlu0 %4234
    %4236 = vrot.lane.b32.xlu0 %v2922, 120
    %v4237 = vpop.permute.xlu0 %4236
    %4238 = vrot.lane.b32.xlu0 %v2923, 120
    %v4239 = vpop.permute.xlu0 %4238
    %4240 = vrot.lane.b32.xlu0 %v2924, 120
    %v4241 = vpop.permute.xlu0 %4240
    %4242 = vrot.lane.b32.xlu0 %v2925, 120
    %v4243 = vpop.permute.xlu0 %4242
    %4244 = vrot.lane.b32.xlu0 %v2926, 120
    %v4245 = vpop.permute.xlu0 %4244
    %v4246 = vsel %vm470, %v4215, %v4217
    %v4247 = vsel %vm470, %v4219, %v4221
    %v4248 = vsel %vm470, %v4223, %v4225
    %v4249 = vsel %vm470, %v4227, %v4229
    %v4250 = vsel %vm470, %v4231, %v4233
    %v4251 = vsel %vm470, %v4235, %v4237
    %v4252 = vsel %vm470, %v4239, %v4241
    %v4253 = vsel %vm470, %v4243, %v4245
    %v4278 = vsel %vm470, %v4217, %v4215
    %v4279 = vsel %vm470, %v4221, %v4219
    %v4280 = vsel %vm470, %v4225, %v4223
    %v4281 = vsel %vm470, %v4229, %v4227
    %v4282 = vsel %vm470, %v4233, %v4231
    %v4283 = vsel %vm470, %v4237, %v4235
    %v4284 = vsel %vm470, %v4241, %v4239
    %v4285 = vsel %vm470, %v4245, %v4243
    %s4286 = scalar_lea.vmem [#allocation5], 53
    %v4287 = vld [vmem:[%s4286] ss:$8 sm:$0x3]
    %v4289 = vlaneseq
    %v4290 = vshrl.u32 %v4289, 7
    %v4291 = vsub.s32 0, %v4290
    %v4292 = vrot.slane %v4287, %v4291
    %v4293 = vlaneseq
    %v4294 = vshrl.u32 %v4293, 7
    %v4295 = vsub.s32 1, %v4294
    %v4296 = vrot.slane %v4287, %v4295
    %v4299 = vmul.f32 %v4292, %v4246
    %v4300 = vmul.f32 %v4296, %v4278
    %v4301 = vmul.f32 %v4292, %v4247
    %v4302 = vmul.f32 %v4296, %v4279
    %v4303 = vmul.f32 %v4292, %v4248
    %v4304 = vmul.f32 %v4296, %v4280
    %v4305 = vmul.f32 %v4292, %v4249
    %v4306 = vmul.f32 %v4296, %v4281
    %v4307 = vmul.f32 %v4292, %v4250
    %v4308 = vmul.f32 %v4296, %v4282
    %v4309 = vmul.f32 %v4292, %v4251
    %v4310 = vmul.f32 %v4296, %v4283
    %v4311 = vmul.f32 %v4292, %v4252
    %v4312 = vmul.f32 %v4296, %v4284
    %v4313 = vmul.f32 %v4292, %v4253
    %v4314 = vmul.f32 %v4296, %v4285
    %v4315 = vadd.f32 %v4108, %v4299
    %v4316 = vadd.f32 %v4109, %v4300
    %v4317 = vadd.f32 %v4110, %v4301
    %v4318 = vadd.f32 %v4111, %v4302
    %v4319 = vadd.f32 %v4112, %v4303
    %v4320 = vadd.f32 %v4113, %v4304
    %v4321 = vadd.f32 %v4114, %v4305
    %v4322 = vadd.f32 %v4115, %v4306
    %v4323 = vadd.f32 %v4116, %v4307
    %v4324 = vadd.f32 %v4117, %v4308
    %v4325 = vadd.f32 %v4118, %v4309
    %v4326 = vadd.f32 %v4119, %v4310
    %v4327 = vadd.f32 %v4120, %v4311
    %v4328 = vadd.f32 %v4121, %v4312
    %v4329 = vadd.f32 %v4122, %v4313
    %v4330 = vadd.f32 %v4123, %v4314
    %s4331 = scalar_lea.vmem [#allocation5], 70
    %v4332 = vld [vmem:[%s4331] ss:$8 sm:$0x3]
    %v4334 = vlaneseq
    %v4335 = vshrl.u32 %v4334, 7
    %v4336 = vsub.s32 0, %v4335
    %v4337 = vrot.slane %v4332, %v4336
    %v4338 = vlaneseq
    %v4339 = vshrl.u32 %v4338, 7
    %v4340 = vsub.s32 1, %v4339
    %v4341 = vrot.slane %v4332, %v4340
    %v4344 = vmul.f32 %v4337, %v4246
    %v4345 = vmul.f32 %v4341, %v4278
    %v4346 = vmul.f32 %v4337, %v4247
    %v4347 = vmul.f32 %v4341, %v4279
    %v4348 = vmul.f32 %v4337, %v4248
    %v4349 = vmul.f32 %v4341, %v4280
    %v4350 = vmul.f32 %v4337, %v4249
    %v4351 = vmul.f32 %v4341, %v4281
    %v4352 = vmul.f32 %v4337, %v4250
    %v4353 = vmul.f32 %v4341, %v4282
    %v4354 = vmul.f32 %v4337, %v4251
    %v4355 = vmul.f32 %v4341, %v4283
    %v4356 = vmul.f32 %v4337, %v4252
    %v4357 = vmul.f32 %v4341, %v4284
    %v4358 = vmul.f32 %v4337, %v4253
    %v4359 = vmul.f32 %v4341, %v4285
    %v4360 = vadd.f32 %v4153, %v4344
    %v4361 = vadd.f32 %v4154, %v4345
    %v4362 = vadd.f32 %v4155, %v4346
    %v4363 = vadd.f32 %v4156, %v4347
    %v4364 = vadd.f32 %v4157, %v4348
    %v4365 = vadd.f32 %v4158, %v4349
    %v4366 = vadd.f32 %v4159, %v4350
    %v4367 = vadd.f32 %v4160, %v4351
    %v4368 = vadd.f32 %v4161, %v4352
    %v4369 = vadd.f32 %v4162, %v4353
    %v4370 = vadd.f32 %v4163, %v4354
    %v4371 = vadd.f32 %v4164, %v4355
    %v4372 = vadd.f32 %v4165, %v4356
    %v4373 = vadd.f32 %v4166, %v4357
    %v4374 = vadd.f32 %v4167, %v4358
    %v4375 = vadd.f32 %v4168, %v4359
    %s4376 = scalar_lea.vmem [#allocation5], 99
    %v4377 = vld [vmem:[%s4376] ss:$8 sm:$0x3]
    %v4379 = vlaneseq
    %v4380 = vshrl.u32 %v4379, 7
    %v4381 = vsub.s32 0, %v4380
    %v4382 = vrot.slane %v4377, %v4381
    %v4383 = vlaneseq
    %v4384 = vshrl.u32 %v4383, 7
    %v4385 = vsub.s32 1, %v4384
    %v4386 = vrot.slane %v4377, %v4385
    %v4389 = vmul.f32 %v4382, %v4246
    %v4390 = vmul.f32 %v4386, %v4278
    %v4391 = vmul.f32 %v4382, %v4247
    %v4392 = vmul.f32 %v4386, %v4279
    %v4393 = vmul.f32 %v4382, %v4248
    %v4394 = vmul.f32 %v4386, %v4280
    %v4395 = vmul.f32 %v4382, %v4249
    %v4396 = vmul.f32 %v4386, %v4281
    %v4397 = vmul.f32 %v4382, %v4250
    %v4398 = vmul.f32 %v4386, %v4282
    %v4399 = vmul.f32 %v4382, %v4251
    %v4400 = vmul.f32 %v4386, %v4283
    %v4401 = vmul.f32 %v4382, %v4252
    %v4402 = vmul.f32 %v4386, %v4284
    %v4403 = vmul.f32 %v4382, %v4253
    %v4404 = vmul.f32 %v4386, %v4285
    %v4405 = vadd.f32 %v4198, %v4389
    %v4406 = vadd.f32 %v4199, %v4390
    %v4407 = vadd.f32 %v4200, %v4391
    %v4408 = vadd.f32 %v4201, %v4392
    %v4409 = vadd.f32 %v4202, %v4393
    %v4410 = vadd.f32 %v4203, %v4394
    %v4411 = vadd.f32 %v4204, %v4395
    %v4412 = vadd.f32 %v4205, %v4396
    %v4413 = vadd.f32 %v4206, %v4397
    %v4414 = vadd.f32 %v4207, %v4398
    %v4415 = vadd.f32 %v4208, %v4399
    %v4416 = vadd.f32 %v4209, %v4400
    %v4417 = vadd.f32 %v4210, %v4401
    %v4418 = vadd.f32 %v4211, %v4402
    %v4419 = vadd.f32 %v4212, %v4403
    %v4420 = vadd.f32 %v4213, %v4404
    %4421 = vrot.lane.b32.xlu0 %v2911, 112
    %v4422 = vpop.permute.xlu0 %4421
    %4423 = vrot.lane.b32.xlu0 %v2912, 112
    %v4424 = vpop.permute.xlu0 %4423
    %4425 = vrot.lane.b32.xlu0 %v2913, 112
    %v4426 = vpop.permute.xlu0 %4425
    %4427 = vrot.lane.b32.xlu0 %v2914, 112
    %v4428 = vpop.permute.xlu0 %4427
    %4429 = vrot.lane.b32.xlu0 %v2915, 112
    %v4430 = vpop.permute.xlu0 %4429
    %4431 = vrot.lane.b32.xlu0 %v2916, 112
    %v4432 = vpop.permute.xlu0 %4431
    %4433 = vrot.lane.b32.xlu0 %v2917, 112
    %v4434 = vpop.permute.xlu0 %4433
    %4435 = vrot.lane.b32.xlu0 %v2918, 112
    %v4436 = vpop.permute.xlu0 %4435
    %4437 = vrot.lane.b32.xlu0 %v2919, 112
    %v4438 = vpop.permute.xlu0 %4437
    %4439 = vrot.lane.b32.xlu0 %v2920, 112
    %v4440 = vpop.permute.xlu0 %4439
    %4441 = vrot.lane.b32.xlu0 %v2921, 112
    %v4442 = vpop.permute.xlu0 %4441
    %4443 = vrot.lane.b32.xlu0 %v2922, 112
    %v4444 = vpop.permute.xlu0 %4443
    %4445 = vrot.lane.b32.xlu0 %v2923, 112
    %v4446 = vpop.permute.xlu0 %4445
    %4447 = vrot.lane.b32.xlu0 %v2924, 112
    %v4448 = vpop.permute.xlu0 %4447
    %4449 = vrot.lane.b32.xlu0 %v2925, 112
    %v4450 = vpop.permute.xlu0 %4449
    %4451 = vrot.lane.b32.xlu0 %v2926, 112
    %v4452 = vpop.permute.xlu0 %4451
    %v4453 = vsel %vm588, %v4422, %v4424
    %v4454 = vsel %vm588, %v4426, %v4428
    %v4455 = vsel %vm588, %v4430, %v4432
    %v4456 = vsel %vm588, %v4434, %v4436
    %v4457 = vsel %vm588, %v4438, %v4440
    %v4458 = vsel %vm588, %v4442, %v4444
    %v4459 = vsel %vm588, %v4446, %v4448
    %v4460 = vsel %vm588, %v4450, %v4452
    %v4485 = vsel %vm588, %v4424, %v4422
    %v4486 = vsel %vm588, %v4428, %v4426
    %v4487 = vsel %vm588, %v4432, %v4430
    %v4488 = vsel %vm588, %v4436, %v4434
    %v4489 = vsel %vm588, %v4440, %v4438
    %v4490 = vsel %vm588, %v4444, %v4442
    %v4491 = vsel %vm588, %v4448, %v4446
    %v4492 = vsel %vm588, %v4452, %v4450
    %s4493 = scalar_lea.vmem [#allocation5], 54
    %v4494 = vld [vmem:[%s4493] ss:$8 sm:$0x3]
    %v4496 = vlaneseq
    %v4497 = vshrl.u32 %v4496, 7
    %v4498 = vsub.s32 0, %v4497
    %v4499 = vrot.slane %v4494, %v4498
    %v4500 = vlaneseq
    %v4501 = vshrl.u32 %v4500, 7
    %v4502 = vsub.s32 1, %v4501
    %v4503 = vrot.slane %v4494, %v4502
    %v4506 = vmul.f32 %v4499, %v4453
    %v4507 = vmul.f32 %v4503, %v4485
    %v4508 = vmul.f32 %v4499, %v4454
    %v4509 = vmul.f32 %v4503, %v4486
    %v4510 = vmul.f32 %v4499, %v4455
    %v4511 = vmul.f32 %v4503, %v4487
    %v4512 = vmul.f32 %v4499, %v4456
    %v4513 = vmul.f32 %v4503, %v4488
    %v4514 = vmul.f32 %v4499, %v4457
    %v4515 = vmul.f32 %v4503, %v4489
    %v4516 = vmul.f32 %v4499, %v4458
    %v4517 = vmul.f32 %v4503, %v4490
    %v4518 = vmul.f32 %v4499, %v4459
    %v4519 = vmul.f32 %v4503, %v4491
    %v4520 = vmul.f32 %v4499, %v4460
    %v4521 = vmul.f32 %v4503, %v4492
    %v4522 = vadd.f32 %v4315, %v4506
    %v4523 = vadd.f32 %v4316, %v4507
    %v4524 = vadd.f32 %v4317, %v4508
    %v4525 = vadd.f32 %v4318, %v4509
    %v4526 = vadd.f32 %v4319, %v4510
    %v4527 = vadd.f32 %v4320, %v4511
    %v4528 = vadd.f32 %v4321, %v4512
    %v4529 = vadd.f32 %v4322, %v4513
    %v4530 = vadd.f32 %v4323, %v4514
    %v4531 = vadd.f32 %v4324, %v4515
    %v4532 = vadd.f32 %v4325, %v4516
    %v4533 = vadd.f32 %v4326, %v4517
    %v4534 = vadd.f32 %v4327, %v4518
    %v4535 = vadd.f32 %v4328, %v4519
    %v4536 = vadd.f32 %v4329, %v4520
    %v4537 = vadd.f32 %v4330, %v4521
    %s4538 = scalar_lea.vmem [#allocation5], 71
    %v4539 = vld [vmem:[%s4538] ss:$8 sm:$0x3]
    %v4541 = vlaneseq
    %v4542 = vshrl.u32 %v4541, 7
    %v4543 = vsub.s32 0, %v4542
    %v4544 = vrot.slane %v4539, %v4543
    %v4545 = vlaneseq
    %v4546 = vshrl.u32 %v4545, 7
    %v4547 = vsub.s32 1, %v4546
    %v4548 = vrot.slane %v4539, %v4547
    %v4551 = vmul.f32 %v4544, %v4453
    %v4552 = vmul.f32 %v4548, %v4485
    %v4553 = vmul.f32 %v4544, %v4454
    %v4554 = vmul.f32 %v4548, %v4486
    %v4555 = vmul.f32 %v4544, %v4455
    %v4556 = vmul.f32 %v4548, %v4487
    %v4557 = vmul.f32 %v4544, %v4456
    %v4558 = vmul.f32 %v4548, %v4488
    %v4559 = vmul.f32 %v4544, %v4457
    %v4560 = vmul.f32 %v4548, %v4489
    %v4561 = vmul.f32 %v4544, %v4458
    %v4562 = vmul.f32 %v4548, %v4490
    %v4563 = vmul.f32 %v4544, %v4459
    %v4564 = vmul.f32 %v4548, %v4491
    %v4565 = vmul.f32 %v4544, %v4460
    %v4566 = vmul.f32 %v4548, %v4492
    %v4567 = vadd.f32 %v4360, %v4551
    %v4568 = vadd.f32 %v4361, %v4552
    %v4569 = vadd.f32 %v4362, %v4553
    %v4570 = vadd.f32 %v4363, %v4554
    %v4571 = vadd.f32 %v4364, %v4555
    %v4572 = vadd.f32 %v4365, %v4556
    %v4573 = vadd.f32 %v4366, %v4557
    %v4574 = vadd.f32 %v4367, %v4558
    %v4575 = vadd.f32 %v4368, %v4559
    %v4576 = vadd.f32 %v4369, %v4560
    %v4577 = vadd.f32 %v4370, %v4561
    %v4578 = vadd.f32 %v4371, %v4562
    %v4579 = vadd.f32 %v4372, %v4563
    %v4580 = vadd.f32 %v4373, %v4564
    %v4581 = vadd.f32 %v4374, %v4565
    %v4582 = vadd.f32 %v4375, %v4566
    %s4583 = scalar_lea.vmem [#allocation5], 100
    %v4584 = vld [vmem:[%s4583] ss:$8 sm:$0x3]
    %v4586 = vlaneseq
    %v4587 = vshrl.u32 %v4586, 7
    %v4588 = vsub.s32 0, %v4587
    %v4589 = vrot.slane %v4584, %v4588
    %v4590 = vlaneseq
    %v4591 = vshrl.u32 %v4590, 7
    %v4592 = vsub.s32 1, %v4591
    %v4593 = vrot.slane %v4584, %v4592
    %v4596 = vmul.f32 %v4589, %v4453
    %v4597 = vmul.f32 %v4593, %v4485
    %v4598 = vmul.f32 %v4589, %v4454
    %v4599 = vmul.f32 %v4593, %v4486
    %v4600 = vmul.f32 %v4589, %v4455
    %v4601 = vmul.f32 %v4593, %v4487
    %v4602 = vmul.f32 %v4589, %v4456
    %v4603 = vmul.f32 %v4593, %v4488
    %v4604 = vmul.f32 %v4589, %v4457
    %v4605 = vmul.f32 %v4593, %v4489
    %v4606 = vmul.f32 %v4589, %v4458
    %v4607 = vmul.f32 %v4593, %v4490
    %v4608 = vmul.f32 %v4589, %v4459
    %v4609 = vmul.f32 %v4593, %v4491
    %v4610 = vmul.f32 %v4589, %v4460
    %v4611 = vmul.f32 %v4593, %v4492
    %v4612 = vadd.f32 %v4405, %v4596
    %v4613 = vadd.f32 %v4406, %v4597
    %v4614 = vadd.f32 %v4407, %v4598
    %v4615 = vadd.f32 %v4408, %v4599
    %v4616 = vadd.f32 %v4409, %v4600
    %v4617 = vadd.f32 %v4410, %v4601
    %v4618 = vadd.f32 %v4411, %v4602
    %v4619 = vadd.f32 %v4412, %v4603
    %v4620 = vadd.f32 %v4413, %v4604
    %v4621 = vadd.f32 %v4414, %v4605
    %v4622 = vadd.f32 %v4415, %v4606
    %v4623 = vadd.f32 %v4416, %v4607
    %v4624 = vadd.f32 %v4417, %v4608
    %v4625 = vadd.f32 %v4418, %v4609
    %v4626 = vadd.f32 %v4419, %v4610
    %v4627 = vadd.f32 %v4420, %v4611
    %4628 = vrot.lane.b32.xlu0 %v2911, 104
    %v4629 = vpop.permute.xlu0 %4628
    %4630 = vrot.lane.b32.xlu0 %v2912, 104
    %v4631 = vpop.permute.xlu0 %4630
    %4632 = vrot.lane.b32.xlu0 %v2913, 104
    %v4633 = vpop.permute.xlu0 %4632
    %4634 = vrot.lane.b32.xlu0 %v2914, 104
    %v4635 = vpop.permute.xlu0 %4634
    %4636 = vrot.lane.b32.xlu0 %v2915, 104
    %v4637 = vpop.permute.xlu0 %4636
    %4638 = vrot.lane.b32.xlu0 %v2916, 104
    %v4639 = vpop.permute.xlu0 %4638
    %4640 = vrot.lane.b32.xlu0 %v2917, 104
    %v4641 = vpop.permute.xlu0 %4640
    %4642 = vrot.lane.b32.xlu0 %v2918, 104
    %v4643 = vpop.permute.xlu0 %4642
    %4644 = vrot.lane.b32.xlu0 %v2919, 104
    %v4645 = vpop.permute.xlu0 %4644
    %4646 = vrot.lane.b32.xlu0 %v2920, 104
    %v4647 = vpop.permute.xlu0 %4646
    %4648 = vrot.lane.b32.xlu0 %v2921, 104
    %v4649 = vpop.permute.xlu0 %4648
    %4650 = vrot.lane.b32.xlu0 %v2922, 104
    %v4651 = vpop.permute.xlu0 %4650
    %4652 = vrot.lane.b32.xlu0 %v2923, 104
    %v4653 = vpop.permute.xlu0 %4652
    %4654 = vrot.lane.b32.xlu0 %v2924, 104
    %v4655 = vpop.permute.xlu0 %4654
    %4656 = vrot.lane.b32.xlu0 %v2925, 104
    %v4657 = vpop.permute.xlu0 %4656
    %4658 = vrot.lane.b32.xlu0 %v2926, 104
    %v4659 = vpop.permute.xlu0 %4658
    %vm4660 = vcmask 850944
    %v4661 = vsel %vm4660, %v4629, %v4631
    %v4662 = vsel %vm4660, %v4633, %v4635
    %v4663 = vsel %vm4660, %v4637, %v4639
    %v4664 = vsel %vm4660, %v4641, %v4643
    %v4665 = vsel %vm4660, %v4645, %v4647
    %v4666 = vsel %vm4660, %v4649, %v4651
    %v4667 = vsel %vm4660, %v4653, %v4655
    %v4668 = vsel %vm4660, %v4657, %v4659
    %v4693 = vsel %vm4660, %v4631, %v4629
    %v4694 = vsel %vm4660, %v4635, %v4633
    %v4695 = vsel %vm4660, %v4639, %v4637
    %v4696 = vsel %vm4660, %v4643, %v4641
    %v4697 = vsel %vm4660, %v4647, %v4645
    %v4698 = vsel %vm4660, %v4651, %v4649
    %v4699 = vsel %vm4660, %v4655, %v4653
    %v4700 = vsel %vm4660, %v4659, %v4657
    %s4701 = scalar_lea.vmem [#allocation5], 55
    %v4702 = vld [vmem:[%s4701] ss:$8 sm:$0x3]
    %v4704 = vlaneseq
    %v4705 = vshrl.u32 %v4704, 7
    %v4706 = vsub.s32 0, %v4705
    %v4707 = vrot.slane %v4702, %v4706
    %v4708 = vlaneseq
    %v4709 = vshrl.u32 %v4708, 7
    %v4710 = vsub.s32 1, %v4709
    %v4711 = vrot.slane %v4702, %v4710
    %v4714 = vmul.f32 %v4707, %v4661
    %v4715 = vmul.f32 %v4711, %v4693
    %v4716 = vmul.f32 %v4707, %v4662
    %v4717 = vmul.f32 %v4711, %v4694
    %v4718 = vmul.f32 %v4707, %v4663
    %v4719 = vmul.f32 %v4711, %v4695
    %v4720 = vmul.f32 %v4707, %v4664
    %v4721 = vmul.f32 %v4711, %v4696
    %v4722 = vmul.f32 %v4707, %v4665
    %v4723 = vmul.f32 %v4711, %v4697
    %v4724 = vmul.f32 %v4707, %v4666
    %v4725 = vmul.f32 %v4711, %v4698
    %v4726 = vmul.f32 %v4707, %v4667
    %v4727 = vmul.f32 %v4711, %v4699
    %v4728 = vmul.f32 %v4707, %v4668
    %v4729 = vmul.f32 %v4711, %v4700
    %v4730 = vadd.f32 %v4522, %v4714
    %v4731 = vadd.f32 %v4523, %v4715
    %v4732 = vadd.f32 %v4524, %v4716
    %v4733 = vadd.f32 %v4525, %v4717
    %v4734 = vadd.f32 %v4526, %v4718
    %v4735 = vadd.f32 %v4527, %v4719
    %v4736 = vadd.f32 %v4528, %v4720
    %v4737 = vadd.f32 %v4529, %v4721
    %v4738 = vadd.f32 %v4530, %v4722
    %v4739 = vadd.f32 %v4531, %v4723
    %v4740 = vadd.f32 %v4532, %v4724
    %v4741 = vadd.f32 %v4533, %v4725
    %v4742 = vadd.f32 %v4534, %v4726
    %v4743 = vadd.f32 %v4535, %v4727
    %v4744 = vadd.f32 %v4536, %v4728
    %v4745 = vadd.f32 %v4537, %v4729
    %s4746 = scalar_lea.vmem [#allocation5], 80
    %v4747 = vld [vmem:[%s4746] ss:$8 sm:$0x3]
    %v4749 = vlaneseq
    %v4750 = vshrl.u32 %v4749, 7
    %v4751 = vsub.s32 0, %v4750
    %v4752 = vrot.slane %v4747, %v4751
    %v4753 = vlaneseq
    %v4754 = vshrl.u32 %v4753, 7
    %v4755 = vsub.s32 1, %v4754
    %v4756 = vrot.slane %v4747, %v4755
    %v4759 = vmul.f32 %v4752, %v4661
    %v4760 = vmul.f32 %v4756, %v4693
    %v4761 = vmul.f32 %v4752, %v4662
    %v4762 = vmul.f32 %v4756, %v4694
    %v4763 = vmul.f32 %v4752, %v4663
    %v4764 = vmul.f32 %v4756, %v4695
    %v4765 = vmul.f32 %v4752, %v4664
    %v4766 = vmul.f32 %v4756, %v4696
    %v4767 = vmul.f32 %v4752, %v4665
    %v4768 = vmul.f32 %v4756, %v4697
    %v4769 = vmul.f32 %v4752, %v4666
    %v4770 = vmul.f32 %v4756, %v4698
    %v4771 = vmul.f32 %v4752, %v4667
    %v4772 = vmul.f32 %v4756, %v4699
    %v4773 = vmul.f32 %v4752, %v4668
    %v4774 = vmul.f32 %v4756, %v4700
    %v4775 = vadd.f32 %v4567, %v4759
    %v4776 = vadd.f32 %v4568, %v4760
    %v4777 = vadd.f32 %v4569, %v4761
    %v4778 = vadd.f32 %v4570, %v4762
    %v4779 = vadd.f32 %v4571, %v4763
    %v4780 = vadd.f32 %v4572, %v4764
    %v4781 = vadd.f32 %v4573, %v4765
    %v4782 = vadd.f32 %v4574, %v4766
    %v4783 = vadd.f32 %v4575, %v4767
    %v4784 = vadd.f32 %v4576, %v4768
    %v4785 = vadd.f32 %v4577, %v4769
    %v4786 = vadd.f32 %v4578, %v4770
    %v4787 = vadd.f32 %v4579, %v4771
    %v4788 = vadd.f32 %v4580, %v4772
    %v4789 = vadd.f32 %v4581, %v4773
    %v4790 = vadd.f32 %v4582, %v4774
    %s4791 = scalar_lea.vmem [#allocation5], 101
    %v4792 = vld [vmem:[%s4791] ss:$8 sm:$0x3]
    %v4794 = vlaneseq
    %v4795 = vshrl.u32 %v4794, 7
    %v4796 = vsub.s32 0, %v4795
    %v4797 = vrot.slane %v4792, %v4796
    %v4798 = vlaneseq
    %v4799 = vshrl.u32 %v4798, 7
    %v4800 = vsub.s32 1, %v4799
    %v4801 = vrot.slane %v4792, %v4800
    %v4804 = vmul.f32 %v4797, %v4661
    %v4805 = vmul.f32 %v4801, %v4693
    %v4806 = vmul.f32 %v4797, %v4662
    %v4807 = vmul.f32 %v4801, %v4694
    %v4808 = vmul.f32 %v4797, %v4663
    %v4809 = vmul.f32 %v4801, %v4695
    %v4810 = vmul.f32 %v4797, %v4664
    %v4811 = vmul.f32 %v4801, %v4696
    %v4812 = vmul.f32 %v4797, %v4665
    %v4813 = vmul.f32 %v4801, %v4697
    %v4814 = vmul.f32 %v4797, %v4666
    %v4815 = vmul.f32 %v4801, %v4698
    %v4816 = vmul.f32 %v4797, %v4667
    %v4817 = vmul.f32 %v4801, %v4699
    %v4818 = vmul.f32 %v4797, %v4668
    %v4819 = vmul.f32 %v4801, %v4700
    %v4820 = vadd.f32 %v4612, %v4804
    %v4821 = vadd.f32 %v4613, %v4805
    %v4822 = vadd.f32 %v4614, %v4806
    %v4823 = vadd.f32 %v4615, %v4807
    %v4824 = vadd.f32 %v4616, %v4808
    %v4825 = vadd.f32 %v4617, %v4809
    %v4826 = vadd.f32 %v4618, %v4810
    %v4827 = vadd.f32 %v4619, %v4811
    %v4828 = vadd.f32 %v4620, %v4812
    %v4829 = vadd.f32 %v4621, %v4813
    %v4830 = vadd.f32 %v4622, %v4814
    %v4831 = vadd.f32 %v4623, %v4815
    %v4832 = vadd.f32 %v4624, %v4816
    %v4833 = vadd.f32 %v4625, %v4817
    %v4834 = vadd.f32 %v4626, %v4818
    %v4835 = vadd.f32 %v4627, %v4819
    %4836 = vrot.lane.b32.xlu0 %v2911, 96
    %v4837 = vpop.permute.xlu0 %4836
    %4838 = vrot.lane.b32.xlu0 %v2912, 96
    %v4839 = vpop.permute.xlu0 %4838
    %4840 = vrot.lane.b32.xlu0 %v2913, 96
    %v4841 = vpop.permute.xlu0 %4840
    %4842 = vrot.lane.b32.xlu0 %v2914, 96
    %v4843 = vpop.permute.xlu0 %4842
    %4844 = vrot.lane.b32.xlu0 %v2915, 96
    %v4845 = vpop.permute.xlu0 %4844
    %4846 = vrot.lane.b32.xlu0 %v2916, 96
    %v4847 = vpop.permute.xlu0 %4846
    %4848 = vrot.lane.b32.xlu0 %v2917, 96
    %v4849 = vpop.permute.xlu0 %4848
    %4850 = vrot.lane.b32.xlu0 %v2918, 96
    %v4851 = vpop.permute.xlu0 %4850
    %4852 = vrot.lane.b32.xlu0 %v2919, 96
    %v4853 = vpop.permute.xlu0 %4852
    %4854 = vrot.lane.b32.xlu0 %v2920, 96
    %v4855 = vpop.permute.xlu0 %4854
    %4856 = vrot.lane.b32.xlu0 %v2921, 96
    %v4857 = vpop.permute.xlu0 %4856
    %4858 = vrot.lane.b32.xlu0 %v2922, 96
    %v4859 = vpop.permute.xlu0 %4858
    %4860 = vrot.lane.b32.xlu0 %v2923, 96
    %v4861 = vpop.permute.xlu0 %4860
    %4862 = vrot.lane.b32.xlu0 %v2924, 96
    %v4863 = vpop.permute.xlu0 %4862
    %4864 = vrot.lane.b32.xlu0 %v2925, 96
    %v4865 = vpop.permute.xlu0 %4864
    %4866 = vrot.lane.b32.xlu0 %v2926, 96
    %v4867 = vpop.permute.xlu0 %4866
    %vm4868 = vcmask 785408
    %v4869 = vsel %vm4868, %v4837, %v4839
    %v4870 = vsel %vm4868, %v4841, %v4843
    %v4871 = vsel %vm4868, %v4845, %v4847
    %v4872 = vsel %vm4868, %v4849, %v4851
    %v4873 = vsel %vm4868, %v4853, %v4855
    %v4874 = vsel %vm4868, %v4857, %v4859
    %v4875 = vsel %vm4868, %v4861, %v4863
    %v4876 = vsel %vm4868, %v4865, %v4867
    %v4901 = vsel %vm4868, %v4839, %v4837
    %v4902 = vsel %vm4868, %v4843, %v4841
    %v4903 = vsel %vm4868, %v4847, %v4845
    %v4904 = vsel %vm4868, %v4851, %v4849
    %v4905 = vsel %vm4868, %v4855, %v4853
    %v4906 = vsel %vm4868, %v4859, %v4857
    %v4907 = vsel %vm4868, %v4863, %v4861
    %v4908 = vsel %vm4868, %v4867, %v4865
    %s4909 = scalar_lea.vmem [#allocation5], 81
    %v4910 = vld [vmem:[%s4909] ss:$8 sm:$0x3]
    %v4912 = vlaneseq
    %v4913 = vshrl.u32 %v4912, 7
    %v4914 = vsub.s32 0, %v4913
    %v4915 = vrot.slane %v4910, %v4914
    %v4916 = vlaneseq
    %v4917 = vshrl.u32 %v4916, 7
    %v4918 = vsub.s32 1, %v4917
    %v4919 = vrot.slane %v4910, %v4918
    %v4922 = vmul.f32 %v4915, %v4869
    %v4923 = vmul.f32 %v4919, %v4901
    %v4924 = vmul.f32 %v4915, %v4870
    %v4925 = vmul.f32 %v4919, %v4902
    %v4926 = vmul.f32 %v4915, %v4871
    %v4927 = vmul.f32 %v4919, %v4903
    %v4928 = vmul.f32 %v4915, %v4872
    %v4929 = vmul.f32 %v4919, %v4904
    %v4930 = vmul.f32 %v4915, %v4873
    %v4931 = vmul.f32 %v4919, %v4905
    %v4932 = vmul.f32 %v4915, %v4874
    %v4933 = vmul.f32 %v4919, %v4906
    %v4934 = vmul.f32 %v4915, %v4875
    %v4935 = vmul.f32 %v4919, %v4907
    %v4936 = vmul.f32 %v4915, %v4876
    %v4937 = vmul.f32 %v4919, %v4908
    %v4938 = vadd.f32 %v4775, %v4922
    %v4939 = vadd.f32 %v4776, %v4923
    %v4940 = vadd.f32 %v4777, %v4924
    %v4941 = vadd.f32 %v4778, %v4925
    %v4942 = vadd.f32 %v4779, %v4926
    %v4943 = vadd.f32 %v4780, %v4927
    %v4944 = vadd.f32 %v4781, %v4928
    %v4945 = vadd.f32 %v4782, %v4929
    %v4946 = vadd.f32 %v4783, %v4930
    %v4947 = vadd.f32 %v4784, %v4931
    %v4948 = vadd.f32 %v4785, %v4932
    %v4949 = vadd.f32 %v4786, %v4933
    %v4950 = vadd.f32 %v4787, %v4934
    %v4951 = vadd.f32 %v4788, %v4935
    %v4952 = vadd.f32 %v4789, %v4936
    %v4953 = vadd.f32 %v4790, %v4937
    %s4954 = scalar_lea.vmem [#allocation5], 102
    %v4955 = vld [vmem:[%s4954] ss:$8 sm:$0x3]
    %v4957 = vlaneseq
    %v4958 = vshrl.u32 %v4957, 7
    %v4959 = vsub.s32 0, %v4958
    %v4960 = vrot.slane %v4955, %v4959
    %v4961 = vlaneseq
    %v4962 = vshrl.u32 %v4961, 7
    %v4963 = vsub.s32 1, %v4962
    %v4964 = vrot.slane %v4955, %v4963
    %v4967 = vmul.f32 %v4960, %v4869
    %v4968 = vmul.f32 %v4964, %v4901
    %v4969 = vmul.f32 %v4960, %v4870
    %v4970 = vmul.f32 %v4964, %v4902
    %v4971 = vmul.f32 %v4960, %v4871
    %v4972 = vmul.f32 %v4964, %v4903
    %v4973 = vmul.f32 %v4960, %v4872
    %v4974 = vmul.f32 %v4964, %v4904
    %v4975 = vmul.f32 %v4960, %v4873
    %v4976 = vmul.f32 %v4964, %v4905
    %v4977 = vmul.f32 %v4960, %v4874
    %v4978 = vmul.f32 %v4964, %v4906
    %v4979 = vmul.f32 %v4960, %v4875
    %v4980 = vmul.f32 %v4964, %v4907
    %v4981 = vmul.f32 %v4960, %v4876
    %v4982 = vmul.f32 %v4964, %v4908
    %v4983 = vadd.f32 %v4820, %v4967
    %v4984 = vadd.f32 %v4821, %v4968
    %v4985 = vadd.f32 %v4822, %v4969
    %v4986 = vadd.f32 %v4823, %v4970
    %v4987 = vadd.f32 %v4824, %v4971
    %v4988 = vadd.f32 %v4825, %v4972
    %v4989 = vadd.f32 %v4826, %v4973
    %v4990 = vadd.f32 %v4827, %v4974
    %v4991 = vadd.f32 %v4828, %v4975
    %v4992 = vadd.f32 %v4829, %v4976
    %v4993 = vadd.f32 %v4830, %v4977
    %v4994 = vadd.f32 %v4831, %v4978
    %v4995 = vadd.f32 %v4832, %v4979
    %v4996 = vadd.f32 %v4833, %v4980
    %v4997 = vadd.f32 %v4834, %v4981
    %v4998 = vadd.f32 %v4835, %v4982
    %4999 = vrot.lane.b32.xlu0 %v2911, 88
    %v5000 = vpop.permute.xlu0 %4999
    %5001 = vrot.lane.b32.xlu0 %v2912, 88
    %v5002 = vpop.permute.xlu0 %5001
    %5003 = vrot.lane.b32.xlu0 %v2913, 88
    %v5004 = vpop.permute.xlu0 %5003
    %5005 = vrot.lane.b32.xlu0 %v2914, 88
    %v5006 = vpop.permute.xlu0 %5005
    %5007 = vrot.lane.b32.xlu0 %v2915, 88
    %v5008 = vpop.permute.xlu0 %5007
    %5009 = vrot.lane.b32.xlu0 %v2916, 88
    %v5010 = vpop.permute.xlu0 %5009
    %5011 = vrot.lane.b32.xlu0 %v2917, 88
    %v5012 = vpop.permute.xlu0 %5011
    %5013 = vrot.lane.b32.xlu0 %v2918, 88
    %v5014 = vpop.permute.xlu0 %5013
    %5015 = vrot.lane.b32.xlu0 %v2919, 88
    %v5016 = vpop.permute.xlu0 %5015
    %5017 = vrot.lane.b32.xlu0 %v2920, 88
    %v5018 = vpop.permute.xlu0 %5017
    %5019 = vrot.lane.b32.xlu0 %v2921, 88
    %v5020 = vpop.permute.xlu0 %5019
    %5021 = vrot.lane.b32.xlu0 %v2922, 88
    %v5022 = vpop.permute.xlu0 %5021
    %5023 = vrot.lane.b32.xlu0 %v2923, 88
    %v5024 = vpop.permute.xlu0 %5023
    %5025 = vrot.lane.b32.xlu0 %v2924, 88
    %v5026 = vpop.permute.xlu0 %5025
    %5027 = vrot.lane.b32.xlu0 %v2925, 88
    %v5028 = vpop.permute.xlu0 %5027
    %5029 = vrot.lane.b32.xlu0 %v2926, 88
    %v5030 = vpop.permute.xlu0 %5029
    %vm5031 = vcmask 719872
    %v5032 = vsel %vm5031, %v5000, %v5002
    %v5033 = vsel %vm5031, %v5004, %v5006
    %v5034 = vsel %vm5031, %v5008, %v5010
    %v5035 = vsel %vm5031, %v5012, %v5014
    %v5036 = vsel %vm5031, %v5016, %v5018
    %v5037 = vsel %vm5031, %v5020, %v5022
    %v5038 = vsel %vm5031, %v5024, %v5026
    %v5039 = vsel %vm5031, %v5028, %v5030
    %v5064 = vsel %vm5031, %v5002, %v5000
    %v5065 = vsel %vm5031, %v5006, %v5004
    %v5066 = vsel %vm5031, %v5010, %v5008
    %v5067 = vsel %vm5031, %v5014, %v5012
    %v5068 = vsel %vm5031, %v5018, %v5016
    %v5069 = vsel %vm5031, %v5022, %v5020
    %v5070 = vsel %vm5031, %v5026, %v5024
    %v5071 = vsel %vm5031, %v5030, %v5028
    %s5072 = scalar_lea.vmem [#allocation5], 82
    %v5073 = vld [vmem:[%s5072] ss:$8 sm:$0x3]
    %v5075 = vlaneseq
    %v5076 = vshrl.u32 %v5075, 7
    %v5077 = vsub.s32 0, %v5076
    %v5078 = vrot.slane %v5073, %v5077
    %v5079 = vlaneseq
    %v5080 = vshrl.u32 %v5079, 7
    %v5081 = vsub.s32 1, %v5080
    %v5082 = vrot.slane %v5073, %v5081
    %v5085 = vmul.f32 %v5078, %v5032
    %v5086 = vmul.f32 %v5082, %v5064
    %v5087 = vmul.f32 %v5078, %v5033
    %v5088 = vmul.f32 %v5082, %v5065
    %v5089 = vmul.f32 %v5078, %v5034
    %v5090 = vmul.f32 %v5082, %v5066
    %v5091 = vmul.f32 %v5078, %v5035
    %v5092 = vmul.f32 %v5082, %v5067
    %v5093 = vmul.f32 %v5078, %v5036
    %v5094 = vmul.f32 %v5082, %v5068
    %v5095 = vmul.f32 %v5078, %v5037
    %v5096 = vmul.f32 %v5082, %v5069
    %v5097 = vmul.f32 %v5078, %v5038
    %v5098 = vmul.f32 %v5082, %v5070
    %v5099 = vmul.f32 %v5078, %v5039
    %v5100 = vmul.f32 %v5082, %v5071
    %v5101 = vadd.f32 %v4938, %v5085
    %v5102 = vadd.f32 %v4939, %v5086
    %v5103 = vadd.f32 %v4940, %v5087
    %v5104 = vadd.f32 %v4941, %v5088
    %v5105 = vadd.f32 %v4942, %v5089
    %v5106 = vadd.f32 %v4943, %v5090
    %v5107 = vadd.f32 %v4944, %v5091
    %v5108 = vadd.f32 %v4945, %v5092
    %v5109 = vadd.f32 %v4946, %v5093
    %v5110 = vadd.f32 %v4947, %v5094
    %v5111 = vadd.f32 %v4948, %v5095
    %v5112 = vadd.f32 %v4949, %v5096
    %v5113 = vadd.f32 %v4950, %v5097
    %v5114 = vadd.f32 %v4951, %v5098
    %v5115 = vadd.f32 %v4952, %v5099
    %v5116 = vadd.f32 %v4953, %v5100
    %s5117 = scalar_lea.vmem [#allocation5], 103
    %v5118 = vld [vmem:[%s5117] ss:$8 sm:$0x3]
    %v5120 = vlaneseq
    %v5121 = vshrl.u32 %v5120, 7
    %v5122 = vsub.s32 0, %v5121
    %v5123 = vrot.slane %v5118, %v5122
    %v5124 = vlaneseq
    %v5125 = vshrl.u32 %v5124, 7
    %v5126 = vsub.s32 1, %v5125
    %v5127 = vrot.slane %v5118, %v5126
    %v5130 = vmul.f32 %v5123, %v5032
    %v5131 = vmul.f32 %v5127, %v5064
    %v5132 = vmul.f32 %v5123, %v5033
    %v5133 = vmul.f32 %v5127, %v5065
    %v5134 = vmul.f32 %v5123, %v5034
    %v5135 = vmul.f32 %v5127, %v5066
    %v5136 = vmul.f32 %v5123, %v5035
    %v5137 = vmul.f32 %v5127, %v5067
    %v5138 = vmul.f32 %v5123, %v5036
    %v5139 = vmul.f32 %v5127, %v5068
    %v5140 = vmul.f32 %v5123, %v5037
    %v5141 = vmul.f32 %v5127, %v5069
    %v5142 = vmul.f32 %v5123, %v5038
    %v5143 = vmul.f32 %v5127, %v5070
    %v5144 = vmul.f32 %v5123, %v5039
    %v5145 = vmul.f32 %v5127, %v5071
    %v5146 = vadd.f32 %v4983, %v5130
    %v5147 = vadd.f32 %v4984, %v5131
    %v5148 = vadd.f32 %v4985, %v5132
    %v5149 = vadd.f32 %v4986, %v5133
    %v5150 = vadd.f32 %v4987, %v5134
    %v5151 = vadd.f32 %v4988, %v5135
    %v5152 = vadd.f32 %v4989, %v5136
    %v5153 = vadd.f32 %v4990, %v5137
    %v5154 = vadd.f32 %v4991, %v5138
    %v5155 = vadd.f32 %v4992, %v5139
    %v5156 = vadd.f32 %v4993, %v5140
    %v5157 = vadd.f32 %v4994, %v5141
    %v5158 = vadd.f32 %v4995, %v5142
    %v5159 = vadd.f32 %v4996, %v5143
    %v5160 = vadd.f32 %v4997, %v5144
    %v5161 = vadd.f32 %v4998, %v5145
    %5162 = vrot.lane.b32.xlu0 %v2911, 80
    %v5163 = vpop.permute.xlu0 %5162
    %5164 = vrot.lane.b32.xlu0 %v2912, 80
    %v5165 = vpop.permute.xlu0 %5164
    %5166 = vrot.lane.b32.xlu0 %v2913, 80
    %v5167 = vpop.permute.xlu0 %5166
    %5168 = vrot.lane.b32.xlu0 %v2914, 80
    %v5169 = vpop.permute.xlu0 %5168
    %5170 = vrot.lane.b32.xlu0 %v2915, 80
    %v5171 = vpop.permute.xlu0 %5170
    %5172 = vrot.lane.b32.xlu0 %v2916, 80
    %v5173 = vpop.permute.xlu0 %5172
    %5174 = vrot.lane.b32.xlu0 %v2917, 80
    %v5175 = vpop.permute.xlu0 %5174
    %5176 = vrot.lane.b32.xlu0 %v2918, 80
    %v5177 = vpop.permute.xlu0 %5176
    %5178 = vrot.lane.b32.xlu0 %v2919, 80
    %v5179 = vpop.permute.xlu0 %5178
    %5180 = vrot.lane.b32.xlu0 %v2920, 80
    %v5181 = vpop.permute.xlu0 %5180
    %5182 = vrot.lane.b32.xlu0 %v2921, 80
    %v5183 = vpop.permute.xlu0 %5182
    %5184 = vrot.lane.b32.xlu0 %v2922, 80
    %v5185 = vpop.permute.xlu0 %5184
    %5186 = vrot.lane.b32.xlu0 %v2923, 80
    %v5187 = vpop.permute.xlu0 %5186
    %5188 = vrot.lane.b32.xlu0 %v2924, 80
    %v5189 = vpop.permute.xlu0 %5188
    %5190 = vrot.lane.b32.xlu0 %v2925, 80
    %v5191 = vpop.permute.xlu0 %5190
    %5192 = vrot.lane.b32.xlu0 %v2926, 80
    %v5193 = vpop.permute.xlu0 %5192
    %vm5194 = vcmask 654336
    %v5195 = vsel %vm5194, %v5163, %v5165
    %v5196 = vsel %vm5194, %v5167, %v5169
    %v5197 = vsel %vm5194, %v5171, %v5173
    %v5198 = vsel %vm5194, %v5175, %v5177
    %v5199 = vsel %vm5194, %v5179, %v5181
    %v5200 = vsel %vm5194, %v5183, %v5185
    %v5201 = vsel %vm5194, %v5187, %v5189
    %v5202 = vsel %vm5194, %v5191, %v5193
    %v5227 = vsel %vm5194, %v5165, %v5163
    %v5228 = vsel %vm5194, %v5169, %v5167
    %v5229 = vsel %vm5194, %v5173, %v5171
    %v5230 = vsel %vm5194, %v5177, %v5175
    %v5231 = vsel %vm5194, %v5181, %v5179
    %v5232 = vsel %vm5194, %v5185, %v5183
    %v5233 = vsel %vm5194, %v5189, %v5187
    %v5234 = vsel %vm5194, %v5193, %v5191
    %s5235 = scalar_lea.vmem [#allocation5], 112
    %v5236 = vld [vmem:[%s5235] ss:$8 sm:$0x3]
    %v5238 = vlaneseq
    %v5239 = vshrl.u32 %v5238, 7
    %v5240 = vsub.s32 0, %v5239
    %v5241 = vrot.slane %v5236, %v5240
    %v5242 = vlaneseq
    %v5243 = vshrl.u32 %v5242, 7
    %v5244 = vsub.s32 1, %v5243
    %v5245 = vrot.slane %v5236, %v5244
    %v5248 = vmul.f32 %v5241, %v5195
    %v5249 = vmul.f32 %v5245, %v5227
    %v5250 = vmul.f32 %v5241, %v5196
    %v5251 = vmul.f32 %v5245, %v5228
    %v5252 = vmul.f32 %v5241, %v5197
    %v5253 = vmul.f32 %v5245, %v5229
    %v5254 = vmul.f32 %v5241, %v5198
    %v5255 = vmul.f32 %v5245, %v5230
    %v5256 = vmul.f32 %v5241, %v5199
    %v5257 = vmul.f32 %v5245, %v5231
    %v5258 = vmul.f32 %v5241, %v5200
    %v5259 = vmul.f32 %v5245, %v5232
    %v5260 = vmul.f32 %v5241, %v5201
    %v5261 = vmul.f32 %v5245, %v5233
    %v5262 = vmul.f32 %v5241, %v5202
    %v5263 = vmul.f32 %v5245, %v5234
    %v5264 = vadd.f32 %v5146, %v5248
    %v5265 = vadd.f32 %v5147, %v5249
    %v5266 = vadd.f32 %v5148, %v5250
    %v5267 = vadd.f32 %v5149, %v5251
    %v5268 = vadd.f32 %v5150, %v5252
    %v5269 = vadd.f32 %v5151, %v5253
    %v5270 = vadd.f32 %v5152, %v5254
    %v5271 = vadd.f32 %v5153, %v5255
    %v5272 = vadd.f32 %v5154, %v5256
    %v5273 = vadd.f32 %v5155, %v5257
    %v5274 = vadd.f32 %v5156, %v5258
    %v5275 = vadd.f32 %v5157, %v5259
    %v5276 = vadd.f32 %v5158, %v5260
    %v5277 = vadd.f32 %v5159, %v5261
    %v5278 = vadd.f32 %v5160, %v5262
    %v5279 = vadd.f32 %v5161, %v5263
    %5280 = vrot.lane.b32.xlu0 %v2911, 72
    %v5281 = vpop.permute.xlu0 %5280
    %5282 = vrot.lane.b32.xlu0 %v2912, 72
    %v5283 = vpop.permute.xlu0 %5282
    %5284 = vrot.lane.b32.xlu0 %v2913, 72
    %v5285 = vpop.permute.xlu0 %5284
    %5286 = vrot.lane.b32.xlu0 %v2914, 72
    %v5287 = vpop.permute.xlu0 %5286
    %5288 = vrot.lane.b32.xlu0 %v2915, 72
    %v5289 = vpop.permute.xlu0 %5288
    %5290 = vrot.lane.b32.xlu0 %v2916, 72
    %v5291 = vpop.permute.xlu0 %5290
    %5292 = vrot.lane.b32.xlu0 %v2917, 72
    %v5293 = vpop.permute.xlu0 %5292
    %5294 = vrot.lane.b32.xlu0 %v2918, 72
    %v5295 = vpop.permute.xlu0 %5294
    %5296 = vrot.lane.b32.xlu0 %v2919, 72
    %v5297 = vpop.permute.xlu0 %5296
    %5298 = vrot.lane.b32.xlu0 %v2920, 72
    %v5299 = vpop.permute.xlu0 %5298
    %5300 = vrot.lane.b32.xlu0 %v2921, 72
    %v5301 = vpop.permute.xlu0 %5300
    %5302 = vrot.lane.b32.xlu0 %v2922, 72
    %v5303 = vpop.permute.xlu0 %5302
    %5304 = vrot.lane.b32.xlu0 %v2923, 72
    %v5305 = vpop.permute.xlu0 %5304
    %5306 = vrot.lane.b32.xlu0 %v2924, 72
    %v5307 = vpop.permute.xlu0 %5306
    %5308 = vrot.lane.b32.xlu0 %v2925, 72
    %v5309 = vpop.permute.xlu0 %5308
    %5310 = vrot.lane.b32.xlu0 %v2926, 72
    %v5311 = vpop.permute.xlu0 %5310
    %vm5312 = vcmask 588800
    %v5313 = vsel %vm5312, %v5281, %v5283
    %v5314 = vsel %vm5312, %v5285, %v5287
    %v5315 = vsel %vm5312, %v5289, %v5291
    %v5316 = vsel %vm5312, %v5293, %v5295
    %v5317 = vsel %vm5312, %v5297, %v5299
    %v5318 = vsel %vm5312, %v5301, %v5303
    %v5319 = vsel %vm5312, %v5305, %v5307
    %v5320 = vsel %vm5312, %v5309, %v5311
    %v5345 = vsel %vm5312, %v5283, %v5281
    %v5346 = vsel %vm5312, %v5287, %v5285
    %v5347 = vsel %vm5312, %v5291, %v5289
    %v5348 = vsel %vm5312, %v5295, %v5293
    %v5349 = vsel %vm5312, %v5299, %v5297
    %v5350 = vsel %vm5312, %v5303, %v5301
    %v5351 = vsel %vm5312, %v5307, %v5305
    %v5352 = vsel %vm5312, %v5311, %v5309
    %s5353 = scalar_lea.vmem [#allocation5], 113
    %v5354 = vld [vmem:[%s5353] ss:$8 sm:$0x3]
    %v5356 = vlaneseq
    %v5357 = vshrl.u32 %v5356, 7
    %v5358 = vsub.s32 0, %v5357
    %v5359 = vrot.slane %v5354, %v5358
    %v5360 = vlaneseq
    %v5361 = vshrl.u32 %v5360, 7
    %v5362 = vsub.s32 1, %v5361
    %v5363 = vrot.slane %v5354, %v5362
    %v5366 = vmul.f32 %v5359, %v5313
    %v5367 = vmul.f32 %v5363, %v5345
    %v5368 = vmul.f32 %v5359, %v5314
    %v5369 = vmul.f32 %v5363, %v5346
    %v5370 = vmul.f32 %v5359, %v5315
    %v5371 = vmul.f32 %v5363, %v5347
    %v5372 = vmul.f32 %v5359, %v5316
    %v5373 = vmul.f32 %v5363, %v5348
    %v5374 = vmul.f32 %v5359, %v5317
    %v5375 = vmul.f32 %v5363, %v5349
    %v5376 = vmul.f32 %v5359, %v5318
    %v5377 = vmul.f32 %v5363, %v5350
    %v5378 = vmul.f32 %v5359, %v5319
    %v5379 = vmul.f32 %v5363, %v5351
    %v5380 = vmul.f32 %v5359, %v5320
    %v5381 = vmul.f32 %v5363, %v5352
    %v5382 = vadd.f32 %v5264, %v5366
    %v5383 = vadd.f32 %v5265, %v5367
    %v5384 = vadd.f32 %v5266, %v5368
    %v5385 = vadd.f32 %v5267, %v5369
    %v5386 = vadd.f32 %v5268, %v5370
    %v5387 = vadd.f32 %v5269, %v5371
    %v5388 = vadd.f32 %v5270, %v5372
    %v5389 = vadd.f32 %v5271, %v5373
    %v5390 = vadd.f32 %v5272, %v5374
    %v5391 = vadd.f32 %v5273, %v5375
    %v5392 = vadd.f32 %v5274, %v5376
    %v5393 = vadd.f32 %v5275, %v5377
    %v5394 = vadd.f32 %v5276, %v5378
    %v5395 = vadd.f32 %v5277, %v5379
    %v5396 = vadd.f32 %v5278, %v5380
    %v5397 = vadd.f32 %v5279, %v5381
    %s5398 = scalar_lea.vmem [#allocation7], 1
    %v5399 = vld [vmem:[%s5398] ss:$8 sm:$0x3]
    %v5401 = vlaneseq
    %v5402 = vshrl.u32 %v5401, 7
    %v5403 = vsub.s32 0, %v5402
    %v5404 = vrot.slane %v5399, %v5403
    %v5405 = vlaneseq
    %v5406 = vshrl.u32 %v5405, 7
    %v5407 = vsub.s32 1, %v5406
    %v5408 = vrot.slane %v5399, %v5407
    %v5411 = vadd.f32 %v4730, %v5404
    %v5412 = vadd.f32 %v4731, %v5408
    %v5413 = vadd.f32 %v4732, %v5404
    %v5414 = vadd.f32 %v4733, %v5408
    %v5415 = vadd.f32 %v4734, %v5404
    %v5416 = vadd.f32 %v4735, %v5408
    %v5417 = vadd.f32 %v4736, %v5404
    %v5418 = vadd.f32 %v4737, %v5408
    %v5419 = vadd.f32 %v4738, %v5404
    %v5420 = vadd.f32 %v4739, %v5408
    %v5421 = vadd.f32 %v4740, %v5404
    %v5422 = vadd.f32 %v4741, %v5408
    %v5423 = vadd.f32 %v4742, %v5404
    %v5424 = vadd.f32 %v4743, %v5408
    %v5425 = vadd.f32 %v4744, %v5404
    %v5426 = vadd.f32 %v4745, %v5408
    %v5427 = vmul.f32 %v5411, %v87
    %v5428 = vmul.f32 %v5412, %v88
    %v5429 = vmul.f32 %v5413, %v89
    %v5430 = vmul.f32 %v5414, %v90
    %v5431 = vmul.f32 %v5415, %v91
    %v5432 = vmul.f32 %v5416, %v92
    %v5433 = vmul.f32 %v5417, %v93
    %v5434 = vmul.f32 %v5418, %v94
    %v5435 = vmul.f32 %v5419, %v95
    %v5436 = vmul.f32 %v5420, %v96
    %v5437 = vmul.f32 %v5421, %v97
    %v5438 = vmul.f32 %v5422, %v98
    %v5439 = vmul.f32 %v5423, %v99
    %v5440 = vmul.f32 %v5424, %v100
    %v5441 = vmul.f32 %v5425, %v101
    %v5442 = vmul.f32 %v5426, %v102
    %s5443 = scalar_lea.vmem [#allocation7], 3
    %v5444 = vld [vmem:[%s5443] ss:$8 sm:$0x3]
    %v5446 = vlaneseq
    %v5447 = vshrl.u32 %v5446, 7
    %v5448 = vsub.s32 0, %v5447
    %v5449 = vrot.slane %v5444, %v5448
    %v5450 = vlaneseq
    %v5451 = vshrl.u32 %v5450, 7
    %v5452 = vsub.s32 1, %v5451
    %v5453 = vrot.slane %v5444, %v5452
    %v5456 = vadd.f32 %v5101, %v5449
    %v5457 = vadd.f32 %v5102, %v5453
    %v5458 = vadd.f32 %v5103, %v5449
    %v5459 = vadd.f32 %v5104, %v5453
    %v5460 = vadd.f32 %v5105, %v5449
    %v5461 = vadd.f32 %v5106, %v5453
    %v5462 = vadd.f32 %v5107, %v5449
    %v5463 = vadd.f32 %v5108, %v5453
    %v5464 = vadd.f32 %v5109, %v5449
    %v5465 = vadd.f32 %v5110, %v5453
    %v5466 = vadd.f32 %v5111, %v5449
    %v5467 = vadd.f32 %v5112, %v5453
    %v5468 = vadd.f32 %v5113, %v5449
    %v5469 = vadd.f32 %v5114, %v5453
    %v5470 = vadd.f32 %v5115, %v5449
    %v5471 = vadd.f32 %v5116, %v5453
    %v5472 = vmul.f32 %v5456, %v87
    %v5473 = vmul.f32 %v5457, %v88
    %v5474 = vmul.f32 %v5458, %v89
    %v5475 = vmul.f32 %v5459, %v90
    %v5476 = vmul.f32 %v5460, %v91
    %v5477 = vmul.f32 %v5461, %v92
    %v5478 = vmul.f32 %v5462, %v93
    %v5479 = vmul.f32 %v5463, %v94
    %v5480 = vmul.f32 %v5464, %v95
    %v5481 = vmul.f32 %v5465, %v96
    %v5482 = vmul.f32 %v5466, %v97
    %v5483 = vmul.f32 %v5467, %v98
    %v5484 = vmul.f32 %v5468, %v99
    %v5485 = vmul.f32 %v5469, %v100
    %v5486 = vmul.f32 %v5470, %v101
    %v5487 = vmul.f32 %v5471, %v102
    %s5488 = scalar_lea.vmem [#allocation7], 5
    %v5489 = vld [vmem:[%s5488] ss:$8 sm:$0x3]
    %v5491 = vlaneseq
    %v5492 = vshrl.u32 %v5491, 7
    %v5493 = vsub.s32 0, %v5492
    %v5494 = vrot.slane %v5489, %v5493
    %v5495 = vlaneseq
    %v5496 = vshrl.u32 %v5495, 7
    %v5497 = vsub.s32 1, %v5496
    %v5498 = vrot.slane %v5489, %v5497
    %v5501 = vadd.f32 %v5382, %v5494
    %v5502 = vadd.f32 %v5383, %v5498
    %v5503 = vadd.f32 %v5384, %v5494
    %v5504 = vadd.f32 %v5385, %v5498
    %v5505 = vadd.f32 %v5386, %v5494
    %v5506 = vadd.f32 %v5387, %v5498
    %v5507 = vadd.f32 %v5388, %v5494
    %v5508 = vadd.f32 %v5389, %v5498
    %v5509 = vadd.f32 %v5390, %v5494
    %v5510 = vadd.f32 %v5391, %v5498
    %v5511 = vadd.f32 %v5392, %v5494
    %v5512 = vadd.f32 %v5393, %v5498
    %v5513 = vadd.f32 %v5394, %v5494
    %v5514 = vadd.f32 %v5395, %v5498
    %v5515 = vadd.f32 %v5396, %v5494
    %v5516 = vadd.f32 %v5397, %v5498
    %v5517 = vmul.f32 %v5501, %v87
    %v5518 = vmul.f32 %v5502, %v88
    %v5519 = vmul.f32 %v5503, %v89
    %v5520 = vmul.f32 %v5504, %v90
    %v5521 = vmul.f32 %v5505, %v91
    %v5522 = vmul.f32 %v5506, %v92
    %v5523 = vmul.f32 %v5507, %v93
    %v5524 = vmul.f32 %v5508, %v94
    %v5525 = vmul.f32 %v5509, %v95
    %v5526 = vmul.f32 %v5510, %v96
    %v5527 = vmul.f32 %v5511, %v97
    %v5528 = vmul.f32 %v5512, %v98
    %v5529 = vmul.f32 %v5513, %v99
    %v5530 = vmul.f32 %v5514, %v100
    %v5531 = vmul.f32 %v5515, %v101
    %v5532 = vmul.f32 %v5516, %v102
    %s5533 = scalar_lea.vmem [#allocation5], 114
    %v5534 = vld [vmem:[%s5533] ss:$8 sm:$0x3]
    %vm5547 = vcmask 1042432
    %v5548 = vrot.slane %v5427, 5
    %v5549 = vrot.slane %v5429, 5
    %v5550 = vsel %vm5547, %v5548, %v5549
    %v5551 = vrot.slane %v5428, 5
    %v5552 = vrot.slane %v5430, 5
    %v5553 = vsel %vm5547, %v5551, %v5552
    %v5554 = vrot.slane %v5431, 5
    %v5555 = vsel %vm5547, %v5549, %v5554
    %v5556 = vrot.slane %v5432, 5
    %v5557 = vsel %vm5547, %v5552, %v5556
    %v5558 = vrot.slane %v5435, 5
    %v5559 = vrot.slane %v5437, 5
    %v5560 = vsel %vm5547, %v5558, %v5559
    %v5561 = vrot.slane %v5436, 5
    %v5562 = vrot.slane %v5438, 5
    %v5563 = vsel %vm5547, %v5561, %v5562
    %v5564 = vrot.slane %v5439, 5
    %v5565 = vsel %vm5547, %v5559, %v5564
    %v5566 = vrot.slane %v5440, 5
    %v5567 = vsel %vm5547, %v5562, %v5566
    %v5577 = vlaneseq
    %v5578 = vshrl.u32 %v5577, 7
    %v5579 = vsub.s32 0, %v5578
    %v5580 = vrot.slane %v5534, %v5579
    %v5581 = vlaneseq
    %v5582 = vshrl.u32 %v5581, 7
    %v5583 = vsub.s32 1, %v5582
    %v5584 = vrot.slane %v5534, %v5583
    %v5587 = vmul.f32 %v5580, %v5550
    %v5588 = vmul.f32 %v5584, %v5553
    %v5589 = vmul.f32 %v5580, %v5555
    %v5590 = vmul.f32 %v5584, %v5557
    %v5591 = vmul.f32 %v5580, %v5560
    %v5592 = vmul.f32 %v5584, %v5563
    %v5593 = vmul.f32 %v5580, %v5565
    %v5594 = vmul.f32 %v5584, %v5567
    %s5595 = scalar_lea.vmem [#allocation5], 115
    %v5596 = vld [vmem:[%s5595] ss:$8 sm:$0x3]
    %v5597 = vrot.slane %v5427, 6
    %v5598 = vrot.slane %v5429, 6
    %v5599 = vsel %vm123, %v5597, %v5598
    %v5600 = vrot.slane %v5428, 6
    %v5601 = vrot.slane %v5430, 6
    %v5602 = vsel %vm123, %v5600, %v5601
    %v5603 = vrot.slane %v5431, 6
    %v5604 = vsel %vm123, %v5598, %v5603
    %v5605 = vrot.slane %v5432, 6
    %v5606 = vsel %vm123, %v5601, %v5605
    %v5607 = vrot.slane %v5435, 6
    %v5608 = vrot.slane %v5437, 6
    %v5609 = vsel %vm123, %v5607, %v5608
    %v5610 = vrot.slane %v5436, 6
    %v5611 = vrot.slane %v5438, 6
    %v5612 = vsel %vm123, %v5610, %v5611
    %v5613 = vrot.slane %v5439, 6
    %v5614 = vsel %vm123, %v5608, %v5613
    %v5615 = vrot.slane %v5440, 6
    %v5616 = vsel %vm123, %v5611, %v5615
    %v5626 = vlaneseq
    %v5627 = vshrl.u32 %v5626, 7
    %v5628 = vsub.s32 0, %v5627
    %v5629 = vrot.slane %v5596, %v5628
    %v5630 = vlaneseq
    %v5631 = vshrl.u32 %v5630, 7
    %v5632 = vsub.s32 1, %v5631
    %v5633 = vrot.slane %v5596, %v5632
    %v5636 = vmul.f32 %v5629, %v5599
    %v5637 = vmul.f32 %v5633, %v5602
    %v5638 = vmul.f32 %v5629, %v5604
    %v5639 = vmul.f32 %v5633, %v5606
    %v5640 = vmul.f32 %v5629, %v5609
    %v5641 = vmul.f32 %v5633, %v5612
    %v5642 = vmul.f32 %v5629, %v5614
    %v5643 = vmul.f32 %v5633, %v5616
    %v5644 = vadd.f32 %v5587, %v5636
    %v5645 = vadd.f32 %v5588, %v5637
    %v5646 = vadd.f32 %v5589, %v5638
    %v5647 = vadd.f32 %v5590, %v5639
    %v5648 = vadd.f32 %v5591, %v5640
    %v5649 = vadd.f32 %v5592, %v5641
    %v5650 = vadd.f32 %v5593, %v5642
    %v5651 = vadd.f32 %v5594, %v5643
    %s5652 = scalar_lea.vmem [#allocation5], 116
    %v5653 = vld [vmem:[%s5652] ss:$8 sm:$0x3]
    %v5654 = vrot.slane %v5427, 7
    %v5655 = vrot.slane %v5429, 7
    %v5656 = vsel %vm676, %v5654, %v5655
    %v5657 = vrot.slane %v5428, 7
    %v5658 = vrot.slane %v5430, 7
    %v5659 = vsel %vm676, %v5657, %v5658
    %v5660 = vrot.slane %v5431, 7
    %v5661 = vsel %vm676, %v5655, %v5660
    %v5662 = vrot.slane %v5432, 7
    %v5663 = vsel %vm676, %v5658, %v5662
    %v5664 = vrot.slane %v5435, 7
    %v5665 = vrot.slane %v5437, 7
    %v5666 = vsel %vm676, %v5664, %v5665
    %v5667 = vrot.slane %v5436, 7
    %v5668 = vrot.slane %v5438, 7
    %v5669 = vsel %vm676, %v5667, %v5668
    %v5670 = vrot.slane %v5439, 7
    %v5671 = vsel %vm676, %v5665, %v5670
    %v5672 = vrot.slane %v5440, 7
    %v5673 = vsel %vm676, %v5668, %v5672
    %v5683 = vlaneseq
    %v5684 = vshrl.u32 %v5683, 7
    %v5685 = vsub.s32 0, %v5684
    %v5686 = vrot.slane %v5653, %v5685
    %v5687 = vlaneseq
    %v5688 = vshrl.u32 %v5687, 7
    %v5689 = vsub.s32 1, %v5688
    %v5690 = vrot.slane %v5653, %v5689
    %v5693 = vmul.f32 %v5686, %v5656
    %v5694 = vmul.f32 %v5690, %v5659
    %v5695 = vmul.f32 %v5686, %v5661
    %v5696 = vmul.f32 %v5690, %v5663
    %v5697 = vmul.f32 %v5686, %v5666
    %v5698 = vmul.f32 %v5690, %v5669
    %v5699 = vmul.f32 %v5686, %v5671
    %v5700 = vmul.f32 %v5690, %v5673
    %v5701 = vadd.f32 %v5644, %v5693
    %v5702 = vadd.f32 %v5645, %v5694
    %v5703 = vadd.f32 %v5646, %v5695
    %v5704 = vadd.f32 %v5647, %v5696
    %v5705 = vadd.f32 %v5648, %v5697
    %v5706 = vadd.f32 %v5649, %v5698
    %v5707 = vadd.f32 %v5650, %v5699
    %v5708 = vadd.f32 %v5651, %v5700
    %s5709 = scalar_lea.vmem [#allocation5], 117
    %v5710 = vld [vmem:[%s5709] ss:$8 sm:$0x3]
    %v5712 = vlaneseq
    %v5713 = vshrl.u32 %v5712, 7
    %v5714 = vsub.s32 0, %v5713
    %v5715 = vrot.slane %v5710, %v5714
    %v5716 = vlaneseq
    %v5717 = vshrl.u32 %v5716, 7
    %v5718 = vsub.s32 1, %v5717
    %v5719 = vrot.slane %v5710, %v5718
    %v5722 = vmul.f32 %v5715, %v5429
    %v5723 = vmul.f32 %v5719, %v5430
    %v5724 = vmul.f32 %v5715, %v5431
    %v5725 = vmul.f32 %v5719, %v5432
    %v5726 = vmul.f32 %v5715, %v5437
    %v5727 = vmul.f32 %v5719, %v5438
    %v5728 = vmul.f32 %v5715, %v5439
    %v5729 = vmul.f32 %v5719, %v5440
    %v5730 = vadd.f32 %v5701, %v5722
    %v5731 = vadd.f32 %v5702, %v5723
    %v5732 = vadd.f32 %v5703, %v5724
    %v5733 = vadd.f32 %v5704, %v5725
    %v5734 = vadd.f32 %v5705, %v5726
    %v5735 = vadd.f32 %v5706, %v5727
    %v5736 = vadd.f32 %v5707, %v5728
    %v5737 = vadd.f32 %v5708, %v5729
    %s5738 = scalar_lea.vmem [#allocation5], 118
    %v5739 = vld [vmem:[%s5738] ss:$8 sm:$0x3]
    %v5744 = vrot.slane %v5429, 1
    %v5745 = vrot.slane %v5431, 1
    %v5746 = vsel %vm1751, %v5744, %v5745
    %v5747 = vrot.slane %v5430, 1
    %v5748 = vrot.slane %v5432, 1
    %v5749 = vsel %vm1751, %v5747, %v5748
    %v5750 = vrot.slane %v5433, 1
    %v5751 = vsel %vm1751, %v5745, %v5750
    %v5752 = vrot.slane %v5434, 1
    %v5753 = vsel %vm1751, %v5748, %v5752
    %v5754 = vrot.slane %v5437, 1
    %v5755 = vrot.slane %v5439, 1
    %v5756 = vsel %vm1751, %v5754, %v5755
    %v5757 = vrot.slane %v5438, 1
    %v5758 = vrot.slane %v5440, 1
    %v5759 = vsel %vm1751, %v5757, %v5758
    %v5760 = vrot.slane %v5441, 1
    %v5761 = vsel %vm1751, %v5755, %v5760
    %v5762 = vrot.slane %v5442, 1
    %v5763 = vsel %vm1751, %v5758, %v5762
    %v5773 = vlaneseq
    %v5774 = vshrl.u32 %v5773, 7
    %v5775 = vsub.s32 0, %v5774
    %v5776 = vrot.slane %v5739, %v5775
    %v5777 = vlaneseq
    %v5778 = vshrl.u32 %v5777, 7
    %v5779 = vsub.s32 1, %v5778
    %v5780 = vrot.slane %v5739, %v5779
    %v5783 = vmul.f32 %v5776, %v5746
    %v5784 = vmul.f32 %v5780, %v5749
    %v5785 = vmul.f32 %v5776, %v5751
    %v5786 = vmul.f32 %v5780, %v5753
    %v5787 = vmul.f32 %v5776, %v5756
    %v5788 = vmul.f32 %v5780, %v5759
    %v5789 = vmul.f32 %v5776, %v5761
    %v5790 = vmul.f32 %v5780, %v5763
    %v5791 = vadd.f32 %v5730, %v5783
    %v5792 = vadd.f32 %v5731, %v5784
    %v5793 = vadd.f32 %v5732, %v5785
    %v5794 = vadd.f32 %v5733, %v5786
    %v5795 = vadd.f32 %v5734, %v5787
    %v5796 = vadd.f32 %v5735, %v5788
    %v5797 = vadd.f32 %v5736, %v5789
    %v5798 = vadd.f32 %v5737, %v5790
    %s5799 = scalar_lea.vmem [#allocation5], 119
    %v5800 = vld [vmem:[%s5799] ss:$8 sm:$0x3]
    %v5801 = vrot.slane %v5429, 2
    %v5802 = vrot.slane %v5431, 2
    %v5803 = vsel %vm2317, %v5801, %v5802
    %v5804 = vrot.slane %v5430, 2
    %v5805 = vrot.slane %v5432, 2
    %v5806 = vsel %vm2317, %v5804, %v5805
    %v5807 = vrot.slane %v5433, 2
    %v5808 = vsel %vm2317, %v5802, %v5807
    %v5809 = vrot.slane %v5434, 2
    %v5810 = vsel %vm2317, %v5805, %v5809
    %v5811 = vrot.slane %v5437, 2
    %v5812 = vrot.slane %v5439, 2
    %v5813 = vsel %vm2317, %v5811, %v5812
    %v5814 = vrot.slane %v5438, 2
    %v5815 = vrot.slane %v5440, 2
    %v5816 = vsel %vm2317, %v5814, %v5815
    %v5817 = vrot.slane %v5441, 2
    %v5818 = vsel %vm2317, %v5812, %v5817
    %v5819 = vrot.slane %v5442, 2
    %v5820 = vsel %vm2317, %v5815, %v5819
    %v5830 = vlaneseq
    %v5831 = vshrl.u32 %v5830, 7
    %v5832 = vsub.s32 0, %v5831
    %v5833 = vrot.slane %v5800, %v5832
    %v5834 = vlaneseq
    %v5835 = vshrl.u32 %v5834, 7
    %v5836 = vsub.s32 1, %v5835
    %v5837 = vrot.slane %v5800, %v5836
    %v5840 = vmul.f32 %v5833, %v5803
    %v5841 = vmul.f32 %v5837, %v5806
    %v5842 = vmul.f32 %v5833, %v5808
    %v5843 = vmul.f32 %v5837, %v5810
    %v5844 = vmul.f32 %v5833, %v5813
    %v5845 = vmul.f32 %v5837, %v5816
    %v5846 = vmul.f32 %v5833, %v5818
    %v5847 = vmul.f32 %v5837, %v5820
    %v5848 = vadd.f32 %v5791, %v5840
    %v5849 = vadd.f32 %v5792, %v5841
    %v5850 = vadd.f32 %v5793, %v5842
    %v5851 = vadd.f32 %v5794, %v5843
    %v5852 = vadd.f32 %v5795, %v5844
    %v5853 = vadd.f32 %v5796, %v5845
    %v5854 = vadd.f32 %v5797, %v5846
    %v5855 = vadd.f32 %v5798, %v5847
    %s5856 = scalar_lea.vmem [#allocation5], 128
    %v5857 = vld [vmem:[%s5856] ss:$8 sm:$0x3]
    %vm5858 = vcmask 1044480
    %v5859 = vrot.slane %v5429, 3
    %v5860 = vrot.slane %v5431, 3
    %v5861 = vsel %vm5858, %v5859, %v5860
    %v5862 = vrot.slane %v5430, 3
    %v5863 = vrot.slane %v5432, 3
    %v5864 = vsel %vm5858, %v5862, %v5863
    %v5865 = vrot.slane %v5433, 3
    %v5866 = vsel %vm5858, %v5860, %v5865
    %v5867 = vrot.slane %v5434, 3
    %v5868 = vsel %vm5858, %v5863, %v5867
    %v5869 = vrot.slane %v5437, 3
    %v5870 = vrot.slane %v5439, 3
    %v5871 = vsel %vm5858, %v5869, %v5870
    %v5872 = vrot.slane %v5438, 3
    %v5873 = vrot.slane %v5440, 3
    %v5874 = vsel %vm5858, %v5872, %v5873
    %v5875 = vrot.slane %v5441, 3
    %v5876 = vsel %vm5858, %v5870, %v5875
    %v5877 = vrot.slane %v5442, 3
    %v5878 = vsel %vm5858, %v5873, %v5877
    %v5888 = vlaneseq
    %v5889 = vshrl.u32 %v5888, 7
    %v5890 = vsub.s32 0, %v5889
    %v5891 = vrot.slane %v5857, %v5890
    %v5892 = vlaneseq
    %v5893 = vshrl.u32 %v5892, 7
    %v5894 = vsub.s32 1, %v5893
    %v5895 = vrot.slane %v5857, %v5894
    %v5898 = vmul.f32 %v5891, %v5861
    %v5899 = vmul.f32 %v5895, %v5864
    %v5900 = vmul.f32 %v5891, %v5866
    %v5901 = vmul.f32 %v5895, %v5868
    %v5902 = vmul.f32 %v5891, %v5871
    %v5903 = vmul.f32 %v5895, %v5874
    %v5904 = vmul.f32 %v5891, %v5876
    %v5905 = vmul.f32 %v5895, %v5878
    %v5906 = vadd.f32 %v5848, %v5898
    %v5907 = vadd.f32 %v5849, %v5899
    %v5908 = vadd.f32 %v5850, %v5900
    %v5909 = vadd.f32 %v5851, %v5901
    %v5910 = vadd.f32 %v5852, %v5902
    %v5911 = vadd.f32 %v5853, %v5903
    %v5912 = vadd.f32 %v5854, %v5904
    %v5913 = vadd.f32 %v5855, %v5905
    %s5914 = scalar_lea.vmem [#allocation7], 2
    %v5915 = vld [vmem:[%s5914] ss:$8 sm:$0x3]
    %v5917 = vlaneseq
    %v5918 = vshrl.u32 %v5917, 7
    %v5919 = vsub.s32 0, %v5918
    %v5920 = vrot.slane %v5915, %v5919
    %v5921 = vlaneseq
    %v5922 = vshrl.u32 %v5921, 7
    %v5923 = vsub.s32 1, %v5922
    %v5924 = vrot.slane %v5915, %v5923
    %v5927 = vadd.f32 %v5906, %v5920
    %v5928 = vadd.f32 %v5907, %v5924
    %v5929 = vadd.f32 %v5908, %v5920
    %v5930 = vadd.f32 %v5909, %v5924
    %v5931 = vadd.f32 %v5910, %v5920
    %v5932 = vadd.f32 %v5911, %v5924
    %v5933 = vadd.f32 %v5912, %v5920
    %v5934 = vadd.f32 %v5913, %v5924
    %v5935 = vadd.f32 %v2913, %v5927
    %v5936 = vadd.f32 %v2914, %v5928
    %v5937 = vadd.f32 %v2915, %v5929
    %v5938 = vadd.f32 %v2916, %v5930
    %v5939 = vadd.f32 %v2921, %v5931
    %v5940 = vadd.f32 %v2922, %v5932
    %v5941 = vadd.f32 %v2923, %v5933
    %v5942 = vadd.f32 %v2924, %v5934
    %s5943 = scalar_lea.vmem [#allocation5], 129
    %v5944 = vld [vmem:[%s5943] ss:$8 sm:$0x3]
    %v5957 = vrot.slane %v5472, 3
    %v5958 = vrot.slane %v5474, 3
    %v5959 = vsel %vm5858, %v5957, %v5958
    %v5960 = vrot.slane %v5473, 3
    %v5961 = vrot.slane %v5475, 3
    %v5962 = vsel %vm5858, %v5960, %v5961
    %v5963 = vrot.slane %v5476, 3
    %v5964 = vsel %vm5858, %v5958, %v5963
    %v5965 = vrot.slane %v5477, 3
    %v5966 = vsel %vm5858, %v5961, %v5965
    %v5967 = vrot.slane %v5480, 3
    %v5968 = vrot.slane %v5482, 3
    %v5969 = vsel %vm5858, %v5967, %v5968
    %v5970 = vrot.slane %v5481, 3
    %v5971 = vrot.slane %v5483, 3
    %v5972 = vsel %vm5858, %v5970, %v5971
    %v5973 = vrot.slane %v5484, 3
    %v5974 = vsel %vm5858, %v5968, %v5973
    %v5975 = vrot.slane %v5485, 3
    %v5976 = vsel %vm5858, %v5971, %v5975
    %v5986 = vlaneseq
    %v5987 = vshrl.u32 %v5986, 7
    %v5988 = vsub.s32 0, %v5987
    %v5989 = vrot.slane %v5944, %v5988
    %v5990 = vlaneseq
    %v5991 = vshrl.u32 %v5990, 7
    %v5992 = vsub.s32 1, %v5991
    %v5993 = vrot.slane %v5944, %v5992
    %v5996 = vmul.f32 %v5989, %v5959
    %v5997 = vmul.f32 %v5993, %v5962
    %v5998 = vmul.f32 %v5989, %v5964
    %v5999 = vmul.f32 %v5993, %v5966
    %v6000 = vmul.f32 %v5989, %v5969
    %v6001 = vmul.f32 %v5993, %v5972
    %v6002 = vmul.f32 %v5989, %v5974
    %v6003 = vmul.f32 %v5993, %v5976
    %s6004 = scalar_lea.vmem [#allocation5], 130
    %v6005 = vld [vmem:[%s6004] ss:$8 sm:$0x3]
    %vm6006 = vcmask 1043456
    %v6007 = vrot.slane %v5472, 4
    %v6008 = vrot.slane %v5474, 4
    %v6009 = vsel %vm6006, %v6007, %v6008
    %v6010 = vrot.slane %v5473, 4
    %v6011 = vrot.slane %v5475, 4
    %v6012 = vsel %vm6006, %v6010, %v6011
    %v6013 = vrot.slane %v5476, 4
    %v6014 = vsel %vm6006, %v6008, %v6013
    %v6015 = vrot.slane %v5477, 4
    %v6016 = vsel %vm6006, %v6011, %v6015
    %v6017 = vrot.slane %v5480, 4
    %v6018 = vrot.slane %v5482, 4
    %v6019 = vsel %vm6006, %v6017, %v6018
    %v6020 = vrot.slane %v5481, 4
    %v6021 = vrot.slane %v5483, 4
    %v6022 = vsel %vm6006, %v6020, %v6021
    %v6023 = vrot.slane %v5484, 4
    %v6024 = vsel %vm6006, %v6018, %v6023
    %v6025 = vrot.slane %v5485, 4
    %v6026 = vsel %vm6006, %v6021, %v6025
    %v6036 = vlaneseq
    %v6037 = vshrl.u32 %v6036, 7
    %v6038 = vsub.s32 0, %v6037
    %v6039 = vrot.slane %v6005, %v6038
    %v6040 = vlaneseq
    %v6041 = vshrl.u32 %v6040, 7
    %v6042 = vsub.s32 1, %v6041
    %v6043 = vrot.slane %v6005, %v6042
    %v6046 = vmul.f32 %v6039, %v6009
    %v6047 = vmul.f32 %v6043, %v6012
    %v6048 = vmul.f32 %v6039, %v6014
    %v6049 = vmul.f32 %v6043, %v6016
    %v6050 = vmul.f32 %v6039, %v6019
    %v6051 = vmul.f32 %v6043, %v6022
    %v6052 = vmul.f32 %v6039, %v6024
    %v6053 = vmul.f32 %v6043, %v6026
    %v6054 = vadd.f32 %v5996, %v6046
    %v6055 = vadd.f32 %v5997, %v6047
    %v6056 = vadd.f32 %v5998, %v6048
    %v6057 = vadd.f32 %v5999, %v6049
    %v6058 = vadd.f32 %v6000, %v6050
    %v6059 = vadd.f32 %v6001, %v6051
    %v6060 = vadd.f32 %v6002, %v6052
    %v6061 = vadd.f32 %v6003, %v6053
    %s6062 = scalar_lea.vmem [#allocation5], 131
    %v6063 = vld [vmem:[%s6062] ss:$8 sm:$0x3]
    %v6064 = vrot.slane %v5472, 5
    %v6065 = vrot.slane %v5474, 5
    %v6066 = vsel %vm5547, %v6064, %v6065
    %v6067 = vrot.slane %v5473, 5
    %v6068 = vrot.slane %v5475, 5
    %v6069 = vsel %vm5547, %v6067, %v6068
    %v6070 = vrot.slane %v5476, 5
    %v6071 = vsel %vm5547, %v6065, %v6070
    %v6072 = vrot.slane %v5477, 5
    %v6073 = vsel %vm5547, %v6068, %v6072
    %v6074 = vrot.slane %v5480, 5
    %v6075 = vrot.slane %v5482, 5
    %v6076 = vsel %vm5547, %v6074, %v6075
    %v6077 = vrot.slane %v5481, 5
    %v6078 = vrot.slane %v5483, 5
    %v6079 = vsel %vm5547, %v6077, %v6078
    %v6080 = vrot.slane %v5484, 5
    %v6081 = vsel %vm5547, %v6075, %v6080
    %v6082 = vrot.slane %v5485, 5
    %v6083 = vsel %vm5547, %v6078, %v6082
    %v6093 = vlaneseq
    %v6094 = vshrl.u32 %v6093, 7
    %v6095 = vsub.s32 0, %v6094
    %v6096 = vrot.slane %v6063, %v6095
    %v6097 = vlaneseq
    %v6098 = vshrl.u32 %v6097, 7
    %v6099 = vsub.s32 1, %v6098
    %v6100 = vrot.slane %v6063, %v6099
    %v6103 = vmul.f32 %v6096, %v6066
    %v6104 = vmul.f32 %v6100, %v6069
    %v6105 = vmul.f32 %v6096, %v6071
    %v6106 = vmul.f32 %v6100, %v6073
    %v6107 = vmul.f32 %v6096, %v6076
    %v6108 = vmul.f32 %v6100, %v6079
    %v6109 = vmul.f32 %v6096, %v6081
    %v6110 = vmul.f32 %v6100, %v6083
    %v6111 = vadd.f32 %v6054, %v6103
    %v6112 = vadd.f32 %v6055, %v6104
    %v6113 = vadd.f32 %v6056, %v6105
    %v6114 = vadd.f32 %v6057, %v6106
    %v6115 = vadd.f32 %v6058, %v6107
    %v6116 = vadd.f32 %v6059, %v6108
    %v6117 = vadd.f32 %v6060, %v6109
    %v6118 = vadd.f32 %v6061, %v6110
    %s6119 = scalar_lea.vmem [#allocation5], 132
    %v6120 = vld [vmem:[%s6119] ss:$8 sm:$0x3]
    %v6121 = vrot.slane %v5472, 6
    %v6122 = vrot.slane %v5474, 6
    %v6123 = vsel %vm123, %v6121, %v6122
    %v6124 = vrot.slane %v5473, 6
    %v6125 = vrot.slane %v5475, 6
    %v6126 = vsel %vm123, %v6124, %v6125
    %v6127 = vrot.slane %v5476, 6
    %v6128 = vsel %vm123, %v6122, %v6127
    %v6129 = vrot.slane %v5477, 6
    %v6130 = vsel %vm123, %v6125, %v6129
    %v6131 = vrot.slane %v5480, 6
    %v6132 = vrot.slane %v5482, 6
    %v6133 = vsel %vm123, %v6131, %v6132
    %v6134 = vrot.slane %v5481, 6
    %v6135 = vrot.slane %v5483, 6
    %v6136 = vsel %vm123, %v6134, %v6135
    %v6137 = vrot.slane %v5484, 6
    %v6138 = vsel %vm123, %v6132, %v6137
    %v6139 = vrot.slane %v5485, 6
    %v6140 = vsel %vm123, %v6135, %v6139
    %v6150 = vlaneseq
    %v6151 = vshrl.u32 %v6150, 7
    %v6152 = vsub.s32 0, %v6151
    %v6153 = vrot.slane %v6120, %v6152
    %v6154 = vlaneseq
    %v6155 = vshrl.u32 %v6154, 7
    %v6156 = vsub.s32 1, %v6155
    %v6157 = vrot.slane %v6120, %v6156
    %v6160 = vmul.f32 %v6153, %v6123
    %v6161 = vmul.f32 %v6157, %v6126
    %v6162 = vmul.f32 %v6153, %v6128
    %v6163 = vmul.f32 %v6157, %v6130
    %v6164 = vmul.f32 %v6153, %v6133
    %v6165 = vmul.f32 %v6157, %v6136
    %v6166 = vmul.f32 %v6153, %v6138
    %v6167 = vmul.f32 %v6157, %v6140
    %v6168 = vadd.f32 %v6111, %v6160
    %v6169 = vadd.f32 %v6112, %v6161
    %v6170 = vadd.f32 %v6113, %v6162
    %v6171 = vadd.f32 %v6114, %v6163
    %v6172 = vadd.f32 %v6115, %v6164
    %v6173 = vadd.f32 %v6116, %v6165
    %v6174 = vadd.f32 %v6117, %v6166
    %v6175 = vadd.f32 %v6118, %v6167
    %s6176 = scalar_lea.vmem [#allocation5], 133
    %v6177 = vld [vmem:[%s6176] ss:$8 sm:$0x3]
    %v6178 = vrot.slane %v5472, 7
    %v6179 = vrot.slane %v5474, 7
    %v6180 = vsel %vm676, %v6178, %v6179
    %v6181 = vrot.slane %v5473, 7
    %v6182 = vrot.slane %v5475, 7
    %v6183 = vsel %vm676, %v6181, %v6182
    %v6184 = vrot.slane %v5476, 7
    %v6185 = vsel %vm676, %v6179, %v6184
    %v6186 = vrot.slane %v5477, 7
    %v6187 = vsel %vm676, %v6182, %v6186
    %v6188 = vrot.slane %v5480, 7
    %v6189 = vrot.slane %v5482, 7
    %v6190 = vsel %vm676, %v6188, %v6189
    %v6191 = vrot.slane %v5481, 7
    %v6192 = vrot.slane %v5483, 7
    %v6193 = vsel %vm676, %v6191, %v6192
    %v6194 = vrot.slane %v5484, 7
    %v6195 = vsel %vm676, %v6189, %v6194
    %v6196 = vrot.slane %v5485, 7
    %v6197 = vsel %vm676, %v6192, %v6196
    %v6207 = vlaneseq
    %v6208 = vshrl.u32 %v6207, 7
    %v6209 = vsub.s32 0, %v6208
    %v6210 = vrot.slane %v6177, %v6209
    %v6211 = vlaneseq
    %v6212 = vshrl.u32 %v6211, 7
    %v6213 = vsub.s32 1, %v6212
    %v6214 = vrot.slane %v6177, %v6213
    %v6217 = vmul.f32 %v6210, %v6180
    %v6218 = vmul.f32 %v6214, %v6183
    %v6219 = vmul.f32 %v6210, %v6185
    %v6220 = vmul.f32 %v6214, %v6187
    %v6221 = vmul.f32 %v6210, %v6190
    %v6222 = vmul.f32 %v6214, %v6193
    %v6223 = vmul.f32 %v6210, %v6195
    %v6224 = vmul.f32 %v6214, %v6197
    %v6225 = vadd.f32 %v6168, %v6217
    %v6226 = vadd.f32 %v6169, %v6218
    %v6227 = vadd.f32 %v6170, %v6219
    %v6228 = vadd.f32 %v6171, %v6220
    %v6229 = vadd.f32 %v6172, %v6221
    %v6230 = vadd.f32 %v6173, %v6222
    %v6231 = vadd.f32 %v6174, %v6223
    %v6232 = vadd.f32 %v6175, %v6224
    %s6233 = scalar_lea.vmem [#allocation5], 134
    %v6234 = vld [vmem:[%s6233] ss:$8 sm:$0x3]
    %v6236 = vlaneseq
    %v6237 = vshrl.u32 %v6236, 7
    %v6238 = vsub.s32 0, %v6237
    %v6239 = vrot.slane %v6234, %v6238
    %v6240 = vlaneseq
    %v6241 = vshrl.u32 %v6240, 7
    %v6242 = vsub.s32 1, %v6241
    %v6243 = vrot.slane %v6234, %v6242
    %v6246 = vmul.f32 %v6239, %v5474
    %v6247 = vmul.f32 %v6243, %v5475
    %v6248 = vmul.f32 %v6239, %v5476
    %v6249 = vmul.f32 %v6243, %v5477
    %v6250 = vmul.f32 %v6239, %v5482
    %v6251 = vmul.f32 %v6243, %v5483
    %v6252 = vmul.f32 %v6239, %v5484
    %v6253 = vmul.f32 %v6243, %v5485
    %v6254 = vadd.f32 %v6225, %v6246
    %v6255 = vadd.f32 %v6226, %v6247
    %v6256 = vadd.f32 %v6227, %v6248
    %v6257 = vadd.f32 %v6228, %v6249
    %v6258 = vadd.f32 %v6229, %v6250
    %v6259 = vadd.f32 %v6230, %v6251
    %v6260 = vadd.f32 %v6231, %v6252
    %v6261 = vadd.f32 %v6232, %v6253
    %s6262 = scalar_lea.vmem [#allocation5], 135
    %v6263 = vld [vmem:[%s6262] ss:$8 sm:$0x3]
    %v6268 = vrot.slane %v5474, 1
    %v6269 = vrot.slane %v5476, 1
    %v6270 = vsel %vm1751, %v6268, %v6269
    %v6271 = vrot.slane %v5475, 1
    %v6272 = vrot.slane %v5477, 1
    %v6273 = vsel %vm1751, %v6271, %v6272
    %v6274 = vrot.slane %v5478, 1
    %v6275 = vsel %vm1751, %v6269, %v6274
    %v6276 = vrot.slane %v5479, 1
    %v6277 = vsel %vm1751, %v6272, %v6276
    %v6278 = vrot.slane %v5482, 1
    %v6279 = vrot.slane %v5484, 1
    %v6280 = vsel %vm1751, %v6278, %v6279
    %v6281 = vrot.slane %v5483, 1
    %v6282 = vrot.slane %v5485, 1
    %v6283 = vsel %vm1751, %v6281, %v6282
    %v6284 = vrot.slane %v5486, 1
    %v6285 = vsel %vm1751, %v6279, %v6284
    %v6286 = vrot.slane %v5487, 1
    %v6287 = vsel %vm1751, %v6282, %v6286
    %v6297 = vlaneseq
    %v6298 = vshrl.u32 %v6297, 7
    %v6299 = vsub.s32 0, %v6298
    %v6300 = vrot.slane %v6263, %v6299
    %v6301 = vlaneseq
    %v6302 = vshrl.u32 %v6301, 7
    %v6303 = vsub.s32 1, %v6302
    %v6304 = vrot.slane %v6263, %v6303
    %v6307 = vmul.f32 %v6300, %v6270
    %v6308 = vmul.f32 %v6304, %v6273
    %v6309 = vmul.f32 %v6300, %v6275
    %v6310 = vmul.f32 %v6304, %v6277
    %v6311 = vmul.f32 %v6300, %v6280
    %v6312 = vmul.f32 %v6304, %v6283
    %v6313 = vmul.f32 %v6300, %v6285
    %v6314 = vmul.f32 %v6304, %v6287
    %v6315 = vadd.f32 %v6254, %v6307
    %v6316 = vadd.f32 %v6255, %v6308
    %v6317 = vadd.f32 %v6256, %v6309
    %v6318 = vadd.f32 %v6257, %v6310
    %v6319 = vadd.f32 %v6258, %v6311
    %v6320 = vadd.f32 %v6259, %v6312
    %v6321 = vadd.f32 %v6260, %v6313
    %v6322 = vadd.f32 %v6261, %v6314
    %s6323 = scalar_lea.vmem [#allocation5], 144
    %v6324 = vld [vmem:[%s6323] ss:$8 sm:$0x3]
    %v6325 = vrot.slane %v5474, 2
    %v6326 = vrot.slane %v5476, 2
    %v6327 = vsel %vm2317, %v6325, %v6326
    %v6328 = vrot.slane %v5475, 2
    %v6329 = vrot.slane %v5477, 2
    %v6330 = vsel %vm2317, %v6328, %v6329
    %v6331 = vrot.slane %v5478, 2
    %v6332 = vsel %vm2317, %v6326, %v6331
    %v6333 = vrot.slane %v5479, 2
    %v6334 = vsel %vm2317, %v6329, %v6333
    %v6335 = vrot.slane %v5482, 2
    %v6336 = vrot.slane %v5484, 2
    %v6337 = vsel %vm2317, %v6335, %v6336
    %v6338 = vrot.slane %v5483, 2
    %v6339 = vrot.slane %v5485, 2
    %v6340 = vsel %vm2317, %v6338, %v6339
    %v6341 = vrot.slane %v5486, 2
    %v6342 = vsel %vm2317, %v6336, %v6341
    %v6343 = vrot.slane %v5487, 2
    %v6344 = vsel %vm2317, %v6339, %v6343
    %v6354 = vlaneseq
    %v6355 = vshrl.u32 %v6354, 7
    %v6356 = vsub.s32 0, %v6355
    %v6357 = vrot.slane %v6324, %v6356
    %v6358 = vlaneseq
    %v6359 = vshrl.u32 %v6358, 7
    %v6360 = vsub.s32 1, %v6359
    %v6361 = vrot.slane %v6324, %v6360
    %v6364 = vmul.f32 %v6357, %v6327
    %v6365 = vmul.f32 %v6361, %v6330
    %v6366 = vmul.f32 %v6357, %v6332
    %v6367 = vmul.f32 %v6361, %v6334
    %v6368 = vmul.f32 %v6357, %v6337
    %v6369 = vmul.f32 %v6361, %v6340
    %v6370 = vmul.f32 %v6357, %v6342
    %v6371 = vmul.f32 %v6361, %v6344
    %v6372 = vadd.f32 %v6315, %v6364
    %v6373 = vadd.f32 %v6316, %v6365
    %v6374 = vadd.f32 %v6317, %v6366
    %v6375 = vadd.f32 %v6318, %v6367
    %v6376 = vadd.f32 %v6319, %v6368
    %v6377 = vadd.f32 %v6320, %v6369
    %v6378 = vadd.f32 %v6321, %v6370
    %v6379 = vadd.f32 %v6322, %v6371
    %s6380 = scalar_lea.vmem [#allocation5], 145
    %v6381 = vld [vmem:[%s6380] ss:$8 sm:$0x3]
    %v6382 = vrot.slane %v5478, 3
    %v6383 = vsel %vm5858, %v5963, %v6382
    %v6384 = vrot.slane %v5479, 3
    %v6385 = vsel %vm5858, %v5965, %v6384
    %v6386 = vrot.slane %v5486, 3
    %v6387 = vsel %vm5858, %v5973, %v6386
    %v6388 = vrot.slane %v5487, 3
    %v6389 = vsel %vm5858, %v5975, %v6388
    %v6395 = vlaneseq
    %v6396 = vshrl.u32 %v6395, 7
    %v6397 = vsub.s32 0, %v6396
    %v6398 = vrot.slane %v6381, %v6397
    %v6399 = vlaneseq
    %v6400 = vshrl.u32 %v6399, 7
    %v6401 = vsub.s32 1, %v6400
    %v6402 = vrot.slane %v6381, %v6401
    %v6405 = vmul.f32 %v6398, %v5964
    %v6406 = vmul.f32 %v6402, %v5966
    %v6407 = vmul.f32 %v6398, %v6383
    %v6408 = vmul.f32 %v6402, %v6385
    %v6409 = vmul.f32 %v6398, %v5974
    %v6410 = vmul.f32 %v6402, %v5976
    %v6411 = vmul.f32 %v6398, %v6387
    %v6412 = vmul.f32 %v6402, %v6389
    %v6413 = vadd.f32 %v6372, %v6405
    %v6414 = vadd.f32 %v6373, %v6406
    %v6415 = vadd.f32 %v6374, %v6407
    %v6416 = vadd.f32 %v6375, %v6408
    %v6417 = vadd.f32 %v6376, %v6409
    %v6418 = vadd.f32 %v6377, %v6410
    %v6419 = vadd.f32 %v6378, %v6411
    %v6420 = vadd.f32 %v6379, %v6412
    %s6421 = scalar_lea.vmem [#allocation5], 146
    %v6422 = vld [vmem:[%s6421] ss:$8 sm:$0x3]
    %v6423 = vrot.slane %v5478, 4
    %v6424 = vsel %vm6006, %v6013, %v6423
    %v6425 = vrot.slane %v5479, 4
    %v6426 = vsel %vm6006, %v6015, %v6425
    %v6427 = vrot.slane %v5486, 4
    %v6428 = vsel %vm6006, %v6023, %v6427
    %v6429 = vrot.slane %v5487, 4
    %v6430 = vsel %vm6006, %v6025, %v6429
    %v6436 = vlaneseq
    %v6437 = vshrl.u32 %v6436, 7
    %v6438 = vsub.s32 0, %v6437
    %v6439 = vrot.slane %v6422, %v6438
    %v6440 = vlaneseq
    %v6441 = vshrl.u32 %v6440, 7
    %v6442 = vsub.s32 1, %v6441
    %v6443 = vrot.slane %v6422, %v6442
    %v6446 = vmul.f32 %v6439, %v6014
    %v6447 = vmul.f32 %v6443, %v6016
    %v6448 = vmul.f32 %v6439, %v6424
    %v6449 = vmul.f32 %v6443, %v6426
    %v6450 = vmul.f32 %v6439, %v6024
    %v6451 = vmul.f32 %v6443, %v6026
    %v6452 = vmul.f32 %v6439, %v6428
    %v6453 = vmul.f32 %v6443, %v6430
    %v6454 = vadd.f32 %v6413, %v6446
    %v6455 = vadd.f32 %v6414, %v6447
    %v6456 = vadd.f32 %v6415, %v6448
    %v6457 = vadd.f32 %v6416, %v6449
    %v6458 = vadd.f32 %v6417, %v6450
    %v6459 = vadd.f32 %v6418, %v6451
    %v6460 = vadd.f32 %v6419, %v6452
    %v6461 = vadd.f32 %v6420, %v6453
    %s6462 = scalar_lea.vmem [#allocation5], 147
    %v6463 = vld [vmem:[%s6462] ss:$8 sm:$0x3]
    %v6464 = vrot.slane %v5478, 5
    %v6465 = vsel %vm5547, %v6070, %v6464
    %v6466 = vrot.slane %v5479, 5
    %v6467 = vsel %vm5547, %v6072, %v6466
    %v6468 = vrot.slane %v5486, 5
    %v6469 = vsel %vm5547, %v6080, %v6468
    %v6470 = vrot.slane %v5487, 5
    %v6471 = vsel %vm5547, %v6082, %v6470
    %v6477 = vlaneseq
    %v6478 = vshrl.u32 %v6477, 7
    %v6479 = vsub.s32 0, %v6478
    %v6480 = vrot.slane %v6463, %v6479
    %v6481 = vlaneseq
    %v6482 = vshrl.u32 %v6481, 7
    %v6483 = vsub.s32 1, %v6482
    %v6484 = vrot.slane %v6463, %v6483
    %v6487 = vmul.f32 %v6480, %v6071
    %v6488 = vmul.f32 %v6484, %v6073
    %v6489 = vmul.f32 %v6480, %v6465
    %v6490 = vmul.f32 %v6484, %v6467
    %v6491 = vmul.f32 %v6480, %v6081
    %v6492 = vmul.f32 %v6484, %v6083
    %v6493 = vmul.f32 %v6480, %v6469
    %v6494 = vmul.f32 %v6484, %v6471
    %v6495 = vadd.f32 %v6454, %v6487
    %v6496 = vadd.f32 %v6455, %v6488
    %v6497 = vadd.f32 %v6456, %v6489
    %v6498 = vadd.f32 %v6457, %v6490
    %v6499 = vadd.f32 %v6458, %v6491
    %v6500 = vadd.f32 %v6459, %v6492
    %v6501 = vadd.f32 %v6460, %v6493
    %v6502 = vadd.f32 %v6461, %v6494
    %s6503 = scalar_lea.vmem [#allocation7], 4
    %v6504 = vld [vmem:[%s6503] ss:$8 sm:$0x3]
    %v6506 = vlaneseq
    %v6507 = vshrl.u32 %v6506, 7
    %v6508 = vsub.s32 0, %v6507
    %v6509 = vrot.slane %v6504, %v6508
    %v6510 = vlaneseq
    %v6511 = vshrl.u32 %v6510, 7
    %v6512 = vsub.s32 1, %v6511
    %v6513 = vrot.slane %v6504, %v6512
    %v6516 = vadd.f32 %v6495, %v6509
    %v6517 = vadd.f32 %v6496, %v6513
    %v6518 = vadd.f32 %v6497, %v6509
    %v6519 = vadd.f32 %v6498, %v6513
    %v6520 = vadd.f32 %v6499, %v6509
    %v6521 = vadd.f32 %v6500, %v6513
    %v6522 = vadd.f32 %v6501, %v6509
    %v6523 = vadd.f32 %v6502, %v6513
    %v6524 = vadd.f32 %v5935, %v6516
    %v6525 = vadd.f32 %v5936, %v6517
    %v6526 = vadd.f32 %v5937, %v6518
    %v6527 = vadd.f32 %v5938, %v6519
    %v6528 = vadd.f32 %v5939, %v6520
    %v6529 = vadd.f32 %v5940, %v6521
    %v6530 = vadd.f32 %v5941, %v6522
    %v6531 = vadd.f32 %v5942, %v6523
    %s6532 = scalar_lea.vmem [#allocation5], 148
    %v6533 = vld [vmem:[%s6532] ss:$8 sm:$0x3]
    %v6546 = vrot.slane %v5517, 1
    %v6547 = vrot.slane %v5519, 1
    %v6548 = vsel %vm1751, %v6546, %v6547
    %v6549 = vrot.slane %v5518, 1
    %v6550 = vrot.slane %v5520, 1
    %v6551 = vsel %vm1751, %v6549, %v6550
    %v6552 = vrot.slane %v5521, 1
    %v6553 = vsel %vm1751, %v6547, %v6552
    %v6554 = vrot.slane %v5522, 1
    %v6555 = vsel %vm1751, %v6550, %v6554
    %v6556 = vrot.slane %v5525, 1
    %v6557 = vrot.slane %v5527, 1
    %v6558 = vsel %vm1751, %v6556, %v6557
    %v6559 = vrot.slane %v5526, 1
    %v6560 = vrot.slane %v5528, 1
    %v6561 = vsel %vm1751, %v6559, %v6560
    %v6562 = vrot.slane %v5529, 1
    %v6563 = vsel %vm1751, %v6557, %v6562
    %v6564 = vrot.slane %v5530, 1
    %v6565 = vsel %vm1751, %v6560, %v6564
    %v6575 = vlaneseq
    %v6576 = vshrl.u32 %v6575, 7
    %v6577 = vsub.s32 0, %v6576
    %v6578 = vrot.slane %v6533, %v6577
    %v6579 = vlaneseq
    %v6580 = vshrl.u32 %v6579, 7
    %v6581 = vsub.s32 1, %v6580
    %v6582 = vrot.slane %v6533, %v6581
    %v6585 = vmul.f32 %v6578, %v6548
    %v6586 = vmul.f32 %v6582, %v6551
    %v6587 = vmul.f32 %v6578, %v6553
    %v6588 = vmul.f32 %v6582, %v6555
    %v6589 = vmul.f32 %v6578, %v6558
    %v6590 = vmul.f32 %v6582, %v6561
    %v6591 = vmul.f32 %v6578, %v6563
    %v6592 = vmul.f32 %v6582, %v6565
    %s6593 = scalar_lea.vmem [#allocation5], 149
    %v6594 = vld [vmem:[%s6593] ss:$8 sm:$0x3]
    %v6595 = vrot.slane %v5517, 2
    %v6596 = vrot.slane %v5519, 2
    %v6597 = vsel %vm2317, %v6595, %v6596
    %v6598 = vrot.slane %v5518, 2
    %v6599 = vrot.slane %v5520, 2
    %v6600 = vsel %vm2317, %v6598, %v6599
    %v6601 = vrot.slane %v5521, 2
    %v6602 = vsel %vm2317, %v6596, %v6601
    %v6603 = vrot.slane %v5522, 2
    %v6604 = vsel %vm2317, %v6599, %v6603
    %v6605 = vrot.slane %v5525, 2
    %v6606 = vrot.slane %v5527, 2
    %v6607 = vsel %vm2317, %v6605, %v6606
    %v6608 = vrot.slane %v5526, 2
    %v6609 = vrot.slane %v5528, 2
    %v6610 = vsel %vm2317, %v6608, %v6609
    %v6611 = vrot.slane %v5529, 2
    %v6612 = vsel %vm2317, %v6606, %v6611
    %v6613 = vrot.slane %v5530, 2
    %v6614 = vsel %vm2317, %v6609, %v6613
    %v6624 = vlaneseq
    %v6625 = vshrl.u32 %v6624, 7
    %v6626 = vsub.s32 0, %v6625
    %v6627 = vrot.slane %v6594, %v6626
    %v6628 = vlaneseq
    %v6629 = vshrl.u32 %v6628, 7
    %v6630 = vsub.s32 1, %v6629
    %v6631 = vrot.slane %v6594, %v6630
    %v6634 = vmul.f32 %v6627, %v6597
    %v6635 = vmul.f32 %v6631, %v6600
    %v6636 = vmul.f32 %v6627, %v6602
    %v6637 = vmul.f32 %v6631, %v6604
    %v6638 = vmul.f32 %v6627, %v6607
    %v6639 = vmul.f32 %v6631, %v6610
    %v6640 = vmul.f32 %v6627, %v6612
    %v6641 = vmul.f32 %v6631, %v6614
    %v6642 = vadd.f32 %v6585, %v6634
    %v6643 = vadd.f32 %v6586, %v6635
    %v6644 = vadd.f32 %v6587, %v6636
    %v6645 = vadd.f32 %v6588, %v6637
    %v6646 = vadd.f32 %v6589, %v6638
    %v6647 = vadd.f32 %v6590, %v6639
    %v6648 = vadd.f32 %v6591, %v6640
    %v6649 = vadd.f32 %v6592, %v6641
    %s6650 = scalar_lea.vmem [#allocation5], 150
    %v6651 = vld [vmem:[%s6650] ss:$8 sm:$0x3]
    %v6652 = vrot.slane %v5517, 3
    %v6653 = vrot.slane %v5519, 3
    %v6654 = vsel %vm5858, %v6652, %v6653
    %v6655 = vrot.slane %v5518, 3
    %v6656 = vrot.slane %v5520, 3
    %v6657 = vsel %vm5858, %v6655, %v6656
    %v6658 = vrot.slane %v5521, 3
    %v6659 = vsel %vm5858, %v6653, %v6658
    %v6660 = vrot.slane %v5522, 3
    %v6661 = vsel %vm5858, %v6656, %v6660
    %v6662 = vrot.slane %v5525, 3
    %v6663 = vrot.slane %v5527, 3
    %v6664 = vsel %vm5858, %v6662, %v6663
    %v6665 = vrot.slane %v5526, 3
    %v6666 = vrot.slane %v5528, 3
    %v6667 = vsel %vm5858, %v6665, %v6666
    %v6668 = vrot.slane %v5529, 3
    %v6669 = vsel %vm5858, %v6663, %v6668
    %v6670 = vrot.slane %v5530, 3
    %v6671 = vsel %vm5858, %v6666, %v6670
    %v6681 = vlaneseq
    %v6682 = vshrl.u32 %v6681, 7
    %v6683 = vsub.s32 0, %v6682
    %v6684 = vrot.slane %v6651, %v6683
    %v6685 = vlaneseq
    %v6686 = vshrl.u32 %v6685, 7
    %v6687 = vsub.s32 1, %v6686
    %v6688 = vrot.slane %v6651, %v6687
    %v6691 = vmul.f32 %v6684, %v6654
    %v6692 = vmul.f32 %v6688, %v6657
    %v6693 = vmul.f32 %v6684, %v6659
    %v6694 = vmul.f32 %v6688, %v6661
    %v6695 = vmul.f32 %v6684, %v6664
    %v6696 = vmul.f32 %v6688, %v6667
    %v6697 = vmul.f32 %v6684, %v6669
    %v6698 = vmul.f32 %v6688, %v6671
    %v6699 = vadd.f32 %v6642, %v6691
    %v6700 = vadd.f32 %v6643, %v6692
    %v6701 = vadd.f32 %v6644, %v6693
    %v6702 = vadd.f32 %v6645, %v6694
    %v6703 = vadd.f32 %v6646, %v6695
    %v6704 = vadd.f32 %v6647, %v6696
    %v6705 = vadd.f32 %v6648, %v6697
    %v6706 = vadd.f32 %v6649, %v6698
    %s6707 = scalar_lea.vmem [#allocation5], 151
    %v6708 = vld [vmem:[%s6707] ss:$8 sm:$0x3]
    %v6709 = vrot.slane %v5517, 4
    %v6710 = vrot.slane %v5519, 4
    %v6711 = vsel %vm6006, %v6709, %v6710
    %v6712 = vrot.slane %v5518, 4
    %v6713 = vrot.slane %v5520, 4
    %v6714 = vsel %vm6006, %v6712, %v6713
    %v6715 = vrot.slane %v5521, 4
    %v6716 = vsel %vm6006, %v6710, %v6715
    %v6717 = vrot.slane %v5522, 4
    %v6718 = vsel %vm6006, %v6713, %v6717
    %v6719 = vrot.slane %v5525, 4
    %v6720 = vrot.slane %v5527, 4
    %v6721 = vsel %vm6006, %v6719, %v6720
    %v6722 = vrot.slane %v5526, 4
    %v6723 = vrot.slane %v5528, 4
    %v6724 = vsel %vm6006, %v6722, %v6723
    %v6725 = vrot.slane %v5529, 4
    %v6726 = vsel %vm6006, %v6720, %v6725
    %v6727 = vrot.slane %v5530, 4
    %v6728 = vsel %vm6006, %v6723, %v6727
    %v6738 = vlaneseq
    %v6739 = vshrl.u32 %v6738, 7
    %v6740 = vsub.s32 0, %v6739
    %v6741 = vrot.slane %v6708, %v6740
    %v6742 = vlaneseq
    %v6743 = vshrl.u32 %v6742, 7
    %v6744 = vsub.s32 1, %v6743
    %v6745 = vrot.slane %v6708, %v6744
    %v6748 = vmul.f32 %v6741, %v6711
    %v6749 = vmul.f32 %v6745, %v6714
    %v6750 = vmul.f32 %v6741, %v6716
    %v6751 = vmul.f32 %v6745, %v6718
    %v6752 = vmul.f32 %v6741, %v6721
    %v6753 = vmul.f32 %v6745, %v6724
    %v6754 = vmul.f32 %v6741, %v6726
    %v6755 = vmul.f32 %v6745, %v6728
    %v6756 = vadd.f32 %v6699, %v6748
    %v6757 = vadd.f32 %v6700, %v6749
    %v6758 = vadd.f32 %v6701, %v6750
    %v6759 = vadd.f32 %v6702, %v6751
    %v6760 = vadd.f32 %v6703, %v6752
    %v6761 = vadd.f32 %v6704, %v6753
    %v6762 = vadd.f32 %v6705, %v6754
    %v6763 = vadd.f32 %v6706, %v6755
    %s6764 = scalar_lea.vmem [#allocation5], 160
    %v6765 = vld [vmem:[%s6764] ss:$8 sm:$0x3]
    %v6766 = vrot.slane %v5517, 5
    %v6767 = vrot.slane %v5519, 5
    %v6768 = vsel %vm5547, %v6766, %v6767
    %v6769 = vrot.slane %v5518, 5
    %v6770 = vrot.slane %v5520, 5
    %v6771 = vsel %vm5547, %v6769, %v6770
    %v6772 = vrot.slane %v5521, 5
    %v6773 = vsel %vm5547, %v6767, %v6772
    %v6774 = vrot.slane %v5522, 5
    %v6775 = vsel %vm5547, %v6770, %v6774
    %v6776 = vrot.slane %v5525, 5
    %v6777 = vrot.slane %v5527, 5
    %v6778 = vsel %vm5547, %v6776, %v6777
    %v6779 = vrot.slane %v5526, 5
    %v6780 = vrot.slane %v5528, 5
    %v6781 = vsel %vm5547, %v6779, %v6780
    %v6782 = vrot.slane %v5529, 5
    %v6783 = vsel %vm5547, %v6777, %v6782
    %v6784 = vrot.slane %v5530, 5
    %v6785 = vsel %vm5547, %v6780, %v6784
    %v6795 = vlaneseq
    %v6796 = vshrl.u32 %v6795, 7
    %v6797 = vsub.s32 0, %v6796
    %v6798 = vrot.slane %v6765, %v6797
    %v6799 = vlaneseq
    %v6800 = vshrl.u32 %v6799, 7
    %v6801 = vsub.s32 1, %v6800
    %v6802 = vrot.slane %v6765, %v6801
    %v6805 = vmul.f32 %v6798, %v6768
    %v6806 = vmul.f32 %v6802, %v6771
    %v6807 = vmul.f32 %v6798, %v6773
    %v6808 = vmul.f32 %v6802, %v6775
    %v6809 = vmul.f32 %v6798, %v6778
    %v6810 = vmul.f32 %v6802, %v6781
    %v6811 = vmul.f32 %v6798, %v6783
    %v6812 = vmul.f32 %v6802, %v6785
    %v6813 = vadd.f32 %v6756, %v6805
    %v6814 = vadd.f32 %v6757, %v6806
    %v6815 = vadd.f32 %v6758, %v6807
    %v6816 = vadd.f32 %v6759, %v6808
    %v6817 = vadd.f32 %v6760, %v6809
    %v6818 = vadd.f32 %v6761, %v6810
    %v6819 = vadd.f32 %v6762, %v6811
    %v6820 = vadd.f32 %v6763, %v6812
    %s6821 = scalar_lea.vmem [#allocation5], 161
    %v6822 = vld [vmem:[%s6821] ss:$8 sm:$0x3]
    %v6823 = vrot.slane %v5517, 6
    %v6824 = vrot.slane %v5519, 6
    %v6825 = vsel %vm123, %v6823, %v6824
    %v6826 = vrot.slane %v5518, 6
    %v6827 = vrot.slane %v5520, 6
    %v6828 = vsel %vm123, %v6826, %v6827
    %v6829 = vrot.slane %v5521, 6
    %v6830 = vsel %vm123, %v6824, %v6829
    %v6831 = vrot.slane %v5522, 6
    %v6832 = vsel %vm123, %v6827, %v6831
    %v6833 = vrot.slane %v5525, 6
    %v6834 = vrot.slane %v5527, 6
    %v6835 = vsel %vm123, %v6833, %v6834
    %v6836 = vrot.slane %v5526, 6
    %v6837 = vrot.slane %v5528, 6
    %v6838 = vsel %vm123, %v6836, %v6837
    %v6839 = vrot.slane %v5529, 6
    %v6840 = vsel %vm123, %v6834, %v6839
    %v6841 = vrot.slane %v5530, 6
    %v6842 = vsel %vm123, %v6837, %v6841
    %v6852 = vlaneseq
    %v6853 = vshrl.u32 %v6852, 7
    %v6854 = vsub.s32 0, %v6853
    %v6855 = vrot.slane %v6822, %v6854
    %v6856 = vlaneseq
    %v6857 = vshrl.u32 %v6856, 7
    %v6858 = vsub.s32 1, %v6857
    %v6859 = vrot.slane %v6822, %v6858
    %v6862 = vmul.f32 %v6855, %v6825
    %v6863 = vmul.f32 %v6859, %v6828
    %v6864 = vmul.f32 %v6855, %v6830
    %v6865 = vmul.f32 %v6859, %v6832
    %v6866 = vmul.f32 %v6855, %v6835
    %v6867 = vmul.f32 %v6859, %v6838
    %v6868 = vmul.f32 %v6855, %v6840
    %v6869 = vmul.f32 %v6859, %v6842
    %v6870 = vadd.f32 %v6813, %v6862
    %v6871 = vadd.f32 %v6814, %v6863
    %v6872 = vadd.f32 %v6815, %v6864
    %v6873 = vadd.f32 %v6816, %v6865
    %v6874 = vadd.f32 %v6817, %v6866
    %v6875 = vadd.f32 %v6818, %v6867
    %v6876 = vadd.f32 %v6819, %v6868
    %v6877 = vadd.f32 %v6820, %v6869
    %s6878 = scalar_lea.vmem [#allocation5], 162
    %v6879 = vld [vmem:[%s6878] ss:$8 sm:$0x3]
    %v6880 = vrot.slane %v5517, 7
    %v6881 = vrot.slane %v5519, 7
    %v6882 = vsel %vm676, %v6880, %v6881
    %v6883 = vrot.slane %v5518, 7
    %v6884 = vrot.slane %v5520, 7
    %v6885 = vsel %vm676, %v6883, %v6884
    %v6886 = vrot.slane %v5521, 7
    %v6887 = vsel %vm676, %v6881, %v6886
    %v6888 = vrot.slane %v5522, 7
    %v6889 = vsel %vm676, %v6884, %v6888
    %v6890 = vrot.slane %v5525, 7
    %v6891 = vrot.slane %v5527, 7
    %v6892 = vsel %vm676, %v6890, %v6891
    %v6893 = vrot.slane %v5526, 7
    %v6894 = vrot.slane %v5528, 7
    %v6895 = vsel %vm676, %v6893, %v6894
    %v6896 = vrot.slane %v5529, 7
    %v6897 = vsel %vm676, %v6891, %v6896
    %v6898 = vrot.slane %v5530, 7
    %v6899 = vsel %vm676, %v6894, %v6898
    %v6909 = vlaneseq
    %v6910 = vshrl.u32 %v6909, 7
    %v6911 = vsub.s32 0, %v6910
    %v6912 = vrot.slane %v6879, %v6911
    %v6913 = vlaneseq
    %v6914 = vshrl.u32 %v6913, 7
    %v6915 = vsub.s32 1, %v6914
    %v6916 = vrot.slane %v6879, %v6915
    %v6919 = vmul.f32 %v6912, %v6882
    %v6920 = vmul.f32 %v6916, %v6885
    %v6921 = vmul.f32 %v6912, %v6887
    %v6922 = vmul.f32 %v6916, %v6889
    %v6923 = vmul.f32 %v6912, %v6892
    %v6924 = vmul.f32 %v6916, %v6895
    %v6925 = vmul.f32 %v6912, %v6897
    %v6926 = vmul.f32 %v6916, %v6899
    %v6927 = vadd.f32 %v6870, %v6919
    %v6928 = vadd.f32 %v6871, %v6920
    %v6929 = vadd.f32 %v6872, %v6921
    %v6930 = vadd.f32 %v6873, %v6922
    %v6931 = vadd.f32 %v6874, %v6923
    %v6932 = vadd.f32 %v6875, %v6924
    %v6933 = vadd.f32 %v6876, %v6925
    %v6934 = vadd.f32 %v6877, %v6926
    %s6935 = scalar_lea.vmem [#allocation5], 163
    %v6936 = vld [vmem:[%s6935] ss:$8 sm:$0x3]
    %v6938 = vlaneseq
    %v6939 = vshrl.u32 %v6938, 7
    %v6940 = vsub.s32 0, %v6939
    %v6941 = vrot.slane %v6936, %v6940
    %v6942 = vlaneseq
    %v6943 = vshrl.u32 %v6942, 7
    %v6944 = vsub.s32 1, %v6943
    %v6945 = vrot.slane %v6936, %v6944
    %v6948 = vmul.f32 %v6941, %v5519
    %v6949 = vmul.f32 %v6945, %v5520
    %v6950 = vmul.f32 %v6941, %v5521
    %v6951 = vmul.f32 %v6945, %v5522
    %v6952 = vmul.f32 %v6941, %v5527
    %v6953 = vmul.f32 %v6945, %v5528
    %v6954 = vmul.f32 %v6941, %v5529
    %v6955 = vmul.f32 %v6945, %v5530
    %v6956 = vadd.f32 %v6927, %v6948
    %v6957 = vadd.f32 %v6928, %v6949
    %v6958 = vadd.f32 %v6929, %v6950
    %v6959 = vadd.f32 %v6930, %v6951
    %v6960 = vadd.f32 %v6931, %v6952
    %v6961 = vadd.f32 %v6932, %v6953
    %v6962 = vadd.f32 %v6933, %v6954
    %v6963 = vadd.f32 %v6934, %v6955
    %s6964 = scalar_lea.vmem [#allocation5], 164
    %v6965 = vld [vmem:[%s6964] ss:$8 sm:$0x3]
    %v6970 = vrot.slane %v5523, 1
    %v6971 = vsel %vm1751, %v6552, %v6970
    %v6972 = vrot.slane %v5524, 1
    %v6973 = vsel %vm1751, %v6554, %v6972
    %v6974 = vrot.slane %v5531, 1
    %v6975 = vsel %vm1751, %v6562, %v6974
    %v6976 = vrot.slane %v5532, 1
    %v6977 = vsel %vm1751, %v6564, %v6976
    %v6983 = vlaneseq
    %v6984 = vshrl.u32 %v6983, 7
    %v6985 = vsub.s32 0, %v6984
    %v6986 = vrot.slane %v6965, %v6985
    %v6987 = vlaneseq
    %v6988 = vshrl.u32 %v6987, 7
    %v6989 = vsub.s32 1, %v6988
    %v6990 = vrot.slane %v6965, %v6989
    %v6993 = vmul.f32 %v6986, %v6553
    %v6994 = vmul.f32 %v6990, %v6555
    %v6995 = vmul.f32 %v6986, %v6971
    %v6996 = vmul.f32 %v6990, %v6973
    %v6997 = vmul.f32 %v6986, %v6563
    %v6998 = vmul.f32 %v6990, %v6565
    %v6999 = vmul.f32 %v6986, %v6975
    %v7000 = vmul.f32 %v6990, %v6977
    %v7001 = vadd.f32 %v6956, %v6993
    %v7002 = vadd.f32 %v6957, %v6994
    %v7003 = vadd.f32 %v6958, %v6995
    %v7004 = vadd.f32 %v6959, %v6996
    %v7005 = vadd.f32 %v6960, %v6997
    %v7006 = vadd.f32 %v6961, %v6998
    %v7007 = vadd.f32 %v6962, %v6999
    %v7008 = vadd.f32 %v6963, %v7000
    %s7009 = scalar_lea.vmem [#allocation5], 165
    %v7010 = vld [vmem:[%s7009] ss:$8 sm:$0x3]
    %v7011 = vrot.slane %v5523, 2
    %v7012 = vsel %vm2317, %v6601, %v7011
    %v7013 = vrot.slane %v5524, 2
    %v7014 = vsel %vm2317, %v6603, %v7013
    %v7015 = vrot.slane %v5531, 2
    %v7016 = vsel %vm2317, %v6611, %v7015
    %v7017 = vrot.slane %v5532, 2
    %v7018 = vsel %vm2317, %v6613, %v7017
    %v7024 = vlaneseq
    %v7025 = vshrl.u32 %v7024, 7
    %v7026 = vsub.s32 0, %v7025
    %v7027 = vrot.slane %v7010, %v7026
    %v7028 = vlaneseq
    %v7029 = vshrl.u32 %v7028, 7
    %v7030 = vsub.s32 1, %v7029
    %v7031 = vrot.slane %v7010, %v7030
    %v7034 = vmul.f32 %v7027, %v6602
    %v7035 = vmul.f32 %v7031, %v6604
    %v7036 = vmul.f32 %v7027, %v7012
    %v7037 = vmul.f32 %v7031, %v7014
    %v7038 = vmul.f32 %v7027, %v6612
    %v7039 = vmul.f32 %v7031, %v6614
    %v7040 = vmul.f32 %v7027, %v7016
    %v7041 = vmul.f32 %v7031, %v7018
    %v7042 = vadd.f32 %v7001, %v7034
    %v7043 = vadd.f32 %v7002, %v7035
    %v7044 = vadd.f32 %v7003, %v7036
    %v7045 = vadd.f32 %v7004, %v7037
    %v7046 = vadd.f32 %v7005, %v7038
    %v7047 = vadd.f32 %v7006, %v7039
    %v7048 = vadd.f32 %v7007, %v7040
    %v7049 = vadd.f32 %v7008, %v7041
    %s7050 = scalar_lea.vmem [#allocation5], 166
    %v7051 = vld [vmem:[%s7050] ss:$8 sm:$0x3]
    %v7052 = vrot.slane %v5523, 3
    %v7053 = vsel %vm5858, %v6658, %v7052
    %v7054 = vrot.slane %v5524, 3
    %v7055 = vsel %vm5858, %v6660, %v7054
    %v7056 = vrot.slane %v5531, 3
    %v7057 = vsel %vm5858, %v6668, %v7056
    %v7058 = vrot.slane %v5532, 3
    %v7059 = vsel %vm5858, %v6670, %v7058
    %v7065 = vlaneseq
    %v7066 = vshrl.u32 %v7065, 7
    %v7067 = vsub.s32 0, %v7066
    %v7068 = vrot.slane %v7051, %v7067
    %v7069 = vlaneseq
    %v7070 = vshrl.u32 %v7069, 7
    %v7071 = vsub.s32 1, %v7070
    %v7072 = vrot.slane %v7051, %v7071
    %v7075 = vmul.f32 %v7068, %v6659
    %v7076 = vmul.f32 %v7072, %v6661
    %v7077 = vmul.f32 %v7068, %v7053
    %v7078 = vmul.f32 %v7072, %v7055
    %v7079 = vmul.f32 %v7068, %v6669
    %v7080 = vmul.f32 %v7072, %v6671
    %v7081 = vmul.f32 %v7068, %v7057
    %v7082 = vmul.f32 %v7072, %v7059
    %v7083 = vadd.f32 %v7042, %v7075
    %v7084 = vadd.f32 %v7043, %v7076
    %v7085 = vadd.f32 %v7044, %v7077
    %v7086 = vadd.f32 %v7045, %v7078
    %v7087 = vadd.f32 %v7046, %v7079
    %v7088 = vadd.f32 %v7047, %v7080
    %v7089 = vadd.f32 %v7048, %v7081
    %v7090 = vadd.f32 %v7049, %v7082
    %s7091 = scalar_lea.vmem [#allocation5], 167
    %v7092 = vld [vmem:[%s7091] ss:$8 sm:$0x3]
    %v7093 = vrot.slane %v5523, 4
    %v7094 = vsel %vm6006, %v6715, %v7093
    %v7095 = vrot.slane %v5524, 4
    %v7096 = vsel %vm6006, %v6717, %v7095
    %v7097 = vrot.slane %v5531, 4
    %v7098 = vsel %vm6006, %v6725, %v7097
    %v7099 = vrot.slane %v5532, 4
    %v7100 = vsel %vm6006, %v6727, %v7099
    %v7106 = vlaneseq
    %v7107 = vshrl.u32 %v7106, 7
    %v7108 = vsub.s32 0, %v7107
    %v7109 = vrot.slane %v7092, %v7108
    %v7110 = vlaneseq
    %v7111 = vshrl.u32 %v7110, 7
    %v7112 = vsub.s32 1, %v7111
    %v7113 = vrot.slane %v7092, %v7112
    %v7116 = vmul.f32 %v7109, %v6716
    %v7117 = vmul.f32 %v7113, %v6718
    %v7118 = vmul.f32 %v7109, %v7094
    %v7119 = vmul.f32 %v7113, %v7096
    %v7120 = vmul.f32 %v7109, %v6726
    %v7121 = vmul.f32 %v7113, %v6728
    %v7122 = vmul.f32 %v7109, %v7098
    %v7123 = vmul.f32 %v7113, %v7100
    %v7124 = vadd.f32 %v7083, %v7116
    %v7125 = vadd.f32 %v7084, %v7117
    %v7126 = vadd.f32 %v7085, %v7118
    %v7127 = vadd.f32 %v7086, %v7119
    %v7128 = vadd.f32 %v7087, %v7120
    %v7129 = vadd.f32 %v7088, %v7121
    %v7130 = vadd.f32 %v7089, %v7122
    %v7131 = vadd.f32 %v7090, %v7123
    %s7132 = scalar_lea.vmem [#allocation5], 176
    %v7133 = vld [vmem:[%s7132] ss:$8 sm:$0x3]
    %v7134 = vrot.slane %v5523, 5
    %v7135 = vsel %vm5547, %v6772, %v7134
    %v7136 = vrot.slane %v5524, 5
    %v7137 = vsel %vm5547, %v6774, %v7136
    %v7138 = vrot.slane %v5531, 5
    %v7139 = vsel %vm5547, %v6782, %v7138
    %v7140 = vrot.slane %v5532, 5
    %v7141 = vsel %vm5547, %v6784, %v7140
    %v7147 = vlaneseq
    %v7148 = vshrl.u32 %v7147, 7
    %v7149 = vsub.s32 0, %v7148
    %v7150 = vrot.slane %v7133, %v7149
    %v7151 = vlaneseq
    %v7152 = vshrl.u32 %v7151, 7
    %v7153 = vsub.s32 1, %v7152
    %v7154 = vrot.slane %v7133, %v7153
    %v7157 = vmul.f32 %v7150, %v6773
    %v7158 = vmul.f32 %v7154, %v6775
    %v7159 = vmul.f32 %v7150, %v7135
    %v7160 = vmul.f32 %v7154, %v7137
    %v7161 = vmul.f32 %v7150, %v6783
    %v7162 = vmul.f32 %v7154, %v6785
    %v7163 = vmul.f32 %v7150, %v7139
    %v7164 = vmul.f32 %v7154, %v7141
    %v7165 = vadd.f32 %v7124, %v7157
    %v7166 = vadd.f32 %v7125, %v7158
    %v7167 = vadd.f32 %v7126, %v7159
    %v7168 = vadd.f32 %v7127, %v7160
    %v7169 = vadd.f32 %v7128, %v7161
    %v7170 = vadd.f32 %v7129, %v7162
    %v7171 = vadd.f32 %v7130, %v7163
    %v7172 = vadd.f32 %v7131, %v7164
    %s7173 = scalar_lea.vmem [#allocation5], 177
    %v7174 = vld [vmem:[%s7173] ss:$8 sm:$0x3]
    %v7175 = vrot.slane %v5523, 6
    %v7176 = vsel %vm123, %v6829, %v7175
    %v7177 = vrot.slane %v5524, 6
    %v7178 = vsel %vm123, %v6831, %v7177
    %v7179 = vrot.slane %v5531, 6
    %v7180 = vsel %vm123, %v6839, %v7179
    %v7181 = vrot.slane %v5532, 6
    %v7182 = vsel %vm123, %v6841, %v7181
    %v7188 = vlaneseq
    %v7189 = vshrl.u32 %v7188, 7
    %v7190 = vsub.s32 0, %v7189
    %v7191 = vrot.slane %v7174, %v7190
    %v7192 = vlaneseq
    %v7193 = vshrl.u32 %v7192, 7
    %v7194 = vsub.s32 1, %v7193
    %v7195 = vrot.slane %v7174, %v7194
    %v7198 = vmul.f32 %v7191, %v6830
    %v7199 = vmul.f32 %v7195, %v6832
    %v7200 = vmul.f32 %v7191, %v7176
    %v7201 = vmul.f32 %v7195, %v7178
    %v7202 = vmul.f32 %v7191, %v6840
    %v7203 = vmul.f32 %v7195, %v6842
    %v7204 = vmul.f32 %v7191, %v7180
    %v7205 = vmul.f32 %v7195, %v7182
    %v7206 = vadd.f32 %v7165, %v7198
    %v7207 = vadd.f32 %v7166, %v7199
    %v7208 = vadd.f32 %v7167, %v7200
    %v7209 = vadd.f32 %v7168, %v7201
    %v7210 = vadd.f32 %v7169, %v7202
    %v7211 = vadd.f32 %v7170, %v7203
    %v7212 = vadd.f32 %v7171, %v7204
    %v7213 = vadd.f32 %v7172, %v7205
    %s7214 = scalar_lea.vmem [#allocation5], 178
    %v7215 = vld [vmem:[%s7214] ss:$8 sm:$0x3]
    %v7216 = vrot.slane %v5523, 7
    %v7217 = vsel %vm676, %v6886, %v7216
    %v7218 = vrot.slane %v5524, 7
    %v7219 = vsel %vm676, %v6888, %v7218
    %v7220 = vrot.slane %v5531, 7
    %v7221 = vsel %vm676, %v6896, %v7220
    %v7222 = vrot.slane %v5532, 7
    %v7223 = vsel %vm676, %v6898, %v7222
    %v7229 = vlaneseq
    %v7230 = vshrl.u32 %v7229, 7
    %v7231 = vsub.s32 0, %v7230
    %v7232 = vrot.slane %v7215, %v7231
    %v7233 = vlaneseq
    %v7234 = vshrl.u32 %v7233, 7
    %v7235 = vsub.s32 1, %v7234
    %v7236 = vrot.slane %v7215, %v7235
    %v7239 = vmul.f32 %v7232, %v6887
    %v7240 = vmul.f32 %v7236, %v6889
    %v7241 = vmul.f32 %v7232, %v7217
    %v7242 = vmul.f32 %v7236, %v7219
    %v7243 = vmul.f32 %v7232, %v6897
    %v7244 = vmul.f32 %v7236, %v6899
    %v7245 = vmul.f32 %v7232, %v7221
    %v7246 = vmul.f32 %v7236, %v7223
    %v7247 = vadd.f32 %v7206, %v7239
    %v7248 = vadd.f32 %v7207, %v7240
    %v7249 = vadd.f32 %v7208, %v7241
    %v7250 = vadd.f32 %v7209, %v7242
    %v7251 = vadd.f32 %v7210, %v7243
    %v7252 = vadd.f32 %v7211, %v7244
    %v7253 = vadd.f32 %v7212, %v7245
    %v7254 = vadd.f32 %v7213, %v7246
    %s7255 = scalar_lea.vmem [#allocation7], 6
    %v7256 = vld [vmem:[%s7255] ss:$8 sm:$0x3]
    %v7258 = vlaneseq
    %v7259 = vshrl.u32 %v7258, 7
    %v7260 = vsub.s32 0, %v7259
    %v7261 = vrot.slane %v7256, %v7260
    %v7262 = vlaneseq
    %v7263 = vshrl.u32 %v7262, 7
    %v7264 = vsub.s32 1, %v7263
    %v7265 = vrot.slane %v7256, %v7264
    %v7268 = vadd.f32 %v7247, %v7261
    %v7269 = vadd.f32 %v7248, %v7265
    %v7270 = vadd.f32 %v7249, %v7261
    %v7271 = vadd.f32 %v7250, %v7265
    %v7272 = vadd.f32 %v7251, %v7261
    %v7273 = vadd.f32 %v7252, %v7265
    %v7274 = vadd.f32 %v7253, %v7261
    %v7275 = vadd.f32 %v7254, %v7265
    %v7276 = vadd.f32 %v6524, %v7268
    %v7277 = vadd.f32 %v6525, %v7269
    %v7278 = vadd.f32 %v6526, %v7270
    %v7279 = vadd.f32 %v6527, %v7271
    %v7280 = vadd.f32 %v6528, %v7272
    %v7281 = vadd.f32 %v6529, %v7273
    %v7282 = vadd.f32 %v6530, %v7274
    %v7283 = vadd.f32 %v6531, %v7275
    %s7284 = scalar_lea.vmem [#allocation5], 179
    %v7285 = vld [vmem:[%s7284] ss:$8 sm:$0x3]
    %7290 = vrot.lane.b32.xlu0 %v7277, 7
    %v7291 = vpop.permute.xlu0 %7290
    %7292 = vrot.lane.b32.xlu0 %v7279, 7
    %v7293 = vpop.permute.xlu0 %7292
    %7294 = vrot.lane.b32.xlu0 %v7281, 7
    %v7295 = vpop.permute.xlu0 %7294
    %7296 = vrot.lane.b32.xlu0 %v7283, 7
    %v7297 = vpop.permute.xlu0 %7296
    %7306 = vrot.lane.b32.xlu0 %v7276, 7
    %v7307 = vpop.permute.xlu0 %7306
    %7308 = vrot.lane.b32.xlu0 %v7278, 7
    %v7309 = vpop.permute.xlu0 %7308
    %7310 = vrot.lane.b32.xlu0 %v7280, 7
    %v7311 = vpop.permute.xlu0 %7310
    %7312 = vrot.lane.b32.xlu0 %v7282, 7
    %v7313 = vpop.permute.xlu0 %7312
    %vm7314 = vcmask 56320
    %v7315 = vsel %vm7314, %v7307, %v7291
    %v7316 = vsel %vm7314, %v7309, %v7293
    %v7317 = vsel %vm7314, %v7311, %v7295
    %v7318 = vsel %vm7314, %v7313, %v7297
    %v7327 = vsel %vm7314, %v7291, %v7307
    %v7328 = vsel %vm7314, %v7293, %v7309
    %v7329 = vsel %vm7314, %v7295, %v7311
    %v7330 = vsel %vm7314, %v7297, %v7313
    %v7332 = vlaneseq
    %v7333 = vshrl.u32 %v7332, 7
    %v7334 = vsub.s32 0, %v7333
    %v7335 = vrot.slane %v7285, %v7334
    %v7336 = vlaneseq
    %v7337 = vshrl.u32 %v7336, 7
    %v7338 = vsub.s32 1, %v7337
    %v7339 = vrot.slane %v7285, %v7338
    %v7342 = vmul.f32 %v7335, %v7327
    %v7343 = vmul.f32 %v7339, %v7315
    %v7344 = vmul.f32 %v7335, %v7328
    %v7345 = vmul.f32 %v7339, %v7316
    %v7346 = vmul.f32 %v7335, %v7329
    %v7347 = vmul.f32 %v7339, %v7317
    %v7348 = vmul.f32 %v7335, %v7330
    %v7349 = vmul.f32 %v7339, %v7318
    %s7350 = scalar_lea.vmem [#allocation5], 180
    %v7351 = vld [vmem:[%s7350] ss:$8 sm:$0x3]
    %7352 = vrot.lane.b32.xlu0 %v7277, 6
    %v7353 = vpop.permute.xlu0 %7352
    %7354 = vrot.lane.b32.xlu0 %v7279, 6
    %v7355 = vpop.permute.xlu0 %7354
    %7356 = vrot.lane.b32.xlu0 %v7281, 6
    %v7357 = vpop.permute.xlu0 %7356
    %7358 = vrot.lane.b32.xlu0 %v7283, 6
    %v7359 = vpop.permute.xlu0 %7358
    %7364 = vrot.lane.b32.xlu0 %v7276, 6
    %v7365 = vpop.permute.xlu0 %7364
    %7366 = vrot.lane.b32.xlu0 %v7278, 6
    %v7367 = vpop.permute.xlu0 %7366
    %7368 = vrot.lane.b32.xlu0 %v7280, 6
    %v7369 = vpop.permute.xlu0 %7368
    %7370 = vrot.lane.b32.xlu0 %v7282, 6
    %v7371 = vpop.permute.xlu0 %7370
    %vm7372 = vcmask 48128
    %v7373 = vsel %vm7372, %v7365, %v7353
    %v7374 = vsel %vm7372, %v7367, %v7355
    %v7375 = vsel %vm7372, %v7369, %v7357
    %v7376 = vsel %vm7372, %v7371, %v7359
    %v7385 = vsel %vm7372, %v7353, %v7365
    %v7386 = vsel %vm7372, %v7355, %v7367
    %v7387 = vsel %vm7372, %v7357, %v7369
    %v7388 = vsel %vm7372, %v7359, %v7371
    %v7390 = vlaneseq
    %v7391 = vshrl.u32 %v7390, 7
    %v7392 = vsub.s32 0, %v7391
    %v7393 = vrot.slane %v7351, %v7392
    %v7394 = vlaneseq
    %v7395 = vshrl.u32 %v7394, 7
    %v7396 = vsub.s32 1, %v7395
    %v7397 = vrot.slane %v7351, %v7396
    %v7400 = vmul.f32 %v7393, %v7385
    %v7401 = vmul.f32 %v7397, %v7373
    %v7402 = vmul.f32 %v7393, %v7386
    %v7403 = vmul.f32 %v7397, %v7374
    %v7404 = vmul.f32 %v7393, %v7387
    %v7405 = vmul.f32 %v7397, %v7375
    %v7406 = vmul.f32 %v7393, %v7388
    %v7407 = vmul.f32 %v7397, %v7376
    %v7408 = vadd.f32 %v7342, %v7400
    %v7409 = vadd.f32 %v7343, %v7401
    %v7410 = vadd.f32 %v7344, %v7402
    %v7411 = vadd.f32 %v7345, %v7403
    %v7412 = vadd.f32 %v7346, %v7404
    %v7413 = vadd.f32 %v7347, %v7405
    %v7414 = vadd.f32 %v7348, %v7406
    %v7415 = vadd.f32 %v7349, %v7407
    %s7416 = scalar_lea.vmem [#allocation5], 181
    %v7417 = vld [vmem:[%s7416] ss:$8 sm:$0x3]
    %7418 = vrot.lane.b32.xlu0 %v7277, 5
    %v7419 = vpop.permute.xlu0 %7418
    %7420 = vrot.lane.b32.xlu0 %v7279, 5
    %v7421 = vpop.permute.xlu0 %7420
    %7422 = vrot.lane.b32.xlu0 %v7281, 5
    %v7423 = vpop.permute.xlu0 %7422
    %7424 = vrot.lane.b32.xlu0 %v7283, 5
    %v7425 = vpop.permute.xlu0 %7424
    %7430 = vrot.lane.b32.xlu0 %v7276, 5
    %v7431 = vpop.permute.xlu0 %7430
    %7432 = vrot.lane.b32.xlu0 %v7278, 5
    %v7433 = vpop.permute.xlu0 %7432
    %7434 = vrot.lane.b32.xlu0 %v7280, 5
    %v7435 = vpop.permute.xlu0 %7434
    %7436 = vrot.lane.b32.xlu0 %v7282, 5
    %v7437 = vpop.permute.xlu0 %7436
    %vm7438 = vcmask 39936
    %v7439 = vsel %vm7438, %v7431, %v7419
    %v7440 = vsel %vm7438, %v7433, %v7421
    %v7441 = vsel %vm7438, %v7435, %v7423
    %v7442 = vsel %vm7438, %v7437, %v7425
    %v7451 = vsel %vm7438, %v7419, %v7431
    %v7452 = vsel %vm7438, %v7421, %v7433
    %v7453 = vsel %vm7438, %v7423, %v7435
    %v7454 = vsel %vm7438, %v7425, %v7437
    %v7456 = vlaneseq
    %v7457 = vshrl.u32 %v7456, 7
    %v7458 = vsub.s32 0, %v7457
    %v7459 = vrot.slane %v7417, %v7458
    %v7460 = vlaneseq
    %v7461 = vshrl.u32 %v7460, 7
    %v7462 = vsub.s32 1, %v7461
    %v7463 = vrot.slane %v7417, %v7462
    %v7466 = vmul.f32 %v7459, %v7451
    %v7467 = vmul.f32 %v7463, %v7439
    %v7468 = vmul.f32 %v7459, %v7452
    %v7469 = vmul.f32 %v7463, %v7440
    %v7470 = vmul.f32 %v7459, %v7453
    %v7471 = vmul.f32 %v7463, %v7441
    %v7472 = vmul.f32 %v7459, %v7454
    %v7473 = vmul.f32 %v7463, %v7442
    %v7474 = vadd.f32 %v7408, %v7466
    %v7475 = vadd.f32 %v7409, %v7467
    %v7476 = vadd.f32 %v7410, %v7468
    %v7477 = vadd.f32 %v7411, %v7469
    %v7478 = vadd.f32 %v7412, %v7470
    %v7479 = vadd.f32 %v7413, %v7471
    %v7480 = vadd.f32 %v7414, %v7472
    %v7481 = vadd.f32 %v7415, %v7473
    %s7482 = scalar_lea.vmem [#allocation5], 182
    %v7483 = vld [vmem:[%s7482] ss:$8 sm:$0x3]
    %7484 = vrot.lane.b32.xlu0 %v7277, 4
    %v7485 = vpop.permute.xlu0 %7484
    %7486 = vrot.lane.b32.xlu0 %v7279, 4
    %v7487 = vpop.permute.xlu0 %7486
    %7488 = vrot.lane.b32.xlu0 %v7281, 4
    %v7489 = vpop.permute.xlu0 %7488
    %7490 = vrot.lane.b32.xlu0 %v7283, 4
    %v7491 = vpop.permute.xlu0 %7490
    %7496 = vrot.lane.b32.xlu0 %v7276, 4
    %v7497 = vpop.permute.xlu0 %7496
    %7498 = vrot.lane.b32.xlu0 %v7278, 4
    %v7499 = vpop.permute.xlu0 %7498
    %7500 = vrot.lane.b32.xlu0 %v7280, 4
    %v7501 = vpop.permute.xlu0 %7500
    %7502 = vrot.lane.b32.xlu0 %v7282, 4
    %v7503 = vpop.permute.xlu0 %7502
    %vm7504 = vcmask 31744
    %v7505 = vsel %vm7504, %v7497, %v7485
    %v7506 = vsel %vm7504, %v7499, %v7487
    %v7507 = vsel %vm7504, %v7501, %v7489
    %v7508 = vsel %vm7504, %v7503, %v7491
    %v7517 = vsel %vm7504, %v7485, %v7497
    %v7518 = vsel %vm7504, %v7487, %v7499
    %v7519 = vsel %vm7504, %v7489, %v7501
    %v7520 = vsel %vm7504, %v7491, %v7503
    %v7522 = vlaneseq
    %v7523 = vshrl.u32 %v7522, 7
    %v7524 = vsub.s32 0, %v7523
    %v7525 = vrot.slane %v7483, %v7524
    %v7526 = vlaneseq
    %v7527 = vshrl.u32 %v7526, 7
    %v7528 = vsub.s32 1, %v7527
    %v7529 = vrot.slane %v7483, %v7528
    %v7532 = vmul.f32 %v7525, %v7517
    %v7533 = vmul.f32 %v7529, %v7505
    %v7534 = vmul.f32 %v7525, %v7518
    %v7535 = vmul.f32 %v7529, %v7506
    %v7536 = vmul.f32 %v7525, %v7519
    %v7537 = vmul.f32 %v7529, %v7507
    %v7538 = vmul.f32 %v7525, %v7520
    %v7539 = vmul.f32 %v7529, %v7508
    %v7540 = vadd.f32 %v7474, %v7532
    %v7541 = vadd.f32 %v7475, %v7533
    %v7542 = vadd.f32 %v7476, %v7534
    %v7543 = vadd.f32 %v7477, %v7535
    %v7544 = vadd.f32 %v7478, %v7536
    %v7545 = vadd.f32 %v7479, %v7537
    %v7546 = vadd.f32 %v7480, %v7538
    %v7547 = vadd.f32 %v7481, %v7539
    %s7548 = scalar_lea.vmem [#allocation5], 183
    %v7549 = vld [vmem:[%s7548] ss:$8 sm:$0x3]
    %7550 = vrot.lane.b32.xlu0 %v7277, 3
    %v7551 = vpop.permute.xlu0 %7550
    %7552 = vrot.lane.b32.xlu0 %v7279, 3
    %v7553 = vpop.permute.xlu0 %7552
    %7554 = vrot.lane.b32.xlu0 %v7281, 3
    %v7555 = vpop.permute.xlu0 %7554
    %7556 = vrot.lane.b32.xlu0 %v7283, 3
    %v7557 = vpop.permute.xlu0 %7556
    %7562 = vrot.lane.b32.xlu0 %v7276, 3
    %v7563 = vpop.permute.xlu0 %7562
    %7564 = vrot.lane.b32.xlu0 %v7278, 3
    %v7565 = vpop.permute.xlu0 %7564
    %7566 = vrot.lane.b32.xlu0 %v7280, 3
    %v7567 = vpop.permute.xlu0 %7566
    %7568 = vrot.lane.b32.xlu0 %v7282, 3
    %v7569 = vpop.permute.xlu0 %7568
    %vm7570 = vcmask 23552
    %v7571 = vsel %vm7570, %v7563, %v7551
    %v7572 = vsel %vm7570, %v7565, %v7553
    %v7573 = vsel %vm7570, %v7567, %v7555
    %v7574 = vsel %vm7570, %v7569, %v7557
    %v7583 = vsel %vm7570, %v7551, %v7563
    %v7584 = vsel %vm7570, %v7553, %v7565
    %v7585 = vsel %vm7570, %v7555, %v7567
    %v7586 = vsel %vm7570, %v7557, %v7569
    %v7588 = vlaneseq
    %v7589 = vshrl.u32 %v7588, 7
    %v7590 = vsub.s32 0, %v7589
    %v7591 = vrot.slane %v7549, %v7590
    %v7592 = vlaneseq
    %v7593 = vshrl.u32 %v7592, 7
    %v7594 = vsub.s32 1, %v7593
    %v7595 = vrot.slane %v7549, %v7594
    %v7598 = vmul.f32 %v7591, %v7583
    %v7599 = vmul.f32 %v7595, %v7571
    %v7600 = vmul.f32 %v7591, %v7584
    %v7601 = vmul.f32 %v7595, %v7572
    %v7602 = vmul.f32 %v7591, %v7585
    %v7603 = vmul.f32 %v7595, %v7573
    %v7604 = vmul.f32 %v7591, %v7586
    %v7605 = vmul.f32 %v7595, %v7574
    %v7606 = vadd.f32 %v7540, %v7598
    %v7607 = vadd.f32 %v7541, %v7599
    %v7608 = vadd.f32 %v7542, %v7600
    %v7609 = vadd.f32 %v7543, %v7601
    %v7610 = vadd.f32 %v7544, %v7602
    %v7611 = vadd.f32 %v7545, %v7603
    %v7612 = vadd.f32 %v7546, %v7604
    %v7613 = vadd.f32 %v7547, %v7605
    %s7614 = scalar_lea.vmem [#allocation5], 192
    %v7615 = vld [vmem:[%s7614] ss:$8 sm:$0x3]
    %7616 = vrot.lane.b32.xlu0 %v7277, 2
    %v7617 = vpop.permute.xlu0 %7616
    %7618 = vrot.lane.b32.xlu0 %v7279, 2
    %v7619 = vpop.permute.xlu0 %7618
    %7620 = vrot.lane.b32.xlu0 %v7281, 2
    %v7621 = vpop.permute.xlu0 %7620
    %7622 = vrot.lane.b32.xlu0 %v7283, 2
    %v7623 = vpop.permute.xlu0 %7622
    %7628 = vrot.lane.b32.xlu0 %v7276, 2
    %v7629 = vpop.permute.xlu0 %7628
    %7630 = vrot.lane.b32.xlu0 %v7278, 2
    %v7631 = vpop.permute.xlu0 %7630
    %7632 = vrot.lane.b32.xlu0 %v7280, 2
    %v7633 = vpop.permute.xlu0 %7632
    %7634 = vrot.lane.b32.xlu0 %v7282, 2
    %v7635 = vpop.permute.xlu0 %7634
    %vm7636 = vcmask 15360
    %v7637 = vsel %vm7636, %v7629, %v7617
    %v7638 = vsel %vm7636, %v7631, %v7619
    %v7639 = vsel %vm7636, %v7633, %v7621
    %v7640 = vsel %vm7636, %v7635, %v7623
    %v7649 = vsel %vm7636, %v7617, %v7629
    %v7650 = vsel %vm7636, %v7619, %v7631
    %v7651 = vsel %vm7636, %v7621, %v7633
    %v7652 = vsel %vm7636, %v7623, %v7635
    %v7654 = vlaneseq
    %v7655 = vshrl.u32 %v7654, 7
    %v7656 = vsub.s32 0, %v7655
    %v7657 = vrot.slane %v7615, %v7656
    %v7658 = vlaneseq
    %v7659 = vshrl.u32 %v7658, 7
    %v7660 = vsub.s32 1, %v7659
    %v7661 = vrot.slane %v7615, %v7660
    %v7664 = vmul.f32 %v7657, %v7649
    %v7665 = vmul.f32 %v7661, %v7637
    %v7666 = vmul.f32 %v7657, %v7650
    %v7667 = vmul.f32 %v7661, %v7638
    %v7668 = vmul.f32 %v7657, %v7651
    %v7669 = vmul.f32 %v7661, %v7639
    %v7670 = vmul.f32 %v7657, %v7652
    %v7671 = vmul.f32 %v7661, %v7640
    %v7672 = vadd.f32 %v7606, %v7664
    %v7673 = vadd.f32 %v7607, %v7665
    %v7674 = vadd.f32 %v7608, %v7666
    %v7675 = vadd.f32 %v7609, %v7667
    %v7676 = vadd.f32 %v7610, %v7668
    %v7677 = vadd.f32 %v7611, %v7669
    %v7678 = vadd.f32 %v7612, %v7670
    %v7679 = vadd.f32 %v7613, %v7671
    %s7680 = scalar_lea.vmem [#allocation5], 193
    %v7681 = vld [vmem:[%s7680] ss:$8 sm:$0x3]
    %7682 = vrot.lane.b32.xlu0 %v7277, 1
    %v7683 = vpop.permute.xlu0 %7682
    %7684 = vrot.lane.b32.xlu0 %v7279, 1
    %v7685 = vpop.permute.xlu0 %7684
    %7686 = vrot.lane.b32.xlu0 %v7281, 1
    %v7687 = vpop.permute.xlu0 %7686
    %7688 = vrot.lane.b32.xlu0 %v7283, 1
    %v7689 = vpop.permute.xlu0 %7688
    %7694 = vrot.lane.b32.xlu0 %v7276, 1
    %v7695 = vpop.permute.xlu0 %7694
    %7696 = vrot.lane.b32.xlu0 %v7278, 1
    %v7697 = vpop.permute.xlu0 %7696
    %7698 = vrot.lane.b32.xlu0 %v7280, 1
    %v7699 = vpop.permute.xlu0 %7698
    %7700 = vrot.lane.b32.xlu0 %v7282, 1
    %v7701 = vpop.permute.xlu0 %7700
    %vm7702 = vcmask 7168
    %v7703 = vsel %vm7702, %v7695, %v7683
    %v7704 = vsel %vm7702, %v7697, %v7685
    %v7705 = vsel %vm7702, %v7699, %v7687
    %v7706 = vsel %vm7702, %v7701, %v7689
    %v7715 = vsel %vm7702, %v7683, %v7695
    %v7716 = vsel %vm7702, %v7685, %v7697
    %v7717 = vsel %vm7702, %v7687, %v7699
    %v7718 = vsel %vm7702, %v7689, %v7701
    %v7720 = vlaneseq
    %v7721 = vshrl.u32 %v7720, 7
    %v7722 = vsub.s32 0, %v7721
    %v7723 = vrot.slane %v7681, %v7722
    %v7724 = vlaneseq
    %v7725 = vshrl.u32 %v7724, 7
    %v7726 = vsub.s32 1, %v7725
    %v7727 = vrot.slane %v7681, %v7726
    %v7730 = vmul.f32 %v7723, %v7715
    %v7731 = vmul.f32 %v7727, %v7703
    %v7732 = vmul.f32 %v7723, %v7716
    %v7733 = vmul.f32 %v7727, %v7704
    %v7734 = vmul.f32 %v7723, %v7717
    %v7735 = vmul.f32 %v7727, %v7705
    %v7736 = vmul.f32 %v7723, %v7718
    %v7737 = vmul.f32 %v7727, %v7706
    %v7738 = vadd.f32 %v7672, %v7730
    %v7739 = vadd.f32 %v7673, %v7731
    %v7740 = vadd.f32 %v7674, %v7732
    %v7741 = vadd.f32 %v7675, %v7733
    %v7742 = vadd.f32 %v7676, %v7734
    %v7743 = vadd.f32 %v7677, %v7735
    %v7744 = vadd.f32 %v7678, %v7736
    %v7745 = vadd.f32 %v7679, %v7737
    %s7746 = scalar_lea.vmem [#allocation5], 194
    %v7747 = vld [vmem:[%s7746] ss:$8 sm:$0x3]
    %v7749 = vlaneseq
    %v7750 = vshrl.u32 %v7749, 7
    %v7751 = vsub.s32 0, %v7750
    %v7752 = vrot.slane %v7747, %v7751
    %v7753 = vlaneseq
    %v7754 = vshrl.u32 %v7753, 7
    %v7755 = vsub.s32 1, %v7754
    %v7756 = vrot.slane %v7747, %v7755
    %v7759 = vmul.f32 %v7752, %v7276
    %v7760 = vmul.f32 %v7756, %v7277
    %v7761 = vmul.f32 %v7752, %v7278
    %v7762 = vmul.f32 %v7756, %v7279
    %v7763 = vmul.f32 %v7752, %v7280
    %v7764 = vmul.f32 %v7756, %v7281
    %v7765 = vmul.f32 %v7752, %v7282
    %v7766 = vmul.f32 %v7756, %v7283
    %v7767 = vadd.f32 %v7738, %v7759
    %v7768 = vadd.f32 %v7739, %v7760
    %v7769 = vadd.f32 %v7740, %v7761
    %v7770 = vadd.f32 %v7741, %v7762
    %v7771 = vadd.f32 %v7742, %v7763
    %v7772 = vadd.f32 %v7743, %v7764
    %v7773 = vadd.f32 %v7744, %v7765
    %v7774 = vadd.f32 %v7745, %v7766
    %s7775 = scalar_lea.vmem [#allocation5], 195
    %v7776 = vld [vmem:[%s7775] ss:$8 sm:$0x3]
    %7777 = vrot.lane.b32.xlu0 %v7276, 127
    %v7778 = vpop.permute.xlu0 %7777
    %7779 = vrot.lane.b32.xlu0 %v7277, 127
    %v7780 = vpop.permute.xlu0 %7779
    %7781 = vrot.lane.b32.xlu0 %v7278, 127
    %v7782 = vpop.permute.xlu0 %7781
    %7783 = vrot.lane.b32.xlu0 %v7279, 127
    %v7784 = vpop.permute.xlu0 %7783
    %7785 = vrot.lane.b32.xlu0 %v7280, 127
    %v7786 = vpop.permute.xlu0 %7785
    %7787 = vrot.lane.b32.xlu0 %v7281, 127
    %v7788 = vpop.permute.xlu0 %7787
    %7789 = vrot.lane.b32.xlu0 %v7282, 127
    %v7790 = vpop.permute.xlu0 %7789
    %7791 = vrot.lane.b32.xlu0 %v7283, 127
    %v7792 = vpop.permute.xlu0 %7791
    %vm7793 = vcmask 1039360
    %v7794 = vsel %vm7793, %v7778, %v7780
    %v7795 = vsel %vm7793, %v7782, %v7784
    %v7796 = vsel %vm7793, %v7786, %v7788
    %v7797 = vsel %vm7793, %v7790, %v7792
    %v7810 = vsel %vm7793, %v7780, %v7778
    %v7811 = vsel %vm7793, %v7784, %v7782
    %v7812 = vsel %vm7793, %v7788, %v7786
    %v7813 = vsel %vm7793, %v7792, %v7790
    %v7815 = vlaneseq
    %v7816 = vshrl.u32 %v7815, 7
    %v7817 = vsub.s32 0, %v7816
    %v7818 = vrot.slane %v7776, %v7817
    %v7819 = vlaneseq
    %v7820 = vshrl.u32 %v7819, 7
    %v7821 = vsub.s32 1, %v7820
    %v7822 = vrot.slane %v7776, %v7821
    %v7825 = vmul.f32 %v7818, %v7794
    %v7826 = vmul.f32 %v7822, %v7810
    %v7827 = vmul.f32 %v7818, %v7795
    %v7828 = vmul.f32 %v7822, %v7811
    %v7829 = vmul.f32 %v7818, %v7796
    %v7830 = vmul.f32 %v7822, %v7812
    %v7831 = vmul.f32 %v7818, %v7797
    %v7832 = vmul.f32 %v7822, %v7813
    %v7833 = vadd.f32 %v7767, %v7825
    %v7834 = vadd.f32 %v7768, %v7826
    %v7835 = vadd.f32 %v7769, %v7827
    %v7836 = vadd.f32 %v7770, %v7828
    %v7837 = vadd.f32 %v7771, %v7829
    %v7838 = vadd.f32 %v7772, %v7830
    %v7839 = vadd.f32 %v7773, %v7831
    %v7840 = vadd.f32 %v7774, %v7832
    %s7841 = scalar_lea.vmem [#allocation5], 196
    %v7842 = vld [vmem:[%s7841] ss:$8 sm:$0x3]
    %7843 = vrot.lane.b32.xlu0 %v7276, 126
    %v7844 = vpop.permute.xlu0 %7843
    %7845 = vrot.lane.b32.xlu0 %v7277, 126
    %v7846 = vpop.permute.xlu0 %7845
    %7847 = vrot.lane.b32.xlu0 %v7278, 126
    %v7848 = vpop.permute.xlu0 %7847
    %7849 = vrot.lane.b32.xlu0 %v7279, 126
    %v7850 = vpop.permute.xlu0 %7849
    %7851 = vrot.lane.b32.xlu0 %v7280, 126
    %v7852 = vpop.permute.xlu0 %7851
    %7853 = vrot.lane.b32.xlu0 %v7281, 126
    %v7854 = vpop.permute.xlu0 %7853
    %7855 = vrot.lane.b32.xlu0 %v7282, 126
    %v7856 = vpop.permute.xlu0 %7855
    %7857 = vrot.lane.b32.xlu0 %v7283, 126
    %v7858 = vpop.permute.xlu0 %7857
    %vm7859 = vcmask 1031168
    %v7860 = vsel %vm7859, %v7844, %v7846
    %v7861 = vsel %vm7859, %v7848, %v7850
    %v7862 = vsel %vm7859, %v7852, %v7854
    %v7863 = vsel %vm7859, %v7856, %v7858
    %v7876 = vsel %vm7859, %v7846, %v7844
    %v7877 = vsel %vm7859, %v7850, %v7848
    %v7878 = vsel %vm7859, %v7854, %v7852
    %v7879 = vsel %vm7859, %v7858, %v7856
    %v7881 = vlaneseq
    %v7882 = vshrl.u32 %v7881, 7
    %v7883 = vsub.s32 0, %v7882
    %v7884 = vrot.slane %v7842, %v7883
    %v7885 = vlaneseq
    %v7886 = vshrl.u32 %v7885, 7
    %v7887 = vsub.s32 1, %v7886
    %v7888 = vrot.slane %v7842, %v7887
    %v7891 = vmul.f32 %v7884, %v7860
    %v7892 = vmul.f32 %v7888, %v7876
    %v7893 = vmul.f32 %v7884, %v7861
    %v7894 = vmul.f32 %v7888, %v7877
    %v7895 = vmul.f32 %v7884, %v7862
    %v7896 = vmul.f32 %v7888, %v7878
    %v7897 = vmul.f32 %v7884, %v7863
    %v7898 = vmul.f32 %v7888, %v7879
    %v7899 = vadd.f32 %v7833, %v7891
    %v7900 = vadd.f32 %v7834, %v7892
    %v7901 = vadd.f32 %v7835, %v7893
    %v7902 = vadd.f32 %v7836, %v7894
    %v7903 = vadd.f32 %v7837, %v7895
    %v7904 = vadd.f32 %v7838, %v7896
    %v7905 = vadd.f32 %v7839, %v7897
    %v7906 = vadd.f32 %v7840, %v7898
    %s7907 = scalar_lea.vmem [#allocation5], 197
    %v7908 = vld [vmem:[%s7907] ss:$8 sm:$0x3]
    %7909 = vrot.lane.b32.xlu0 %v7276, 125
    %v7910 = vpop.permute.xlu0 %7909
    %7911 = vrot.lane.b32.xlu0 %v7277, 125
    %v7912 = vpop.permute.xlu0 %7911
    %7913 = vrot.lane.b32.xlu0 %v7278, 125
    %v7914 = vpop.permute.xlu0 %7913
    %7915 = vrot.lane.b32.xlu0 %v7279, 125
    %v7916 = vpop.permute.xlu0 %7915
    %7917 = vrot.lane.b32.xlu0 %v7280, 125
    %v7918 = vpop.permute.xlu0 %7917
    %7919 = vrot.lane.b32.xlu0 %v7281, 125
    %v7920 = vpop.permute.xlu0 %7919
    %7921 = vrot.lane.b32.xlu0 %v7282, 125
    %v7922 = vpop.permute.xlu0 %7921
    %7923 = vrot.lane.b32.xlu0 %v7283, 125
    %v7924 = vpop.permute.xlu0 %7923
    %vm7925 = vcmask 1022976
    %v7926 = vsel %vm7925, %v7910, %v7912
    %v7927 = vsel %vm7925, %v7914, %v7916
    %v7928 = vsel %vm7925, %v7918, %v7920
    %v7929 = vsel %vm7925, %v7922, %v7924
    %v7942 = vsel %vm7925, %v7912, %v7910
    %v7943 = vsel %vm7925, %v7916, %v7914
    %v7944 = vsel %vm7925, %v7920, %v7918
    %v7945 = vsel %vm7925, %v7924, %v7922
    %v7947 = vlaneseq
    %v7948 = vshrl.u32 %v7947, 7
    %v7949 = vsub.s32 0, %v7948
    %v7950 = vrot.slane %v7908, %v7949
    %v7951 = vlaneseq
    %v7952 = vshrl.u32 %v7951, 7
    %v7953 = vsub.s32 1, %v7952
    %v7954 = vrot.slane %v7908, %v7953
    %v7957 = vmul.f32 %v7950, %v7926
    %v7958 = vmul.f32 %v7954, %v7942
    %v7959 = vmul.f32 %v7950, %v7927
    %v7960 = vmul.f32 %v7954, %v7943
    %v7961 = vmul.f32 %v7950, %v7928
    %v7962 = vmul.f32 %v7954, %v7944
    %v7963 = vmul.f32 %v7950, %v7929
    %v7964 = vmul.f32 %v7954, %v7945
    %v7965 = vadd.f32 %v7899, %v7957
    %v7966 = vadd.f32 %v7900, %v7958
    %v7967 = vadd.f32 %v7901, %v7959
    %v7968 = vadd.f32 %v7902, %v7960
    %v7969 = vadd.f32 %v7903, %v7961
    %v7970 = vadd.f32 %v7904, %v7962
    %v7971 = vadd.f32 %v7905, %v7963
    %v7972 = vadd.f32 %v7906, %v7964
    %s7973 = scalar_lea.vmem [#allocation5], 198
    %v7974 = vld [vmem:[%s7973] ss:$8 sm:$0x3]
    %7975 = vrot.lane.b32.xlu0 %v7276, 124
    %v7976 = vpop.permute.xlu0 %7975
    %7977 = vrot.lane.b32.xlu0 %v7277, 124
    %v7978 = vpop.permute.xlu0 %7977
    %7979 = vrot.lane.b32.xlu0 %v7278, 124
    %v7980 = vpop.permute.xlu0 %7979
    %7981 = vrot.lane.b32.xlu0 %v7279, 124
    %v7982 = vpop.permute.xlu0 %7981
    %7983 = vrot.lane.b32.xlu0 %v7280, 124
    %v7984 = vpop.permute.xlu0 %7983
    %7985 = vrot.lane.b32.xlu0 %v7281, 124
    %v7986 = vpop.permute.xlu0 %7985
    %7987 = vrot.lane.b32.xlu0 %v7282, 124
    %v7988 = vpop.permute.xlu0 %7987
    %7989 = vrot.lane.b32.xlu0 %v7283, 124
    %v7990 = vpop.permute.xlu0 %7989
    %vm7991 = vcmask 1014784
    %v7992 = vsel %vm7991, %v7976, %v7978
    %v7993 = vsel %vm7991, %v7980, %v7982
    %v7994 = vsel %vm7991, %v7984, %v7986
    %v7995 = vsel %vm7991, %v7988, %v7990
    %v8008 = vsel %vm7991, %v7978, %v7976
    %v8009 = vsel %vm7991, %v7982, %v7980
    %v8010 = vsel %vm7991, %v7986, %v7984
    %v8011 = vsel %vm7991, %v7990, %v7988
    %v8013 = vlaneseq
    %v8014 = vshrl.u32 %v8013, 7
    %v8015 = vsub.s32 0, %v8014
    %v8016 = vrot.slane %v7974, %v8015
    %v8017 = vlaneseq
    %v8018 = vshrl.u32 %v8017, 7
    %v8019 = vsub.s32 1, %v8018
    %v8020 = vrot.slane %v7974, %v8019
    %v8023 = vmul.f32 %v8016, %v7992
    %v8024 = vmul.f32 %v8020, %v8008
    %v8025 = vmul.f32 %v8016, %v7993
    %v8026 = vmul.f32 %v8020, %v8009
    %v8027 = vmul.f32 %v8016, %v7994
    %v8028 = vmul.f32 %v8020, %v8010
    %v8029 = vmul.f32 %v8016, %v7995
    %v8030 = vmul.f32 %v8020, %v8011
    %v8031 = vadd.f32 %v7965, %v8023
    %v8032 = vadd.f32 %v7966, %v8024
    %v8033 = vadd.f32 %v7967, %v8025
    %v8034 = vadd.f32 %v7968, %v8026
    %v8035 = vadd.f32 %v7969, %v8027
    %v8036 = vadd.f32 %v7970, %v8028
    %v8037 = vadd.f32 %v7971, %v8029
    %v8038 = vadd.f32 %v7972, %v8030
    %s8039 = scalar_lea.vmem [#allocation5], 199
    %v8040 = vld [vmem:[%s8039] ss:$8 sm:$0x3]
    %8041 = vrot.lane.b32.xlu0 %v7276, 123
    %v8042 = vpop.permute.xlu0 %8041
    %8043 = vrot.lane.b32.xlu0 %v7277, 123
    %v8044 = vpop.permute.xlu0 %8043
    %8045 = vrot.lane.b32.xlu0 %v7278, 123
    %v8046 = vpop.permute.xlu0 %8045
    %8047 = vrot.lane.b32.xlu0 %v7279, 123
    %v8048 = vpop.permute.xlu0 %8047
    %8049 = vrot.lane.b32.xlu0 %v7280, 123
    %v8050 = vpop.permute.xlu0 %8049
    %8051 = vrot.lane.b32.xlu0 %v7281, 123
    %v8052 = vpop.permute.xlu0 %8051
    %8053 = vrot.lane.b32.xlu0 %v7282, 123
    %v8054 = vpop.permute.xlu0 %8053
    %8055 = vrot.lane.b32.xlu0 %v7283, 123
    %v8056 = vpop.permute.xlu0 %8055
    %vm8057 = vcmask 1006592
    %v8058 = vsel %vm8057, %v8042, %v8044
    %v8059 = vsel %vm8057, %v8046, %v8048
    %v8060 = vsel %vm8057, %v8050, %v8052
    %v8061 = vsel %vm8057, %v8054, %v8056
    %v8074 = vsel %vm8057, %v8044, %v8042
    %v8075 = vsel %vm8057, %v8048, %v8046
    %v8076 = vsel %vm8057, %v8052, %v8050
    %v8077 = vsel %vm8057, %v8056, %v8054
    %v8079 = vlaneseq
    %v8080 = vshrl.u32 %v8079, 7
    %v8081 = vsub.s32 0, %v8080
    %v8082 = vrot.slane %v8040, %v8081
    %v8083 = vlaneseq
    %v8084 = vshrl.u32 %v8083, 7
    %v8085 = vsub.s32 1, %v8084
    %v8086 = vrot.slane %v8040, %v8085
    %v8089 = vmul.f32 %v8082, %v8058
    %v8090 = vmul.f32 %v8086, %v8074
    %v8091 = vmul.f32 %v8082, %v8059
    %v8092 = vmul.f32 %v8086, %v8075
    %v8093 = vmul.f32 %v8082, %v8060
    %v8094 = vmul.f32 %v8086, %v8076
    %v8095 = vmul.f32 %v8082, %v8061
    %v8096 = vmul.f32 %v8086, %v8077
    %v8097 = vadd.f32 %v8031, %v8089
    %v8098 = vadd.f32 %v8032, %v8090
    %v8099 = vadd.f32 %v8033, %v8091
    %v8100 = vadd.f32 %v8034, %v8092
    %v8101 = vadd.f32 %v8035, %v8093
    %v8102 = vadd.f32 %v8036, %v8094
    %v8103 = vadd.f32 %v8037, %v8095
    %v8104 = vadd.f32 %v8038, %v8096
    %s8105 = scalar_lea.vmem [#allocation5], 208
    %v8106 = vld [vmem:[%s8105] ss:$8 sm:$0x3]
    %8107 = vrot.lane.b32.xlu0 %v7276, 122
    %v8108 = vpop.permute.xlu0 %8107
    %8109 = vrot.lane.b32.xlu0 %v7277, 122
    %v8110 = vpop.permute.xlu0 %8109
    %8111 = vrot.lane.b32.xlu0 %v7278, 122
    %v8112 = vpop.permute.xlu0 %8111
    %8113 = vrot.lane.b32.xlu0 %v7279, 122
    %v8114 = vpop.permute.xlu0 %8113
    %8115 = vrot.lane.b32.xlu0 %v7280, 122
    %v8116 = vpop.permute.xlu0 %8115
    %8117 = vrot.lane.b32.xlu0 %v7281, 122
    %v8118 = vpop.permute.xlu0 %8117
    %8119 = vrot.lane.b32.xlu0 %v7282, 122
    %v8120 = vpop.permute.xlu0 %8119
    %8121 = vrot.lane.b32.xlu0 %v7283, 122
    %v8122 = vpop.permute.xlu0 %8121
    %vm8123 = vcmask 998400
    %v8124 = vsel %vm8123, %v8108, %v8110
    %v8125 = vsel %vm8123, %v8112, %v8114
    %v8126 = vsel %vm8123, %v8116, %v8118
    %v8127 = vsel %vm8123, %v8120, %v8122
    %v8140 = vsel %vm8123, %v8110, %v8108
    %v8141 = vsel %vm8123, %v8114, %v8112
    %v8142 = vsel %vm8123, %v8118, %v8116
    %v8143 = vsel %vm8123, %v8122, %v8120
    %v8145 = vlaneseq
    %v8146 = vshrl.u32 %v8145, 7
    %v8147 = vsub.s32 0, %v8146
    %v8148 = vrot.slane %v8106, %v8147
    %v8149 = vlaneseq
    %v8150 = vshrl.u32 %v8149, 7
    %v8151 = vsub.s32 1, %v8150
    %v8152 = vrot.slane %v8106, %v8151
    %v8155 = vmul.f32 %v8148, %v8124
    %v8156 = vmul.f32 %v8152, %v8140
    %v8157 = vmul.f32 %v8148, %v8125
    %v8158 = vmul.f32 %v8152, %v8141
    %v8159 = vmul.f32 %v8148, %v8126
    %v8160 = vmul.f32 %v8152, %v8142
    %v8161 = vmul.f32 %v8148, %v8127
    %v8162 = vmul.f32 %v8152, %v8143
    %v8163 = vadd.f32 %v8097, %v8155
    %v8164 = vadd.f32 %v8098, %v8156
    %v8165 = vadd.f32 %v8099, %v8157
    %v8166 = vadd.f32 %v8100, %v8158
    %v8167 = vadd.f32 %v8101, %v8159
    %v8168 = vadd.f32 %v8102, %v8160
    %v8169 = vadd.f32 %v8103, %v8161
    %v8170 = vadd.f32 %v8104, %v8162
    %s8171 = scalar_lea.vmem [#allocation5], 209
    %v8172 = vld [vmem:[%s8171] ss:$8 sm:$0x3]
    %8173 = vrot.lane.b32.xlu0 %v7276, 121
    %v8174 = vpop.permute.xlu0 %8173
    %8175 = vrot.lane.b32.xlu0 %v7277, 121
    %v8176 = vpop.permute.xlu0 %8175
    %8177 = vrot.lane.b32.xlu0 %v7278, 121
    %v8178 = vpop.permute.xlu0 %8177
    %8179 = vrot.lane.b32.xlu0 %v7279, 121
    %v8180 = vpop.permute.xlu0 %8179
    %8181 = vrot.lane.b32.xlu0 %v7280, 121
    %v8182 = vpop.permute.xlu0 %8181
    %8183 = vrot.lane.b32.xlu0 %v7281, 121
    %v8184 = vpop.permute.xlu0 %8183
    %8185 = vrot.lane.b32.xlu0 %v7282, 121
    %v8186 = vpop.permute.xlu0 %8185
    %8187 = vrot.lane.b32.xlu0 %v7283, 121
    %v8188 = vpop.permute.xlu0 %8187
    %vm8189 = vcmask 990208
    %v8190 = vsel %vm8189, %v8174, %v8176
    %v8191 = vsel %vm8189, %v8178, %v8180
    %v8192 = vsel %vm8189, %v8182, %v8184
    %v8193 = vsel %vm8189, %v8186, %v8188
    %v8206 = vsel %vm8189, %v8176, %v8174
    %v8207 = vsel %vm8189, %v8180, %v8178
    %v8208 = vsel %vm8189, %v8184, %v8182
    %v8209 = vsel %vm8189, %v8188, %v8186
    %v8211 = vlaneseq
    %v8212 = vshrl.u32 %v8211, 7
    %v8213 = vsub.s32 0, %v8212
    %v8214 = vrot.slane %v8172, %v8213
    %v8215 = vlaneseq
    %v8216 = vshrl.u32 %v8215, 7
    %v8217 = vsub.s32 1, %v8216
    %v8218 = vrot.slane %v8172, %v8217
    %v8221 = vmul.f32 %v8214, %v8190
    %v8222 = vmul.f32 %v8218, %v8206
    %v8223 = vmul.f32 %v8214, %v8191
    %v8224 = vmul.f32 %v8218, %v8207
    %v8225 = vmul.f32 %v8214, %v8192
    %v8226 = vmul.f32 %v8218, %v8208
    %v8227 = vmul.f32 %v8214, %v8193
    %v8228 = vmul.f32 %v8218, %v8209
    %v8229 = vadd.f32 %v8163, %v8221
    %v8230 = vadd.f32 %v8164, %v8222
    %v8231 = vadd.f32 %v8165, %v8223
    %v8232 = vadd.f32 %v8166, %v8224
    %v8233 = vadd.f32 %v8167, %v8225
    %v8234 = vadd.f32 %v8168, %v8226
    %v8235 = vadd.f32 %v8169, %v8227
    %v8236 = vadd.f32 %v8170, %v8228
    %s8237 = scalar_lea.vmem [#allocation7], 7
    %v8238 = vld [vmem:[%s8237] ss:$8 sm:$0x3]
    %v8240 = vlaneseq
    %v8241 = vshrl.u32 %v8240, 7
    %v8242 = vsub.s32 0, %v8241
    %v8243 = vrot.slane %v8238, %v8242
    %v8244 = vlaneseq
    %v8245 = vshrl.u32 %v8244, 7
    %v8246 = vsub.s32 1, %v8245
    %v8247 = vrot.slane %v8238, %v8246
    %v8250 = vadd.f32 %v8229, %v8243
    %v8251 = vadd.f32 %v8230, %v8247
    %v8252 = vadd.f32 %v8231, %v8243
    %v8253 = vadd.f32 %v8232, %v8247
    %v8254 = vadd.f32 %v8233, %v8243
    %v8255 = vadd.f32 %v8234, %v8247
    %v8256 = vadd.f32 %v8235, %v8243
    %v8257 = vadd.f32 %v8236, %v8247
    %v8258 = vmul.f32 %v8250, %v73
    %v8259 = vmul.f32 %v8251, %v74
    %v8260 = vmul.f32 %v8252, %v75
    %v8261 = vmul.f32 %v8253, %v76
    %v8262 = vmul.f32 %v8254, %v81
    %v8263 = vmul.f32 %v8255, %v82
    %v8264 = vmul.f32 %v8256, %v83
    %v8265 = vmul.f32 %v8257, %v84
    %8270 = vrot.lane.b32.xlu0 %v8258, 64
    %v8271 = vpop.permute.xlu0 %8270
    %8272 = vrot.lane.b32.xlu0 %v8259, 64
    %v8273 = vpop.permute.xlu0 %8272
    %8274 = vrot.lane.b32.xlu0 %v8260, 64
    %v8275 = vpop.permute.xlu0 %8274
    %8276 = vrot.lane.b32.xlu0 %v8261, 64
    %v8277 = vpop.permute.xlu0 %8276
    %vm8278 = vcmask 523264
    %v8279 = vsel %vm8278, %v8271, %v8273
    %v8280 = vsel %vm8278, %v8275, %v8277
    %8283 = vst [vmem:[#allocation10] sm:$0xff] %v8279
    %8284 = vst [vmem:[#allocation10 + $0x8] sm:$0xff] %v8280
    %8289 = vrot.lane.b32.xlu0 %v8262, 64
    %v8290 = vpop.permute.xlu0 %8289
    %8291 = vrot.lane.b32.xlu0 %v8263, 64
    %v8292 = vpop.permute.xlu0 %8291
    %8293 = vrot.lane.b32.xlu0 %v8264, 64
    %v8294 = vpop.permute.xlu0 %8293
    %8295 = vrot.lane.b32.xlu0 %v8265, 64
    %v8296 = vpop.permute.xlu0 %8295
    %v8297 = vsel %vm8278, %v8290, %v8292
    %v8298 = vsel %vm8278, %v8294, %v8296
    %8301 = vst [vmem:[#allocation10 + $0x10] sm:$0xff] %v8297
    %8302 = vst [vmem:[#allocation10 + $0x18] sm:$0xff] %v8298
    // Predicated region
    $region34: #{tpu_custom_call.1} parent=1 // pred_check
      _
    $region35: #{tpu_custom_call.1} parent=1 // pred_check_branch
      %8304 = sbr.rel (0) target = $region37
    $region36: #{tpu_custom_call.1} parent=1 // pred_region
      %s8306 = ssub.s32 512, 512
      %8307 = vsyncadd [#allocation4], %s8306
      %s8308 = sshll.u32 [#allocation10], 4
      %s8309 = int_to_ptr.vmem [resolvable:$true] %s8308
      %8314 = dma.vmem_to_hbm [thread:$0]  %s8309, 512, %s4, [#allocation4], 128, 128, 8
    $region37: #{tpu_custom_call.1} parent=1 // pred_fallthru
      _
    // Predicated region
    $region38: #{tpu_custom_call.1} parent=1 // pred_check
      _
    $region39: #{tpu_custom_call.1} parent=1 // pred_check_branch
      %8316 = sbr.rel (0) target = $region41
    $region40: #{tpu_custom_call.1} parent=1 // pred_region
      %8317 = dma.done [#allocation4], 512
    $region41: #{tpu_custom_call.1} parent=1 // pred_fallthru
      _
    %8318 = vsyncpa [#allocation3], 1
    %8319 = vsyncpa [#allocation6], 1
    %8320 = vsyncpa [#allocation9], 1
    %8321 = vsyncpa [#allocation4], 1

</llo_original>
